<compile_context>
chip_gen: v6e
topology: v6e:2x2x1
jax: 0.10.0
libtpu: 0.0.40
codegen_flags: <defaults>
</compile_context>

<pallas_src>
import jax
import jax.numpy as jnp
from jax import lax
from jax.experimental import pallas as pl
from jax.experimental.pallas import tpu as pltpu

D = 28 * 28          # 784 pixels
TK = 128             # pixel tile (lane / MXU aligned)
D_PAD = 7 * TK       # 896 = D padded up to a multiple of TK


def nade_kernel(xt_ref, wt_ref, v_ref, b_ref, out_ref):
    # xt_ref : (D_PAD, B)  x^T, zero padded          (VMEM, whole array)
    # wt_ref : (D_PAD, H)  W^T, zero padded
    # v_ref  : (D_PAD, H)  V,   zero padded
    # b_ref  : (1, H)      bias
    # out_ref: (B, D_PAD)  logits (lane-dense along pixels)
    B = xt_ref.shape[1]
    H = wt_ref.shape[1]
    n_blk = xt_ref.shape[0] // TK

    # Strictly-lower-triangular 0/1 mask for the within-block *exclusive* prefix.
    # Built once (loop-invariant); 0/1 is exactly representable in bf16.
    t_idx = lax.broadcasted_iota(jnp.int32, (TK, TK), 0)
    j_idx = lax.broadcasted_iota(jnp.int32, (TK, TK), 1)
    L = (j_idx < t_idx).astype(jnp.bfloat16)                     # (TK, TK)

    # Running carry: carry[0, b*H + h] = bias_h + sum_{k' < k0} W[h, k'] * x[b, k'].
    # Bias is folded into the carry initialisation; kept exact f32 the whole time.
    bias = b_ref[...]                                            # (1, H) f32
    carry = jnp.concatenate([bias] * B, axis=1)                  # (1, B*H) f32

    for kblk in range(n_blk):                                    # fully unrolled (7 steps)
        k0 = kblk * TK
        xT = xt_ref[k0:k0 + TK, :]                               # (TK, B)  f32
        wt = wt_ref[k0:k0 + TK, :]                               # (TK, H)  f32
        v = v_ref[k0:k0 + TK, :]                                 # (TK, H)  f32

        # outer[t, b*H + h] = x[b, k0+t] * W[h, k0+t]   (batch folded onto lanes)
        outer = jnp.concatenate(
            [xT[:, b:b + 1] * wt for b in range(B)], axis=1)     # (TK, B*H) f32

        # Within-block exclusive prefix on the MXU:
        #   prefix[t, :] = sum_{j < t} outer[j, :]
        # hi/lo bf16 split of the f32 operand -> two single-pass bf16 matmuls with
        # f32 accumulation (L is exact in bf16).
        hi = outer.astype(jnp.bfloat16)
        lo = (outer - hi.astype(jnp.float32)).astype(jnp.bfloat16)
        prefix = (jnp.dot(L, hi, preferred_element_type=jnp.float32)
                  + jnp.dot(L, lo, preferred_element_type=jnp.float32))  # (TK, B*H)

        h_act = jax.nn.sigmoid(prefix + carry)                   # (TK, B*H)  EUP + VPU

        # logits[t, b] = sum_h h_act[t, b*H + h] * V[k0 + t, h]  (VPU mul + XLU lane reduce)
        logit_tb = jnp.concatenate(
            [jnp.sum(h_act[:, b * H:(b + 1) * H] * v, axis=1, keepdims=True)
             for b in range(B)], axis=1)                         # (TK, B)
        logit_bt = logit_tb.T                                    # (B, TK) lane-dense

        if k0 + TK > D - 1:   # only the last block contains pixels k >= 783
            kg = k0 + lax.broadcasted_iota(jnp.int32, (B, TK), 1)
            logit_bt = jnp.where(kg < D - 1, logit_bt, 0.0)

        out_ref[:, k0:k0 + TK] = logit_bt                        # one dense store / block

        # Carry update with this block's full contribution (exact f32 sublane reduce).
        carry = carry + jnp.sum(outer, axis=0, keepdims=True)    # (1, B*H)


@jax.jit
def nade_forward(x, W, b, V):
    """x: (B, 783) float32 (what PyTorch's get_loss feeds to forward) -> (B, 784) logits."""
    Bsz = x.shape[0]
    H = W.shape[0]

    # NOTE: parameter padding/transpose is re-done per call here for self-containment;
    # if W/V are reused across calls, precompute wt_pad / v_pad once and cache them.
    xt_pad = jnp.zeros((D_PAD, Bsz), jnp.float32).at[:x.shape[1], :].set(x.T)
    wt_pad = jnp.zeros((D_PAD, H), jnp.float32).at[:D, :].set(W.T)
    v_pad = jnp.zeros((D_PAD, H), jnp.float32).at[:D, :].set(V)
    bias2 = b.reshape(1, H).astype(jnp.float32)

    out = pl.pallas_call(
        nade_kernel,
        out_shape=jax.ShapeDtypeStruct((Bsz, D_PAD), jnp.float32),
        in_specs=[pl.BlockSpec(memory_space=pltpu.MemorySpace.VMEM)] * 4,
        out_specs=pl.BlockSpec(memory_space=pltpu.MemorySpace.VMEM),
    )(xt_pad, wt_pad, v_pad, bias2)
    return out[:, :D]


def nade_ref(x, W, b, V):
    """Pure-JAX reference of the PyTorch forward."""
    Bsz, Dm1 = x.shape                                   # Dm1 = 783
    xT = x.T                                             # (783, B)
    contrib = W[:, :Dm1, None] * xT[None, :, :]          # (H, 783, B)
    cum_incl = jnp.cumsum(contrib, axis=1)
    cum_excl = jnp.concatenate(
        [jnp.zeros((W.shape[0], 1, Bsz), jnp.float32), cum_incl[:, :-1, :]], axis=1)
    h = jax.nn.sigmoid(cum_excl + b[:, None, None])      # (H, 783, B)
    logits = jnp.einsum('kh,hkb->kb', V[:Dm1], h)        # (783, B)
    logits = jnp.concatenate([logits, jnp.zeros((1, Bsz), jnp.float32)], axis=0)
    return logits.T                                      # (B, 784)


if __name__ == "__main__":
    HIDDEN = 64   # small hidden_dim (module default is 256; shapes otherwise identical)
    BATCH = 4

    key = jax.random.PRNGKey(0)
    kW, kV, kx = jax.random.split(key, 3)

    # Parameters (shapes from NADE.__init__): W (H, 784), b (H,), V (784, H), c (784,)
    W = jax.random.normal(kW, (HIDDEN, D), jnp.float32)          # torch.randn
    b = jnp.zeros((HIDDEN,), jnp.float32)                        # torch.zeros
    V = jax.random.normal(kV, (D, HIDDEN), jnp.float32)          # torch.randn
    c = jnp.zeros((D,), jnp.float32)                             # defined but unused in forward

    # forward input: (batch, 783), as produced by get_loss's x[:, :-1]
    x = jax.random.uniform(kx, (BATCH, D - 1), jnp.float32)

    out = jax.block_until_ready(nade_forward(x, W, b, V))
    assert out.shape == (BATCH, D)

    ref = nade_ref(x, W, b, V)
    if not bool(jnp.allclose(out, ref, atol=1e-2, rtol=1e-2)):
        max_err = float(jnp.max(jnp.abs(out - ref)))
        raise AssertionError(f"kernel/reference mismatch, max abs err = {max_err}")

    print("KERNEL_OK")
</pallas_src>

<mosaic_0001>
module attributes {stable_mosaic.version = 11 : i64} {
  func.func @nade_kernel(%arg0: memref<896x4xf32, #tpu.memory_space<vmem>>, %arg1: memref<896x64xf32, #tpu.memory_space<vmem>>, %arg2: memref<896x64xf32, #tpu.memory_space<vmem>>, %arg3: memref<1x64xf32, #tpu.memory_space<vmem>>, %arg4: memref<4x896xf32, #tpu.memory_space<vmem>>) attributes {dimension_semantics = [], scalar_prefetch = 0 : i64, scratch_operands = 0 : i64, tpu.core_type = #tpu.core_type<tc>} {
    %0 = tpu.iota {dimensions = array<i32: 0>} : vector<128x128xi32>
    %1 = tpu.iota {dimensions = array<i32: 1>} : vector<128x128xi32>
    %2 = arith.cmpi slt, %1, %0 : vector<128x128xi32>
    %3 = arith.extui %2 : vector<128x128xi1> to vector<128x128xi32>
    %4 = arith.sitofp %3 : vector<128x128xi32> to vector<128x128xf32>
    %5 = arith.truncf %4 : vector<128x128xf32> to vector<128x128xbf16>
    %c0 = arith.constant 0 : index
    %c0_0 = arith.constant 0 : index
    %6 = vector.load %arg3[%c0, %c0_0] : memref<1x64xf32, #tpu.memory_space<vmem>>, vector<1x64xf32>
    %7 = tpu.concatenate %6, %6, %6, %6 in 1 : vector<1x64xf32>, vector<1x64xf32>, vector<1x64xf32>, vector<1x64xf32> -> vector<1x256xf32>
    %c0_1 = arith.constant 0 : index
    %c0_2 = arith.constant 0 : index
    %8 = vector.load %arg0[%c0_1, %c0_2] : memref<896x4xf32, #tpu.memory_space<vmem>>, vector<128x4xf32>
    %c0_3 = arith.constant 0 : index
    %c0_4 = arith.constant 0 : index
    %9 = vector.load %arg1[%c0_3, %c0_4] : memref<896x64xf32, #tpu.memory_space<vmem>>, vector<128x64xf32>
    %c0_5 = arith.constant 0 : index
    %c0_6 = arith.constant 0 : index
    %10 = vector.load %arg2[%c0_5, %c0_6] : memref<896x64xf32, #tpu.memory_space<vmem>>, vector<128x64xf32>
    %11 = vector.extract_strided_slice %8 {offsets = [0, 0], sizes = [128, 1], strides = [1, 1]} : vector<128x4xf32> to vector<128x1xf32>
    %12 = vector.broadcast %11 : vector<128x1xf32> to vector<128x64xf32>
    %13 = arith.mulf %12, %9 : vector<128x64xf32>
    %14 = vector.extract_strided_slice %8 {offsets = [0, 1], sizes = [128, 1], strides = [1, 1]} : vector<128x4xf32> to vector<128x1xf32>
    %15 = vector.broadcast %14 : vector<128x1xf32> to vector<128x64xf32>
    %16 = arith.mulf %15, %9 : vector<128x64xf32>
    %17 = vector.extract_strided_slice %8 {offsets = [0, 2], sizes = [128, 1], strides = [1, 1]} : vector<128x4xf32> to vector<128x1xf32>
    %18 = vector.broadcast %17 : vector<128x1xf32> to vector<128x64xf32>
    %19 = arith.mulf %18, %9 : vector<128x64xf32>
    %20 = vector.extract_strided_slice %8 {offsets = [0, 3], sizes = [128, 1], strides = [1, 1]} : vector<128x4xf32> to vector<128x1xf32>
    %21 = vector.broadcast %20 : vector<128x1xf32> to vector<128x64xf32>
    %22 = arith.mulf %21, %9 : vector<128x64xf32>
    %23 = tpu.concatenate %13, %16, %19, %22 in 1 : vector<128x64xf32>, vector<128x64xf32>, vector<128x64xf32>, vector<128x64xf32> -> vector<128x256xf32>
    %24 = arith.truncf %23 : vector<128x256xf32> to vector<128x256xbf16>
    %25 = arith.extf %24 : vector<128x256xbf16> to vector<128x256xf32>
    %26 = arith.subf %23, %25 : vector<128x256xf32>
    %27 = arith.truncf %26 : vector<128x256xf32> to vector<128x256xbf16>
    %cst = arith.constant dense<0.000000e+00> : vector<128x256xf32>
    %28 = tpu.matmul %5, %24, %cst {dimension_numbers = #tpu.dot_dimension_numbers<[1], [0], [0], [1], [0, 0, 1, 1], [], []>} : vector<128x128xbf16>, vector<128x256xbf16>, vector<128x256xf32> -> vector<128x256xf32>
    %cst_7 = arith.constant dense<0.000000e+00> : vector<128x256xf32>
    %29 = tpu.matmul %5, %27, %cst_7 {dimension_numbers = #tpu.dot_dimension_numbers<[1], [0], [0], [1], [0, 0, 1, 1], [], []>} : vector<128x128xbf16>, vector<128x256xbf16>, vector<128x256xf32> -> vector<128x256xf32>
    %30 = arith.addf %28, %29 : vector<128x256xf32>
    %31 = vector.broadcast %7 : vector<1x256xf32> to vector<128x256xf32>
    %32 = arith.addf %30, %31 : vector<128x256xf32>
    %33 = arith.negf %32 : vector<128x256xf32>
    %34 = math.exp %33 : vector<128x256xf32>
    %cst_8 = arith.constant 1.000000e+00 : f32
    %35 = vector.broadcast %cst_8 : f32 to vector<128x256xf32>
    %36 = arith.addf %35, %34 : vector<128x256xf32>
    %37 = arith.divf %35, %36 : vector<128x256xf32>
    %38 = vector.extract_strided_slice %37 {offsets = [0, 0], sizes = [128, 64], strides = [1, 1]} : vector<128x256xf32> to vector<128x64xf32>
    %39 = arith.mulf %38, %10 : vector<128x64xf32>
    %cst_9 = arith.constant dense<0.000000e+00> : vector<128xf32>
    %40 = vector.multi_reduction <add>, %39, %cst_9 [1] : vector<128x64xf32> to vector<128xf32>
    %41 = vector.shape_cast %40 : vector<128xf32> to vector<128x1xf32>
    %42 = vector.extract_strided_slice %37 {offsets = [0, 64], sizes = [128, 64], strides = [1, 1]} : vector<128x256xf32> to vector<128x64xf32>
    %43 = arith.mulf %42, %10 : vector<128x64xf32>
    %cst_10 = arith.constant dense<0.000000e+00> : vector<128xf32>
    %44 = vector.multi_reduction <add>, %43, %cst_10 [1] : vector<128x64xf32> to vector<128xf32>
    %45 = vector.shape_cast %44 : vector<128xf32> to vector<128x1xf32>
    %46 = vector.extract_strided_slice %37 {offsets = [0, 128], sizes = [128, 64], strides = [1, 1]} : vector<128x256xf32> to vector<128x64xf32>
    %47 = arith.mulf %46, %10 : vector<128x64xf32>
    %cst_11 = arith.constant dense<0.000000e+00> : vector<128xf32>
    %48 = vector.multi_reduction <add>, %47, %cst_11 [1] : vector<128x64xf32> to vector<128xf32>
    %49 = vector.shape_cast %48 : vector<128xf32> to vector<128x1xf32>
    %50 = vector.extract_strided_slice %37 {offsets = [0, 192], sizes = [128, 64], strides = [1, 1]} : vector<128x256xf32> to vector<128x64xf32>
    %51 = arith.mulf %50, %10 : vector<128x64xf32>
    %cst_12 = arith.constant dense<0.000000e+00> : vector<128xf32>
    %52 = vector.multi_reduction <add>, %51, %cst_12 [1] : vector<128x64xf32> to vector<128xf32>
    %53 = vector.shape_cast %52 : vector<128xf32> to vector<128x1xf32>
    %54 = tpu.concatenate %41, %45, %49, %53 in 1 : vector<128x1xf32>, vector<128x1xf32>, vector<128x1xf32>, vector<128x1xf32> -> vector<128x4xf32>
    %55 = tpu.transpose %54, [1, 0] : vector<128x4xf32> -> vector<4x128xf32>
    %c0_13 = arith.constant 0 : index
    %c0_14 = arith.constant 0 : index
    %56 = vector.load %arg4[%c0_13, %c0_14] : memref<4x896xf32, #tpu.memory_space<vmem>>, vector<4x128xf32>
    tpu.vector_store %arg4[%c0_13, %c0_14], %55 {strides = array<i32>} : memref<4x896xf32, #tpu.memory_space<vmem>>, vector<4x128xf32>,
    %cst_15 = arith.constant dense<0.000000e+00> : vector<256xf32>
    %57 = vector.multi_reduction <add>, %23, %cst_15 [0] : vector<128x256xf32> to vector<256xf32>
    %58 = vector.shape_cast %57 : vector<256xf32> to vector<1x256xf32>
    %59 = arith.addf %7, %58 : vector<1x256xf32>
    %c128 = arith.constant 128 : index
    %c0_16 = arith.constant 0 : index
    %60 = vector.load %arg0[%c128, %c0_16] : memref<896x4xf32, #tpu.memory_space<vmem>>, vector<128x4xf32>
    %c128_17 = arith.constant 128 : index
    %c0_18 = arith.constant 0 : index
    %61 = vector.load %arg1[%c128_17, %c0_18] : memref<896x64xf32, #tpu.memory_space<vmem>>, vector<128x64xf32>
    %c128_19 = arith.constant 128 : index
    %c0_20 = arith.constant 0 : index
    %62 = vector.load %arg2[%c128_19, %c0_20] : memref<896x64xf32, #tpu.memory_space<vmem>>, vector<128x64xf32>
    %63 = vector.extract_strided_slice %60 {offsets = [0, 0], sizes = [128, 1], strides = [1, 1]} : vector<128x4xf32> to vector<128x1xf32>
    %64 = vector.broadcast %63 : vector<128x1xf32> to vector<128x64xf32>
    %65 = arith.mulf %64, %61 : vector<128x64xf32>
    %66 = vector.extract_strided_slice %60 {offsets = [0, 1], sizes = [128, 1], strides = [1, 1]} : vector<128x4xf32> to vector<128x1xf32>
    %67 = vector.broadcast %66 : vector<128x1xf32> to vector<128x64xf32>
    %68 = arith.mulf %67, %61 : vector<128x64xf32>
    %69 = vector.extract_strided_slice %60 {offsets = [0, 2], sizes = [128, 1], strides = [1, 1]} : vector<128x4xf32> to vector<128x1xf32>
    %70 = vector.broadcast %69 : vector<128x1xf32> to vector<128x64xf32>
    %71 = arith.mulf %70, %61 : vector<128x64xf32>
    %72 = vector.extract_strided_slice %60 {offsets = [0, 3], sizes = [128, 1], strides = [1, 1]} : vector<128x4xf32> to vector<128x1xf32>
    %73 = vector.broadcast %72 : vector<128x1xf32> to vector<128x64xf32>
    %74 = arith.mulf %73, %61 : vector<128x64xf32>
    %75 = tpu.concatenate %65, %68, %71, %74 in 1 : vector<128x64xf32>, vector<128x64xf32>, vector<128x64xf32>, vector<128x64xf32> -> vector<128x256xf32>
    %76 = arith.truncf %75 : vector<128x256xf32> to vector<128x256xbf16>
    %77 = arith.extf %76 : vector<128x256xbf16> to vector<128x256xf32>
    %78 = arith.subf %75, %77 : vector<128x256xf32>
    %79 = arith.truncf %78 : vector<128x256xf32> to vector<128x256xbf16>
    %cst_21 = arith.constant dense<0.000000e+00> : vector<128x256xf32>
    %80 = tpu.matmul %5, %76, %cst_21 {dimension_numbers = #tpu.dot_dimension_numbers<[1], [0], [0], [1], [0, 0, 1, 1], [], []>} : vector<128x128xbf16>, vector<128x256xbf16>, vector<128x256xf32> -> vector<128x256xf32>
    %cst_22 = arith.constant dense<0.000000e+00> : vector<128x256xf32>
    %81 = tpu.matmul %5, %79, %cst_22 {dimension_numbers = #tpu.dot_dimension_numbers<[1], [0], [0], [1], [0, 0, 1, 1], [], []>} : vector<128x128xbf16>, vector<128x256xbf16>, vector<128x256xf32> -> vector<128x256xf32>
    %82 = arith.addf %80, %81 : vector<128x256xf32>
    %83 = vector.broadcast %59 : vector<1x256xf32> to vector<128x256xf32>
    %84 = arith.addf %82, %83 : vector<128x256xf32>
    %85 = arith.negf %84 : vector<128x256xf32>
    %86 = math.exp %85 : vector<128x256xf32>
    %cst_23 = arith.constant 1.000000e+00 : f32
    %87 = vector.broadcast %cst_23 : f32 to vector<128x256xf32>
    %88 = arith.addf %87, %86 : vector<128x256xf32>
    %89 = arith.divf %87, %88 : vector<128x256xf32>
    %90 = vector.extract_strided_slice %89 {offsets = [0, 0], sizes = [128, 64], strides = [1, 1]} : vector<128x256xf32> to vector<128x64xf32>
    %91 = arith.mulf %90, %62 : vector<128x64xf32>
    %cst_24 = arith.constant dense<0.000000e+00> : vector<128xf32>
    %92 = vector.multi_reduction <add>, %91, %cst_24 [1] : vector<128x64xf32> to vector<128xf32>
    %93 = vector.shape_cast %92 : vector<128xf32> to vector<128x1xf32>
    %94 = vector.extract_strided_slice %89 {offsets = [0, 64], sizes = [128, 64], strides = [1, 1]} : vector<128x256xf32> to vector<128x64xf32>
    %95 = arith.mulf %94, %62 : vector<128x64xf32>
    %cst_25 = arith.constant dense<0.000000e+00> : vector<128xf32>
    %96 = vector.multi_reduction <add>, %95, %cst_25 [1] : vector<128x64xf32> to vector<128xf32>
    %97 = vector.shape_cast %96 : vector<128xf32> to vector<128x1xf32>
    %98 = vector.extract_strided_slice %89 {offsets = [0, 128], sizes = [128, 64], strides = [1, 1]} : vector<128x256xf32> to vector<128x64xf32>
    %99 = arith.mulf %98, %62 : vector<128x64xf32>
    %cst_26 = arith.constant dense<0.000000e+00> : vector<128xf32>
    %100 = vector.multi_reduction <add>, %99, %cst_26 [1] : vector<128x64xf32> to vector<128xf32>
    %101 = vector.shape_cast %100 : vector<128xf32> to vector<128x1xf32>
    %102 = vector.extract_strided_slice %89 {offsets = [0, 192], sizes = [128, 64], strides = [1, 1]} : vector<128x256xf32> to vector<128x64xf32>
    %103 = arith.mulf %102, %62 : vector<128x64xf32>
    %cst_27 = arith.constant dense<0.000000e+00> : vector<128xf32>
    %104 = vector.multi_reduction <add>, %103, %cst_27 [1] : vector<128x64xf32> to vector<128xf32>
    %105 = vector.shape_cast %104 : vector<128xf32> to vector<128x1xf32>
    %106 = tpu.concatenate %93, %97, %101, %105 in 1 : vector<128x1xf32>, vector<128x1xf32>, vector<128x1xf32>, vector<128x1xf32> -> vector<128x4xf32>
    %107 = tpu.transpose %106, [1, 0] : vector<128x4xf32> -> vector<4x128xf32>
    %c0_28 = arith.constant 0 : index
    %c128_29 = arith.constant 128 : index
    %108 = vector.load %arg4[%c0_28, %c128_29] : memref<4x896xf32, #tpu.memory_space<vmem>>, vector<4x128xf32>
    tpu.vector_store %arg4[%c0_28, %c128_29], %107 {strides = array<i32>} : memref<4x896xf32, #tpu.memory_space<vmem>>, vector<4x128xf32>,
    %cst_30 = arith.constant dense<0.000000e+00> : vector<256xf32>
    %109 = vector.multi_reduction <add>, %75, %cst_30 [0] : vector<128x256xf32> to vector<256xf32>
    %110 = vector.shape_cast %109 : vector<256xf32> to vector<1x256xf32>
    %111 = arith.addf %59, %110 : vector<1x256xf32>
    %c256 = arith.constant 256 : index
    %c0_31 = arith.constant 0 : index
    %112 = vector.load %arg0[%c256, %c0_31] : memref<896x4xf32, #tpu.memory_space<vmem>>, vector<128x4xf32>
    %c256_32 = arith.constant 256 : index
    %c0_33 = arith.constant 0 : index
    %113 = vector.load %arg1[%c256_32, %c0_33] : memref<896x64xf32, #tpu.memory_space<vmem>>, vector<128x64xf32>
    %c256_34 = arith.constant 256 : index
    %c0_35 = arith.constant 0 : index
    %114 = vector.load %arg2[%c256_34, %c0_35] : memref<896x64xf32, #tpu.memory_space<vmem>>, vector<128x64xf32>
    %115 = vector.extract_strided_slice %112 {offsets = [0, 0], sizes = [128, 1], strides = [1, 1]} : vector<128x4xf32> to vector<128x1xf32>
    %116 = vector.broadcast %115 : vector<128x1xf32> to vector<128x64xf32>
    %117 = arith.mulf %116, %113 : vector<128x64xf32>
    %118 = vector.extract_strided_slice %112 {offsets = [0, 1], sizes = [128, 1], strides = [1, 1]} : vector<128x4xf32> to vector<128x1xf32>
    %119 = vector.broadcast %118 : vector<128x1xf32> to vector<128x64xf32>
    %120 = arith.mulf %119, %113 : vector<128x64xf32>
    %121 = vector.extract_strided_slice %112 {offsets = [0, 2], sizes = [128, 1], strides = [1, 1]} : vector<128x4xf32> to vector<128x1xf32>
    %122 = vector.broadcast %121 : vector<128x1xf32> to vector<128x64xf32>
    %123 = arith.mulf %122, %113 : vector<128x64xf32>
    %124 = vector.extract_strided_slice %112 {offsets = [0, 3], sizes = [128, 1], strides = [1, 1]} : vector<128x4xf32> to vector<128x1xf32>
    %125 = vector.broadcast %124 : vector<128x1xf32> to vector<128x64xf32>
    %126 = arith.mulf %125, %113 : vector<128x64xf32>
    %127 = tpu.concatenate %117, %120, %123, %126 in 1 : vector<128x64xf32>, vector<128x64xf32>, vector<128x64xf32>, vector<128x64xf32> -> vector<128x256xf32>
    %128 = arith.truncf %127 : vector<128x256xf32> to vector<128x256xbf16>
    %129 = arith.extf %128 : vector<128x256xbf16> to vector<128x256xf32>
    %130 = arith.subf %127, %129 : vector<128x256xf32>
    %131 = arith.truncf %130 : vector<128x256xf32> to vector<128x256xbf16>
    %cst_36 = arith.constant dense<0.000000e+00> : vector<128x256xf32>
    %132 = tpu.matmul %5, %128, %cst_36 {dimension_numbers = #tpu.dot_dimension_numbers<[1], [0], [0], [1], [0, 0, 1, 1], [], []>} : vector<128x128xbf16>, vector<128x256xbf16>, vector<128x256xf32> -> vector<128x256xf32>
    %cst_37 = arith.constant dense<0.000000e+00> : vector<128x256xf32>
    %133 = tpu.matmul %5, %131, %cst_37 {dimension_numbers = #tpu.dot_dimension_numbers<[1], [0], [0], [1], [0, 0, 1, 1], [], []>} : vector<128x128xbf16>, vector<128x256xbf16>, vector<128x256xf32> -> vector<128x256xf32>
    %134 = arith.addf %132, %133 : vector<128x256xf32>
    %135 = vector.broadcast %111 : vector<1x256xf32> to vector<128x256xf32>
    %136 = arith.addf %134, %135 : vector<128x256xf32>
    %137 = arith.negf %136 : vector<128x256xf32>
    %138 = math.exp %137 : vector<128x256xf32>
    %cst_38 = arith.constant 1.000000e+00 : f32
    %139 = vector.broadcast %cst_38 : f32 to vector<128x256xf32>
    %140 = arith.addf %139, %138 : vector<128x256xf32>
    %141 = arith.divf %139, %140 : vector<128x256xf32>
    %142 = vector.extract_strided_slice %141 {offsets = [0, 0], sizes = [128, 64], strides = [1, 1]} : vector<128x256xf32> to vector<128x64xf32>
    %143 = arith.mulf %142, %114 : vector<128x64xf32>
    %cst_39 = arith.constant dense<0.000000e+00> : vector<128xf32>
    %144 = vector.multi_reduction <add>, %143, %cst_39 [1] : vector<128x64xf32> to vector<128xf32>
    %145 = vector.shape_cast %144 : vector<128xf32> to vector<128x1xf32>
    %146 = vector.extract_strided_slice %141 {offsets = [0, 64], sizes = [128, 64], strides = [1, 1]} : vector<128x256xf32> to vector<128x64xf32>
    %147 = arith.mulf %146, %114 : vector<128x64xf32>
    %cst_40 = arith.constant dense<0.000000e+00> : vector<128xf32>
    %148 = vector.multi_reduction <add>, %147, %cst_40 [1] : vector<128x64xf32> to vector<128xf32>
    %149 = vector.shape_cast %148 : vector<128xf32> to vector<128x1xf32>
    %150 = vector.extract_strided_slice %141 {offsets = [0, 128], sizes = [128, 64], strides = [1, 1]} : vector<128x256xf32> to vector<128x64xf32>
    %151 = arith.mulf %150, %114 : vector<128x64xf32>
    %cst_41 = arith.constant dense<0.000000e+00> : vector<128xf32>
    %152 = vector.multi_reduction <add>, %151, %cst_41 [1] : vector<128x64xf32> to vector<128xf32>
    %153 = vector.shape_cast %152 : vector<128xf32> to vector<128x1xf32>
    %154 = vector.extract_strided_slice %141 {offsets = [0, 192], sizes = [128, 64], strides = [1, 1]} : vector<128x256xf32> to vector<128x64xf32>
    %155 = arith.mulf %154, %114 : vector<128x64xf32>
    %cst_42 = arith.constant dense<0.000000e+00> : vector<128xf32>
    %156 = vector.multi_reduction <add>, %155, %cst_42 [1] : vector<128x64xf32> to vector<128xf32>
    %157 = vector.shape_cast %156 : vector<128xf32> to vector<128x1xf32>
    %158 = tpu.concatenate %145, %149, %153, %157 in 1 : vector<128x1xf32>, vector<128x1xf32>, vector<128x1xf32>, vector<128x1xf32> -> vector<128x4xf32>
    %159 = tpu.transpose %158, [1, 0] : vector<128x4xf32> -> vector<4x128xf32>
    %c0_43 = arith.constant 0 : index
    %c256_44 = arith.constant 256 : index
    %160 = vector.load %arg4[%c0_43, %c256_44] : memref<4x896xf32, #tpu.memory_space<vmem>>, vector<4x128xf32>
    tpu.vector_store %arg4[%c0_43, %c256_44], %159 {strides = array<i32>} : memref<4x896xf32, #tpu.memory_space<vmem>>, vector<4x128xf32>,
    %cst_45 = arith.constant dense<0.000000e+00> : vector<256xf32>
    %161 = vector.multi_reduction <add>, %127, %cst_45 [0] : vector<128x256xf32> to vector<256xf32>
    %162 = vector.shape_cast %161 : vector<256xf32> to vector<1x256xf32>
    %163 = arith.addf %111, %162 : vector<1x256xf32>
    %c384 = arith.constant 384 : index
    %c0_46 = arith.constant 0 : index
    %164 = vector.load %arg0[%c384, %c0_46] : memref<896x4xf32, #tpu.memory_space<vmem>>, vector<128x4xf32>
    %c384_47 = arith.constant 384 : index
    %c0_48 = arith.constant 0 : index
    %165 = vector.load %arg1[%c384_47, %c0_48] : memref<896x64xf32, #tpu.memory_space<vmem>>, vector<128x64xf32>
    %c384_49 = arith.constant 384 : index
    %c0_50 = arith.constant 0 : index
    %166 = vector.load %arg2[%c384_49, %c0_50] : memref<896x64xf32, #tpu.memory_space<vmem>>, vector<128x64xf32>
    %167 = vector.extract_strided_slice %164 {offsets = [0, 0], sizes = [128, 1], strides = [1, 1]} : vector<128x4xf32> to vector<128x1xf32>
    %168 = vector.broadcast %167 : vector<128x1xf32> to vector<128x64xf32>
    %169 = arith.mulf %168, %165 : vector<128x64xf32>
    %170 = vector.extract_strided_slice %164 {offsets = [0, 1], sizes = [128, 1], strides = [1, 1]} : vector<128x4xf32> to vector<128x1xf32>
    %171 = vector.broadcast %170 : vector<128x1xf32> to vector<128x64xf32>
    %172 = arith.mulf %171, %165 : vector<128x64xf32>
    %173 = vector.extract_strided_slice %164 {offsets = [0, 2], sizes = [128, 1], strides = [1, 1]} : vector<128x4xf32> to vector<128x1xf32>
    %174 = vector.broadcast %173 : vector<128x1xf32> to vector<128x64xf32>
    %175 = arith.mulf %174, %165 : vector<128x64xf32>
    %176 = vector.extract_strided_slice %164 {offsets = [0, 3], sizes = [128, 1], strides = [1, 1]} : vector<128x4xf32> to vector<128x1xf32>
    %177 = vector.broadcast %176 : vector<128x1xf32> to vector<128x64xf32>
    %178 = arith.mulf %177, %165 : vector<128x64xf32>
    %179 = tpu.concatenate %169, %172, %175, %178 in 1 : vector<128x64xf32>, vector<128x64xf32>, vector<128x64xf32>, vector<128x64xf32> -> vector<128x256xf32>
    %180 = arith.truncf %179 : vector<128x256xf32> to vector<128x256xbf16>
    %181 = arith.extf %180 : vector<128x256xbf16> to vector<128x256xf32>
    %182 = arith.subf %179, %181 : vector<128x256xf32>
    %183 = arith.truncf %182 : vector<128x256xf32> to vector<128x256xbf16>
    %cst_51 = arith.constant dense<0.000000e+00> : vector<128x256xf32>
    %184 = tpu.matmul %5, %180, %cst_51 {dimension_numbers = #tpu.dot_dimension_numbers<[1], [0], [0], [1], [0, 0, 1, 1], [], []>} : vector<128x128xbf16>, vector<128x256xbf16>, vector<128x256xf32> -> vector<128x256xf32>
    %cst_52 = arith.constant dense<0.000000e+00> : vector<128x256xf32>
    %185 = tpu.matmul %5, %183, %cst_52 {dimension_numbers = #tpu.dot_dimension_numbers<[1], [0], [0], [1], [0, 0, 1, 1], [], []>} : vector<128x128xbf16>, vector<128x256xbf16>, vector<128x256xf32> -> vector<128x256xf32>
    %186 = arith.addf %184, %185 : vector<128x256xf32>
    %187 = vector.broadcast %163 : vector<1x256xf32> to vector<128x256xf32>
    %188 = arith.addf %186, %187 : vector<128x256xf32>
    %189 = arith.negf %188 : vector<128x256xf32>
    %190 = math.exp %189 : vector<128x256xf32>
    %cst_53 = arith.constant 1.000000e+00 : f32
    %191 = vector.broadcast %cst_53 : f32 to vector<128x256xf32>
    %192 = arith.addf %191, %190 : vector<128x256xf32>
    %193 = arith.divf %191, %192 : vector<128x256xf32>
    %194 = vector.extract_strided_slice %193 {offsets = [0, 0], sizes = [128, 64], strides = [1, 1]} : vector<128x256xf32> to vector<128x64xf32>
    %195 = arith.mulf %194, %166 : vector<128x64xf32>
    %cst_54 = arith.constant dense<0.000000e+00> : vector<128xf32>
    %196 = vector.multi_reduction <add>, %195, %cst_54 [1] : vector<128x64xf32> to vector<128xf32>
    %197 = vector.shape_cast %196 : vector<128xf32> to vector<128x1xf32>
    %198 = vector.extract_strided_slice %193 {offsets = [0, 64], sizes = [128, 64], strides = [1, 1]} : vector<128x256xf32> to vector<128x64xf32>
    %199 = arith.mulf %198, %166 : vector<128x64xf32>
    %cst_55 = arith.constant dense<0.000000e+00> : vector<128xf32>
    %200 = vector.multi_reduction <add>, %199, %cst_55 [1] : vector<128x64xf32> to vector<128xf32>
    %201 = vector.shape_cast %200 : vector<128xf32> to vector<128x1xf32>
    %202 = vector.extract_strided_slice %193 {offsets = [0, 128], sizes = [128, 64], strides = [1, 1]} : vector<128x256xf32> to vector<128x64xf32>
    %203 = arith.mulf %202, %166 : vector<128x64xf32>
    %cst_56 = arith.constant dense<0.000000e+00> : vector<128xf32>
    %204 = vector.multi_reduction <add>, %203, %cst_56 [1] : vector<128x64xf32> to vector<128xf32>
    %205 = vector.shape_cast %204 : vector<128xf32> to vector<128x1xf32>
    %206 = vector.extract_strided_slice %193 {offsets = [0, 192], sizes = [128, 64], strides = [1, 1]} : vector<128x256xf32> to vector<128x64xf32>
    %207 = arith.mulf %206, %166 : vector<128x64xf32>
    %cst_57 = arith.constant dense<0.000000e+00> : vector<128xf32>
    %208 = vector.multi_reduction <add>, %207, %cst_57 [1] : vector<128x64xf32> to vector<128xf32>
    %209 = vector.shape_cast %208 : vector<128xf32> to vector<128x1xf32>
    %210 = tpu.concatenate %197, %201, %205, %209 in 1 : vector<128x1xf32>, vector<128x1xf32>, vector<128x1xf32>, vector<128x1xf32> -> vector<128x4xf32>
    %211 = tpu.transpose %210, [1, 0] : vector<128x4xf32> -> vector<4x128xf32>
    %c0_58 = arith.constant 0 : index
    %c384_59 = arith.constant 384 : index
    %212 = vector.load %arg4[%c0_58, %c384_59] : memref<4x896xf32, #tpu.memory_space<vmem>>, vector<4x128xf32>
    tpu.vector_store %arg4[%c0_58, %c384_59], %211 {strides = array<i32>} : memref<4x896xf32, #tpu.memory_space<vmem>>, vector<4x128xf32>,
    %cst_60 = arith.constant dense<0.000000e+00> : vector<256xf32>
    %213 = vector.multi_reduction <add>, %179, %cst_60 [0] : vector<128x256xf32> to vector<256xf32>
    %214 = vector.shape_cast %213 : vector<256xf32> to vector<1x256xf32>
    %215 = arith.addf %163, %214 : vector<1x256xf32>
    %c512 = arith.constant 512 : index
    %c0_61 = arith.constant 0 : index
    %216 = vector.load %arg0[%c512, %c0_61] : memref<896x4xf32, #tpu.memory_space<vmem>>, vector<128x4xf32>
    %c512_62 = arith.constant 512 : index
    %c0_63 = arith.constant 0 : index
    %217 = vector.load %arg1[%c512_62, %c0_63] : memref<896x64xf32, #tpu.memory_space<vmem>>, vector<128x64xf32>
    %c512_64 = arith.constant 512 : index
    %c0_65 = arith.constant 0 : index
    %218 = vector.load %arg2[%c512_64, %c0_65] : memref<896x64xf32, #tpu.memory_space<vmem>>, vector<128x64xf32>
    %219 = vector.extract_strided_slice %216 {offsets = [0, 0], sizes = [128, 1], strides = [1, 1]} : vector<128x4xf32> to vector<128x1xf32>
    %220 = vector.broadcast %219 : vector<128x1xf32> to vector<128x64xf32>
    %221 = arith.mulf %220, %217 : vector<128x64xf32>
    %222 = vector.extract_strided_slice %216 {offsets = [0, 1], sizes = [128, 1], strides = [1, 1]} : vector<128x4xf32> to vector<128x1xf32>
    %223 = vector.broadcast %222 : vector<128x1xf32> to vector<128x64xf32>
    %224 = arith.mulf %223, %217 : vector<128x64xf32>
    %225 = vector.extract_strided_slice %216 {offsets = [0, 2], sizes = [128, 1], strides = [1, 1]} : vector<128x4xf32> to vector<128x1xf32>
    %226 = vector.broadcast %225 : vector<128x1xf32> to vector<128x64xf32>
    %227 = arith.mulf %226, %217 : vector<128x64xf32>
    %228 = vector.extract_strided_slice %216 {offsets = [0, 3], sizes = [128, 1], strides = [1, 1]} : vector<128x4xf32> to vector<128x1xf32>
    %229 = vector.broadcast %228 : vector<128x1xf32> to vector<128x64xf32>
    %230 = arith.mulf %229, %217 : vector<128x64xf32>
    %231 = tpu.concatenate %221, %224, %227, %230 in 1 : vector<128x64xf32>, vector<128x64xf32>, vector<128x64xf32>, vector<128x64xf32> -> vector<128x256xf32>
    %232 = arith.truncf %231 : vector<128x256xf32> to vector<128x256xbf16>
    %233 = arith.extf %232 : vector<128x256xbf16> to vector<128x256xf32>
    %234 = arith.subf %231, %233 : vector<128x256xf32>
    %235 = arith.truncf %234 : vector<128x256xf32> to vector<128x256xbf16>
    %cst_66 = arith.constant dense<0.000000e+00> : vector<128x256xf32>
    %236 = tpu.matmul %5, %232, %cst_66 {dimension_numbers = #tpu.dot_dimension_numbers<[1], [0], [0], [1], [0, 0, 1, 1], [], []>} : vector<128x128xbf16>, vector<128x256xbf16>, vector<128x256xf32> -> vector<128x256xf32>
    %cst_67 = arith.constant dense<0.000000e+00> : vector<128x256xf32>
    %237 = tpu.matmul %5, %235, %cst_67 {dimension_numbers = #tpu.dot_dimension_numbers<[1], [0], [0], [1], [0, 0, 1, 1], [], []>} : vector<128x128xbf16>, vector<128x256xbf16>, vector<128x256xf32> -> vector<128x256xf32>
    %238 = arith.addf %236, %237 : vector<128x256xf32>
    %239 = vector.broadcast %215 : vector<1x256xf32> to vector<128x256xf32>
    %240 = arith.addf %238, %239 : vector<128x256xf32>
    %241 = arith.negf %240 : vector<128x256xf32>
    %242 = math.exp %241 : vector<128x256xf32>
    %cst_68 = arith.constant 1.000000e+00 : f32
    %243 = vector.broadcast %cst_68 : f32 to vector<128x256xf32>
    %244 = arith.addf %243, %242 : vector<128x256xf32>
    %245 = arith.divf %243, %244 : vector<128x256xf32>
    %246 = vector.extract_strided_slice %245 {offsets = [0, 0], sizes = [128, 64], strides = [1, 1]} : vector<128x256xf32> to vector<128x64xf32>
    %247 = arith.mulf %246, %218 : vector<128x64xf32>
    %cst_69 = arith.constant dense<0.000000e+00> : vector<128xf32>
    %248 = vector.multi_reduction <add>, %247, %cst_69 [1] : vector<128x64xf32> to vector<128xf32>
    %249 = vector.shape_cast %248 : vector<128xf32> to vector<128x1xf32>
    %250 = vector.extract_strided_slice %245 {offsets = [0, 64], sizes = [128, 64], strides = [1, 1]} : vector<128x256xf32> to vector<128x64xf32>
    %251 = arith.mulf %250, %218 : vector<128x64xf32>
    %cst_70 = arith.constant dense<0.000000e+00> : vector<128xf32>
    %252 = vector.multi_reduction <add>, %251, %cst_70 [1] : vector<128x64xf32> to vector<128xf32>
    %253 = vector.shape_cast %252 : vector<128xf32> to vector<128x1xf32>
    %254 = vector.extract_strided_slice %245 {offsets = [0, 128], sizes = [128, 64], strides = [1, 1]} : vector<128x256xf32> to vector<128x64xf32>
    %255 = arith.mulf %254, %218 : vector<128x64xf32>
    %cst_71 = arith.constant dense<0.000000e+00> : vector<128xf32>
    %256 = vector.multi_reduction <add>, %255, %cst_71 [1] : vector<128x64xf32> to vector<128xf32>
    %257 = vector.shape_cast %256 : vector<128xf32> to vector<128x1xf32>
    %258 = vector.extract_strided_slice %245 {offsets = [0, 192], sizes = [128, 64], strides = [1, 1]} : vector<128x256xf32> to vector<128x64xf32>
    %259 = arith.mulf %258, %218 : vector<128x64xf32>
    %cst_72 = arith.constant dense<0.000000e+00> : vector<128xf32>
    %260 = vector.multi_reduction <add>, %259, %cst_72 [1] : vector<128x64xf32> to vector<128xf32>
    %261 = vector.shape_cast %260 : vector<128xf32> to vector<128x1xf32>
    %262 = tpu.concatenate %249, %253, %257, %261 in 1 : vector<128x1xf32>, vector<128x1xf32>, vector<128x1xf32>, vector<128x1xf32> -> vector<128x4xf32>
    %263 = tpu.transpose %262, [1, 0] : vector<128x4xf32> -> vector<4x128xf32>
    %c0_73 = arith.constant 0 : index
    %c512_74 = arith.constant 512 : index
    %264 = vector.load %arg4[%c0_73, %c512_74] : memref<4x896xf32, #tpu.memory_space<vmem>>, vector<4x128xf32>
    tpu.vector_store %arg4[%c0_73, %c512_74], %263 {strides = array<i32>} : memref<4x896xf32, #tpu.memory_space<vmem>>, vector<4x128xf32>,
    %cst_75 = arith.constant dense<0.000000e+00> : vector<256xf32>
    %265 = vector.multi_reduction <add>, %231, %cst_75 [0] : vector<128x256xf32> to vector<256xf32>
    %266 = vector.shape_cast %265 : vector<256xf32> to vector<1x256xf32>
    %267 = arith.addf %215, %266 : vector<1x256xf32>
    %c640 = arith.constant 640 : index
    %c0_76 = arith.constant 0 : index
    %268 = vector.load %arg0[%c640, %c0_76] : memref<896x4xf32, #tpu.memory_space<vmem>>, vector<128x4xf32>
    %c640_77 = arith.constant 640 : index
    %c0_78 = arith.constant 0 : index
    %269 = vector.load %arg1[%c640_77, %c0_78] : memref<896x64xf32, #tpu.memory_space<vmem>>, vector<128x64xf32>
    %c640_79 = arith.constant 640 : index
    %c0_80 = arith.constant 0 : index
    %270 = vector.load %arg2[%c640_79, %c0_80] : memref<896x64xf32, #tpu.memory_space<vmem>>, vector<128x64xf32>
    %271 = vector.extract_strided_slice %268 {offsets = [0, 0], sizes = [128, 1], strides = [1, 1]} : vector<128x4xf32> to vector<128x1xf32>
    %272 = vector.broadcast %271 : vector<128x1xf32> to vector<128x64xf32>
    %273 = arith.mulf %272, %269 : vector<128x64xf32>
    %274 = vector.extract_strided_slice %268 {offsets = [0, 1], sizes = [128, 1], strides = [1, 1]} : vector<128x4xf32> to vector<128x1xf32>
    %275 = vector.broadcast %274 : vector<128x1xf32> to vector<128x64xf32>
    %276 = arith.mulf %275, %269 : vector<128x64xf32>
    %277 = vector.extract_strided_slice %268 {offsets = [0, 2], sizes = [128, 1], strides = [1, 1]} : vector<128x4xf32> to vector<128x1xf32>
    %278 = vector.broadcast %277 : vector<128x1xf32> to vector<128x64xf32>
    %279 = arith.mulf %278, %269 : vector<128x64xf32>
    %280 = vector.extract_strided_slice %268 {offsets = [0, 3], sizes = [128, 1], strides = [1, 1]} : vector<128x4xf32> to vector<128x1xf32>
    %281 = vector.broadcast %280 : vector<128x1xf32> to vector<128x64xf32>
    %282 = arith.mulf %281, %269 : vector<128x64xf32>
    %283 = tpu.concatenate %273, %276, %279, %282 in 1 : vector<128x64xf32>, vector<128x64xf32>, vector<128x64xf32>, vector<128x64xf32> -> vector<128x256xf32>
    %284 = arith.truncf %283 : vector<128x256xf32> to vector<128x256xbf16>
    %285 = arith.extf %284 : vector<128x256xbf16> to vector<128x256xf32>
    %286 = arith.subf %283, %285 : vector<128x256xf32>
    %287 = arith.truncf %286 : vector<128x256xf32> to vector<128x256xbf16>
    %cst_81 = arith.constant dense<0.000000e+00> : vector<128x256xf32>
    %288 = tpu.matmul %5, %284, %cst_81 {dimension_numbers = #tpu.dot_dimension_numbers<[1], [0], [0], [1], [0, 0, 1, 1], [], []>} : vector<128x128xbf16>, vector<128x256xbf16>, vector<128x256xf32> -> vector<128x256xf32>
    %cst_82 = arith.constant dense<0.000000e+00> : vector<128x256xf32>
    %289 = tpu.matmul %5, %287, %cst_82 {dimension_numbers = #tpu.dot_dimension_numbers<[1], [0], [0], [1], [0, 0, 1, 1], [], []>} : vector<128x128xbf16>, vector<128x256xbf16>, vector<128x256xf32> -> vector<128x256xf32>
    %290 = arith.addf %288, %289 : vector<128x256xf32>
    %291 = vector.broadcast %267 : vector<1x256xf32> to vector<128x256xf32>
    %292 = arith.addf %290, %291 : vector<128x256xf32>
    %293 = arith.negf %292 : vector<128x256xf32>
    %294 = math.exp %293 : vector<128x256xf32>
    %cst_83 = arith.constant 1.000000e+00 : f32
    %295 = vector.broadcast %cst_83 : f32 to vector<128x256xf32>
    %296 = arith.addf %295, %294 : vector<128x256xf32>
    %297 = arith.divf %295, %296 : vector<128x256xf32>
    %298 = vector.extract_strided_slice %297 {offsets = [0, 0], sizes = [128, 64], strides = [1, 1]} : vector<128x256xf32> to vector<128x64xf32>
    %299 = arith.mulf %298, %270 : vector<128x64xf32>
    %cst_84 = arith.constant dense<0.000000e+00> : vector<128xf32>
    %300 = vector.multi_reduction <add>, %299, %cst_84 [1] : vector<128x64xf32> to vector<128xf32>
    %301 = vector.shape_cast %300 : vector<128xf32> to vector<128x1xf32>
    %302 = vector.extract_strided_slice %297 {offsets = [0, 64], sizes = [128, 64], strides = [1, 1]} : vector<128x256xf32> to vector<128x64xf32>
    %303 = arith.mulf %302, %270 : vector<128x64xf32>
    %cst_85 = arith.constant dense<0.000000e+00> : vector<128xf32>
    %304 = vector.multi_reduction <add>, %303, %cst_85 [1] : vector<128x64xf32> to vector<128xf32>
    %305 = vector.shape_cast %304 : vector<128xf32> to vector<128x1xf32>
    %306 = vector.extract_strided_slice %297 {offsets = [0, 128], sizes = [128, 64], strides = [1, 1]} : vector<128x256xf32> to vector<128x64xf32>
    %307 = arith.mulf %306, %270 : vector<128x64xf32>
    %cst_86 = arith.constant dense<0.000000e+00> : vector<128xf32>
    %308 = vector.multi_reduction <add>, %307, %cst_86 [1] : vector<128x64xf32> to vector<128xf32>
    %309 = vector.shape_cast %308 : vector<128xf32> to vector<128x1xf32>
    %310 = vector.extract_strided_slice %297 {offsets = [0, 192], sizes = [128, 64], strides = [1, 1]} : vector<128x256xf32> to vector<128x64xf32>
    %311 = arith.mulf %310, %270 : vector<128x64xf32>
    %cst_87 = arith.constant dense<0.000000e+00> : vector<128xf32>
    %312 = vector.multi_reduction <add>, %311, %cst_87 [1] : vector<128x64xf32> to vector<128xf32>
    %313 = vector.shape_cast %312 : vector<128xf32> to vector<128x1xf32>
    %314 = tpu.concatenate %301, %305, %309, %313 in 1 : vector<128x1xf32>, vector<128x1xf32>, vector<128x1xf32>, vector<128x1xf32> -> vector<128x4xf32>
    %315 = tpu.transpose %314, [1, 0] : vector<128x4xf32> -> vector<4x128xf32>
    %c0_88 = arith.constant 0 : index
    %c640_89 = arith.constant 640 : index
    %316 = vector.load %arg4[%c0_88, %c640_89] : memref<4x896xf32, #tpu.memory_space<vmem>>, vector<4x128xf32>
    tpu.vector_store %arg4[%c0_88, %c640_89], %315 {strides = array<i32>} : memref<4x896xf32, #tpu.memory_space<vmem>>, vector<4x128xf32>,
    %cst_90 = arith.constant dense<0.000000e+00> : vector<256xf32>
    %317 = vector.multi_reduction <add>, %283, %cst_90 [0] : vector<128x256xf32> to vector<256xf32>
    %318 = vector.shape_cast %317 : vector<256xf32> to vector<1x256xf32>
    %319 = arith.addf %267, %318 : vector<1x256xf32>
    %c768 = arith.constant 768 : index
    %c0_91 = arith.constant 0 : index
    %320 = vector.load %arg0[%c768, %c0_91] : memref<896x4xf32, #tpu.memory_space<vmem>>, vector<128x4xf32>
    %c768_92 = arith.constant 768 : index
    %c0_93 = arith.constant 0 : index
    %321 = vector.load %arg1[%c768_92, %c0_93] : memref<896x64xf32, #tpu.memory_space<vmem>>, vector<128x64xf32>
    %c768_94 = arith.constant 768 : index
    %c0_95 = arith.constant 0 : index
    %322 = vector.load %arg2[%c768_94, %c0_95] : memref<896x64xf32, #tpu.memory_space<vmem>>, vector<128x64xf32>
    %323 = vector.extract_strided_slice %320 {offsets = [0, 0], sizes = [128, 1], strides = [1, 1]} : vector<128x4xf32> to vector<128x1xf32>
    %324 = vector.broadcast %323 : vector<128x1xf32> to vector<128x64xf32>
    %325 = arith.mulf %324, %321 : vector<128x64xf32>
    %326 = vector.extract_strided_slice %320 {offsets = [0, 1], sizes = [128, 1], strides = [1, 1]} : vector<128x4xf32> to vector<128x1xf32>
    %327 = vector.broadcast %326 : vector<128x1xf32> to vector<128x64xf32>
    %328 = arith.mulf %327, %321 : vector<128x64xf32>
    %329 = vector.extract_strided_slice %320 {offsets = [0, 2], sizes = [128, 1], strides = [1, 1]} : vector<128x4xf32> to vector<128x1xf32>
    %330 = vector.broadcast %329 : vector<128x1xf32> to vector<128x64xf32>
    %331 = arith.mulf %330, %321 : vector<128x64xf32>
    %332 = vector.extract_strided_slice %320 {offsets = [0, 3], sizes = [128, 1], strides = [1, 1]} : vector<128x4xf32> to vector<128x1xf32>
    %333 = vector.broadcast %332 : vector<128x1xf32> to vector<128x64xf32>
    %334 = arith.mulf %333, %321 : vector<128x64xf32>
    %335 = tpu.concatenate %325, %328, %331, %334 in 1 : vector<128x64xf32>, vector<128x64xf32>, vector<128x64xf32>, vector<128x64xf32> -> vector<128x256xf32>
    %336 = arith.truncf %335 : vector<128x256xf32> to vector<128x256xbf16>
    %337 = arith.extf %336 : vector<128x256xbf16> to vector<128x256xf32>
    %338 = arith.subf %335, %337 : vector<128x256xf32>
    %339 = arith.truncf %338 : vector<128x256xf32> to vector<128x256xbf16>
    %cst_96 = arith.constant dense<0.000000e+00> : vector<128x256xf32>
    %340 = tpu.matmul %5, %336, %cst_96 {dimension_numbers = #tpu.dot_dimension_numbers<[1], [0], [0], [1], [0, 0, 1, 1], [], []>} : vector<128x128xbf16>, vector<128x256xbf16>, vector<128x256xf32> -> vector<128x256xf32>
    %cst_97 = arith.constant dense<0.000000e+00> : vector<128x256xf32>
    %341 = tpu.matmul %5, %339, %cst_97 {dimension_numbers = #tpu.dot_dimension_numbers<[1], [0], [0], [1], [0, 0, 1, 1], [], []>} : vector<128x128xbf16>, vector<128x256xbf16>, vector<128x256xf32> -> vector<128x256xf32>
    %342 = arith.addf %340, %341 : vector<128x256xf32>
    %343 = vector.broadcast %319 : vector<1x256xf32> to vector<128x256xf32>
    %344 = arith.addf %342, %343 : vector<128x256xf32>
    %345 = arith.negf %344 : vector<128x256xf32>
    %346 = math.exp %345 : vector<128x256xf32>
    %cst_98 = arith.constant 1.000000e+00 : f32
    %347 = vector.broadcast %cst_98 : f32 to vector<128x256xf32>
    %348 = arith.addf %347, %346 : vector<128x256xf32>
    %349 = arith.divf %347, %348 : vector<128x256xf32>
    %350 = vector.extract_strided_slice %349 {offsets = [0, 0], sizes = [128, 64], strides = [1, 1]} : vector<128x256xf32> to vector<128x64xf32>
    %351 = arith.mulf %350, %322 : vector<128x64xf32>
    %cst_99 = arith.constant dense<0.000000e+00> : vector<128xf32>
    %352 = vector.multi_reduction <add>, %351, %cst_99 [1] : vector<128x64xf32> to vector<128xf32>
    %353 = vector.shape_cast %352 : vector<128xf32> to vector<128x1xf32>
    %354 = vector.extract_strided_slice %349 {offsets = [0, 64], sizes = [128, 64], strides = [1, 1]} : vector<128x256xf32> to vector<128x64xf32>
    %355 = arith.mulf %354, %322 : vector<128x64xf32>
    %cst_100 = arith.constant dense<0.000000e+00> : vector<128xf32>
    %356 = vector.multi_reduction <add>, %355, %cst_100 [1] : vector<128x64xf32> to vector<128xf32>
    %357 = vector.shape_cast %356 : vector<128xf32> to vector<128x1xf32>
    %358 = vector.extract_strided_slice %349 {offsets = [0, 128], sizes = [128, 64], strides = [1, 1]} : vector<128x256xf32> to vector<128x64xf32>
    %359 = arith.mulf %358, %322 : vector<128x64xf32>
    %cst_101 = arith.constant dense<0.000000e+00> : vector<128xf32>
    %360 = vector.multi_reduction <add>, %359, %cst_101 [1] : vector<128x64xf32> to vector<128xf32>
    %361 = vector.shape_cast %360 : vector<128xf32> to vector<128x1xf32>
    %362 = vector.extract_strided_slice %349 {offsets = [0, 192], sizes = [128, 64], strides = [1, 1]} : vector<128x256xf32> to vector<128x64xf32>
    %363 = arith.mulf %362, %322 : vector<128x64xf32>
    %cst_102 = arith.constant dense<0.000000e+00> : vector<128xf32>
    %364 = vector.multi_reduction <add>, %363, %cst_102 [1] : vector<128x64xf32> to vector<128xf32>
    %365 = vector.shape_cast %364 : vector<128xf32> to vector<128x1xf32>
    %366 = tpu.concatenate %353, %357, %361, %365 in 1 : vector<128x1xf32>, vector<128x1xf32>, vector<128x1xf32>, vector<128x1xf32> -> vector<128x4xf32>
    %367 = tpu.transpose %366, [1, 0] : vector<128x4xf32> -> vector<4x128xf32>
    %368 = tpu.iota {dimensions = array<i32: 1>} : vector<4x128xi32>
    %c768_i32 = arith.constant 768 : i32
    %369 = vector.broadcast %c768_i32 : i32 to vector<4x128xi32>
    %370 = arith.addi %369, %368 : vector<4x128xi32>
    %c783_i32 = arith.constant 783 : i32
    %371 = vector.broadcast %c783_i32 : i32 to vector<4x128xi32>
    %372 = arith.cmpi slt, %370, %371 : vector<4x128xi32>
    %cst_103 = arith.constant 0.000000e+00 : f32
    %373 = vector.broadcast %cst_103 : f32 to vector<4x128xf32>
    %374 = arith.select %372, %367, %373 : vector<4x128xi1>, vector<4x128xf32>
    %c0_104 = arith.constant 0 : index
    %c768_105 = arith.constant 768 : index
    %375 = vector.load %arg4[%c0_104, %c768_105] : memref<4x896xf32, #tpu.memory_space<vmem>>, vector<4x128xf32>
    tpu.vector_store %arg4[%c0_104, %c768_105], %374 {strides = array<i32>} : memref<4x896xf32, #tpu.memory_space<vmem>>, vector<4x128xf32>,
    return
  }
}

</mosaic_0001>

<llo_original>
// kernel: nade_forward.1
$region0: #{nade_forward.1}
  #allocation0 [shape = 'u32[]', space=smem, size = 0x4, offset = 0x4, fixed_abs, tag = 'smem constant byte address 0x4 - core index']
  #allocation1 [shape = 'u32[144,128]{1,0:T(1,128)}', space=vmem, size = 0x12000, scoped, tag = 'internal scratch']
  %s0 = inlined_call_operand.vmem [shape: f32[896,4], index: 0, kind: input, shape index: {}]
  %s1 = inlined_call_operand.vmem [shape: f32[896,64], index: 1, kind: input, shape index: {}]
  %s2 = inlined_call_operand.vmem [shape: f32[896,64], index: 2, kind: input, shape index: {}]
  %s3 = inlined_call_operand.vmem [shape: f32[1,64], index: 3, kind: input, shape index: {}]
  %s4 = inlined_call_operand.hbm [shape: f32[4,896], index: 4, kind: output, shape index: {}]
  %s5 = sld [smem:[#allocation0]]
  $region26: #{nade_forward.1} parent=0
    _
  %s7 = ssub.s32 1, %s5
  %s8 = scalar_select 0, %s7, %s5
  $region1: #{nade_forward.1} parent=0
    #allocation2 [shape = 'u8[14336]{0}', space=vmem, size = 0x3800, scoped, tag = 'output window, operand 0, single buffered']
    #allocation3 [shape = 's32[1]{0}', space=sflag, size = 0x4, scoped, tag = 'scoped memory for nade_forward.1']
    %9 = vsyncpa [#allocation3], 0
    // Predicated region
    $region2: #{nade_forward.1} parent=1 // pred_check
      _
    $region3: #{nade_forward.1} parent=1 // pred_check_branch
      %11 = sbr.rel (0) target = $region5
    $region4: #{nade_forward.1} parent=1 // pred_region
      _
    $region5: #{nade_forward.1} parent=1 // pred_fallthru
      _
    // Predicated region
    $region6: #{nade_forward.1} parent=1 // pred_check
      _
    $region7: #{nade_forward.1} parent=1 // pred_check_branch
      %13 = sbr.rel (0) target = $region9
    $region8: #{nade_forward.1} parent=1 // pred_region
      _
    $region9: #{nade_forward.1} parent=1 // pred_fallthru
      _
    // Predicated region
    $region10: #{nade_forward.1} parent=1 // pred_check
      _
    $region11: #{nade_forward.1} parent=1 // pred_check_branch
      %15 = sbr.rel (0) target = $region13
    $region12: #{nade_forward.1} parent=1 // pred_region
      _
    $region13: #{nade_forward.1} parent=1 // pred_fallthru
      _
    // Predicated region
    $region14: #{nade_forward.1} parent=1 // pred_check
      _
    $region15: #{nade_forward.1} parent=1 // pred_check_branch
      %17 = sbr.rel (0) target = $region17
    $region16: #{nade_forward.1} parent=1 // pred_region
      _
    $region17: #{nade_forward.1} parent=1 // pred_fallthru
      _
    %v19 = vlaneseq
    %v20 = vshrl.u32 %v19, 7
    %v21 = vadd.s32 %v20, 8
    %v22 = vadd.s32 %v20, 16
    %v23 = vadd.s32 %v20, 24
    %v24 = vadd.s32 %v20, 32
    %v25 = vadd.s32 %v20, 40
    %v26 = vadd.s32 %v20, 48
    %v27 = vadd.s32 %v20, 56
    %v28 = vadd.s32 %v20, 64
    %v29 = vadd.s32 %v20, 72
    %v30 = vadd.s32 %v20, 80
    %v31 = vadd.s32 %v20, 88
    %v32 = vadd.s32 %v20, 96
    %v33 = vadd.s32 %v20, 104
    %v34 = vadd.s32 %v20, 112
    %v35 = vadd.s32 %v20, 120
    %v36 = vlaneseq
    %v37 = vand.u32 %v36, 127
    %vm38 = vcmp.lt.s32.totalorder %v37, %v20
    %vm39 = vcmp.lt.s32.totalorder %v37, %v21
    %vm40 = vcmp.lt.s32.totalorder %v37, %v22
    %vm41 = vcmp.lt.s32.totalorder %v37, %v23
    %vm42 = vcmp.lt.s32.totalorder %v37, %v24
    %vm43 = vcmp.lt.s32.totalorder %v37, %v25
    %vm44 = vcmp.lt.s32.totalorder %v37, %v26
    %vm45 = vcmp.lt.s32.totalorder %v37, %v27
    %vm46 = vcmp.lt.s32.totalorder %v37, %v28
    %vm47 = vcmp.lt.s32.totalorder %v37, %v29
    %vm48 = vcmp.lt.s32.totalorder %v37, %v30
    %vm49 = vcmp.lt.s32.totalorder %v37, %v31
    %vm50 = vcmp.lt.s32.totalorder %v37, %v32
    %vm51 = vcmp.lt.s32.totalorder %v37, %v33
    %vm52 = vcmp.lt.s32.totalorder %v37, %v34
    %vm53 = vcmp.lt.s32.totalorder %v37, %v35
    %v54 = vsel %vm38, 1, 0
    %v55 = vsel %vm39, 1, 0
    %v56 = vsel %vm40, 1, 0
    %v57 = vsel %vm41, 1, 0
    %v58 = vsel %vm42, 1, 0
    %v59 = vsel %vm43, 1, 0
    %v60 = vsel %vm44, 1, 0
    %v61 = vsel %vm45, 1, 0
    %v62 = vsel %vm46, 1, 0
    %v63 = vsel %vm47, 1, 0
    %v64 = vsel %vm48, 1, 0
    %v65 = vsel %vm49, 1, 0
    %v66 = vsel %vm50, 1, 0
    %v67 = vsel %vm51, 1, 0
    %v68 = vsel %vm52, 1, 0
    %v69 = vsel %vm53, 1, 0
    %v70 = vcvt.s32.f32 %v54
    %v71 = vcvt.s32.f32 %v55
    %v72 = vcvt.s32.f32 %v56
    %v73 = vcvt.s32.f32 %v57
    %v74 = vcvt.s32.f32 %v58
    %v75 = vcvt.s32.f32 %v59
    %v76 = vcvt.s32.f32 %v60
    %v77 = vcvt.s32.f32 %v61
    %v78 = vcvt.s32.f32 %v62
    %v79 = vcvt.s32.f32 %v63
    %v80 = vcvt.s32.f32 %v64
    %v81 = vcvt.s32.f32 %v65
    %v82 = vcvt.s32.f32 %v66
    %v83 = vcvt.s32.f32 %v67
    %v84 = vcvt.s32.f32 %v68
    %v85 = vcvt.s32.f32 %v69
    %v86 = vpack.c.bf16 %v71, %v70
    %v87 = vpack.c.bf16 %v73, %v72
    %v88 = vpack.c.bf16 %v75, %v74
    %v89 = vpack.c.bf16 %v77, %v76
    %v90 = vpack.c.bf16 %v79, %v78
    %v91 = vpack.c.bf16 %v81, %v80
    %v92 = vpack.c.bf16 %v83, %v82
    %v93 = vpack.c.bf16 %v85, %v84
    %v94 = vld [vmem:[%s3] sm:$0x1]
    %v96 = vlaneseq
    %v97 = vshrl.u32 %v96, 7
    %v98 = vsub.s32 0, %v97
    %v99 = vrot.slane %v94, %v98
    %100 = vrot.lane.b32.xlu0 %v99, 64
    %v101 = vpop.permute.xlu0 %100
    %vm103 = vcmask 523264
    %v104 = vsel %vm103, %v94, %v101
    %v105 = vld [vmem:[%s0] sm:$0xff]
    %v106 = vld [vmem:[%s0 + $0x8] sm:$0xff]
    %v107 = vld [vmem:[%s0 + $0x10] sm:$0xff]
    %v108 = vld [vmem:[%s0 + $0x18] sm:$0xff]
    %v109 = vld [vmem:[%s0 + $0x20] sm:$0xff]
    %v110 = vld [vmem:[%s0 + $0x28] sm:$0xff]
    %v111 = vld [vmem:[%s0 + $0x30] sm:$0xff]
    %v112 = vld [vmem:[%s0 + $0x38] sm:$0xff]
    %v113 = vld [vmem:[%s0 + $0x40] sm:$0xff]
    %v114 = vld [vmem:[%s0 + $0x48] sm:$0xff]
    %v115 = vld [vmem:[%s0 + $0x50] sm:$0xff]
    %v116 = vld [vmem:[%s0 + $0x58] sm:$0xff]
    %v117 = vld [vmem:[%s0 + $0x60] sm:$0xff]
    %v118 = vld [vmem:[%s0 + $0x68] sm:$0xff]
    %v119 = vld [vmem:[%s0 + $0x70] sm:$0xff]
    %v120 = vld [vmem:[%s0 + $0x78] sm:$0xff]
    %v121 = vld [vmem:[%s1] sm:$0xff]
    %v122 = vld [vmem:[%s1 + $0x8] sm:$0xff]
    %v123 = vld [vmem:[%s1 + $0x10] sm:$0xff]
    %v124 = vld [vmem:[%s1 + $0x18] sm:$0xff]
    %v125 = vld [vmem:[%s1 + $0x20] sm:$0xff]
    %v126 = vld [vmem:[%s1 + $0x28] sm:$0xff]
    %v127 = vld [vmem:[%s1 + $0x30] sm:$0xff]
    %v128 = vld [vmem:[%s1 + $0x38] sm:$0xff]
    %v129 = vld [vmem:[%s1 + $0x40] sm:$0xff]
    %v130 = vld [vmem:[%s1 + $0x48] sm:$0xff]
    %v131 = vld [vmem:[%s1 + $0x50] sm:$0xff]
    %v132 = vld [vmem:[%s1 + $0x58] sm:$0xff]
    %v133 = vld [vmem:[%s1 + $0x60] sm:$0xff]
    %v134 = vld [vmem:[%s1 + $0x68] sm:$0xff]
    %v135 = vld [vmem:[%s1 + $0x70] sm:$0xff]
    %v136 = vld [vmem:[%s1 + $0x78] sm:$0xff]
    %v137 = vld [vmem:[%s2] sm:$0xff]
    %v138 = vld [vmem:[%s2 + $0x8] sm:$0xff]
    %v139 = vld [vmem:[%s2 + $0x10] sm:$0xff]
    %v140 = vld [vmem:[%s2 + $0x18] sm:$0xff]
    %v141 = vld [vmem:[%s2 + $0x20] sm:$0xff]
    %v142 = vld [vmem:[%s2 + $0x28] sm:$0xff]
    %v143 = vld [vmem:[%s2 + $0x30] sm:$0xff]
    %v144 = vld [vmem:[%s2 + $0x38] sm:$0xff]
    %v145 = vld [vmem:[%s2 + $0x40] sm:$0xff]
    %v146 = vld [vmem:[%s2 + $0x48] sm:$0xff]
    %v147 = vld [vmem:[%s2 + $0x50] sm:$0xff]
    %v148 = vld [vmem:[%s2 + $0x58] sm:$0xff]
    %v149 = vld [vmem:[%s2 + $0x60] sm:$0xff]
    %v150 = vld [vmem:[%s2 + $0x68] sm:$0xff]
    %v151 = vld [vmem:[%s2 + $0x70] sm:$0xff]
    %v152 = vld [vmem:[%s2 + $0x78] sm:$0xff]
    %154 = vset.pattern.permute.xlu0 0
    %155 = vperm.xlu0 %154, %v105
    %v156 = vpop.permute.xlu0 %155
    %159 = vset.pattern.permute.xlu0 0
    %160 = vperm.xlu0 %159, %v106
    %v161 = vpop.permute.xlu0 %160
    %164 = vset.pattern.permute.xlu0 0
    %165 = vperm.xlu0 %164, %v107
    %v166 = vpop.permute.xlu0 %165
    %169 = vset.pattern.permute.xlu0 0
    %170 = vperm.xlu0 %169, %v108
    %v171 = vpop.permute.xlu0 %170
    %174 = vset.pattern.permute.xlu0 0
    %175 = vperm.xlu0 %174, %v109
    %v176 = vpop.permute.xlu0 %175
    %179 = vset.pattern.permute.xlu0 0
    %180 = vperm.xlu0 %179, %v110
    %v181 = vpop.permute.xlu0 %180
    %184 = vset.pattern.permute.xlu0 0
    %185 = vperm.xlu0 %184, %v111
    %v186 = vpop.permute.xlu0 %185
    %189 = vset.pattern.permute.xlu0 0
    %190 = vperm.xlu0 %189, %v112
    %v191 = vpop.permute.xlu0 %190
    %194 = vset.pattern.permute.xlu0 0
    %195 = vperm.xlu0 %194, %v113
    %v196 = vpop.permute.xlu0 %195
    %199 = vset.pattern.permute.xlu0 0
    %200 = vperm.xlu0 %199, %v114
    %v201 = vpop.permute.xlu0 %200
    %204 = vset.pattern.permute.xlu0 0
    %205 = vperm.xlu0 %204, %v115
    %v206 = vpop.permute.xlu0 %205
    %209 = vset.pattern.permute.xlu0 0
    %210 = vperm.xlu0 %209, %v116
    %v211 = vpop.permute.xlu0 %210
    %214 = vset.pattern.permute.xlu0 0
    %215 = vperm.xlu0 %214, %v117
    %v216 = vpop.permute.xlu0 %215
    %219 = vset.pattern.permute.xlu0 0
    %220 = vperm.xlu0 %219, %v118
    %v221 = vpop.permute.xlu0 %220
    %224 = vset.pattern.permute.xlu0 0
    %225 = vperm.xlu0 %224, %v119
    %v226 = vpop.permute.xlu0 %225
    %229 = vset.pattern.permute.xlu0 0
    %230 = vperm.xlu0 %229, %v120
    %v231 = vpop.permute.xlu0 %230
    %v233 = vmul.f32 %v156, %v121
    %v234 = vmul.f32 %v161, %v122
    %v235 = vmul.f32 %v166, %v123
    %v236 = vmul.f32 %v171, %v124
    %v237 = vmul.f32 %v176, %v125
    %v238 = vmul.f32 %v181, %v126
    %v239 = vmul.f32 %v186, %v127
    %v240 = vmul.f32 %v191, %v128
    %v241 = vmul.f32 %v196, %v129
    %v242 = vmul.f32 %v201, %v130
    %v243 = vmul.f32 %v206, %v131
    %v244 = vmul.f32 %v211, %v132
    %v245 = vmul.f32 %v216, %v133
    %v246 = vmul.f32 %v221, %v134
    %v247 = vmul.f32 %v226, %v135
    %v248 = vmul.f32 %v231, %v136
    %249 = vset.pattern.permute.xlu0 1
    %250 = vperm.xlu0 %249, %v105
    %v251 = vpop.permute.xlu0 %250
    %253 = vset.pattern.permute.xlu0 1
    %254 = vperm.xlu0 %253, %v106
    %v255 = vpop.permute.xlu0 %254
    %257 = vset.pattern.permute.xlu0 1
    %258 = vperm.xlu0 %257, %v107
    %v259 = vpop.permute.xlu0 %258
    %261 = vset.pattern.permute.xlu0 1
    %262 = vperm.xlu0 %261, %v108
    %v263 = vpop.permute.xlu0 %262
    %265 = vset.pattern.permute.xlu0 1
    %266 = vperm.xlu0 %265, %v109
    %v267 = vpop.permute.xlu0 %266
    %269 = vset.pattern.permute.xlu0 1
    %270 = vperm.xlu0 %269, %v110
    %v271 = vpop.permute.xlu0 %270
    %273 = vset.pattern.permute.xlu0 1
    %274 = vperm.xlu0 %273, %v111
    %v275 = vpop.permute.xlu0 %274
    %277 = vset.pattern.permute.xlu0 1
    %278 = vperm.xlu0 %277, %v112
    %v279 = vpop.permute.xlu0 %278
    %281 = vset.pattern.permute.xlu0 1
    %282 = vperm.xlu0 %281, %v113
    %v283 = vpop.permute.xlu0 %282
    %285 = vset.pattern.permute.xlu0 1
    %286 = vperm.xlu0 %285, %v114
    %v287 = vpop.permute.xlu0 %286
    %289 = vset.pattern.permute.xlu0 1
    %290 = vperm.xlu0 %289, %v115
    %v291 = vpop.permute.xlu0 %290
    %293 = vset.pattern.permute.xlu0 1
    %294 = vperm.xlu0 %293, %v116
    %v295 = vpop.permute.xlu0 %294
    %297 = vset.pattern.permute.xlu0 1
    %298 = vperm.xlu0 %297, %v117
    %v299 = vpop.permute.xlu0 %298
    %301 = vset.pattern.permute.xlu0 1
    %302 = vperm.xlu0 %301, %v118
    %v303 = vpop.permute.xlu0 %302
    %305 = vset.pattern.permute.xlu0 1
    %306 = vperm.xlu0 %305, %v119
    %v307 = vpop.permute.xlu0 %306
    %309 = vset.pattern.permute.xlu0 1
    %310 = vperm.xlu0 %309, %v120
    %v311 = vpop.permute.xlu0 %310
    %v313 = vmul.f32 %v251, %v121
    %v314 = vmul.f32 %v255, %v122
    %v315 = vmul.f32 %v259, %v123
    %v316 = vmul.f32 %v263, %v124
    %v317 = vmul.f32 %v267, %v125
    %v318 = vmul.f32 %v271, %v126
    %v319 = vmul.f32 %v275, %v127
    %v320 = vmul.f32 %v279, %v128
    %v321 = vmul.f32 %v283, %v129
    %v322 = vmul.f32 %v287, %v130
    %v323 = vmul.f32 %v291, %v131
    %v324 = vmul.f32 %v295, %v132
    %v325 = vmul.f32 %v299, %v133
    %v326 = vmul.f32 %v303, %v134
    %v327 = vmul.f32 %v307, %v135
    %v328 = vmul.f32 %v311, %v136
    %329 = vset.pattern.permute.xlu0 2
    %330 = vperm.xlu0 %329, %v105
    %v331 = vpop.permute.xlu0 %330
    %333 = vset.pattern.permute.xlu0 2
    %334 = vperm.xlu0 %333, %v106
    %v335 = vpop.permute.xlu0 %334
    %337 = vset.pattern.permute.xlu0 2
    %338 = vperm.xlu0 %337, %v107
    %v339 = vpop.permute.xlu0 %338
    %341 = vset.pattern.permute.xlu0 2
    %342 = vperm.xlu0 %341, %v108
    %v343 = vpop.permute.xlu0 %342
    %345 = vset.pattern.permute.xlu0 2
    %346 = vperm.xlu0 %345, %v109
    %v347 = vpop.permute.xlu0 %346
    %349 = vset.pattern.permute.xlu0 2
    %350 = vperm.xlu0 %349, %v110
    %v351 = vpop.permute.xlu0 %350
    %353 = vset.pattern.permute.xlu0 2
    %354 = vperm.xlu0 %353, %v111
    %v355 = vpop.permute.xlu0 %354
    %357 = vset.pattern.permute.xlu0 2
    %358 = vperm.xlu0 %357, %v112
    %v359 = vpop.permute.xlu0 %358
    %361 = vset.pattern.permute.xlu0 2
    %362 = vperm.xlu0 %361, %v113
    %v363 = vpop.permute.xlu0 %362
    %365 = vset.pattern.permute.xlu0 2
    %366 = vperm.xlu0 %365, %v114
    %v367 = vpop.permute.xlu0 %366
    %369 = vset.pattern.permute.xlu0 2
    %370 = vperm.xlu0 %369, %v115
    %v371 = vpop.permute.xlu0 %370
    %373 = vset.pattern.permute.xlu0 2
    %374 = vperm.xlu0 %373, %v116
    %v375 = vpop.permute.xlu0 %374
    %377 = vset.pattern.permute.xlu0 2
    %378 = vperm.xlu0 %377, %v117
    %v379 = vpop.permute.xlu0 %378
    %381 = vset.pattern.permute.xlu0 2
    %382 = vperm.xlu0 %381, %v118
    %v383 = vpop.permute.xlu0 %382
    %385 = vset.pattern.permute.xlu0 2
    %386 = vperm.xlu0 %385, %v119
    %v387 = vpop.permute.xlu0 %386
    %389 = vset.pattern.permute.xlu0 2
    %390 = vperm.xlu0 %389, %v120
    %v391 = vpop.permute.xlu0 %390
    %v393 = vmul.f32 %v331, %v121
    %v394 = vmul.f32 %v335, %v122
    %v395 = vmul.f32 %v339, %v123
    %v396 = vmul.f32 %v343, %v124
    %v397 = vmul.f32 %v347, %v125
    %v398 = vmul.f32 %v351, %v126
    %v399 = vmul.f32 %v355, %v127
    %v400 = vmul.f32 %v359, %v128
    %v401 = vmul.f32 %v363, %v129
    %v402 = vmul.f32 %v367, %v130
    %v403 = vmul.f32 %v371, %v131
    %v404 = vmul.f32 %v375, %v132
    %v405 = vmul.f32 %v379, %v133
    %v406 = vmul.f32 %v383, %v134
    %v407 = vmul.f32 %v387, %v135
    %v408 = vmul.f32 %v391, %v136
    %409 = vset.pattern.permute.xlu0 3
    %410 = vperm.xlu0 %409, %v105
    %v411 = vpop.permute.xlu0 %410
    %413 = vset.pattern.permute.xlu0 3
    %414 = vperm.xlu0 %413, %v106
    %v415 = vpop.permute.xlu0 %414
    %417 = vset.pattern.permute.xlu0 3
    %418 = vperm.xlu0 %417, %v107
    %v419 = vpop.permute.xlu0 %418
    %421 = vset.pattern.permute.xlu0 3
    %422 = vperm.xlu0 %421, %v108
    %v423 = vpop.permute.xlu0 %422
    %425 = vset.pattern.permute.xlu0 3
    %426 = vperm.xlu0 %425, %v109
    %v427 = vpop.permute.xlu0 %426
    %429 = vset.pattern.permute.xlu0 3
    %430 = vperm.xlu0 %429, %v110
    %v431 = vpop.permute.xlu0 %430
    %433 = vset.pattern.permute.xlu0 3
    %434 = vperm.xlu0 %433, %v111
    %v435 = vpop.permute.xlu0 %434
    %437 = vset.pattern.permute.xlu0 3
    %438 = vperm.xlu0 %437, %v112
    %v439 = vpop.permute.xlu0 %438
    %441 = vset.pattern.permute.xlu0 3
    %442 = vperm.xlu0 %441, %v113
    %v443 = vpop.permute.xlu0 %442
    %445 = vset.pattern.permute.xlu0 3
    %446 = vperm.xlu0 %445, %v114
    %v447 = vpop.permute.xlu0 %446
    %449 = vset.pattern.permute.xlu0 3
    %450 = vperm.xlu0 %449, %v115
    %v451 = vpop.permute.xlu0 %450
    %453 = vset.pattern.permute.xlu0 3
    %454 = vperm.xlu0 %453, %v116
    %v455 = vpop.permute.xlu0 %454
    %457 = vset.pattern.permute.xlu0 3
    %458 = vperm.xlu0 %457, %v117
    %v459 = vpop.permute.xlu0 %458
    %461 = vset.pattern.permute.xlu0 3
    %462 = vperm.xlu0 %461, %v118
    %v463 = vpop.permute.xlu0 %462
    %465 = vset.pattern.permute.xlu0 3
    %466 = vperm.xlu0 %465, %v119
    %v467 = vpop.permute.xlu0 %466
    %469 = vset.pattern.permute.xlu0 3
    %470 = vperm.xlu0 %469, %v120
    %v471 = vpop.permute.xlu0 %470
    %v473 = vmul.f32 %v411, %v121
    %v474 = vmul.f32 %v415, %v122
    %v475 = vmul.f32 %v419, %v123
    %v476 = vmul.f32 %v423, %v124
    %v477 = vmul.f32 %v427, %v125
    %v478 = vmul.f32 %v431, %v126
    %v479 = vmul.f32 %v435, %v127
    %v480 = vmul.f32 %v439, %v128
    %v481 = vmul.f32 %v443, %v129
    %v482 = vmul.f32 %v447, %v130
    %v483 = vmul.f32 %v451, %v131
    %v484 = vmul.f32 %v455, %v132
    %v485 = vmul.f32 %v459, %v133
    %v486 = vmul.f32 %v463, %v134
    %v487 = vmul.f32 %v467, %v135
    %v488 = vmul.f32 %v471, %v136
    %505 = vrot.lane.b32.xlu0 %v313, 64
    %v506 = vpop.permute.xlu0 %505
    %507 = vrot.lane.b32.xlu0 %v314, 64
    %v508 = vpop.permute.xlu0 %507
    %509 = vrot.lane.b32.xlu0 %v315, 64
    %v510 = vpop.permute.xlu0 %509
    %511 = vrot.lane.b32.xlu0 %v316, 64
    %v512 = vpop.permute.xlu0 %511
    %513 = vrot.lane.b32.xlu0 %v317, 64
    %v514 = vpop.permute.xlu0 %513
    %515 = vrot.lane.b32.xlu0 %v318, 64
    %v516 = vpop.permute.xlu0 %515
    %517 = vrot.lane.b32.xlu0 %v319, 64
    %v518 = vpop.permute.xlu0 %517
    %519 = vrot.lane.b32.xlu0 %v320, 64
    %v520 = vpop.permute.xlu0 %519
    %521 = vrot.lane.b32.xlu0 %v321, 64
    %v522 = vpop.permute.xlu0 %521
    %523 = vrot.lane.b32.xlu0 %v322, 64
    %v524 = vpop.permute.xlu0 %523
    %525 = vrot.lane.b32.xlu0 %v323, 64
    %v526 = vpop.permute.xlu0 %525
    %527 = vrot.lane.b32.xlu0 %v324, 64
    %v528 = vpop.permute.xlu0 %527
    %529 = vrot.lane.b32.xlu0 %v325, 64
    %v530 = vpop.permute.xlu0 %529
    %531 = vrot.lane.b32.xlu0 %v326, 64
    %v532 = vpop.permute.xlu0 %531
    %533 = vrot.lane.b32.xlu0 %v327, 64
    %v534 = vpop.permute.xlu0 %533
    %535 = vrot.lane.b32.xlu0 %v328, 64
    %v536 = vpop.permute.xlu0 %535
    %569 = vrot.lane.b32.xlu0 %v473, 64
    %v570 = vpop.permute.xlu0 %569
    %571 = vrot.lane.b32.xlu0 %v474, 64
    %v572 = vpop.permute.xlu0 %571
    %573 = vrot.lane.b32.xlu0 %v475, 64
    %v574 = vpop.permute.xlu0 %573
    %575 = vrot.lane.b32.xlu0 %v476, 64
    %v576 = vpop.permute.xlu0 %575
    %577 = vrot.lane.b32.xlu0 %v477, 64
    %v578 = vpop.permute.xlu0 %577
    %579 = vrot.lane.b32.xlu0 %v478, 64
    %v580 = vpop.permute.xlu0 %579
    %581 = vrot.lane.b32.xlu0 %v479, 64
    %v582 = vpop.permute.xlu0 %581
    %583 = vrot.lane.b32.xlu0 %v480, 64
    %v584 = vpop.permute.xlu0 %583
    %585 = vrot.lane.b32.xlu0 %v481, 64
    %v586 = vpop.permute.xlu0 %585
    %587 = vrot.lane.b32.xlu0 %v482, 64
    %v588 = vpop.permute.xlu0 %587
    %589 = vrot.lane.b32.xlu0 %v483, 64
    %v590 = vpop.permute.xlu0 %589
    %591 = vrot.lane.b32.xlu0 %v484, 64
    %v592 = vpop.permute.xlu0 %591
    %593 = vrot.lane.b32.xlu0 %v485, 64
    %v594 = vpop.permute.xlu0 %593
    %595 = vrot.lane.b32.xlu0 %v486, 64
    %v596 = vpop.permute.xlu0 %595
    %597 = vrot.lane.b32.xlu0 %v487, 64
    %v598 = vpop.permute.xlu0 %597
    %599 = vrot.lane.b32.xlu0 %v488, 64
    %v600 = vpop.permute.xlu0 %599
    %v617 = vsel %vm103, %v233, %v506
    %v618 = vsel %vm103, %v234, %v508
    %v619 = vsel %vm103, %v235, %v510
    %v620 = vsel %vm103, %v236, %v512
    %v621 = vsel %vm103, %v237, %v514
    %v622 = vsel %vm103, %v238, %v516
    %v623 = vsel %vm103, %v239, %v518
    %v624 = vsel %vm103, %v240, %v520
    %v625 = vsel %vm103, %v241, %v522
    %v626 = vsel %vm103, %v242, %v524
    %v627 = vsel %vm103, %v243, %v526
    %v628 = vsel %vm103, %v244, %v528
    %v629 = vsel %vm103, %v245, %v530
    %v630 = vsel %vm103, %v246, %v532
    %v631 = vsel %vm103, %v247, %v534
    %v632 = vsel %vm103, %v248, %v536
    %v633 = vsel %vm103, %v393, %v570
    %v634 = vsel %vm103, %v394, %v572
    %v635 = vsel %vm103, %v395, %v574
    %v636 = vsel %vm103, %v396, %v576
    %v637 = vsel %vm103, %v397, %v578
    %v638 = vsel %vm103, %v398, %v580
    %v639 = vsel %vm103, %v399, %v582
    %v640 = vsel %vm103, %v400, %v584
    %v641 = vsel %vm103, %v401, %v586
    %v642 = vsel %vm103, %v402, %v588
    %v643 = vsel %vm103, %v403, %v590
    %v644 = vsel %vm103, %v404, %v592
    %v645 = vsel %vm103, %v405, %v594
    %v646 = vsel %vm103, %v406, %v596
    %v647 = vsel %vm103, %v407, %v598
    %v648 = vsel %vm103, %v408, %v600
    %v649 = vpack.c.bf16 %v618, %v617
    %v650 = vpack.c.bf16 %v634, %v633
    %v651 = vpack.c.bf16 %v620, %v619
    %v652 = vpack.c.bf16 %v636, %v635
    %v653 = vpack.c.bf16 %v622, %v621
    %v654 = vpack.c.bf16 %v638, %v637
    %v655 = vpack.c.bf16 %v624, %v623
    %v656 = vpack.c.bf16 %v640, %v639
    %v657 = vpack.c.bf16 %v626, %v625
    %v658 = vpack.c.bf16 %v642, %v641
    %v659 = vpack.c.bf16 %v628, %v627
    %v660 = vpack.c.bf16 %v644, %v643
    %v661 = vpack.c.bf16 %v630, %v629
    %v662 = vpack.c.bf16 %v646, %v645
    %v663 = vpack.c.bf16 %v632, %v631
    %v664 = vpack.c.bf16 %v648, %v647
    %v665 = vunpack.c.l.bf16 %v649
    %v666 = vunpack.c.l.bf16 %v650
    %v667 = vunpack.c.h.bf16 %v649
    %v668 = vunpack.c.h.bf16 %v650
    %v669 = vunpack.c.l.bf16 %v651
    %v670 = vunpack.c.l.bf16 %v652
    %v671 = vunpack.c.h.bf16 %v651
    %v672 = vunpack.c.h.bf16 %v652
    %v673 = vunpack.c.l.bf16 %v653
    %v674 = vunpack.c.l.bf16 %v654
    %v675 = vunpack.c.h.bf16 %v653
    %v676 = vunpack.c.h.bf16 %v654
    %v677 = vunpack.c.l.bf16 %v655
    %v678 = vunpack.c.l.bf16 %v656
    %v679 = vunpack.c.h.bf16 %v655
    %v680 = vunpack.c.h.bf16 %v656
    %v681 = vunpack.c.l.bf16 %v657
    %v682 = vunpack.c.l.bf16 %v658
    %v683 = vunpack.c.h.bf16 %v657
    %v684 = vunpack.c.h.bf16 %v658
    %v685 = vunpack.c.l.bf16 %v659
    %v686 = vunpack.c.l.bf16 %v660
    %v687 = vunpack.c.h.bf16 %v659
    %v688 = vunpack.c.h.bf16 %v660
    %v689 = vunpack.c.l.bf16 %v661
    %v690 = vunpack.c.l.bf16 %v662
    %v691 = vunpack.c.h.bf16 %v661
    %v692 = vunpack.c.h.bf16 %v662
    %v693 = vunpack.c.l.bf16 %v663
    %v694 = vunpack.c.l.bf16 %v664
    %v695 = vunpack.c.h.bf16 %v663
    %v696 = vunpack.c.h.bf16 %v664
    %v697 = vsub.f32 %v617, %v665
    %v698 = vsub.f32 %v633, %v666
    %v699 = vsub.f32 %v618, %v667
    %v700 = vsub.f32 %v634, %v668
    %v701 = vsub.f32 %v619, %v669
    %v702 = vsub.f32 %v635, %v670
    %v703 = vsub.f32 %v620, %v671
    %v704 = vsub.f32 %v636, %v672
    %v705 = vsub.f32 %v621, %v673
    %v706 = vsub.f32 %v637, %v674
    %v707 = vsub.f32 %v622, %v675
    %v708 = vsub.f32 %v638, %v676
    %v709 = vsub.f32 %v623, %v677
    %v710 = vsub.f32 %v639, %v678
    %v711 = vsub.f32 %v624, %v679
    %v712 = vsub.f32 %v640, %v680
    %v713 = vsub.f32 %v625, %v681
    %v714 = vsub.f32 %v641, %v682
    %v715 = vsub.f32 %v626, %v683
    %v716 = vsub.f32 %v642, %v684
    %v717 = vsub.f32 %v627, %v685
    %v718 = vsub.f32 %v643, %v686
    %v719 = vsub.f32 %v628, %v687
    %v720 = vsub.f32 %v644, %v688
    %v721 = vsub.f32 %v629, %v689
    %v722 = vsub.f32 %v645, %v690
    %v723 = vsub.f32 %v630, %v691
    %v724 = vsub.f32 %v646, %v692
    %v725 = vsub.f32 %v631, %v693
    %v726 = vsub.f32 %v647, %v694
    %v727 = vsub.f32 %v632, %v695
    %v728 = vsub.f32 %v648, %v696
    %v729 = vpack.c.bf16 %v699, %v697
    %v730 = vpack.c.bf16 %v700, %v698
    %v731 = vpack.c.bf16 %v703, %v701
    %v732 = vpack.c.bf16 %v704, %v702
    %v733 = vpack.c.bf16 %v707, %v705
    %v734 = vpack.c.bf16 %v708, %v706
    %v735 = vpack.c.bf16 %v711, %v709
    %v736 = vpack.c.bf16 %v712, %v710
    %v737 = vpack.c.bf16 %v715, %v713
    %v738 = vpack.c.bf16 %v716, %v714
    %v739 = vpack.c.bf16 %v719, %v717
    %v740 = vpack.c.bf16 %v720, %v718
    %v741 = vpack.c.bf16 %v723, %v721
    %v742 = vpack.c.bf16 %v724, %v722
    %v743 = vpack.c.bf16 %v727, %v725
    %v744 = vpack.c.bf16 %v728, %v726
    %745 = vmatprep.subr.bf16.mxu0 %v744
    %746 = vmatpush1.bf16.msra.mxu0 %v743
    %747 = vmatprep.subr.bf16.mxu0 %v742
    %748 = vmatpush1.bf16.msra.mxu0 %v741
    %749 = vmatprep.subr.bf16.mxu0 %v740
    %750 = vmatpush1.bf16.msra.mxu0 %v739
    %751 = vmatprep.subr.bf16.mxu0 %v738
    %752 = vmatpush1.bf16.msra.mxu0 %v737
    %753 = vmatprep.subr.bf16.mxu0 %v736
    %754 = vmatpush1.bf16.msra.mxu0 %v735
    %755 = vmatprep.subr.bf16.mxu0 %v734
    %756 = vmatpush1.bf16.msra.mxu0 %v733
    %757 = vmatprep.subr.bf16.mxu0 %v732
    %758 = vmatpush1.bf16.msra.mxu0 %v731
    %759 = vmatprep.subr.bf16.mxu0 %v730
    %760 = vmatpush1.bf16.msra.mxu0 %v729
    %761 = vmatprep.subr.bf16.mxu0 0
    %762 = vmatpush2.bf16.msra.mxu0 0
    %763 = vmatprep.subr.bf16.mxu0 0
    %764 = vmatpush2.bf16.msra.mxu0 0
    %765 = vmatprep.subr.bf16.mxu0 0
    %766 = vmatpush2.bf16.msra.mxu0 0
    %767 = vmatprep.subr.bf16.mxu0 0
    %768 = vmatpush2.bf16.msra.mxu0 0
    %769 = vmatprep.subr.bf16.mxu0 0
    %770 = vmatpush2.bf16.msra.mxu0 0
    %771 = vmatprep.subr.bf16.mxu0 0
    %772 = vmatpush2.bf16.msra.mxu0 0
    %773 = vmatprep.subr.bf16.mxu0 0
    %774 = vmatpush2.bf16.msra.mxu0 0
    %775 = vmatprep.subr.bf16.mxu0 0
    %776 = vmatpush2.bf16.msra.mxu0 0
    %777 = vmatprep.mubr.bf16.mxu0 0
    %778 = vmatmul.mubr.bf16.gmra.mxu0 %v86
    %v779 = vpop.f32.mrf.mxu0
    %v780 = vadd.f32 0.0, %v779
    %v781 = vpop.f32.mrf.mxu0
    %v782 = vadd.f32 0.0, %v781
    %v783 = vpop.f32.mrf.mxu0
    %v784 = vadd.f32 0.0, %v783
    %v785 = vpop.f32.mrf.mxu0
    %v786 = vadd.f32 0.0, %v785
    %787 = vmatprep.mubr.bf16.mxu0 0
    %788 = vmatmul.mubr.bf16.gmra.mxu0 %v87
    %v789 = vpop.f32.mrf.mxu0
    %v790 = vadd.f32 0.0, %v789
    %v791 = vpop.f32.mrf.mxu0
    %v792 = vadd.f32 0.0, %v791
    %v793 = vpop.f32.mrf.mxu0
    %v794 = vadd.f32 0.0, %v793
    %v795 = vpop.f32.mrf.mxu0
    %v796 = vadd.f32 0.0, %v795
    %797 = vmatprep.mubr.bf16.mxu0 0
    %798 = vmatmul.mubr.bf16.gmra.mxu0 %v88
    %v799 = vpop.f32.mrf.mxu0
    %v800 = vadd.f32 0.0, %v799
    %v801 = vpop.f32.mrf.mxu0
    %v802 = vadd.f32 0.0, %v801
    %v803 = vpop.f32.mrf.mxu0
    %v804 = vadd.f32 0.0, %v803
    %v805 = vpop.f32.mrf.mxu0
    %v806 = vadd.f32 0.0, %v805
    %807 = vmatprep.mubr.bf16.mxu0 0
    %808 = vmatmul.mubr.bf16.gmra.mxu0 %v89
    %v809 = vpop.f32.mrf.mxu0
    %v810 = vadd.f32 0.0, %v809
    %v811 = vpop.f32.mrf.mxu0
    %v812 = vadd.f32 0.0, %v811
    %v813 = vpop.f32.mrf.mxu0
    %v814 = vadd.f32 0.0, %v813
    %v815 = vpop.f32.mrf.mxu0
    %v816 = vadd.f32 0.0, %v815
    %817 = vmatprep.mubr.bf16.mxu0 0
    %818 = vmatmul.mubr.bf16.gmra.mxu0 %v90
    %v819 = vpop.f32.mrf.mxu0
    %v820 = vadd.f32 0.0, %v819
    %v821 = vpop.f32.mrf.mxu0
    %v822 = vadd.f32 0.0, %v821
    %v823 = vpop.f32.mrf.mxu0
    %v824 = vadd.f32 0.0, %v823
    %v825 = vpop.f32.mrf.mxu0
    %v826 = vadd.f32 0.0, %v825
    %827 = vmatprep.mubr.bf16.mxu0 0
    %828 = vmatmul.mubr.bf16.gmra.mxu0 %v91
    %v829 = vpop.f32.mrf.mxu0
    %v830 = vadd.f32 0.0, %v829
    %v831 = vpop.f32.mrf.mxu0
    %v832 = vadd.f32 0.0, %v831
    %v833 = vpop.f32.mrf.mxu0
    %v834 = vadd.f32 0.0, %v833
    %v835 = vpop.f32.mrf.mxu0
    %v836 = vadd.f32 0.0, %v835
    %837 = vmatprep.mubr.bf16.mxu0 0
    %838 = vmatmul.mubr.bf16.gmra.mxu0 %v92
    %v839 = vpop.f32.mrf.mxu0
    %v840 = vadd.f32 0.0, %v839
    %v841 = vpop.f32.mrf.mxu0
    %v842 = vadd.f32 0.0, %v841
    %v843 = vpop.f32.mrf.mxu0
    %v844 = vadd.f32 0.0, %v843
    %v845 = vpop.f32.mrf.mxu0
    %v846 = vadd.f32 0.0, %v845
    %847 = vmatprep.mubr.bf16.mxu0 0
    %848 = vmatmul.mubr.bf16.gmra.mxu0 %v93
    %v849 = vpop.f32.mrf.mxu0
    %v850 = vadd.f32 0.0, %v849
    %v851 = vpop.f32.mrf.mxu0
    %v852 = vadd.f32 0.0, %v851
    %v853 = vpop.f32.mrf.mxu0
    %v854 = vadd.f32 0.0, %v853
    %v855 = vpop.f32.mrf.mxu0
    %v856 = vadd.f32 0.0, %v855
    %857 = vdwg.mxu0
    %858 = vmatprep.subr.bf16.mxu0 %v664
    %859 = vmatpush1.bf16.msra.mxu0 %v663
    %860 = vmatprep.subr.bf16.mxu0 %v662
    %861 = vmatpush1.bf16.msra.mxu0 %v661
    %862 = vmatprep.subr.bf16.mxu0 %v660
    %863 = vmatpush1.bf16.msra.mxu0 %v659
    %864 = vmatprep.subr.bf16.mxu0 %v658
    %865 = vmatpush1.bf16.msra.mxu0 %v657
    %866 = vmatprep.subr.bf16.mxu0 %v656
    %867 = vmatpush1.bf16.msra.mxu0 %v655
    %868 = vmatprep.subr.bf16.mxu0 %v654
    %869 = vmatpush1.bf16.msra.mxu0 %v653
    %870 = vmatprep.subr.bf16.mxu0 %v652
    %871 = vmatpush1.bf16.msra.mxu0 %v651
    %872 = vmatprep.subr.bf16.mxu0 %v650
    %873 = vmatpush1.bf16.msra.mxu0 %v649
    %874 = vmatprep.subr.bf16.mxu0 0
    %875 = vmatpush2.bf16.msra.mxu0 0
    %876 = vmatprep.subr.bf16.mxu0 0
    %877 = vmatpush2.bf16.msra.mxu0 0
    %878 = vmatprep.subr.bf16.mxu0 0
    %879 = vmatpush2.bf16.msra.mxu0 0
    %880 = vmatprep.subr.bf16.mxu0 0
    %881 = vmatpush2.bf16.msra.mxu0 0
    %882 = vmatprep.subr.bf16.mxu0 0
    %883 = vmatpush2.bf16.msra.mxu0 0
    %884 = vmatprep.subr.bf16.mxu0 0
    %885 = vmatpush2.bf16.msra.mxu0 0
    %886 = vmatprep.subr.bf16.mxu0 0
    %887 = vmatpush2.bf16.msra.mxu0 0
    %888 = vmatprep.subr.bf16.mxu0 0
    %889 = vmatpush2.bf16.msra.mxu0 0
    %890 = vmatprep.mubr.bf16.mxu0 0
    %891 = vmatmul.mubr.bf16.gmra.mxu0 %v86
    %v892 = vpop.f32.mrf.mxu0
    %v893 = vadd.f32 %v780, %v892
    %v894 = vpop.f32.mrf.mxu0
    %v895 = vadd.f32 %v782, %v894
    %v896 = vpop.f32.mrf.mxu0
    %v897 = vadd.f32 %v784, %v896
    %v898 = vpop.f32.mrf.mxu0
    %v899 = vadd.f32 %v786, %v898
    %900 = vmatprep.mubr.bf16.mxu0 0
    %901 = vmatmul.mubr.bf16.gmra.mxu0 %v87
    %v902 = vpop.f32.mrf.mxu0
    %v903 = vadd.f32 %v790, %v902
    %v904 = vpop.f32.mrf.mxu0
    %v905 = vadd.f32 %v792, %v904
    %v906 = vpop.f32.mrf.mxu0
    %v907 = vadd.f32 %v794, %v906
    %v908 = vpop.f32.mrf.mxu0
    %v909 = vadd.f32 %v796, %v908
    %910 = vmatprep.mubr.bf16.mxu0 0
    %911 = vmatmul.mubr.bf16.gmra.mxu0 %v88
    %v912 = vpop.f32.mrf.mxu0
    %v913 = vadd.f32 %v800, %v912
    %v914 = vpop.f32.mrf.mxu0
    %v915 = vadd.f32 %v802, %v914
    %v916 = vpop.f32.mrf.mxu0
    %v917 = vadd.f32 %v804, %v916
    %v918 = vpop.f32.mrf.mxu0
    %v919 = vadd.f32 %v806, %v918
    %920 = vmatprep.mubr.bf16.mxu0 0
    %921 = vmatmul.mubr.bf16.gmra.mxu0 %v89
    %v922 = vpop.f32.mrf.mxu0
    %v923 = vadd.f32 %v810, %v922
    %v924 = vpop.f32.mrf.mxu0
    %v925 = vadd.f32 %v812, %v924
    %v926 = vpop.f32.mrf.mxu0
    %v927 = vadd.f32 %v814, %v926
    %v928 = vpop.f32.mrf.mxu0
    %v929 = vadd.f32 %v816, %v928
    %930 = vmatprep.mubr.bf16.mxu0 0
    %931 = vmatmul.mubr.bf16.gmra.mxu0 %v90
    %v932 = vpop.f32.mrf.mxu0
    %v933 = vadd.f32 %v820, %v932
    %v934 = vpop.f32.mrf.mxu0
    %v935 = vadd.f32 %v822, %v934
    %v936 = vpop.f32.mrf.mxu0
    %v937 = vadd.f32 %v824, %v936
    %v938 = vpop.f32.mrf.mxu0
    %v939 = vadd.f32 %v826, %v938
    %940 = vmatprep.mubr.bf16.mxu0 0
    %941 = vmatmul.mubr.bf16.gmra.mxu0 %v91
    %v942 = vpop.f32.mrf.mxu0
    %v943 = vadd.f32 %v830, %v942
    %v944 = vpop.f32.mrf.mxu0
    %v945 = vadd.f32 %v832, %v944
    %v946 = vpop.f32.mrf.mxu0
    %v947 = vadd.f32 %v834, %v946
    %v948 = vpop.f32.mrf.mxu0
    %v949 = vadd.f32 %v836, %v948
    %950 = vmatprep.mubr.bf16.mxu0 0
    %951 = vmatmul.mubr.bf16.gmra.mxu0 %v92
    %v952 = vpop.f32.mrf.mxu0
    %v953 = vadd.f32 %v840, %v952
    %v954 = vpop.f32.mrf.mxu0
    %v955 = vadd.f32 %v842, %v954
    %v956 = vpop.f32.mrf.mxu0
    %v957 = vadd.f32 %v844, %v956
    %v958 = vpop.f32.mrf.mxu0
    %v959 = vadd.f32 %v846, %v958
    %960 = vmatprep.mubr.bf16.mxu0 0
    %961 = vmatmul.mubr.bf16.gmra.mxu0 %v93
    %v962 = vpop.f32.mrf.mxu0
    %v963 = vadd.f32 %v850, %v962
    %v964 = vpop.f32.mrf.mxu0
    %v965 = vadd.f32 %v852, %v964
    %v966 = vpop.f32.mrf.mxu0
    %v967 = vadd.f32 %v854, %v966
    %v968 = vpop.f32.mrf.mxu0
    %v969 = vadd.f32 %v856, %v968
    %970 = vdwg.mxu0
    %v971 = vlaneseq
    %v972 = vshrl.u32 %v971, 7
    %v973 = vsub.s32 0, %v972
    %v974 = vrot.slane %v104, %v973
    %v975 = vadd.f32 %v893, %v974
    %v976 = vadd.f32 %v895, %v974
    %v977 = vadd.f32 %v897, %v974
    %v978 = vadd.f32 %v899, %v974
    %v979 = vadd.f32 %v903, %v974
    %v980 = vadd.f32 %v905, %v974
    %v981 = vadd.f32 %v907, %v974
    %v982 = vadd.f32 %v909, %v974
    %v983 = vadd.f32 %v913, %v974
    %v984 = vadd.f32 %v915, %v974
    %v985 = vadd.f32 %v917, %v974
    %v986 = vadd.f32 %v919, %v974
    %v987 = vadd.f32 %v923, %v974
    %v988 = vadd.f32 %v925, %v974
    %v989 = vadd.f32 %v927, %v974
    %v990 = vadd.f32 %v929, %v974
    %v991 = vadd.f32 %v933, %v974
    %v992 = vadd.f32 %v935, %v974
    %v993 = vadd.f32 %v937, %v974
    %v994 = vadd.f32 %v939, %v974
    %v995 = vadd.f32 %v943, %v974
    %v996 = vadd.f32 %v945, %v974
    %v997 = vadd.f32 %v947, %v974
    %v998 = vadd.f32 %v949, %v974
    %v999 = vadd.f32 %v953, %v974
    %v1000 = vadd.f32 %v955, %v974
    %v1001 = vadd.f32 %v957, %v974
    %v1002 = vadd.f32 %v959, %v974
    %v1003 = vadd.f32 %v963, %v974
    %v1004 = vadd.f32 %v965, %v974
    %v1005 = vadd.f32 %v967, %v974
    %v1006 = vadd.f32 %v969, %v974
    %v1007 = vxor.u32 %v975, 2147483648
    %v1008 = vxor.u32 %v976, 2147483648
    %v1009 = vxor.u32 %v977, 2147483648
    %v1010 = vxor.u32 %v978, 2147483648
    %v1011 = vxor.u32 %v979, 2147483648
    %v1012 = vxor.u32 %v980, 2147483648
    %v1013 = vxor.u32 %v981, 2147483648
    %v1014 = vxor.u32 %v982, 2147483648
    %v1015 = vxor.u32 %v983, 2147483648
    %v1016 = vxor.u32 %v984, 2147483648
    %v1017 = vxor.u32 %v985, 2147483648
    %v1018 = vxor.u32 %v986, 2147483648
    %v1019 = vxor.u32 %v987, 2147483648
    %v1020 = vxor.u32 %v988, 2147483648
    %v1021 = vxor.u32 %v989, 2147483648
    %v1022 = vxor.u32 %v990, 2147483648
    %v1023 = vxor.u32 %v991, 2147483648
    %v1024 = vxor.u32 %v992, 2147483648
    %v1025 = vxor.u32 %v993, 2147483648
    %v1026 = vxor.u32 %v994, 2147483648
    %v1027 = vxor.u32 %v995, 2147483648
    %v1028 = vxor.u32 %v996, 2147483648
    %v1029 = vxor.u32 %v997, 2147483648
    %v1030 = vxor.u32 %v998, 2147483648
    %v1031 = vxor.u32 %v999, 2147483648
    %v1032 = vxor.u32 %v1000, 2147483648
    %v1033 = vxor.u32 %v1001, 2147483648
    %v1034 = vxor.u32 %v1002, 2147483648
    %v1035 = vxor.u32 %v1003, 2147483648
    %v1036 = vxor.u32 %v1004, 2147483648
    %v1037 = vxor.u32 %v1005, 2147483648
    %v1038 = vxor.u32 %v1006, 2147483648
    %v1039 = vmul.f32 %v1007, 1.442695
    %v1040 = vpow.pop %v1039
    %v1041 = vmul.f32 %v1008, 1.442695
    %v1042 = vpow.pop %v1041
    %v1043 = vmul.f32 %v1009, 1.442695
    %v1044 = vpow.pop %v1043
    %v1045 = vmul.f32 %v1010, 1.442695
    %v1046 = vpow.pop %v1045
    %v1047 = vmul.f32 %v1011, 1.442695
    %v1048 = vpow.pop %v1047
    %v1049 = vmul.f32 %v1012, 1.442695
    %v1050 = vpow.pop %v1049
    %v1051 = vmul.f32 %v1013, 1.442695
    %v1052 = vpow.pop %v1051
    %v1053 = vmul.f32 %v1014, 1.442695
    %v1054 = vpow.pop %v1053
    %v1055 = vmul.f32 %v1015, 1.442695
    %v1056 = vpow.pop %v1055
    %v1057 = vmul.f32 %v1016, 1.442695
    %v1058 = vpow.pop %v1057
    %v1059 = vmul.f32 %v1017, 1.442695
    %v1060 = vpow.pop %v1059
    %v1061 = vmul.f32 %v1018, 1.442695
    %v1062 = vpow.pop %v1061
    %v1063 = vmul.f32 %v1019, 1.442695
    %v1064 = vpow.pop %v1063
    %v1065 = vmul.f32 %v1020, 1.442695
    %v1066 = vpow.pop %v1065
    %v1067 = vmul.f32 %v1021, 1.442695
    %v1068 = vpow.pop %v1067
    %v1069 = vmul.f32 %v1022, 1.442695
    %v1070 = vpow.pop %v1069
    %v1071 = vmul.f32 %v1023, 1.442695
    %v1072 = vpow.pop %v1071
    %v1073 = vmul.f32 %v1024, 1.442695
    %v1074 = vpow.pop %v1073
    %v1075 = vmul.f32 %v1025, 1.442695
    %v1076 = vpow.pop %v1075
    %v1077 = vmul.f32 %v1026, 1.442695
    %v1078 = vpow.pop %v1077
    %v1079 = vmul.f32 %v1027, 1.442695
    %v1080 = vpow.pop %v1079
    %v1081 = vmul.f32 %v1028, 1.442695
    %v1082 = vpow.pop %v1081
    %v1083 = vmul.f32 %v1029, 1.442695
    %v1084 = vpow.pop %v1083
    %v1085 = vmul.f32 %v1030, 1.442695
    %v1086 = vpow.pop %v1085
    %v1087 = vmul.f32 %v1031, 1.442695
    %v1088 = vpow.pop %v1087
    %v1089 = vmul.f32 %v1032, 1.442695
    %v1090 = vpow.pop %v1089
    %v1091 = vmul.f32 %v1033, 1.442695
    %v1092 = vpow.pop %v1091
    %v1093 = vmul.f32 %v1034, 1.442695
    %v1094 = vpow.pop %v1093
    %v1095 = vmul.f32 %v1035, 1.442695
    %v1096 = vpow.pop %v1095
    %v1097 = vmul.f32 %v1036, 1.442695
    %v1098 = vpow.pop %v1097
    %v1099 = vmul.f32 %v1037, 1.442695
    %v1100 = vpow.pop %v1099
    %v1101 = vmul.f32 %v1038, 1.442695
    %v1102 = vpow.pop %v1101
    %v1103 = vadd.f32 %v1040, 1.0
    %v1104 = vadd.f32 %v1042, 1.0
    %v1105 = vadd.f32 %v1044, 1.0
    %v1106 = vadd.f32 %v1046, 1.0
    %v1107 = vadd.f32 %v1048, 1.0
    %v1108 = vadd.f32 %v1050, 1.0
    %v1109 = vadd.f32 %v1052, 1.0
    %v1110 = vadd.f32 %v1054, 1.0
    %v1111 = vadd.f32 %v1056, 1.0
    %v1112 = vadd.f32 %v1058, 1.0
    %v1113 = vadd.f32 %v1060, 1.0
    %v1114 = vadd.f32 %v1062, 1.0
    %v1115 = vadd.f32 %v1064, 1.0
    %v1116 = vadd.f32 %v1066, 1.0
    %v1117 = vadd.f32 %v1068, 1.0
    %v1118 = vadd.f32 %v1070, 1.0
    %v1119 = vadd.f32 %v1072, 1.0
    %v1120 = vadd.f32 %v1074, 1.0
    %v1121 = vadd.f32 %v1076, 1.0
    %v1122 = vadd.f32 %v1078, 1.0
    %v1123 = vadd.f32 %v1080, 1.0
    %v1124 = vadd.f32 %v1082, 1.0
    %v1125 = vadd.f32 %v1084, 1.0
    %v1126 = vadd.f32 %v1086, 1.0
    %v1127 = vadd.f32 %v1088, 1.0
    %v1128 = vadd.f32 %v1090, 1.0
    %v1129 = vadd.f32 %v1092, 1.0
    %v1130 = vadd.f32 %v1094, 1.0
    %v1131 = vadd.f32 %v1096, 1.0
    %v1132 = vadd.f32 %v1098, 1.0
    %v1133 = vadd.f32 %v1100, 1.0
    %v1134 = vadd.f32 %v1102, 1.0
    %v1135 = vrcp.pop %v1103
    %v1136 = vmul.f32 1.0, %v1135
    %v1137 = vrcp.pop %v1104
    %v1138 = vmul.f32 1.0, %v1137
    %v1139 = vrcp.pop %v1105
    %v1140 = vmul.f32 1.0, %v1139
    %v1141 = vrcp.pop %v1106
    %v1142 = vmul.f32 1.0, %v1141
    %v1143 = vrcp.pop %v1107
    %v1144 = vmul.f32 1.0, %v1143
    %v1145 = vrcp.pop %v1108
    %v1146 = vmul.f32 1.0, %v1145
    %v1147 = vrcp.pop %v1109
    %v1148 = vmul.f32 1.0, %v1147
    %v1149 = vrcp.pop %v1110
    %v1150 = vmul.f32 1.0, %v1149
    %v1151 = vrcp.pop %v1111
    %v1152 = vmul.f32 1.0, %v1151
    %v1153 = vrcp.pop %v1112
    %v1154 = vmul.f32 1.0, %v1153
    %v1155 = vrcp.pop %v1113
    %v1156 = vmul.f32 1.0, %v1155
    %v1157 = vrcp.pop %v1114
    %v1158 = vmul.f32 1.0, %v1157
    %v1159 = vrcp.pop %v1115
    %v1160 = vmul.f32 1.0, %v1159
    %v1161 = vrcp.pop %v1116
    %v1162 = vmul.f32 1.0, %v1161
    %v1163 = vrcp.pop %v1117
    %v1164 = vmul.f32 1.0, %v1163
    %v1165 = vrcp.pop %v1118
    %v1166 = vmul.f32 1.0, %v1165
    %v1167 = vrcp.pop %v1119
    %v1168 = vmul.f32 1.0, %v1167
    %v1169 = vrcp.pop %v1120
    %v1170 = vmul.f32 1.0, %v1169
    %v1171 = vrcp.pop %v1121
    %v1172 = vmul.f32 1.0, %v1171
    %v1173 = vrcp.pop %v1122
    %v1174 = vmul.f32 1.0, %v1173
    %v1175 = vrcp.pop %v1123
    %v1176 = vmul.f32 1.0, %v1175
    %v1177 = vrcp.pop %v1124
    %v1178 = vmul.f32 1.0, %v1177
    %v1179 = vrcp.pop %v1125
    %v1180 = vmul.f32 1.0, %v1179
    %v1181 = vrcp.pop %v1126
    %v1182 = vmul.f32 1.0, %v1181
    %v1183 = vrcp.pop %v1127
    %v1184 = vmul.f32 1.0, %v1183
    %v1185 = vrcp.pop %v1128
    %v1186 = vmul.f32 1.0, %v1185
    %v1187 = vrcp.pop %v1129
    %v1188 = vmul.f32 1.0, %v1187
    %v1189 = vrcp.pop %v1130
    %v1190 = vmul.f32 1.0, %v1189
    %v1191 = vrcp.pop %v1131
    %v1192 = vmul.f32 1.0, %v1191
    %v1193 = vrcp.pop %v1132
    %v1194 = vmul.f32 1.0, %v1193
    %v1195 = vrcp.pop %v1133
    %v1196 = vmul.f32 1.0, %v1195
    %v1197 = vrcp.pop %v1134
    %v1198 = vmul.f32 1.0, %v1197
    %v1199 = vmul.f32 %v1136, %v137
    %v1200 = vmul.f32 %v1140, %v138
    %v1201 = vmul.f32 %v1144, %v139
    %v1202 = vmul.f32 %v1148, %v140
    %v1203 = vmul.f32 %v1152, %v141
    %v1204 = vmul.f32 %v1156, %v142
    %v1205 = vmul.f32 %v1160, %v143
    %v1206 = vmul.f32 %v1164, %v144
    %v1207 = vmul.f32 %v1168, %v145
    %v1208 = vmul.f32 %v1172, %v146
    %v1209 = vmul.f32 %v1176, %v147
    %v1210 = vmul.f32 %v1180, %v148
    %v1211 = vmul.f32 %v1184, %v149
    %v1212 = vmul.f32 %v1188, %v150
    %v1213 = vmul.f32 %v1192, %v151
    %v1214 = vmul.f32 %v1196, %v152
    %v1215 = vsel %vm103, %v1199, 0.0
    %1216 = vadd.xlane.f32.xlu0 %v1215
    %v1217 = vpop.xlane.xlu0 %1216
    %v1218 = vsel %vm103, %v1200, 0.0
    %1219 = vadd.xlane.f32.xlu0 %v1218
    %v1220 = vpop.xlane.xlu0 %1219
    %v1221 = vsel %vm103, %v1201, 0.0
    %1222 = vadd.xlane.f32.xlu0 %v1221
    %v1223 = vpop.xlane.xlu0 %1222
    %v1224 = vsel %vm103, %v1202, 0.0
    %1225 = vadd.xlane.f32.xlu0 %v1224
    %v1226 = vpop.xlane.xlu0 %1225
    %v1227 = vsel %vm103, %v1203, 0.0
    %1228 = vadd.xlane.f32.xlu0 %v1227
    %v1229 = vpop.xlane.xlu0 %1228
    %v1230 = vsel %vm103, %v1204, 0.0
    %1231 = vadd.xlane.f32.xlu0 %v1230
    %v1232 = vpop.xlane.xlu0 %1231
    %v1233 = vsel %vm103, %v1205, 0.0
    %1234 = vadd.xlane.f32.xlu0 %v1233
    %v1235 = vpop.xlane.xlu0 %1234
    %v1236 = vsel %vm103, %v1206, 0.0
    %1237 = vadd.xlane.f32.xlu0 %v1236
    %v1238 = vpop.xlane.xlu0 %1237
    %v1239 = vsel %vm103, %v1207, 0.0
    %1240 = vadd.xlane.f32.xlu0 %v1239
    %v1241 = vpop.xlane.xlu0 %1240
    %v1242 = vsel %vm103, %v1208, 0.0
    %1243 = vadd.xlane.f32.xlu0 %v1242
    %v1244 = vpop.xlane.xlu0 %1243
    %v1245 = vsel %vm103, %v1209, 0.0
    %1246 = vadd.xlane.f32.xlu0 %v1245
    %v1247 = vpop.xlane.xlu0 %1246
    %v1248 = vsel %vm103, %v1210, 0.0
    %1249 = vadd.xlane.f32.xlu0 %v1248
    %v1250 = vpop.xlane.xlu0 %1249
    %v1251 = vsel %vm103, %v1211, 0.0
    %1252 = vadd.xlane.f32.xlu0 %v1251
    %v1253 = vpop.xlane.xlu0 %1252
    %v1254 = vsel %vm103, %v1212, 0.0
    %1255 = vadd.xlane.f32.xlu0 %v1254
    %v1256 = vpop.xlane.xlu0 %1255
    %v1257 = vsel %vm103, %v1213, 0.0
    %1258 = vadd.xlane.f32.xlu0 %v1257
    %v1259 = vpop.xlane.xlu0 %1258
    %v1260 = vsel %vm103, %v1214, 0.0
    %1261 = vadd.xlane.f32.xlu0 %v1260
    %v1262 = vpop.xlane.xlu0 %1261
    %1279 = vrot.lane.b32.xlu0 %v137, 64
    %v1280 = vpop.permute.xlu0 %1279
    %1281 = vrot.lane.b32.xlu0 %v138, 64
    %v1282 = vpop.permute.xlu0 %1281
    %1283 = vrot.lane.b32.xlu0 %v139, 64
    %v1284 = vpop.permute.xlu0 %1283
    %1285 = vrot.lane.b32.xlu0 %v140, 64
    %v1286 = vpop.permute.xlu0 %1285
    %1287 = vrot.lane.b32.xlu0 %v141, 64
    %v1288 = vpop.permute.xlu0 %1287
    %1289 = vrot.lane.b32.xlu0 %v142, 64
    %v1290 = vpop.permute.xlu0 %1289
    %1291 = vrot.lane.b32.xlu0 %v143, 64
    %v1292 = vpop.permute.xlu0 %1291
    %1293 = vrot.lane.b32.xlu0 %v144, 64
    %v1294 = vpop.permute.xlu0 %1293
    %1295 = vrot.lane.b32.xlu0 %v145, 64
    %v1296 = vpop.permute.xlu0 %1295
    %1297 = vrot.lane.b32.xlu0 %v146, 64
    %v1298 = vpop.permute.xlu0 %1297
    %1299 = vrot.lane.b32.xlu0 %v147, 64
    %v1300 = vpop.permute.xlu0 %1299
    %1301 = vrot.lane.b32.xlu0 %v148, 64
    %v1302 = vpop.permute.xlu0 %1301
    %1303 = vrot.lane.b32.xlu0 %v149, 64
    %v1304 = vpop.permute.xlu0 %1303
    %1305 = vrot.lane.b32.xlu0 %v150, 64
    %v1306 = vpop.permute.xlu0 %1305
    %1307 = vrot.lane.b32.xlu0 %v151, 64
    %v1308 = vpop.permute.xlu0 %1307
    %1309 = vrot.lane.b32.xlu0 %v152, 64
    %v1310 = vpop.permute.xlu0 %1309
    %v1327 = vmul.f32 %v1136, %v1280
    %v1328 = vmul.f32 %v1140, %v1282
    %v1329 = vmul.f32 %v1144, %v1284
    %v1330 = vmul.f32 %v1148, %v1286
    %v1331 = vmul.f32 %v1152, %v1288
    %v1332 = vmul.f32 %v1156, %v1290
    %v1333 = vmul.f32 %v1160, %v1292
    %v1334 = vmul.f32 %v1164, %v1294
    %v1335 = vmul.f32 %v1168, %v1296
    %v1336 = vmul.f32 %v1172, %v1298
    %v1337 = vmul.f32 %v1176, %v1300
    %v1338 = vmul.f32 %v1180, %v1302
    %v1339 = vmul.f32 %v1184, %v1304
    %v1340 = vmul.f32 %v1188, %v1306
    %v1341 = vmul.f32 %v1192, %v1308
    %v1342 = vmul.f32 %v1196, %v1310
    %1359 = vrot.lane.b32.xlu0 %v1327, 64
    %v1360 = vpop.permute.xlu0 %1359
    %1361 = vrot.lane.b32.xlu0 %v1328, 64
    %v1362 = vpop.permute.xlu0 %1361
    %1363 = vrot.lane.b32.xlu0 %v1329, 64
    %v1364 = vpop.permute.xlu0 %1363
    %1365 = vrot.lane.b32.xlu0 %v1330, 64
    %v1366 = vpop.permute.xlu0 %1365
    %1367 = vrot.lane.b32.xlu0 %v1331, 64
    %v1368 = vpop.permute.xlu0 %1367
    %1369 = vrot.lane.b32.xlu0 %v1332, 64
    %v1370 = vpop.permute.xlu0 %1369
    %1371 = vrot.lane.b32.xlu0 %v1333, 64
    %v1372 = vpop.permute.xlu0 %1371
    %1373 = vrot.lane.b32.xlu0 %v1334, 64
    %v1374 = vpop.permute.xlu0 %1373
    %1375 = vrot.lane.b32.xlu0 %v1335, 64
    %v1376 = vpop.permute.xlu0 %1375
    %1377 = vrot.lane.b32.xlu0 %v1336, 64
    %v1378 = vpop.permute.xlu0 %1377
    %1379 = vrot.lane.b32.xlu0 %v1337, 64
    %v1380 = vpop.permute.xlu0 %1379
    %1381 = vrot.lane.b32.xlu0 %v1338, 64
    %v1382 = vpop.permute.xlu0 %1381
    %1383 = vrot.lane.b32.xlu0 %v1339, 64
    %v1384 = vpop.permute.xlu0 %1383
    %1385 = vrot.lane.b32.xlu0 %v1340, 64
    %v1386 = vpop.permute.xlu0 %1385
    %1387 = vrot.lane.b32.xlu0 %v1341, 64
    %v1388 = vpop.permute.xlu0 %1387
    %1389 = vrot.lane.b32.xlu0 %v1342, 64
    %v1390 = vpop.permute.xlu0 %1389
    %v1407 = vsel %vm103, %v1360, 0.0
    %1408 = vadd.xlane.f32.xlu0 %v1407
    %v1409 = vpop.xlane.xlu0 %1408
    %v1410 = vsel %vm103, %v1362, 0.0
    %1411 = vadd.xlane.f32.xlu0 %v1410
    %v1412 = vpop.xlane.xlu0 %1411
    %v1413 = vsel %vm103, %v1364, 0.0
    %1414 = vadd.xlane.f32.xlu0 %v1413
    %v1415 = vpop.xlane.xlu0 %1414
    %v1416 = vsel %vm103, %v1366, 0.0
    %1417 = vadd.xlane.f32.xlu0 %v1416
    %v1418 = vpop.xlane.xlu0 %1417
    %v1419 = vsel %vm103, %v1368, 0.0
    %1420 = vadd.xlane.f32.xlu0 %v1419
    %v1421 = vpop.xlane.xlu0 %1420
    %v1422 = vsel %vm103, %v1370, 0.0
    %1423 = vadd.xlane.f32.xlu0 %v1422
    %v1424 = vpop.xlane.xlu0 %1423
    %v1425 = vsel %vm103, %v1372, 0.0
    %1426 = vadd.xlane.f32.xlu0 %v1425
    %v1427 = vpop.xlane.xlu0 %1426
    %v1428 = vsel %vm103, %v1374, 0.0
    %1429 = vadd.xlane.f32.xlu0 %v1428
    %v1430 = vpop.xlane.xlu0 %1429
    %v1431 = vsel %vm103, %v1376, 0.0
    %1432 = vadd.xlane.f32.xlu0 %v1431
    %v1433 = vpop.xlane.xlu0 %1432
    %v1434 = vsel %vm103, %v1378, 0.0
    %1435 = vadd.xlane.f32.xlu0 %v1434
    %v1436 = vpop.xlane.xlu0 %1435
    %v1437 = vsel %vm103, %v1380, 0.0
    %1438 = vadd.xlane.f32.xlu0 %v1437
    %v1439 = vpop.xlane.xlu0 %1438
    %v1440 = vsel %vm103, %v1382, 0.0
    %1441 = vadd.xlane.f32.xlu0 %v1440
    %v1442 = vpop.xlane.xlu0 %1441
    %v1443 = vsel %vm103, %v1384, 0.0
    %1444 = vadd.xlane.f32.xlu0 %v1443
    %v1445 = vpop.xlane.xlu0 %1444
    %v1446 = vsel %vm103, %v1386, 0.0
    %1447 = vadd.xlane.f32.xlu0 %v1446
    %v1448 = vpop.xlane.xlu0 %1447
    %v1449 = vsel %vm103, %v1388, 0.0
    %1450 = vadd.xlane.f32.xlu0 %v1449
    %v1451 = vpop.xlane.xlu0 %1450
    %v1452 = vsel %vm103, %v1390, 0.0
    %1453 = vadd.xlane.f32.xlu0 %v1452
    %v1454 = vpop.xlane.xlu0 %1453
    %v1455 = vmul.f32 %v1138, %v137
    %v1456 = vmul.f32 %v1142, %v138
    %v1457 = vmul.f32 %v1146, %v139
    %v1458 = vmul.f32 %v1150, %v140
    %v1459 = vmul.f32 %v1154, %v141
    %v1460 = vmul.f32 %v1158, %v142
    %v1461 = vmul.f32 %v1162, %v143
    %v1462 = vmul.f32 %v1166, %v144
    %v1463 = vmul.f32 %v1170, %v145
    %v1464 = vmul.f32 %v1174, %v146
    %v1465 = vmul.f32 %v1178, %v147
    %v1466 = vmul.f32 %v1182, %v148
    %v1467 = vmul.f32 %v1186, %v149
    %v1468 = vmul.f32 %v1190, %v150
    %v1469 = vmul.f32 %v1194, %v151
    %v1470 = vmul.f32 %v1198, %v152
    %v1471 = vsel %vm103, %v1455, 0.0
    %1472 = vadd.xlane.f32.xlu0 %v1471
    %v1473 = vpop.xlane.xlu0 %1472
    %v1474 = vsel %vm103, %v1456, 0.0
    %1475 = vadd.xlane.f32.xlu0 %v1474
    %v1476 = vpop.xlane.xlu0 %1475
    %v1477 = vsel %vm103, %v1457, 0.0
    %1478 = vadd.xlane.f32.xlu0 %v1477
    %v1479 = vpop.xlane.xlu0 %1478
    %v1480 = vsel %vm103, %v1458, 0.0
    %1481 = vadd.xlane.f32.xlu0 %v1480
    %v1482 = vpop.xlane.xlu0 %1481
    %v1483 = vsel %vm103, %v1459, 0.0
    %1484 = vadd.xlane.f32.xlu0 %v1483
    %v1485 = vpop.xlane.xlu0 %1484
    %v1486 = vsel %vm103, %v1460, 0.0
    %1487 = vadd.xlane.f32.xlu0 %v1486
    %v1488 = vpop.xlane.xlu0 %1487
    %v1489 = vsel %vm103, %v1461, 0.0
    %1490 = vadd.xlane.f32.xlu0 %v1489
    %v1491 = vpop.xlane.xlu0 %1490
    %v1492 = vsel %vm103, %v1462, 0.0
    %1493 = vadd.xlane.f32.xlu0 %v1492
    %v1494 = vpop.xlane.xlu0 %1493
    %v1495 = vsel %vm103, %v1463, 0.0
    %1496 = vadd.xlane.f32.xlu0 %v1495
    %v1497 = vpop.xlane.xlu0 %1496
    %v1498 = vsel %vm103, %v1464, 0.0
    %1499 = vadd.xlane.f32.xlu0 %v1498
    %v1500 = vpop.xlane.xlu0 %1499
    %v1501 = vsel %vm103, %v1465, 0.0
    %1502 = vadd.xlane.f32.xlu0 %v1501
    %v1503 = vpop.xlane.xlu0 %1502
    %v1504 = vsel %vm103, %v1466, 0.0
    %1505 = vadd.xlane.f32.xlu0 %v1504
    %v1506 = vpop.xlane.xlu0 %1505
    %v1507 = vsel %vm103, %v1467, 0.0
    %1508 = vadd.xlane.f32.xlu0 %v1507
    %v1509 = vpop.xlane.xlu0 %1508
    %v1510 = vsel %vm103, %v1468, 0.0
    %1511 = vadd.xlane.f32.xlu0 %v1510
    %v1512 = vpop.xlane.xlu0 %1511
    %v1513 = vsel %vm103, %v1469, 0.0
    %1514 = vadd.xlane.f32.xlu0 %v1513
    %v1515 = vpop.xlane.xlu0 %1514
    %v1516 = vsel %vm103, %v1470, 0.0
    %1517 = vadd.xlane.f32.xlu0 %v1516
    %v1518 = vpop.xlane.xlu0 %1517
    %v1519 = vmul.f32 %v1138, %v1280
    %v1520 = vmul.f32 %v1142, %v1282
    %v1521 = vmul.f32 %v1146, %v1284
    %v1522 = vmul.f32 %v1150, %v1286
    %v1523 = vmul.f32 %v1154, %v1288
    %v1524 = vmul.f32 %v1158, %v1290
    %v1525 = vmul.f32 %v1162, %v1292
    %v1526 = vmul.f32 %v1166, %v1294
    %v1527 = vmul.f32 %v1170, %v1296
    %v1528 = vmul.f32 %v1174, %v1298
    %v1529 = vmul.f32 %v1178, %v1300
    %v1530 = vmul.f32 %v1182, %v1302
    %v1531 = vmul.f32 %v1186, %v1304
    %v1532 = vmul.f32 %v1190, %v1306
    %v1533 = vmul.f32 %v1194, %v1308
    %v1534 = vmul.f32 %v1198, %v1310
    %1551 = vrot.lane.b32.xlu0 %v1519, 64
    %v1552 = vpop.permute.xlu0 %1551
    %1553 = vrot.lane.b32.xlu0 %v1520, 64
    %v1554 = vpop.permute.xlu0 %1553
    %1555 = vrot.lane.b32.xlu0 %v1521, 64
    %v1556 = vpop.permute.xlu0 %1555
    %1557 = vrot.lane.b32.xlu0 %v1522, 64
    %v1558 = vpop.permute.xlu0 %1557
    %1559 = vrot.lane.b32.xlu0 %v1523, 64
    %v1560 = vpop.permute.xlu0 %1559
    %1561 = vrot.lane.b32.xlu0 %v1524, 64
    %v1562 = vpop.permute.xlu0 %1561
    %1563 = vrot.lane.b32.xlu0 %v1525, 64
    %v1564 = vpop.permute.xlu0 %1563
    %1565 = vrot.lane.b32.xlu0 %v1526, 64
    %v1566 = vpop.permute.xlu0 %1565
    %1567 = vrot.lane.b32.xlu0 %v1527, 64
    %v1568 = vpop.permute.xlu0 %1567
    %1569 = vrot.lane.b32.xlu0 %v1528, 64
    %v1570 = vpop.permute.xlu0 %1569
    %1571 = vrot.lane.b32.xlu0 %v1529, 64
    %v1572 = vpop.permute.xlu0 %1571
    %1573 = vrot.lane.b32.xlu0 %v1530, 64
    %v1574 = vpop.permute.xlu0 %1573
    %1575 = vrot.lane.b32.xlu0 %v1531, 64
    %v1576 = vpop.permute.xlu0 %1575
    %1577 = vrot.lane.b32.xlu0 %v1532, 64
    %v1578 = vpop.permute.xlu0 %1577
    %1579 = vrot.lane.b32.xlu0 %v1533, 64
    %v1580 = vpop.permute.xlu0 %1579
    %1581 = vrot.lane.b32.xlu0 %v1534, 64
    %v1582 = vpop.permute.xlu0 %1581
    %v1599 = vsel %vm103, %v1552, 0.0
    %1600 = vadd.xlane.f32.xlu0 %v1599
    %v1601 = vpop.xlane.xlu0 %1600
    %v1602 = vsel %vm103, %v1554, 0.0
    %1603 = vadd.xlane.f32.xlu0 %v1602
    %v1604 = vpop.xlane.xlu0 %1603
    %v1605 = vsel %vm103, %v1556, 0.0
    %1606 = vadd.xlane.f32.xlu0 %v1605
    %v1607 = vpop.xlane.xlu0 %1606
    %v1608 = vsel %vm103, %v1558, 0.0
    %1609 = vadd.xlane.f32.xlu0 %v1608
    %v1610 = vpop.xlane.xlu0 %1609
    %v1611 = vsel %vm103, %v1560, 0.0
    %1612 = vadd.xlane.f32.xlu0 %v1611
    %v1613 = vpop.xlane.xlu0 %1612
    %v1614 = vsel %vm103, %v1562, 0.0
    %1615 = vadd.xlane.f32.xlu0 %v1614
    %v1616 = vpop.xlane.xlu0 %1615
    %v1617 = vsel %vm103, %v1564, 0.0
    %1618 = vadd.xlane.f32.xlu0 %v1617
    %v1619 = vpop.xlane.xlu0 %1618
    %v1620 = vsel %vm103, %v1566, 0.0
    %1621 = vadd.xlane.f32.xlu0 %v1620
    %v1622 = vpop.xlane.xlu0 %1621
    %v1623 = vsel %vm103, %v1568, 0.0
    %1624 = vadd.xlane.f32.xlu0 %v1623
    %v1625 = vpop.xlane.xlu0 %1624
    %v1626 = vsel %vm103, %v1570, 0.0
    %1627 = vadd.xlane.f32.xlu0 %v1626
    %v1628 = vpop.xlane.xlu0 %1627
    %v1629 = vsel %vm103, %v1572, 0.0
    %1630 = vadd.xlane.f32.xlu0 %v1629
    %v1631 = vpop.xlane.xlu0 %1630
    %v1632 = vsel %vm103, %v1574, 0.0
    %1633 = vadd.xlane.f32.xlu0 %v1632
    %v1634 = vpop.xlane.xlu0 %1633
    %v1635 = vsel %vm103, %v1576, 0.0
    %1636 = vadd.xlane.f32.xlu0 %v1635
    %v1637 = vpop.xlane.xlu0 %1636
    %v1638 = vsel %vm103, %v1578, 0.0
    %1639 = vadd.xlane.f32.xlu0 %v1638
    %v1640 = vpop.xlane.xlu0 %1639
    %v1641 = vsel %vm103, %v1580, 0.0
    %1642 = vadd.xlane.f32.xlu0 %v1641
    %v1643 = vpop.xlane.xlu0 %1642
    %v1644 = vsel %vm103, %v1582, 0.0
    %1645 = vadd.xlane.f32.xlu0 %v1644
    %v1646 = vpop.xlane.xlu0 %1645
    %vm1647 = vcmask 7168
    %v1648 = vsel %vm1647, %v1217, %v1409
    %v1649 = vsel %vm1647, %v1220, %v1412
    %v1650 = vsel %vm1647, %v1223, %v1415
    %v1651 = vsel %vm1647, %v1226, %v1418
    %v1652 = vsel %vm1647, %v1229, %v1421
    %v1653 = vsel %vm1647, %v1232, %v1424
    %v1654 = vsel %vm1647, %v1235, %v1427
    %v1655 = vsel %vm1647, %v1238, %v1430
    %v1656 = vsel %vm1647, %v1241, %v1433
    %v1657 = vsel %vm1647, %v1244, %v1436
    %v1658 = vsel %vm1647, %v1247, %v1439
    %v1659 = vsel %vm1647, %v1250, %v1442
    %v1660 = vsel %vm1647, %v1253, %v1445
    %v1661 = vsel %vm1647, %v1256, %v1448
    %v1662 = vsel %vm1647, %v1259, %v1451
    %v1663 = vsel %vm1647, %v1262, %v1454
    %vm1664 = vcmask 15360
    %v1665 = vsel %vm1664, %v1648, %v1473
    %v1666 = vsel %vm1664, %v1649, %v1476
    %v1667 = vsel %vm1664, %v1650, %v1479
    %v1668 = vsel %vm1664, %v1651, %v1482
    %v1669 = vsel %vm1664, %v1652, %v1485
    %v1670 = vsel %vm1664, %v1653, %v1488
    %v1671 = vsel %vm1664, %v1654, %v1491
    %v1672 = vsel %vm1664, %v1655, %v1494
    %v1673 = vsel %vm1664, %v1656, %v1497
    %v1674 = vsel %vm1664, %v1657, %v1500
    %v1675 = vsel %vm1664, %v1658, %v1503
    %v1676 = vsel %vm1664, %v1659, %v1506
    %v1677 = vsel %vm1664, %v1660, %v1509
    %v1678 = vsel %vm1664, %v1661, %v1512
    %v1679 = vsel %vm1664, %v1662, %v1515
    %v1680 = vsel %vm1664, %v1663, %v1518
    %vm1681 = vcmask 23552
    %v1682 = vsel %vm1681, %v1665, %v1601
    %v1683 = vsel %vm1681, %v1666, %v1604
    %v1684 = vsel %vm1681, %v1667, %v1607
    %v1685 = vsel %vm1681, %v1668, %v1610
    %v1686 = vsel %vm1681, %v1669, %v1613
    %v1687 = vsel %vm1681, %v1670, %v1616
    %v1688 = vsel %vm1681, %v1671, %v1619
    %v1689 = vsel %vm1681, %v1672, %v1622
    %v1690 = vsel %vm1681, %v1673, %v1625
    %v1691 = vsel %vm1681, %v1674, %v1628
    %v1692 = vsel %vm1681, %v1675, %v1631
    %v1693 = vsel %vm1681, %v1676, %v1634
    %v1694 = vsel %vm1681, %v1677, %v1637
    %v1695 = vsel %vm1681, %v1678, %v1640
    %v1696 = vsel %vm1681, %v1679, %v1643
    %v1697 = vsel %vm1681, %v1680, %v1646
    %1698 = vxpose.xlu0.b32.start [1/16] %v1682, 128
    %1699 = vxpose.xlu0.b32.cont [2/16] %v1683, 128
    %1700 = vxpose.xlu0.b32.cont [3/16] %v1684, 128
    %1701 = vxpose.xlu0.b32.cont [4/16] %v1685, 128
    %1702 = vxpose.xlu0.b32.cont [5/16] %v1686, 128
    %1703 = vxpose.xlu0.b32.cont [6/16] %v1687, 128
    %1704 = vxpose.xlu0.b32.cont [7/16] %v1688, 128
    %1705 = vxpose.xlu0.b32.cont [8/16] %v1689, 128
    %1706 = vxpose.xlu0.b32.cont [9/16] %v1690, 128
    %1707 = vxpose.xlu0.b32.cont [10/16] %v1691, 128
    %1708 = vxpose.xlu0.b32.cont [11/16] %v1692, 128
    %1709 = vxpose.xlu0.b32.cont [12/16] %v1693, 128
    %1710 = vxpose.xlu0.b32.cont [13/16] %v1694, 128
    %1711 = vxpose.xlu0.b32.cont [14/16] %v1695, 128
    %1712 = vxpose.xlu0.b32.cont [15/16] %v1696, 128
    %1713 = vxpose.xlu0.b32.end [16/16] %v1697, 128
    %v1714 = vpop.trf.xlu0
    %v1715 = vpop.trf.xlu0
    %v1716 = vpop.trf.xlu0
    %v1717 = vpop.trf.xlu0
    %v1718 = vpop.trf.xlu0
    %v1719 = vpop.trf.xlu0
    %v1720 = vpop.trf.xlu0
    %v1721 = vpop.trf.xlu0
    %v1722 = vpop.trf.xlu0
    %v1723 = vpop.trf.xlu0
    %v1724 = vpop.trf.xlu0
    %v1725 = vpop.trf.xlu0
    %v1726 = vpop.trf.xlu0
    %v1727 = vpop.trf.xlu0
    %v1728 = vpop.trf.xlu0
    %v1729 = vpop.trf.xlu0
    %1730 = vst [vmem:[#allocation2] sm:$0xf] %v1714
    %v1731 = vadd.f32 %v617, %v618
    %v1732 = vadd.f32 %v1731, %v619
    %v1733 = vadd.f32 %v1732, %v620
    %v1734 = vadd.f32 %v1733, %v621
    %v1735 = vadd.f32 %v1734, %v622
    %v1736 = vadd.f32 %v1735, %v623
    %v1737 = vadd.f32 %v1736, %v624
    %v1738 = vadd.f32 %v1737, %v625
    %v1739 = vadd.f32 %v1738, %v626
    %v1740 = vadd.f32 %v1739, %v627
    %v1741 = vadd.f32 %v1740, %v628
    %v1742 = vadd.f32 %v1741, %v629
    %v1743 = vadd.f32 %v1742, %v630
    %v1744 = vadd.f32 %v1743, %v631
    %v1745 = vadd.f32 %v1744, %v632
    %v1746 = vrot.slane %v1745, 4
    %v1747 = vadd.f32 %v1745, %v1746
    %v1748 = vrot.slane %v1747, 2
    %v1749 = vadd.f32 %v1747, %v1748
    %v1750 = vrot.slane %v1749, 1
    %v1751 = vadd.f32 %v1749, %v1750
    %v1752 = vadd.f32 %v633, %v634
    %v1753 = vadd.f32 %v1752, %v635
    %v1754 = vadd.f32 %v1753, %v636
    %v1755 = vadd.f32 %v1754, %v637
    %v1756 = vadd.f32 %v1755, %v638
    %v1757 = vadd.f32 %v1756, %v639
    %v1758 = vadd.f32 %v1757, %v640
    %v1759 = vadd.f32 %v1758, %v641
    %v1760 = vadd.f32 %v1759, %v642
    %v1761 = vadd.f32 %v1760, %v643
    %v1762 = vadd.f32 %v1761, %v644
    %v1763 = vadd.f32 %v1762, %v645
    %v1764 = vadd.f32 %v1763, %v646
    %v1765 = vadd.f32 %v1764, %v647
    %v1766 = vadd.f32 %v1765, %v648
    %v1767 = vrot.slane %v1766, 4
    %v1768 = vadd.f32 %v1766, %v1767
    %v1769 = vrot.slane %v1768, 2
    %v1770 = vadd.f32 %v1768, %v1769
    %v1771 = vrot.slane %v1770, 1
    %v1772 = vadd.f32 %v1770, %v1771
    %v1773 = vadd.f32 %v104, %v1751
    %v1774 = vadd.f32 %v104, %v1772
    %v1775 = vld [vmem:[%s0 + $0x80] sm:$0xff]
    %v1776 = vld [vmem:[%s0 + $0x88] sm:$0xff]
    %v1777 = vld [vmem:[%s0 + $0x90] sm:$0xff]
    %v1778 = vld [vmem:[%s0 + $0x98] sm:$0xff]
    %v1779 = vld [vmem:[%s0 + $0xa0] sm:$0xff]
    %v1780 = vld [vmem:[%s0 + $0xa8] sm:$0xff]
    %v1781 = vld [vmem:[%s0 + $0xb0] sm:$0xff]
    %v1782 = vld [vmem:[%s0 + $0xb8] sm:$0xff]
    %v1783 = vld [vmem:[%s0 + $0xc0] sm:$0xff]
    %v1784 = vld [vmem:[%s0 + $0xc8] sm:$0xff]
    %v1785 = vld [vmem:[%s0 + $0xd0] sm:$0xff]
    %v1786 = vld [vmem:[%s0 + $0xd8] sm:$0xff]
    %v1787 = vld [vmem:[%s0 + $0xe0] sm:$0xff]
    %v1788 = vld [vmem:[%s0 + $0xe8] sm:$0xff]
    %v1789 = vld [vmem:[%s0 + $0xf0] sm:$0xff]
    %v1790 = vld [vmem:[%s0 + $0xf8] sm:$0xff]
    %v1791 = vld [vmem:[%s1 + $0x80] sm:$0xff]
    %v1792 = vld [vmem:[%s1 + $0x88] sm:$0xff]
    %v1793 = vld [vmem:[%s1 + $0x90] sm:$0xff]
    %v1794 = vld [vmem:[%s1 + $0x98] sm:$0xff]
    %v1795 = vld [vmem:[%s1 + $0xa0] sm:$0xff]
    %v1796 = vld [vmem:[%s1 + $0xa8] sm:$0xff]
    %v1797 = vld [vmem:[%s1 + $0xb0] sm:$0xff]
    %v1798 = vld [vmem:[%s1 + $0xb8] sm:$0xff]
    %v1799 = vld [vmem:[%s1 + $0xc0] sm:$0xff]
    %v1800 = vld [vmem:[%s1 + $0xc8] sm:$0xff]
    %v1801 = vld [vmem:[%s1 + $0xd0] sm:$0xff]
    %v1802 = vld [vmem:[%s1 + $0xd8] sm:$0xff]
    %v1803 = vld [vmem:[%s1 + $0xe0] sm:$0xff]
    %v1804 = vld [vmem:[%s1 + $0xe8] sm:$0xff]
    %v1805 = vld [vmem:[%s1 + $0xf0] sm:$0xff]
    %v1806 = vld [vmem:[%s1 + $0xf8] sm:$0xff]
    %v1807 = vld [vmem:[%s2 + $0x80] sm:$0xff]
    %v1808 = vld [vmem:[%s2 + $0x88] sm:$0xff]
    %v1809 = vld [vmem:[%s2 + $0x90] sm:$0xff]
    %v1810 = vld [vmem:[%s2 + $0x98] sm:$0xff]
    %v1811 = vld [vmem:[%s2 + $0xa0] sm:$0xff]
    %v1812 = vld [vmem:[%s2 + $0xa8] sm:$0xff]
    %v1813 = vld [vmem:[%s2 + $0xb0] sm:$0xff]
    %v1814 = vld [vmem:[%s2 + $0xb8] sm:$0xff]
    %v1815 = vld [vmem:[%s2 + $0xc0] sm:$0xff]
    %v1816 = vld [vmem:[%s2 + $0xc8] sm:$0xff]
    %v1817 = vld [vmem:[%s2 + $0xd0] sm:$0xff]
    %v1818 = vld [vmem:[%s2 + $0xd8] sm:$0xff]
    %v1819 = vld [vmem:[%s2 + $0xe0] sm:$0xff]
    %v1820 = vld [vmem:[%s2 + $0xe8] sm:$0xff]
    %v1821 = vld [vmem:[%s2 + $0xf0] sm:$0xff]
    %v1822 = vld [vmem:[%s2 + $0xf8] sm:$0xff]
    %1824 = vset.pattern.permute.xlu0 0
    %1825 = vperm.xlu0 %1824, %v1775
    %v1826 = vpop.permute.xlu0 %1825
    %1829 = vset.pattern.permute.xlu0 0
    %1830 = vperm.xlu0 %1829, %v1776
    %v1831 = vpop.permute.xlu0 %1830
    %1834 = vset.pattern.permute.xlu0 0
    %1835 = vperm.xlu0 %1834, %v1777
    %v1836 = vpop.permute.xlu0 %1835
    %1839 = vset.pattern.permute.xlu0 0
    %1840 = vperm.xlu0 %1839, %v1778
    %v1841 = vpop.permute.xlu0 %1840
    %1844 = vset.pattern.permute.xlu0 0
    %1845 = vperm.xlu0 %1844, %v1779
    %v1846 = vpop.permute.xlu0 %1845
    %1849 = vset.pattern.permute.xlu0 0
    %1850 = vperm.xlu0 %1849, %v1780
    %v1851 = vpop.permute.xlu0 %1850
    %1854 = vset.pattern.permute.xlu0 0
    %1855 = vperm.xlu0 %1854, %v1781
    %v1856 = vpop.permute.xlu0 %1855
    %1859 = vset.pattern.permute.xlu0 0
    %1860 = vperm.xlu0 %1859, %v1782
    %v1861 = vpop.permute.xlu0 %1860
    %1864 = vset.pattern.permute.xlu0 0
    %1865 = vperm.xlu0 %1864, %v1783
    %v1866 = vpop.permute.xlu0 %1865
    %1869 = vset.pattern.permute.xlu0 0
    %1870 = vperm.xlu0 %1869, %v1784
    %v1871 = vpop.permute.xlu0 %1870
    %1874 = vset.pattern.permute.xlu0 0
    %1875 = vperm.xlu0 %1874, %v1785
    %v1876 = vpop.permute.xlu0 %1875
    %1879 = vset.pattern.permute.xlu0 0
    %1880 = vperm.xlu0 %1879, %v1786
    %v1881 = vpop.permute.xlu0 %1880
    %1884 = vset.pattern.permute.xlu0 0
    %1885 = vperm.xlu0 %1884, %v1787
    %v1886 = vpop.permute.xlu0 %1885
    %1889 = vset.pattern.permute.xlu0 0
    %1890 = vperm.xlu0 %1889, %v1788
    %v1891 = vpop.permute.xlu0 %1890
    %1894 = vset.pattern.permute.xlu0 0
    %1895 = vperm.xlu0 %1894, %v1789
    %v1896 = vpop.permute.xlu0 %1895
    %1899 = vset.pattern.permute.xlu0 0
    %1900 = vperm.xlu0 %1899, %v1790
    %v1901 = vpop.permute.xlu0 %1900
    %v1903 = vmul.f32 %v1826, %v1791
    %v1904 = vmul.f32 %v1831, %v1792
    %v1905 = vmul.f32 %v1836, %v1793
    %v1906 = vmul.f32 %v1841, %v1794
    %v1907 = vmul.f32 %v1846, %v1795
    %v1908 = vmul.f32 %v1851, %v1796
    %v1909 = vmul.f32 %v1856, %v1797
    %v1910 = vmul.f32 %v1861, %v1798
    %v1911 = vmul.f32 %v1866, %v1799
    %v1912 = vmul.f32 %v1871, %v1800
    %v1913 = vmul.f32 %v1876, %v1801
    %v1914 = vmul.f32 %v1881, %v1802
    %v1915 = vmul.f32 %v1886, %v1803
    %v1916 = vmul.f32 %v1891, %v1804
    %v1917 = vmul.f32 %v1896, %v1805
    %v1918 = vmul.f32 %v1901, %v1806
    %1919 = vset.pattern.permute.xlu0 1
    %1920 = vperm.xlu0 %1919, %v1775
    %v1921 = vpop.permute.xlu0 %1920
    %1923 = vset.pattern.permute.xlu0 1
    %1924 = vperm.xlu0 %1923, %v1776
    %v1925 = vpop.permute.xlu0 %1924
    %1927 = vset.pattern.permute.xlu0 1
    %1928 = vperm.xlu0 %1927, %v1777
    %v1929 = vpop.permute.xlu0 %1928
    %1931 = vset.pattern.permute.xlu0 1
    %1932 = vperm.xlu0 %1931, %v1778
    %v1933 = vpop.permute.xlu0 %1932
    %1935 = vset.pattern.permute.xlu0 1
    %1936 = vperm.xlu0 %1935, %v1779
    %v1937 = vpop.permute.xlu0 %1936
    %1939 = vset.pattern.permute.xlu0 1
    %1940 = vperm.xlu0 %1939, %v1780
    %v1941 = vpop.permute.xlu0 %1940
    %1943 = vset.pattern.permute.xlu0 1
    %1944 = vperm.xlu0 %1943, %v1781
    %v1945 = vpop.permute.xlu0 %1944
    %1947 = vset.pattern.permute.xlu0 1
    %1948 = vperm.xlu0 %1947, %v1782
    %v1949 = vpop.permute.xlu0 %1948
    %1951 = vset.pattern.permute.xlu0 1
    %1952 = vperm.xlu0 %1951, %v1783
    %v1953 = vpop.permute.xlu0 %1952
    %1955 = vset.pattern.permute.xlu0 1
    %1956 = vperm.xlu0 %1955, %v1784
    %v1957 = vpop.permute.xlu0 %1956
    %1959 = vset.pattern.permute.xlu0 1
    %1960 = vperm.xlu0 %1959, %v1785
    %v1961 = vpop.permute.xlu0 %1960
    %1963 = vset.pattern.permute.xlu0 1
    %1964 = vperm.xlu0 %1963, %v1786
    %v1965 = vpop.permute.xlu0 %1964
    %1967 = vset.pattern.permute.xlu0 1
    %1968 = vperm.xlu0 %1967, %v1787
    %v1969 = vpop.permute.xlu0 %1968
    %1971 = vset.pattern.permute.xlu0 1
    %1972 = vperm.xlu0 %1971, %v1788
    %v1973 = vpop.permute.xlu0 %1972
    %1975 = vset.pattern.permute.xlu0 1
    %1976 = vperm.xlu0 %1975, %v1789
    %v1977 = vpop.permute.xlu0 %1976
    %1979 = vset.pattern.permute.xlu0 1
    %1980 = vperm.xlu0 %1979, %v1790
    %v1981 = vpop.permute.xlu0 %1980
    %v1983 = vmul.f32 %v1921, %v1791
    %v1984 = vmul.f32 %v1925, %v1792
    %v1985 = vmul.f32 %v1929, %v1793
    %v1986 = vmul.f32 %v1933, %v1794
    %v1987 = vmul.f32 %v1937, %v1795
    %v1988 = vmul.f32 %v1941, %v1796
    %v1989 = vmul.f32 %v1945, %v1797
    %v1990 = vmul.f32 %v1949, %v1798
    %v1991 = vmul.f32 %v1953, %v1799
    %v1992 = vmul.f32 %v1957, %v1800
    %v1993 = vmul.f32 %v1961, %v1801
    %v1994 = vmul.f32 %v1965, %v1802
    %v1995 = vmul.f32 %v1969, %v1803
    %v1996 = vmul.f32 %v1973, %v1804
    %v1997 = vmul.f32 %v1977, %v1805
    %v1998 = vmul.f32 %v1981, %v1806
    %1999 = vset.pattern.permute.xlu0 2
    %2000 = vperm.xlu0 %1999, %v1775
    %v2001 = vpop.permute.xlu0 %2000
    %2003 = vset.pattern.permute.xlu0 2
    %2004 = vperm.xlu0 %2003, %v1776
    %v2005 = vpop.permute.xlu0 %2004
    %2007 = vset.pattern.permute.xlu0 2
    %2008 = vperm.xlu0 %2007, %v1777
    %v2009 = vpop.permute.xlu0 %2008
    %2011 = vset.pattern.permute.xlu0 2
    %2012 = vperm.xlu0 %2011, %v1778
    %v2013 = vpop.permute.xlu0 %2012
    %2015 = vset.pattern.permute.xlu0 2
    %2016 = vperm.xlu0 %2015, %v1779
    %v2017 = vpop.permute.xlu0 %2016
    %2019 = vset.pattern.permute.xlu0 2
    %2020 = vperm.xlu0 %2019, %v1780
    %v2021 = vpop.permute.xlu0 %2020
    %2023 = vset.pattern.permute.xlu0 2
    %2024 = vperm.xlu0 %2023, %v1781
    %v2025 = vpop.permute.xlu0 %2024
    %2027 = vset.pattern.permute.xlu0 2
    %2028 = vperm.xlu0 %2027, %v1782
    %v2029 = vpop.permute.xlu0 %2028
    %2031 = vset.pattern.permute.xlu0 2
    %2032 = vperm.xlu0 %2031, %v1783
    %v2033 = vpop.permute.xlu0 %2032
    %2035 = vset.pattern.permute.xlu0 2
    %2036 = vperm.xlu0 %2035, %v1784
    %v2037 = vpop.permute.xlu0 %2036
    %2039 = vset.pattern.permute.xlu0 2
    %2040 = vperm.xlu0 %2039, %v1785
    %v2041 = vpop.permute.xlu0 %2040
    %2043 = vset.pattern.permute.xlu0 2
    %2044 = vperm.xlu0 %2043, %v1786
    %v2045 = vpop.permute.xlu0 %2044
    %2047 = vset.pattern.permute.xlu0 2
    %2048 = vperm.xlu0 %2047, %v1787
    %v2049 = vpop.permute.xlu0 %2048
    %2051 = vset.pattern.permute.xlu0 2
    %2052 = vperm.xlu0 %2051, %v1788
    %v2053 = vpop.permute.xlu0 %2052
    %2055 = vset.pattern.permute.xlu0 2
    %2056 = vperm.xlu0 %2055, %v1789
    %v2057 = vpop.permute.xlu0 %2056
    %2059 = vset.pattern.permute.xlu0 2
    %2060 = vperm.xlu0 %2059, %v1790
    %v2061 = vpop.permute.xlu0 %2060
    %v2063 = vmul.f32 %v2001, %v1791
    %v2064 = vmul.f32 %v2005, %v1792
    %v2065 = vmul.f32 %v2009, %v1793
    %v2066 = vmul.f32 %v2013, %v1794
    %v2067 = vmul.f32 %v2017, %v1795
    %v2068 = vmul.f32 %v2021, %v1796
    %v2069 = vmul.f32 %v2025, %v1797
    %v2070 = vmul.f32 %v2029, %v1798
    %v2071 = vmul.f32 %v2033, %v1799
    %v2072 = vmul.f32 %v2037, %v1800
    %v2073 = vmul.f32 %v2041, %v1801
    %v2074 = vmul.f32 %v2045, %v1802
    %v2075 = vmul.f32 %v2049, %v1803
    %v2076 = vmul.f32 %v2053, %v1804
    %v2077 = vmul.f32 %v2057, %v1805
    %v2078 = vmul.f32 %v2061, %v1806
    %2079 = vset.pattern.permute.xlu0 3
    %2080 = vperm.xlu0 %2079, %v1775
    %v2081 = vpop.permute.xlu0 %2080
    %2083 = vset.pattern.permute.xlu0 3
    %2084 = vperm.xlu0 %2083, %v1776
    %v2085 = vpop.permute.xlu0 %2084
    %2087 = vset.pattern.permute.xlu0 3
    %2088 = vperm.xlu0 %2087, %v1777
    %v2089 = vpop.permute.xlu0 %2088
    %2091 = vset.pattern.permute.xlu0 3
    %2092 = vperm.xlu0 %2091, %v1778
    %v2093 = vpop.permute.xlu0 %2092
    %2095 = vset.pattern.permute.xlu0 3
    %2096 = vperm.xlu0 %2095, %v1779
    %v2097 = vpop.permute.xlu0 %2096
    %2099 = vset.pattern.permute.xlu0 3
    %2100 = vperm.xlu0 %2099, %v1780
    %v2101 = vpop.permute.xlu0 %2100
    %2103 = vset.pattern.permute.xlu0 3
    %2104 = vperm.xlu0 %2103, %v1781
    %v2105 = vpop.permute.xlu0 %2104
    %2107 = vset.pattern.permute.xlu0 3
    %2108 = vperm.xlu0 %2107, %v1782
    %v2109 = vpop.permute.xlu0 %2108
    %2111 = vset.pattern.permute.xlu0 3
    %2112 = vperm.xlu0 %2111, %v1783
    %v2113 = vpop.permute.xlu0 %2112
    %2115 = vset.pattern.permute.xlu0 3
    %2116 = vperm.xlu0 %2115, %v1784
    %v2117 = vpop.permute.xlu0 %2116
    %2119 = vset.pattern.permute.xlu0 3
    %2120 = vperm.xlu0 %2119, %v1785
    %v2121 = vpop.permute.xlu0 %2120
    %2123 = vset.pattern.permute.xlu0 3
    %2124 = vperm.xlu0 %2123, %v1786
    %v2125 = vpop.permute.xlu0 %2124
    %2127 = vset.pattern.permute.xlu0 3
    %2128 = vperm.xlu0 %2127, %v1787
    %v2129 = vpop.permute.xlu0 %2128
    %2131 = vset.pattern.permute.xlu0 3
    %2132 = vperm.xlu0 %2131, %v1788
    %v2133 = vpop.permute.xlu0 %2132
    %2135 = vset.pattern.permute.xlu0 3
    %2136 = vperm.xlu0 %2135, %v1789
    %v2137 = vpop.permute.xlu0 %2136
    %2139 = vset.pattern.permute.xlu0 3
    %2140 = vperm.xlu0 %2139, %v1790
    %v2141 = vpop.permute.xlu0 %2140
    %v2143 = vmul.f32 %v2081, %v1791
    %v2144 = vmul.f32 %v2085, %v1792
    %v2145 = vmul.f32 %v2089, %v1793
    %v2146 = vmul.f32 %v2093, %v1794
    %v2147 = vmul.f32 %v2097, %v1795
    %v2148 = vmul.f32 %v2101, %v1796
    %v2149 = vmul.f32 %v2105, %v1797
    %v2150 = vmul.f32 %v2109, %v1798
    %v2151 = vmul.f32 %v2113, %v1799
    %v2152 = vmul.f32 %v2117, %v1800
    %v2153 = vmul.f32 %v2121, %v1801
    %v2154 = vmul.f32 %v2125, %v1802
    %v2155 = vmul.f32 %v2129, %v1803
    %v2156 = vmul.f32 %v2133, %v1804
    %v2157 = vmul.f32 %v2137, %v1805
    %v2158 = vmul.f32 %v2141, %v1806
    %2175 = vrot.lane.b32.xlu0 %v1983, 64
    %v2176 = vpop.permute.xlu0 %2175
    %2177 = vrot.lane.b32.xlu0 %v1984, 64
    %v2178 = vpop.permute.xlu0 %2177
    %2179 = vrot.lane.b32.xlu0 %v1985, 64
    %v2180 = vpop.permute.xlu0 %2179
    %2181 = vrot.lane.b32.xlu0 %v1986, 64
    %v2182 = vpop.permute.xlu0 %2181
    %2183 = vrot.lane.b32.xlu0 %v1987, 64
    %v2184 = vpop.permute.xlu0 %2183
    %2185 = vrot.lane.b32.xlu0 %v1988, 64
    %v2186 = vpop.permute.xlu0 %2185
    %2187 = vrot.lane.b32.xlu0 %v1989, 64
    %v2188 = vpop.permute.xlu0 %2187
    %2189 = vrot.lane.b32.xlu0 %v1990, 64
    %v2190 = vpop.permute.xlu0 %2189
    %2191 = vrot.lane.b32.xlu0 %v1991, 64
    %v2192 = vpop.permute.xlu0 %2191
    %2193 = vrot.lane.b32.xlu0 %v1992, 64
    %v2194 = vpop.permute.xlu0 %2193
    %2195 = vrot.lane.b32.xlu0 %v1993, 64
    %v2196 = vpop.permute.xlu0 %2195
    %2197 = vrot.lane.b32.xlu0 %v1994, 64
    %v2198 = vpop.permute.xlu0 %2197
    %2199 = vrot.lane.b32.xlu0 %v1995, 64
    %v2200 = vpop.permute.xlu0 %2199
    %2201 = vrot.lane.b32.xlu0 %v1996, 64
    %v2202 = vpop.permute.xlu0 %2201
    %2203 = vrot.lane.b32.xlu0 %v1997, 64
    %v2204 = vpop.permute.xlu0 %2203
    %2205 = vrot.lane.b32.xlu0 %v1998, 64
    %v2206 = vpop.permute.xlu0 %2205
    %2239 = vrot.lane.b32.xlu0 %v2143, 64
    %v2240 = vpop.permute.xlu0 %2239
    %2241 = vrot.lane.b32.xlu0 %v2144, 64
    %v2242 = vpop.permute.xlu0 %2241
    %2243 = vrot.lane.b32.xlu0 %v2145, 64
    %v2244 = vpop.permute.xlu0 %2243
    %2245 = vrot.lane.b32.xlu0 %v2146, 64
    %v2246 = vpop.permute.xlu0 %2245
    %2247 = vrot.lane.b32.xlu0 %v2147, 64
    %v2248 = vpop.permute.xlu0 %2247
    %2249 = vrot.lane.b32.xlu0 %v2148, 64
    %v2250 = vpop.permute.xlu0 %2249
    %2251 = vrot.lane.b32.xlu0 %v2149, 64
    %v2252 = vpop.permute.xlu0 %2251
    %2253 = vrot.lane.b32.xlu0 %v2150, 64
    %v2254 = vpop.permute.xlu0 %2253
    %2255 = vrot.lane.b32.xlu0 %v2151, 64
    %v2256 = vpop.permute.xlu0 %2255
    %2257 = vrot.lane.b32.xlu0 %v2152, 64
    %v2258 = vpop.permute.xlu0 %2257
    %2259 = vrot.lane.b32.xlu0 %v2153, 64
    %v2260 = vpop.permute.xlu0 %2259
    %2261 = vrot.lane.b32.xlu0 %v2154, 64
    %v2262 = vpop.permute.xlu0 %2261
    %2263 = vrot.lane.b32.xlu0 %v2155, 64
    %v2264 = vpop.permute.xlu0 %2263
    %2265 = vrot.lane.b32.xlu0 %v2156, 64
    %v2266 = vpop.permute.xlu0 %2265
    %2267 = vrot.lane.b32.xlu0 %v2157, 64
    %v2268 = vpop.permute.xlu0 %2267
    %2269 = vrot.lane.b32.xlu0 %v2158, 64
    %v2270 = vpop.permute.xlu0 %2269
    %v2287 = vsel %vm103, %v1903, %v2176
    %v2288 = vsel %vm103, %v1904, %v2178
    %v2289 = vsel %vm103, %v1905, %v2180
    %v2290 = vsel %vm103, %v1906, %v2182
    %v2291 = vsel %vm103, %v1907, %v2184
    %v2292 = vsel %vm103, %v1908, %v2186
    %v2293 = vsel %vm103, %v1909, %v2188
    %v2294 = vsel %vm103, %v1910, %v2190
    %v2295 = vsel %vm103, %v1911, %v2192
    %v2296 = vsel %vm103, %v1912, %v2194
    %v2297 = vsel %vm103, %v1913, %v2196
    %v2298 = vsel %vm103, %v1914, %v2198
    %v2299 = vsel %vm103, %v1915, %v2200
    %v2300 = vsel %vm103, %v1916, %v2202
    %v2301 = vsel %vm103, %v1917, %v2204
    %v2302 = vsel %vm103, %v1918, %v2206
    %v2303 = vsel %vm103, %v2063, %v2240
    %v2304 = vsel %vm103, %v2064, %v2242
    %v2305 = vsel %vm103, %v2065, %v2244
    %v2306 = vsel %vm103, %v2066, %v2246
    %v2307 = vsel %vm103, %v2067, %v2248
    %v2308 = vsel %vm103, %v2068, %v2250
    %v2309 = vsel %vm103, %v2069, %v2252
    %v2310 = vsel %vm103, %v2070, %v2254
    %v2311 = vsel %vm103, %v2071, %v2256
    %v2312 = vsel %vm103, %v2072, %v2258
    %v2313 = vsel %vm103, %v2073, %v2260
    %v2314 = vsel %vm103, %v2074, %v2262
    %v2315 = vsel %vm103, %v2075, %v2264
    %v2316 = vsel %vm103, %v2076, %v2266
    %v2317 = vsel %vm103, %v2077, %v2268
    %v2318 = vsel %vm103, %v2078, %v2270
    %v2319 = vpack.c.bf16 %v2288, %v2287
    %v2320 = vpack.c.bf16 %v2304, %v2303
    %v2321 = vpack.c.bf16 %v2290, %v2289
    %v2322 = vpack.c.bf16 %v2306, %v2305
    %v2323 = vpack.c.bf16 %v2292, %v2291
    %v2324 = vpack.c.bf16 %v2308, %v2307
    %v2325 = vpack.c.bf16 %v2294, %v2293
    %v2326 = vpack.c.bf16 %v2310, %v2309
    %v2327 = vpack.c.bf16 %v2296, %v2295
    %v2328 = vpack.c.bf16 %v2312, %v2311
    %v2329 = vpack.c.bf16 %v2298, %v2297
    %v2330 = vpack.c.bf16 %v2314, %v2313
    %v2331 = vpack.c.bf16 %v2300, %v2299
    %v2332 = vpack.c.bf16 %v2316, %v2315
    %v2333 = vpack.c.bf16 %v2302, %v2301
    %v2334 = vpack.c.bf16 %v2318, %v2317
    %v2335 = vunpack.c.l.bf16 %v2319
    %v2336 = vunpack.c.l.bf16 %v2320
    %v2337 = vunpack.c.h.bf16 %v2319
    %v2338 = vunpack.c.h.bf16 %v2320
    %v2339 = vunpack.c.l.bf16 %v2321
    %v2340 = vunpack.c.l.bf16 %v2322
    %v2341 = vunpack.c.h.bf16 %v2321
    %v2342 = vunpack.c.h.bf16 %v2322
    %v2343 = vunpack.c.l.bf16 %v2323
    %v2344 = vunpack.c.l.bf16 %v2324
    %v2345 = vunpack.c.h.bf16 %v2323
    %v2346 = vunpack.c.h.bf16 %v2324
    %v2347 = vunpack.c.l.bf16 %v2325
    %v2348 = vunpack.c.l.bf16 %v2326
    %v2349 = vunpack.c.h.bf16 %v2325
    %v2350 = vunpack.c.h.bf16 %v2326
    %v2351 = vunpack.c.l.bf16 %v2327
    %v2352 = vunpack.c.l.bf16 %v2328
    %v2353 = vunpack.c.h.bf16 %v2327
    %v2354 = vunpack.c.h.bf16 %v2328
    %v2355 = vunpack.c.l.bf16 %v2329
    %v2356 = vunpack.c.l.bf16 %v2330
    %v2357 = vunpack.c.h.bf16 %v2329
    %v2358 = vunpack.c.h.bf16 %v2330
    %v2359 = vunpack.c.l.bf16 %v2331
    %v2360 = vunpack.c.l.bf16 %v2332
    %v2361 = vunpack.c.h.bf16 %v2331
    %v2362 = vunpack.c.h.bf16 %v2332
    %v2363 = vunpack.c.l.bf16 %v2333
    %v2364 = vunpack.c.l.bf16 %v2334
    %v2365 = vunpack.c.h.bf16 %v2333
    %v2366 = vunpack.c.h.bf16 %v2334
    %v2367 = vsub.f32 %v2287, %v2335
    %v2368 = vsub.f32 %v2303, %v2336
    %v2369 = vsub.f32 %v2288, %v2337
    %v2370 = vsub.f32 %v2304, %v2338
    %v2371 = vsub.f32 %v2289, %v2339
    %v2372 = vsub.f32 %v2305, %v2340
    %v2373 = vsub.f32 %v2290, %v2341
    %v2374 = vsub.f32 %v2306, %v2342
    %v2375 = vsub.f32 %v2291, %v2343
    %v2376 = vsub.f32 %v2307, %v2344
    %v2377 = vsub.f32 %v2292, %v2345
    %v2378 = vsub.f32 %v2308, %v2346
    %v2379 = vsub.f32 %v2293, %v2347
    %v2380 = vsub.f32 %v2309, %v2348
    %v2381 = vsub.f32 %v2294, %v2349
    %v2382 = vsub.f32 %v2310, %v2350
    %v2383 = vsub.f32 %v2295, %v2351
    %v2384 = vsub.f32 %v2311, %v2352
    %v2385 = vsub.f32 %v2296, %v2353
    %v2386 = vsub.f32 %v2312, %v2354
    %v2387 = vsub.f32 %v2297, %v2355
    %v2388 = vsub.f32 %v2313, %v2356
    %v2389 = vsub.f32 %v2298, %v2357
    %v2390 = vsub.f32 %v2314, %v2358
    %v2391 = vsub.f32 %v2299, %v2359
    %v2392 = vsub.f32 %v2315, %v2360
    %v2393 = vsub.f32 %v2300, %v2361
    %v2394 = vsub.f32 %v2316, %v2362
    %v2395 = vsub.f32 %v2301, %v2363
    %v2396 = vsub.f32 %v2317, %v2364
    %v2397 = vsub.f32 %v2302, %v2365
    %v2398 = vsub.f32 %v2318, %v2366
    %v2399 = vpack.c.bf16 %v2369, %v2367
    %v2400 = vpack.c.bf16 %v2370, %v2368
    %v2401 = vpack.c.bf16 %v2373, %v2371
    %v2402 = vpack.c.bf16 %v2374, %v2372
    %v2403 = vpack.c.bf16 %v2377, %v2375
    %v2404 = vpack.c.bf16 %v2378, %v2376
    %v2405 = vpack.c.bf16 %v2381, %v2379
    %v2406 = vpack.c.bf16 %v2382, %v2380
    %v2407 = vpack.c.bf16 %v2385, %v2383
    %v2408 = vpack.c.bf16 %v2386, %v2384
    %v2409 = vpack.c.bf16 %v2389, %v2387
    %v2410 = vpack.c.bf16 %v2390, %v2388
    %v2411 = vpack.c.bf16 %v2393, %v2391
    %v2412 = vpack.c.bf16 %v2394, %v2392
    %v2413 = vpack.c.bf16 %v2397, %v2395
    %v2414 = vpack.c.bf16 %v2398, %v2396
    %2415 = vmatprep.subr.bf16.mxu0 %v2414
    %2416 = vmatpush1.bf16.msra.mxu0 %v2413
    %2417 = vmatprep.subr.bf16.mxu0 %v2412
    %2418 = vmatpush1.bf16.msra.mxu0 %v2411
    %2419 = vmatprep.subr.bf16.mxu0 %v2410
    %2420 = vmatpush1.bf16.msra.mxu0 %v2409
    %2421 = vmatprep.subr.bf16.mxu0 %v2408
    %2422 = vmatpush1.bf16.msra.mxu0 %v2407
    %2423 = vmatprep.subr.bf16.mxu0 %v2406
    %2424 = vmatpush1.bf16.msra.mxu0 %v2405
    %2425 = vmatprep.subr.bf16.mxu0 %v2404
    %2426 = vmatpush1.bf16.msra.mxu0 %v2403
    %2427 = vmatprep.subr.bf16.mxu0 %v2402
    %2428 = vmatpush1.bf16.msra.mxu0 %v2401
    %2429 = vmatprep.subr.bf16.mxu0 %v2400
    %2430 = vmatpush1.bf16.msra.mxu0 %v2399
    %2431 = vmatprep.subr.bf16.mxu0 0
    %2432 = vmatpush2.bf16.msra.mxu0 0
    %2433 = vmatprep.subr.bf16.mxu0 0
    %2434 = vmatpush2.bf16.msra.mxu0 0
    %2435 = vmatprep.subr.bf16.mxu0 0
    %2436 = vmatpush2.bf16.msra.mxu0 0
    %2437 = vmatprep.subr.bf16.mxu0 0
    %2438 = vmatpush2.bf16.msra.mxu0 0
    %2439 = vmatprep.subr.bf16.mxu0 0
    %2440 = vmatpush2.bf16.msra.mxu0 0
    %2441 = vmatprep.subr.bf16.mxu0 0
    %2442 = vmatpush2.bf16.msra.mxu0 0
    %2443 = vmatprep.subr.bf16.mxu0 0
    %2444 = vmatpush2.bf16.msra.mxu0 0
    %2445 = vmatprep.subr.bf16.mxu0 0
    %2446 = vmatpush2.bf16.msra.mxu0 0
    %2447 = vmatprep.mubr.bf16.mxu0 0
    %2448 = vmatmul.mubr.bf16.gmra.mxu0 %v86
    %v2449 = vpop.f32.mrf.mxu0
    %v2450 = vadd.f32 0.0, %v2449
    %v2451 = vpop.f32.mrf.mxu0
    %v2452 = vadd.f32 0.0, %v2451
    %v2453 = vpop.f32.mrf.mxu0
    %v2454 = vadd.f32 0.0, %v2453
    %v2455 = vpop.f32.mrf.mxu0
    %v2456 = vadd.f32 0.0, %v2455
    %2457 = vmatprep.mubr.bf16.mxu0 0
    %2458 = vmatmul.mubr.bf16.gmra.mxu0 %v87
    %v2459 = vpop.f32.mrf.mxu0
    %v2460 = vadd.f32 0.0, %v2459
    %v2461 = vpop.f32.mrf.mxu0
    %v2462 = vadd.f32 0.0, %v2461
    %v2463 = vpop.f32.mrf.mxu0
    %v2464 = vadd.f32 0.0, %v2463
    %v2465 = vpop.f32.mrf.mxu0
    %v2466 = vadd.f32 0.0, %v2465
    %2467 = vmatprep.mubr.bf16.mxu0 0
    %2468 = vmatmul.mubr.bf16.gmra.mxu0 %v88
    %v2469 = vpop.f32.mrf.mxu0
    %v2470 = vadd.f32 0.0, %v2469
    %v2471 = vpop.f32.mrf.mxu0
    %v2472 = vadd.f32 0.0, %v2471
    %v2473 = vpop.f32.mrf.mxu0
    %v2474 = vadd.f32 0.0, %v2473
    %v2475 = vpop.f32.mrf.mxu0
    %v2476 = vadd.f32 0.0, %v2475
    %2477 = vmatprep.mubr.bf16.mxu0 0
    %2478 = vmatmul.mubr.bf16.gmra.mxu0 %v89
    %v2479 = vpop.f32.mrf.mxu0
    %v2480 = vadd.f32 0.0, %v2479
    %v2481 = vpop.f32.mrf.mxu0
    %v2482 = vadd.f32 0.0, %v2481
    %v2483 = vpop.f32.mrf.mxu0
    %v2484 = vadd.f32 0.0, %v2483
    %v2485 = vpop.f32.mrf.mxu0
    %v2486 = vadd.f32 0.0, %v2485
    %2487 = vmatprep.mubr.bf16.mxu0 0
    %2488 = vmatmul.mubr.bf16.gmra.mxu0 %v90
    %v2489 = vpop.f32.mrf.mxu0
    %v2490 = vadd.f32 0.0, %v2489
    %v2491 = vpop.f32.mrf.mxu0
    %v2492 = vadd.f32 0.0, %v2491
    %v2493 = vpop.f32.mrf.mxu0
    %v2494 = vadd.f32 0.0, %v2493
    %v2495 = vpop.f32.mrf.mxu0
    %v2496 = vadd.f32 0.0, %v2495
    %2497 = vmatprep.mubr.bf16.mxu0 0
    %2498 = vmatmul.mubr.bf16.gmra.mxu0 %v91
    %v2499 = vpop.f32.mrf.mxu0
    %v2500 = vadd.f32 0.0, %v2499
    %v2501 = vpop.f32.mrf.mxu0
    %v2502 = vadd.f32 0.0, %v2501
    %v2503 = vpop.f32.mrf.mxu0
    %v2504 = vadd.f32 0.0, %v2503
    %v2505 = vpop.f32.mrf.mxu0
    %v2506 = vadd.f32 0.0, %v2505
    %2507 = vmatprep.mubr.bf16.mxu0 0
    %2508 = vmatmul.mubr.bf16.gmra.mxu0 %v92
    %v2509 = vpop.f32.mrf.mxu0
    %v2510 = vadd.f32 0.0, %v2509
    %v2511 = vpop.f32.mrf.mxu0
    %v2512 = vadd.f32 0.0, %v2511
    %v2513 = vpop.f32.mrf.mxu0
    %v2514 = vadd.f32 0.0, %v2513
    %v2515 = vpop.f32.mrf.mxu0
    %v2516 = vadd.f32 0.0, %v2515
    %2517 = vmatprep.mubr.bf16.mxu0 0
    %2518 = vmatmul.mubr.bf16.gmra.mxu0 %v93
    %v2519 = vpop.f32.mrf.mxu0
    %v2520 = vadd.f32 0.0, %v2519
    %v2521 = vpop.f32.mrf.mxu0
    %v2522 = vadd.f32 0.0, %v2521
    %v2523 = vpop.f32.mrf.mxu0
    %v2524 = vadd.f32 0.0, %v2523
    %v2525 = vpop.f32.mrf.mxu0
    %v2526 = vadd.f32 0.0, %v2525
    %2527 = vdwg.mxu0
    %2528 = vmatprep.subr.bf16.mxu0 %v2334
    %2529 = vmatpush1.bf16.msra.mxu0 %v2333
    %2530 = vmatprep.subr.bf16.mxu0 %v2332
    %2531 = vmatpush1.bf16.msra.mxu0 %v2331
    %2532 = vmatprep.subr.bf16.mxu0 %v2330
    %2533 = vmatpush1.bf16.msra.mxu0 %v2329
    %2534 = vmatprep.subr.bf16.mxu0 %v2328
    %2535 = vmatpush1.bf16.msra.mxu0 %v2327
    %2536 = vmatprep.subr.bf16.mxu0 %v2326
    %2537 = vmatpush1.bf16.msra.mxu0 %v2325
    %2538 = vmatprep.subr.bf16.mxu0 %v2324
    %2539 = vmatpush1.bf16.msra.mxu0 %v2323
    %2540 = vmatprep.subr.bf16.mxu0 %v2322
    %2541 = vmatpush1.bf16.msra.mxu0 %v2321
    %2542 = vmatprep.subr.bf16.mxu0 %v2320
    %2543 = vmatpush1.bf16.msra.mxu0 %v2319
    %2544 = vmatprep.subr.bf16.mxu0 0
    %2545 = vmatpush2.bf16.msra.mxu0 0
    %2546 = vmatprep.subr.bf16.mxu0 0
    %2547 = vmatpush2.bf16.msra.mxu0 0
    %2548 = vmatprep.subr.bf16.mxu0 0
    %2549 = vmatpush2.bf16.msra.mxu0 0
    %2550 = vmatprep.subr.bf16.mxu0 0
    %2551 = vmatpush2.bf16.msra.mxu0 0
    %2552 = vmatprep.subr.bf16.mxu0 0
    %2553 = vmatpush2.bf16.msra.mxu0 0
    %2554 = vmatprep.subr.bf16.mxu0 0
    %2555 = vmatpush2.bf16.msra.mxu0 0
    %2556 = vmatprep.subr.bf16.mxu0 0
    %2557 = vmatpush2.bf16.msra.mxu0 0
    %2558 = vmatprep.subr.bf16.mxu0 0
    %2559 = vmatpush2.bf16.msra.mxu0 0
    %2560 = vmatprep.mubr.bf16.mxu0 0
    %2561 = vmatmul.mubr.bf16.gmra.mxu0 %v86
    %v2562 = vpop.f32.mrf.mxu0
    %v2563 = vadd.f32 %v2450, %v2562
    %v2564 = vpop.f32.mrf.mxu0
    %v2565 = vadd.f32 %v2452, %v2564
    %v2566 = vpop.f32.mrf.mxu0
    %v2567 = vadd.f32 %v2454, %v2566
    %v2568 = vpop.f32.mrf.mxu0
    %v2569 = vadd.f32 %v2456, %v2568
    %2570 = vmatprep.mubr.bf16.mxu0 0
    %2571 = vmatmul.mubr.bf16.gmra.mxu0 %v87
    %v2572 = vpop.f32.mrf.mxu0
    %v2573 = vadd.f32 %v2460, %v2572
    %v2574 = vpop.f32.mrf.mxu0
    %v2575 = vadd.f32 %v2462, %v2574
    %v2576 = vpop.f32.mrf.mxu0
    %v2577 = vadd.f32 %v2464, %v2576
    %v2578 = vpop.f32.mrf.mxu0
    %v2579 = vadd.f32 %v2466, %v2578
    %2580 = vmatprep.mubr.bf16.mxu0 0
    %2581 = vmatmul.mubr.bf16.gmra.mxu0 %v88
    %v2582 = vpop.f32.mrf.mxu0
    %v2583 = vadd.f32 %v2470, %v2582
    %v2584 = vpop.f32.mrf.mxu0
    %v2585 = vadd.f32 %v2472, %v2584
    %v2586 = vpop.f32.mrf.mxu0
    %v2587 = vadd.f32 %v2474, %v2586
    %v2588 = vpop.f32.mrf.mxu0
    %v2589 = vadd.f32 %v2476, %v2588
    %2590 = vmatprep.mubr.bf16.mxu0 0
    %2591 = vmatmul.mubr.bf16.gmra.mxu0 %v89
    %v2592 = vpop.f32.mrf.mxu0
    %v2593 = vadd.f32 %v2480, %v2592
    %v2594 = vpop.f32.mrf.mxu0
    %v2595 = vadd.f32 %v2482, %v2594
    %v2596 = vpop.f32.mrf.mxu0
    %v2597 = vadd.f32 %v2484, %v2596
    %v2598 = vpop.f32.mrf.mxu0
    %v2599 = vadd.f32 %v2486, %v2598
    %2600 = vmatprep.mubr.bf16.mxu0 0
    %2601 = vmatmul.mubr.bf16.gmra.mxu0 %v90
    %v2602 = vpop.f32.mrf.mxu0
    %v2603 = vadd.f32 %v2490, %v2602
    %v2604 = vpop.f32.mrf.mxu0
    %v2605 = vadd.f32 %v2492, %v2604
    %v2606 = vpop.f32.mrf.mxu0
    %v2607 = vadd.f32 %v2494, %v2606
    %v2608 = vpop.f32.mrf.mxu0
    %v2609 = vadd.f32 %v2496, %v2608
    %2610 = vmatprep.mubr.bf16.mxu0 0
    %2611 = vmatmul.mubr.bf16.gmra.mxu0 %v91
    %v2612 = vpop.f32.mrf.mxu0
    %v2613 = vadd.f32 %v2500, %v2612
    %v2614 = vpop.f32.mrf.mxu0
    %v2615 = vadd.f32 %v2502, %v2614
    %v2616 = vpop.f32.mrf.mxu0
    %v2617 = vadd.f32 %v2504, %v2616
    %v2618 = vpop.f32.mrf.mxu0
    %v2619 = vadd.f32 %v2506, %v2618
    %2620 = vmatprep.mubr.bf16.mxu0 0
    %2621 = vmatmul.mubr.bf16.gmra.mxu0 %v92
    %v2622 = vpop.f32.mrf.mxu0
    %v2623 = vadd.f32 %v2510, %v2622
    %v2624 = vpop.f32.mrf.mxu0
    %v2625 = vadd.f32 %v2512, %v2624
    %v2626 = vpop.f32.mrf.mxu0
    %v2627 = vadd.f32 %v2514, %v2626
    %v2628 = vpop.f32.mrf.mxu0
    %v2629 = vadd.f32 %v2516, %v2628
    %2630 = vmatprep.mubr.bf16.mxu0 0
    %2631 = vmatmul.mubr.bf16.gmra.mxu0 %v93
    %v2632 = vpop.f32.mrf.mxu0
    %v2633 = vadd.f32 %v2520, %v2632
    %v2634 = vpop.f32.mrf.mxu0
    %v2635 = vadd.f32 %v2522, %v2634
    %v2636 = vpop.f32.mrf.mxu0
    %v2637 = vadd.f32 %v2524, %v2636
    %v2638 = vpop.f32.mrf.mxu0
    %v2639 = vadd.f32 %v2526, %v2638
    %2640 = vdwg.mxu0
    %v2641 = vlaneseq
    %v2642 = vshrl.u32 %v2641, 7
    %v2643 = vsub.s32 0, %v2642
    %v2644 = vrot.slane %v1773, %v2643
    %v2645 = vlaneseq
    %v2646 = vshrl.u32 %v2645, 7
    %v2647 = vsub.s32 0, %v2646
    %v2648 = vrot.slane %v1774, %v2647
    %v2649 = vadd.f32 %v2563, %v2644
    %v2650 = vadd.f32 %v2565, %v2648
    %v2651 = vadd.f32 %v2567, %v2644
    %v2652 = vadd.f32 %v2569, %v2648
    %v2653 = vadd.f32 %v2573, %v2644
    %v2654 = vadd.f32 %v2575, %v2648
    %v2655 = vadd.f32 %v2577, %v2644
    %v2656 = vadd.f32 %v2579, %v2648
    %v2657 = vadd.f32 %v2583, %v2644
    %v2658 = vadd.f32 %v2585, %v2648
    %v2659 = vadd.f32 %v2587, %v2644
    %v2660 = vadd.f32 %v2589, %v2648
    %v2661 = vadd.f32 %v2593, %v2644
    %v2662 = vadd.f32 %v2595, %v2648
    %v2663 = vadd.f32 %v2597, %v2644
    %v2664 = vadd.f32 %v2599, %v2648
    %v2665 = vadd.f32 %v2603, %v2644
    %v2666 = vadd.f32 %v2605, %v2648
    %v2667 = vadd.f32 %v2607, %v2644
    %v2668 = vadd.f32 %v2609, %v2648
    %v2669 = vadd.f32 %v2613, %v2644
    %v2670 = vadd.f32 %v2615, %v2648
    %v2671 = vadd.f32 %v2617, %v2644
    %v2672 = vadd.f32 %v2619, %v2648
    %v2673 = vadd.f32 %v2623, %v2644
    %v2674 = vadd.f32 %v2625, %v2648
    %v2675 = vadd.f32 %v2627, %v2644
    %v2676 = vadd.f32 %v2629, %v2648
    %v2677 = vadd.f32 %v2633, %v2644
    %v2678 = vadd.f32 %v2635, %v2648
    %v2679 = vadd.f32 %v2637, %v2644
    %v2680 = vadd.f32 %v2639, %v2648
    %v2681 = vxor.u32 %v2649, 2147483648
    %v2682 = vxor.u32 %v2650, 2147483648
    %v2683 = vxor.u32 %v2651, 2147483648
    %v2684 = vxor.u32 %v2652, 2147483648
    %v2685 = vxor.u32 %v2653, 2147483648
    %v2686 = vxor.u32 %v2654, 2147483648
    %v2687 = vxor.u32 %v2655, 2147483648
    %v2688 = vxor.u32 %v2656, 2147483648
    %v2689 = vxor.u32 %v2657, 2147483648
    %v2690 = vxor.u32 %v2658, 2147483648
    %v2691 = vxor.u32 %v2659, 2147483648
    %v2692 = vxor.u32 %v2660, 2147483648
    %v2693 = vxor.u32 %v2661, 2147483648
    %v2694 = vxor.u32 %v2662, 2147483648
    %v2695 = vxor.u32 %v2663, 2147483648
    %v2696 = vxor.u32 %v2664, 2147483648
    %v2697 = vxor.u32 %v2665, 2147483648
    %v2698 = vxor.u32 %v2666, 2147483648
    %v2699 = vxor.u32 %v2667, 2147483648
    %v2700 = vxor.u32 %v2668, 2147483648
    %v2701 = vxor.u32 %v2669, 2147483648
    %v2702 = vxor.u32 %v2670, 2147483648
    %v2703 = vxor.u32 %v2671, 2147483648
    %v2704 = vxor.u32 %v2672, 2147483648
    %v2705 = vxor.u32 %v2673, 2147483648
    %v2706 = vxor.u32 %v2674, 2147483648
    %v2707 = vxor.u32 %v2675, 2147483648
    %v2708 = vxor.u32 %v2676, 2147483648
    %v2709 = vxor.u32 %v2677, 2147483648
    %v2710 = vxor.u32 %v2678, 2147483648
    %v2711 = vxor.u32 %v2679, 2147483648
    %v2712 = vxor.u32 %v2680, 2147483648
    %v2713 = vmul.f32 %v2681, 1.442695
    %v2714 = vpow.pop %v2713
    %v2715 = vmul.f32 %v2682, 1.442695
    %v2716 = vpow.pop %v2715
    %v2717 = vmul.f32 %v2683, 1.442695
    %v2718 = vpow.pop %v2717
    %v2719 = vmul.f32 %v2684, 1.442695
    %v2720 = vpow.pop %v2719
    %v2721 = vmul.f32 %v2685, 1.442695
    %v2722 = vpow.pop %v2721
    %v2723 = vmul.f32 %v2686, 1.442695
    %v2724 = vpow.pop %v2723
    %v2725 = vmul.f32 %v2687, 1.442695
    %v2726 = vpow.pop %v2725
    %v2727 = vmul.f32 %v2688, 1.442695
    %v2728 = vpow.pop %v2727
    %v2729 = vmul.f32 %v2689, 1.442695
    %v2730 = vpow.pop %v2729
    %v2731 = vmul.f32 %v2690, 1.442695
    %v2732 = vpow.pop %v2731
    %v2733 = vmul.f32 %v2691, 1.442695
    %v2734 = vpow.pop %v2733
    %v2735 = vmul.f32 %v2692, 1.442695
    %v2736 = vpow.pop %v2735
    %v2737 = vmul.f32 %v2693, 1.442695
    %v2738 = vpow.pop %v2737
    %v2739 = vmul.f32 %v2694, 1.442695
    %v2740 = vpow.pop %v2739
    %v2741 = vmul.f32 %v2695, 1.442695
    %v2742 = vpow.pop %v2741
    %v2743 = vmul.f32 %v2696, 1.442695
    %v2744 = vpow.pop %v2743
    %v2745 = vmul.f32 %v2697, 1.442695
    %v2746 = vpow.pop %v2745
    %v2747 = vmul.f32 %v2698, 1.442695
    %v2748 = vpow.pop %v2747
    %v2749 = vmul.f32 %v2699, 1.442695
    %v2750 = vpow.pop %v2749
    %v2751 = vmul.f32 %v2700, 1.442695
    %v2752 = vpow.pop %v2751
    %v2753 = vmul.f32 %v2701, 1.442695
    %v2754 = vpow.pop %v2753
    %v2755 = vmul.f32 %v2702, 1.442695
    %v2756 = vpow.pop %v2755
    %v2757 = vmul.f32 %v2703, 1.442695
    %v2758 = vpow.pop %v2757
    %v2759 = vmul.f32 %v2704, 1.442695
    %v2760 = vpow.pop %v2759
    %v2761 = vmul.f32 %v2705, 1.442695
    %v2762 = vpow.pop %v2761
    %v2763 = vmul.f32 %v2706, 1.442695
    %v2764 = vpow.pop %v2763
    %v2765 = vmul.f32 %v2707, 1.442695
    %v2766 = vpow.pop %v2765
    %v2767 = vmul.f32 %v2708, 1.442695
    %v2768 = vpow.pop %v2767
    %v2769 = vmul.f32 %v2709, 1.442695
    %v2770 = vpow.pop %v2769
    %v2771 = vmul.f32 %v2710, 1.442695
    %v2772 = vpow.pop %v2771
    %v2773 = vmul.f32 %v2711, 1.442695
    %v2774 = vpow.pop %v2773
    %v2775 = vmul.f32 %v2712, 1.442695
    %v2776 = vpow.pop %v2775
    %v2777 = vadd.f32 %v2714, 1.0
    %v2778 = vadd.f32 %v2716, 1.0
    %v2779 = vadd.f32 %v2718, 1.0
    %v2780 = vadd.f32 %v2720, 1.0
    %v2781 = vadd.f32 %v2722, 1.0
    %v2782 = vadd.f32 %v2724, 1.0
    %v2783 = vadd.f32 %v2726, 1.0
    %v2784 = vadd.f32 %v2728, 1.0
    %v2785 = vadd.f32 %v2730, 1.0
    %v2786 = vadd.f32 %v2732, 1.0
    %v2787 = vadd.f32 %v2734, 1.0
    %v2788 = vadd.f32 %v2736, 1.0
    %v2789 = vadd.f32 %v2738, 1.0
    %v2790 = vadd.f32 %v2740, 1.0
    %v2791 = vadd.f32 %v2742, 1.0
    %v2792 = vadd.f32 %v2744, 1.0
    %v2793 = vadd.f32 %v2746, 1.0
    %v2794 = vadd.f32 %v2748, 1.0
    %v2795 = vadd.f32 %v2750, 1.0
    %v2796 = vadd.f32 %v2752, 1.0
    %v2797 = vadd.f32 %v2754, 1.0
    %v2798 = vadd.f32 %v2756, 1.0
    %v2799 = vadd.f32 %v2758, 1.0
    %v2800 = vadd.f32 %v2760, 1.0
    %v2801 = vadd.f32 %v2762, 1.0
    %v2802 = vadd.f32 %v2764, 1.0
    %v2803 = vadd.f32 %v2766, 1.0
    %v2804 = vadd.f32 %v2768, 1.0
    %v2805 = vadd.f32 %v2770, 1.0
    %v2806 = vadd.f32 %v2772, 1.0
    %v2807 = vadd.f32 %v2774, 1.0
    %v2808 = vadd.f32 %v2776, 1.0
    %v2809 = vrcp.pop %v2777
    %v2810 = vmul.f32 1.0, %v2809
    %v2811 = vrcp.pop %v2778
    %v2812 = vmul.f32 1.0, %v2811
    %v2813 = vrcp.pop %v2779
    %v2814 = vmul.f32 1.0, %v2813
    %v2815 = vrcp.pop %v2780
    %v2816 = vmul.f32 1.0, %v2815
    %v2817 = vrcp.pop %v2781
    %v2818 = vmul.f32 1.0, %v2817
    %v2819 = vrcp.pop %v2782
    %v2820 = vmul.f32 1.0, %v2819
    %v2821 = vrcp.pop %v2783
    %v2822 = vmul.f32 1.0, %v2821
    %v2823 = vrcp.pop %v2784
    %v2824 = vmul.f32 1.0, %v2823
    %v2825 = vrcp.pop %v2785
    %v2826 = vmul.f32 1.0, %v2825
    %v2827 = vrcp.pop %v2786
    %v2828 = vmul.f32 1.0, %v2827
    %v2829 = vrcp.pop %v2787
    %v2830 = vmul.f32 1.0, %v2829
    %v2831 = vrcp.pop %v2788
    %v2832 = vmul.f32 1.0, %v2831
    %v2833 = vrcp.pop %v2789
    %v2834 = vmul.f32 1.0, %v2833
    %v2835 = vrcp.pop %v2790
    %v2836 = vmul.f32 1.0, %v2835
    %v2837 = vrcp.pop %v2791
    %v2838 = vmul.f32 1.0, %v2837
    %v2839 = vrcp.pop %v2792
    %v2840 = vmul.f32 1.0, %v2839
    %v2841 = vrcp.pop %v2793
    %v2842 = vmul.f32 1.0, %v2841
    %v2843 = vrcp.pop %v2794
    %v2844 = vmul.f32 1.0, %v2843
    %v2845 = vrcp.pop %v2795
    %v2846 = vmul.f32 1.0, %v2845
    %v2847 = vrcp.pop %v2796
    %v2848 = vmul.f32 1.0, %v2847
    %v2849 = vrcp.pop %v2797
    %v2850 = vmul.f32 1.0, %v2849
    %v2851 = vrcp.pop %v2798
    %v2852 = vmul.f32 1.0, %v2851
    %v2853 = vrcp.pop %v2799
    %v2854 = vmul.f32 1.0, %v2853
    %v2855 = vrcp.pop %v2800
    %v2856 = vmul.f32 1.0, %v2855
    %v2857 = vrcp.pop %v2801
    %v2858 = vmul.f32 1.0, %v2857
    %v2859 = vrcp.pop %v2802
    %v2860 = vmul.f32 1.0, %v2859
    %v2861 = vrcp.pop %v2803
    %v2862 = vmul.f32 1.0, %v2861
    %v2863 = vrcp.pop %v2804
    %v2864 = vmul.f32 1.0, %v2863
    %v2865 = vrcp.pop %v2805
    %v2866 = vmul.f32 1.0, %v2865
    %v2867 = vrcp.pop %v2806
    %v2868 = vmul.f32 1.0, %v2867
    %v2869 = vrcp.pop %v2807
    %v2870 = vmul.f32 1.0, %v2869
    %v2871 = vrcp.pop %v2808
    %v2872 = vmul.f32 1.0, %v2871
    %v2873 = vmul.f32 %v2810, %v1807
    %v2874 = vmul.f32 %v2814, %v1808
    %v2875 = vmul.f32 %v2818, %v1809
    %v2876 = vmul.f32 %v2822, %v1810
    %v2877 = vmul.f32 %v2826, %v1811
    %v2878 = vmul.f32 %v2830, %v1812
    %v2879 = vmul.f32 %v2834, %v1813
    %v2880 = vmul.f32 %v2838, %v1814
    %v2881 = vmul.f32 %v2842, %v1815
    %v2882 = vmul.f32 %v2846, %v1816
    %v2883 = vmul.f32 %v2850, %v1817
    %v2884 = vmul.f32 %v2854, %v1818
    %v2885 = vmul.f32 %v2858, %v1819
    %v2886 = vmul.f32 %v2862, %v1820
    %v2887 = vmul.f32 %v2866, %v1821
    %v2888 = vmul.f32 %v2870, %v1822
    %v2889 = vsel %vm103, %v2873, 0.0
    %2890 = vadd.xlane.f32.xlu0 %v2889
    %v2891 = vpop.xlane.xlu0 %2890
    %v2892 = vsel %vm103, %v2874, 0.0
    %2893 = vadd.xlane.f32.xlu0 %v2892
    %v2894 = vpop.xlane.xlu0 %2893
    %v2895 = vsel %vm103, %v2875, 0.0
    %2896 = vadd.xlane.f32.xlu0 %v2895
    %v2897 = vpop.xlane.xlu0 %2896
    %v2898 = vsel %vm103, %v2876, 0.0
    %2899 = vadd.xlane.f32.xlu0 %v2898
    %v2900 = vpop.xlane.xlu0 %2899
    %v2901 = vsel %vm103, %v2877, 0.0
    %2902 = vadd.xlane.f32.xlu0 %v2901
    %v2903 = vpop.xlane.xlu0 %2902
    %v2904 = vsel %vm103, %v2878, 0.0
    %2905 = vadd.xlane.f32.xlu0 %v2904
    %v2906 = vpop.xlane.xlu0 %2905
    %v2907 = vsel %vm103, %v2879, 0.0
    %2908 = vadd.xlane.f32.xlu0 %v2907
    %v2909 = vpop.xlane.xlu0 %2908
    %v2910 = vsel %vm103, %v2880, 0.0
    %2911 = vadd.xlane.f32.xlu0 %v2910
    %v2912 = vpop.xlane.xlu0 %2911
    %v2913 = vsel %vm103, %v2881, 0.0
    %2914 = vadd.xlane.f32.xlu0 %v2913
    %v2915 = vpop.xlane.xlu0 %2914
    %v2916 = vsel %vm103, %v2882, 0.0
    %2917 = vadd.xlane.f32.xlu0 %v2916
    %v2918 = vpop.xlane.xlu0 %2917
    %v2919 = vsel %vm103, %v2883, 0.0
    %2920 = vadd.xlane.f32.xlu0 %v2919
    %v2921 = vpop.xlane.xlu0 %2920
    %v2922 = vsel %vm103, %v2884, 0.0
    %2923 = vadd.xlane.f32.xlu0 %v2922
    %v2924 = vpop.xlane.xlu0 %2923
    %v2925 = vsel %vm103, %v2885, 0.0
    %2926 = vadd.xlane.f32.xlu0 %v2925
    %v2927 = vpop.xlane.xlu0 %2926
    %v2928 = vsel %vm103, %v2886, 0.0
    %2929 = vadd.xlane.f32.xlu0 %v2928
    %v2930 = vpop.xlane.xlu0 %2929
    %v2931 = vsel %vm103, %v2887, 0.0
    %2932 = vadd.xlane.f32.xlu0 %v2931
    %v2933 = vpop.xlane.xlu0 %2932
    %v2934 = vsel %vm103, %v2888, 0.0
    %2935 = vadd.xlane.f32.xlu0 %v2934
    %v2936 = vpop.xlane.xlu0 %2935
    %2953 = vrot.lane.b32.xlu0 %v1807, 64
    %v2954 = vpop.permute.xlu0 %2953
    %2955 = vrot.lane.b32.xlu0 %v1808, 64
    %v2956 = vpop.permute.xlu0 %2955
    %2957 = vrot.lane.b32.xlu0 %v1809, 64
    %v2958 = vpop.permute.xlu0 %2957
    %2959 = vrot.lane.b32.xlu0 %v1810, 64
    %v2960 = vpop.permute.xlu0 %2959
    %2961 = vrot.lane.b32.xlu0 %v1811, 64
    %v2962 = vpop.permute.xlu0 %2961
    %2963 = vrot.lane.b32.xlu0 %v1812, 64
    %v2964 = vpop.permute.xlu0 %2963
    %2965 = vrot.lane.b32.xlu0 %v1813, 64
    %v2966 = vpop.permute.xlu0 %2965
    %2967 = vrot.lane.b32.xlu0 %v1814, 64
    %v2968 = vpop.permute.xlu0 %2967
    %2969 = vrot.lane.b32.xlu0 %v1815, 64
    %v2970 = vpop.permute.xlu0 %2969
    %2971 = vrot.lane.b32.xlu0 %v1816, 64
    %v2972 = vpop.permute.xlu0 %2971
    %2973 = vrot.lane.b32.xlu0 %v1817, 64
    %v2974 = vpop.permute.xlu0 %2973
    %2975 = vrot.lane.b32.xlu0 %v1818, 64
    %v2976 = vpop.permute.xlu0 %2975
    %2977 = vrot.lane.b32.xlu0 %v1819, 64
    %v2978 = vpop.permute.xlu0 %2977
    %2979 = vrot.lane.b32.xlu0 %v1820, 64
    %v2980 = vpop.permute.xlu0 %2979
    %2981 = vrot.lane.b32.xlu0 %v1821, 64
    %v2982 = vpop.permute.xlu0 %2981
    %2983 = vrot.lane.b32.xlu0 %v1822, 64
    %v2984 = vpop.permute.xlu0 %2983
    %v3001 = vmul.f32 %v2810, %v2954
    %v3002 = vmul.f32 %v2814, %v2956
    %v3003 = vmul.f32 %v2818, %v2958
    %v3004 = vmul.f32 %v2822, %v2960
    %v3005 = vmul.f32 %v2826, %v2962
    %v3006 = vmul.f32 %v2830, %v2964
    %v3007 = vmul.f32 %v2834, %v2966
    %v3008 = vmul.f32 %v2838, %v2968
    %v3009 = vmul.f32 %v2842, %v2970
    %v3010 = vmul.f32 %v2846, %v2972
    %v3011 = vmul.f32 %v2850, %v2974
    %v3012 = vmul.f32 %v2854, %v2976
    %v3013 = vmul.f32 %v2858, %v2978
    %v3014 = vmul.f32 %v2862, %v2980
    %v3015 = vmul.f32 %v2866, %v2982
    %v3016 = vmul.f32 %v2870, %v2984
    %3033 = vrot.lane.b32.xlu0 %v3001, 64
    %v3034 = vpop.permute.xlu0 %3033
    %3035 = vrot.lane.b32.xlu0 %v3002, 64
    %v3036 = vpop.permute.xlu0 %3035
    %3037 = vrot.lane.b32.xlu0 %v3003, 64
    %v3038 = vpop.permute.xlu0 %3037
    %3039 = vrot.lane.b32.xlu0 %v3004, 64
    %v3040 = vpop.permute.xlu0 %3039
    %3041 = vrot.lane.b32.xlu0 %v3005, 64
    %v3042 = vpop.permute.xlu0 %3041
    %3043 = vrot.lane.b32.xlu0 %v3006, 64
    %v3044 = vpop.permute.xlu0 %3043
    %3045 = vrot.lane.b32.xlu0 %v3007, 64
    %v3046 = vpop.permute.xlu0 %3045
    %3047 = vrot.lane.b32.xlu0 %v3008, 64
    %v3048 = vpop.permute.xlu0 %3047
    %3049 = vrot.lane.b32.xlu0 %v3009, 64
    %v3050 = vpop.permute.xlu0 %3049
    %3051 = vrot.lane.b32.xlu0 %v3010, 64
    %v3052 = vpop.permute.xlu0 %3051
    %3053 = vrot.lane.b32.xlu0 %v3011, 64
    %v3054 = vpop.permute.xlu0 %3053
    %3055 = vrot.lane.b32.xlu0 %v3012, 64
    %v3056 = vpop.permute.xlu0 %3055
    %3057 = vrot.lane.b32.xlu0 %v3013, 64
    %v3058 = vpop.permute.xlu0 %3057
    %3059 = vrot.lane.b32.xlu0 %v3014, 64
    %v3060 = vpop.permute.xlu0 %3059
    %3061 = vrot.lane.b32.xlu0 %v3015, 64
    %v3062 = vpop.permute.xlu0 %3061
    %3063 = vrot.lane.b32.xlu0 %v3016, 64
    %v3064 = vpop.permute.xlu0 %3063
    %v3081 = vsel %vm103, %v3034, 0.0
    %3082 = vadd.xlane.f32.xlu0 %v3081
    %v3083 = vpop.xlane.xlu0 %3082
    %v3084 = vsel %vm103, %v3036, 0.0
    %3085 = vadd.xlane.f32.xlu0 %v3084
    %v3086 = vpop.xlane.xlu0 %3085
    %v3087 = vsel %vm103, %v3038, 0.0
    %3088 = vadd.xlane.f32.xlu0 %v3087
    %v3089 = vpop.xlane.xlu0 %3088
    %v3090 = vsel %vm103, %v3040, 0.0
    %3091 = vadd.xlane.f32.xlu0 %v3090
    %v3092 = vpop.xlane.xlu0 %3091
    %v3093 = vsel %vm103, %v3042, 0.0
    %3094 = vadd.xlane.f32.xlu0 %v3093
    %v3095 = vpop.xlane.xlu0 %3094
    %v3096 = vsel %vm103, %v3044, 0.0
    %3097 = vadd.xlane.f32.xlu0 %v3096
    %v3098 = vpop.xlane.xlu0 %3097
    %v3099 = vsel %vm103, %v3046, 0.0
    %3100 = vadd.xlane.f32.xlu0 %v3099
    %v3101 = vpop.xlane.xlu0 %3100
    %v3102 = vsel %vm103, %v3048, 0.0
    %3103 = vadd.xlane.f32.xlu0 %v3102
    %v3104 = vpop.xlane.xlu0 %3103
    %v3105 = vsel %vm103, %v3050, 0.0
    %3106 = vadd.xlane.f32.xlu0 %v3105
    %v3107 = vpop.xlane.xlu0 %3106
    %v3108 = vsel %vm103, %v3052, 0.0
    %3109 = vadd.xlane.f32.xlu0 %v3108
    %v3110 = vpop.xlane.xlu0 %3109
    %v3111 = vsel %vm103, %v3054, 0.0
    %3112 = vadd.xlane.f32.xlu0 %v3111
    %v3113 = vpop.xlane.xlu0 %3112
    %v3114 = vsel %vm103, %v3056, 0.0
    %3115 = vadd.xlane.f32.xlu0 %v3114
    %v3116 = vpop.xlane.xlu0 %3115
    %v3117 = vsel %vm103, %v3058, 0.0
    %3118 = vadd.xlane.f32.xlu0 %v3117
    %v3119 = vpop.xlane.xlu0 %3118
    %v3120 = vsel %vm103, %v3060, 0.0
    %3121 = vadd.xlane.f32.xlu0 %v3120
    %v3122 = vpop.xlane.xlu0 %3121
    %v3123 = vsel %vm103, %v3062, 0.0
    %3124 = vadd.xlane.f32.xlu0 %v3123
    %v3125 = vpop.xlane.xlu0 %3124
    %v3126 = vsel %vm103, %v3064, 0.0
    %3127 = vadd.xlane.f32.xlu0 %v3126
    %v3128 = vpop.xlane.xlu0 %3127
    %v3129 = vmul.f32 %v2812, %v1807
    %v3130 = vmul.f32 %v2816, %v1808
    %v3131 = vmul.f32 %v2820, %v1809
    %v3132 = vmul.f32 %v2824, %v1810
    %v3133 = vmul.f32 %v2828, %v1811
    %v3134 = vmul.f32 %v2832, %v1812
    %v3135 = vmul.f32 %v2836, %v1813
    %v3136 = vmul.f32 %v2840, %v1814
    %v3137 = vmul.f32 %v2844, %v1815
    %v3138 = vmul.f32 %v2848, %v1816
    %v3139 = vmul.f32 %v2852, %v1817
    %v3140 = vmul.f32 %v2856, %v1818
    %v3141 = vmul.f32 %v2860, %v1819
    %v3142 = vmul.f32 %v2864, %v1820
    %v3143 = vmul.f32 %v2868, %v1821
    %v3144 = vmul.f32 %v2872, %v1822
    %v3145 = vsel %vm103, %v3129, 0.0
    %3146 = vadd.xlane.f32.xlu0 %v3145
    %v3147 = vpop.xlane.xlu0 %3146
    %v3148 = vsel %vm103, %v3130, 0.0
    %3149 = vadd.xlane.f32.xlu0 %v3148
    %v3150 = vpop.xlane.xlu0 %3149
    %v3151 = vsel %vm103, %v3131, 0.0
    %3152 = vadd.xlane.f32.xlu0 %v3151
    %v3153 = vpop.xlane.xlu0 %3152
    %v3154 = vsel %vm103, %v3132, 0.0
    %3155 = vadd.xlane.f32.xlu0 %v3154
    %v3156 = vpop.xlane.xlu0 %3155
    %v3157 = vsel %vm103, %v3133, 0.0
    %3158 = vadd.xlane.f32.xlu0 %v3157
    %v3159 = vpop.xlane.xlu0 %3158
    %v3160 = vsel %vm103, %v3134, 0.0
    %3161 = vadd.xlane.f32.xlu0 %v3160
    %v3162 = vpop.xlane.xlu0 %3161
    %v3163 = vsel %vm103, %v3135, 0.0
    %3164 = vadd.xlane.f32.xlu0 %v3163
    %v3165 = vpop.xlane.xlu0 %3164
    %v3166 = vsel %vm103, %v3136, 0.0
    %3167 = vadd.xlane.f32.xlu0 %v3166
    %v3168 = vpop.xlane.xlu0 %3167
    %v3169 = vsel %vm103, %v3137, 0.0
    %3170 = vadd.xlane.f32.xlu0 %v3169
    %v3171 = vpop.xlane.xlu0 %3170
    %v3172 = vsel %vm103, %v3138, 0.0
    %3173 = vadd.xlane.f32.xlu0 %v3172
    %v3174 = vpop.xlane.xlu0 %3173
    %v3175 = vsel %vm103, %v3139, 0.0
    %3176 = vadd.xlane.f32.xlu0 %v3175
    %v3177 = vpop.xlane.xlu0 %3176
    %v3178 = vsel %vm103, %v3140, 0.0
    %3179 = vadd.xlane.f32.xlu0 %v3178
    %v3180 = vpop.xlane.xlu0 %3179
    %v3181 = vsel %vm103, %v3141, 0.0
    %3182 = vadd.xlane.f32.xlu0 %v3181
    %v3183 = vpop.xlane.xlu0 %3182
    %v3184 = vsel %vm103, %v3142, 0.0
    %3185 = vadd.xlane.f32.xlu0 %v3184
    %v3186 = vpop.xlane.xlu0 %3185
    %v3187 = vsel %vm103, %v3143, 0.0
    %3188 = vadd.xlane.f32.xlu0 %v3187
    %v3189 = vpop.xlane.xlu0 %3188
    %v3190 = vsel %vm103, %v3144, 0.0
    %3191 = vadd.xlane.f32.xlu0 %v3190
    %v3192 = vpop.xlane.xlu0 %3191
    %v3193 = vmul.f32 %v2812, %v2954
    %v3194 = vmul.f32 %v2816, %v2956
    %v3195 = vmul.f32 %v2820, %v2958
    %v3196 = vmul.f32 %v2824, %v2960
    %v3197 = vmul.f32 %v2828, %v2962
    %v3198 = vmul.f32 %v2832, %v2964
    %v3199 = vmul.f32 %v2836, %v2966
    %v3200 = vmul.f32 %v2840, %v2968
    %v3201 = vmul.f32 %v2844, %v2970
    %v3202 = vmul.f32 %v2848, %v2972
    %v3203 = vmul.f32 %v2852, %v2974
    %v3204 = vmul.f32 %v2856, %v2976
    %v3205 = vmul.f32 %v2860, %v2978
    %v3206 = vmul.f32 %v2864, %v2980
    %v3207 = vmul.f32 %v2868, %v2982
    %v3208 = vmul.f32 %v2872, %v2984
    %3225 = vrot.lane.b32.xlu0 %v3193, 64
    %v3226 = vpop.permute.xlu0 %3225
    %3227 = vrot.lane.b32.xlu0 %v3194, 64
    %v3228 = vpop.permute.xlu0 %3227
    %3229 = vrot.lane.b32.xlu0 %v3195, 64
    %v3230 = vpop.permute.xlu0 %3229
    %3231 = vrot.lane.b32.xlu0 %v3196, 64
    %v3232 = vpop.permute.xlu0 %3231
    %3233 = vrot.lane.b32.xlu0 %v3197, 64
    %v3234 = vpop.permute.xlu0 %3233
    %3235 = vrot.lane.b32.xlu0 %v3198, 64
    %v3236 = vpop.permute.xlu0 %3235
    %3237 = vrot.lane.b32.xlu0 %v3199, 64
    %v3238 = vpop.permute.xlu0 %3237
    %3239 = vrot.lane.b32.xlu0 %v3200, 64
    %v3240 = vpop.permute.xlu0 %3239
    %3241 = vrot.lane.b32.xlu0 %v3201, 64
    %v3242 = vpop.permute.xlu0 %3241
    %3243 = vrot.lane.b32.xlu0 %v3202, 64
    %v3244 = vpop.permute.xlu0 %3243
    %3245 = vrot.lane.b32.xlu0 %v3203, 64
    %v3246 = vpop.permute.xlu0 %3245
    %3247 = vrot.lane.b32.xlu0 %v3204, 64
    %v3248 = vpop.permute.xlu0 %3247
    %3249 = vrot.lane.b32.xlu0 %v3205, 64
    %v3250 = vpop.permute.xlu0 %3249
    %3251 = vrot.lane.b32.xlu0 %v3206, 64
    %v3252 = vpop.permute.xlu0 %3251
    %3253 = vrot.lane.b32.xlu0 %v3207, 64
    %v3254 = vpop.permute.xlu0 %3253
    %3255 = vrot.lane.b32.xlu0 %v3208, 64
    %v3256 = vpop.permute.xlu0 %3255
    %v3273 = vsel %vm103, %v3226, 0.0
    %3274 = vadd.xlane.f32.xlu0 %v3273
    %v3275 = vpop.xlane.xlu0 %3274
    %v3276 = vsel %vm103, %v3228, 0.0
    %3277 = vadd.xlane.f32.xlu0 %v3276
    %v3278 = vpop.xlane.xlu0 %3277
    %v3279 = vsel %vm103, %v3230, 0.0
    %3280 = vadd.xlane.f32.xlu0 %v3279
    %v3281 = vpop.xlane.xlu0 %3280
    %v3282 = vsel %vm103, %v3232, 0.0
    %3283 = vadd.xlane.f32.xlu0 %v3282
    %v3284 = vpop.xlane.xlu0 %3283
    %v3285 = vsel %vm103, %v3234, 0.0
    %3286 = vadd.xlane.f32.xlu0 %v3285
    %v3287 = vpop.xlane.xlu0 %3286
    %v3288 = vsel %vm103, %v3236, 0.0
    %3289 = vadd.xlane.f32.xlu0 %v3288
    %v3290 = vpop.xlane.xlu0 %3289
    %v3291 = vsel %vm103, %v3238, 0.0
    %3292 = vadd.xlane.f32.xlu0 %v3291
    %v3293 = vpop.xlane.xlu0 %3292
    %v3294 = vsel %vm103, %v3240, 0.0
    %3295 = vadd.xlane.f32.xlu0 %v3294
    %v3296 = vpop.xlane.xlu0 %3295
    %v3297 = vsel %vm103, %v3242, 0.0
    %3298 = vadd.xlane.f32.xlu0 %v3297
    %v3299 = vpop.xlane.xlu0 %3298
    %v3300 = vsel %vm103, %v3244, 0.0
    %3301 = vadd.xlane.f32.xlu0 %v3300
    %v3302 = vpop.xlane.xlu0 %3301
    %v3303 = vsel %vm103, %v3246, 0.0
    %3304 = vadd.xlane.f32.xlu0 %v3303
    %v3305 = vpop.xlane.xlu0 %3304
    %v3306 = vsel %vm103, %v3248, 0.0
    %3307 = vadd.xlane.f32.xlu0 %v3306
    %v3308 = vpop.xlane.xlu0 %3307
    %v3309 = vsel %vm103, %v3250, 0.0
    %3310 = vadd.xlane.f32.xlu0 %v3309
    %v3311 = vpop.xlane.xlu0 %3310
    %v3312 = vsel %vm103, %v3252, 0.0
    %3313 = vadd.xlane.f32.xlu0 %v3312
    %v3314 = vpop.xlane.xlu0 %3313
    %v3315 = vsel %vm103, %v3254, 0.0
    %3316 = vadd.xlane.f32.xlu0 %v3315
    %v3317 = vpop.xlane.xlu0 %3316
    %v3318 = vsel %vm103, %v3256, 0.0
    %3319 = vadd.xlane.f32.xlu0 %v3318
    %v3320 = vpop.xlane.xlu0 %3319
    %v3321 = vsel %vm1647, %v2891, %v3083
    %v3322 = vsel %vm1647, %v2894, %v3086
    %v3323 = vsel %vm1647, %v2897, %v3089
    %v3324 = vsel %vm1647, %v2900, %v3092
    %v3325 = vsel %vm1647, %v2903, %v3095
    %v3326 = vsel %vm1647, %v2906, %v3098
    %v3327 = vsel %vm1647, %v2909, %v3101
    %v3328 = vsel %vm1647, %v2912, %v3104
    %v3329 = vsel %vm1647, %v2915, %v3107
    %v3330 = vsel %vm1647, %v2918, %v3110
    %v3331 = vsel %vm1647, %v2921, %v3113
    %v3332 = vsel %vm1647, %v2924, %v3116
    %v3333 = vsel %vm1647, %v2927, %v3119
    %v3334 = vsel %vm1647, %v2930, %v3122
    %v3335 = vsel %vm1647, %v2933, %v3125
    %v3336 = vsel %vm1647, %v2936, %v3128
    %v3337 = vsel %vm1664, %v3321, %v3147
    %v3338 = vsel %vm1664, %v3322, %v3150
    %v3339 = vsel %vm1664, %v3323, %v3153
    %v3340 = vsel %vm1664, %v3324, %v3156
    %v3341 = vsel %vm1664, %v3325, %v3159
    %v3342 = vsel %vm1664, %v3326, %v3162
    %v3343 = vsel %vm1664, %v3327, %v3165
    %v3344 = vsel %vm1664, %v3328, %v3168
    %v3345 = vsel %vm1664, %v3329, %v3171
    %v3346 = vsel %vm1664, %v3330, %v3174
    %v3347 = vsel %vm1664, %v3331, %v3177
    %v3348 = vsel %vm1664, %v3332, %v3180
    %v3349 = vsel %vm1664, %v3333, %v3183
    %v3350 = vsel %vm1664, %v3334, %v3186
    %v3351 = vsel %vm1664, %v3335, %v3189
    %v3352 = vsel %vm1664, %v3336, %v3192
    %v3353 = vsel %vm1681, %v3337, %v3275
    %v3354 = vsel %vm1681, %v3338, %v3278
    %v3355 = vsel %vm1681, %v3339, %v3281
    %v3356 = vsel %vm1681, %v3340, %v3284
    %v3357 = vsel %vm1681, %v3341, %v3287
    %v3358 = vsel %vm1681, %v3342, %v3290
    %v3359 = vsel %vm1681, %v3343, %v3293
    %v3360 = vsel %vm1681, %v3344, %v3296
    %v3361 = vsel %vm1681, %v3345, %v3299
    %v3362 = vsel %vm1681, %v3346, %v3302
    %v3363 = vsel %vm1681, %v3347, %v3305
    %v3364 = vsel %vm1681, %v3348, %v3308
    %v3365 = vsel %vm1681, %v3349, %v3311
    %v3366 = vsel %vm1681, %v3350, %v3314
    %v3367 = vsel %vm1681, %v3351, %v3317
    %v3368 = vsel %vm1681, %v3352, %v3320
    %3369 = vxpose.xlu0.b32.start [1/16] %v3353, 128
    %3370 = vxpose.xlu0.b32.cont [2/16] %v3354, 128
    %3371 = vxpose.xlu0.b32.cont [3/16] %v3355, 128
    %3372 = vxpose.xlu0.b32.cont [4/16] %v3356, 128
    %3373 = vxpose.xlu0.b32.cont [5/16] %v3357, 128
    %3374 = vxpose.xlu0.b32.cont [6/16] %v3358, 128
    %3375 = vxpose.xlu0.b32.cont [7/16] %v3359, 128
    %3376 = vxpose.xlu0.b32.cont [8/16] %v3360, 128
    %3377 = vxpose.xlu0.b32.cont [9/16] %v3361, 128
    %3378 = vxpose.xlu0.b32.cont [10/16] %v3362, 128
    %3379 = vxpose.xlu0.b32.cont [11/16] %v3363, 128
    %3380 = vxpose.xlu0.b32.cont [12/16] %v3364, 128
    %3381 = vxpose.xlu0.b32.cont [13/16] %v3365, 128
    %3382 = vxpose.xlu0.b32.cont [14/16] %v3366, 128
    %3383 = vxpose.xlu0.b32.cont [15/16] %v3367, 128
    %3384 = vxpose.xlu0.b32.end [16/16] %v3368, 128
    %v3385 = vpop.trf.xlu0
    %v3386 = vpop.trf.xlu0
    %v3387 = vpop.trf.xlu0
    %v3388 = vpop.trf.xlu0
    %v3389 = vpop.trf.xlu0
    %v3390 = vpop.trf.xlu0
    %v3391 = vpop.trf.xlu0
    %v3392 = vpop.trf.xlu0
    %v3393 = vpop.trf.xlu0
    %v3394 = vpop.trf.xlu0
    %v3395 = vpop.trf.xlu0
    %v3396 = vpop.trf.xlu0
    %v3397 = vpop.trf.xlu0
    %v3398 = vpop.trf.xlu0
    %v3399 = vpop.trf.xlu0
    %v3400 = vpop.trf.xlu0
    %3401 = vst [vmem:[#allocation2 + $0x4] sm:$0xf] %v3385
    %v3402 = vadd.f32 %v2287, %v2288
    %v3403 = vadd.f32 %v3402, %v2289
    %v3404 = vadd.f32 %v3403, %v2290
    %v3405 = vadd.f32 %v3404, %v2291
    %v3406 = vadd.f32 %v3405, %v2292
    %v3407 = vadd.f32 %v3406, %v2293
    %v3408 = vadd.f32 %v3407, %v2294
    %v3409 = vadd.f32 %v3408, %v2295
    %v3410 = vadd.f32 %v3409, %v2296
    %v3411 = vadd.f32 %v3410, %v2297
    %v3412 = vadd.f32 %v3411, %v2298
    %v3413 = vadd.f32 %v3412, %v2299
    %v3414 = vadd.f32 %v3413, %v2300
    %v3415 = vadd.f32 %v3414, %v2301
    %v3416 = vadd.f32 %v3415, %v2302
    %v3417 = vrot.slane %v3416, 4
    %v3418 = vadd.f32 %v3416, %v3417
    %v3419 = vrot.slane %v3418, 2
    %v3420 = vadd.f32 %v3418, %v3419
    %v3421 = vrot.slane %v3420, 1
    %v3422 = vadd.f32 %v3420, %v3421
    %v3423 = vadd.f32 %v2303, %v2304
    %v3424 = vadd.f32 %v3423, %v2305
    %v3425 = vadd.f32 %v3424, %v2306
    %v3426 = vadd.f32 %v3425, %v2307
    %v3427 = vadd.f32 %v3426, %v2308
    %v3428 = vadd.f32 %v3427, %v2309
    %v3429 = vadd.f32 %v3428, %v2310
    %v3430 = vadd.f32 %v3429, %v2311
    %v3431 = vadd.f32 %v3430, %v2312
    %v3432 = vadd.f32 %v3431, %v2313
    %v3433 = vadd.f32 %v3432, %v2314
    %v3434 = vadd.f32 %v3433, %v2315
    %v3435 = vadd.f32 %v3434, %v2316
    %v3436 = vadd.f32 %v3435, %v2317
    %v3437 = vadd.f32 %v3436, %v2318
    %v3438 = vrot.slane %v3437, 4
    %v3439 = vadd.f32 %v3437, %v3438
    %v3440 = vrot.slane %v3439, 2
    %v3441 = vadd.f32 %v3439, %v3440
    %v3442 = vrot.slane %v3441, 1
    %v3443 = vadd.f32 %v3441, %v3442
    %v3444 = vadd.f32 %v1773, %v3422
    %v3445 = vadd.f32 %v1774, %v3443
    %v3446 = vld [vmem:[%s0 + $0x100] sm:$0xff]
    %v3447 = vld [vmem:[%s0 + $0x108] sm:$0xff]
    %v3448 = vld [vmem:[%s0 + $0x110] sm:$0xff]
    %v3449 = vld [vmem:[%s0 + $0x118] sm:$0xff]
    %v3450 = vld [vmem:[%s0 + $0x120] sm:$0xff]
    %v3451 = vld [vmem:[%s0 + $0x128] sm:$0xff]
    %v3452 = vld [vmem:[%s0 + $0x130] sm:$0xff]
    %v3453 = vld [vmem:[%s0 + $0x138] sm:$0xff]
    %v3454 = vld [vmem:[%s0 + $0x140] sm:$0xff]
    %v3455 = vld [vmem:[%s0 + $0x148] sm:$0xff]
    %v3456 = vld [vmem:[%s0 + $0x150] sm:$0xff]
    %v3457 = vld [vmem:[%s0 + $0x158] sm:$0xff]
    %v3458 = vld [vmem:[%s0 + $0x160] sm:$0xff]
    %v3459 = vld [vmem:[%s0 + $0x168] sm:$0xff]
    %v3460 = vld [vmem:[%s0 + $0x170] sm:$0xff]
    %v3461 = vld [vmem:[%s0 + $0x178] sm:$0xff]
    %v3462 = vld [vmem:[%s1 + $0x100] sm:$0xff]
    %v3463 = vld [vmem:[%s1 + $0x108] sm:$0xff]
    %v3464 = vld [vmem:[%s1 + $0x110] sm:$0xff]
    %v3465 = vld [vmem:[%s1 + $0x118] sm:$0xff]
    %v3466 = vld [vmem:[%s1 + $0x120] sm:$0xff]
    %v3467 = vld [vmem:[%s1 + $0x128] sm:$0xff]
    %v3468 = vld [vmem:[%s1 + $0x130] sm:$0xff]
    %v3469 = vld [vmem:[%s1 + $0x138] sm:$0xff]
    %v3470 = vld [vmem:[%s1 + $0x140] sm:$0xff]
    %v3471 = vld [vmem:[%s1 + $0x148] sm:$0xff]
    %v3472 = vld [vmem:[%s1 + $0x150] sm:$0xff]
    %v3473 = vld [vmem:[%s1 + $0x158] sm:$0xff]
    %v3474 = vld [vmem:[%s1 + $0x160] sm:$0xff]
    %v3475 = vld [vmem:[%s1 + $0x168] sm:$0xff]
    %v3476 = vld [vmem:[%s1 + $0x170] sm:$0xff]
    %v3477 = vld [vmem:[%s1 + $0x178] sm:$0xff]
    %v3478 = vld [vmem:[%s2 + $0x100] sm:$0xff]
    %v3479 = vld [vmem:[%s2 + $0x108] sm:$0xff]
    %v3480 = vld [vmem:[%s2 + $0x110] sm:$0xff]
    %v3481 = vld [vmem:[%s2 + $0x118] sm:$0xff]
    %v3482 = vld [vmem:[%s2 + $0x120] sm:$0xff]
    %v3483 = vld [vmem:[%s2 + $0x128] sm:$0xff]
    %v3484 = vld [vmem:[%s2 + $0x130] sm:$0xff]
    %v3485 = vld [vmem:[%s2 + $0x138] sm:$0xff]
    %v3486 = vld [vmem:[%s2 + $0x140] sm:$0xff]
    %v3487 = vld [vmem:[%s2 + $0x148] sm:$0xff]
    %v3488 = vld [vmem:[%s2 + $0x150] sm:$0xff]
    %v3489 = vld [vmem:[%s2 + $0x158] sm:$0xff]
    %v3490 = vld [vmem:[%s2 + $0x160] sm:$0xff]
    %v3491 = vld [vmem:[%s2 + $0x168] sm:$0xff]
    %v3492 = vld [vmem:[%s2 + $0x170] sm:$0xff]
    %v3493 = vld [vmem:[%s2 + $0x178] sm:$0xff]
    %3495 = vset.pattern.permute.xlu0 0
    %3496 = vperm.xlu0 %3495, %v3446
    %v3497 = vpop.permute.xlu0 %3496
    %3500 = vset.pattern.permute.xlu0 0
    %3501 = vperm.xlu0 %3500, %v3447
    %v3502 = vpop.permute.xlu0 %3501
    %3505 = vset.pattern.permute.xlu0 0
    %3506 = vperm.xlu0 %3505, %v3448
    %v3507 = vpop.permute.xlu0 %3506
    %3510 = vset.pattern.permute.xlu0 0
    %3511 = vperm.xlu0 %3510, %v3449
    %v3512 = vpop.permute.xlu0 %3511
    %3515 = vset.pattern.permute.xlu0 0
    %3516 = vperm.xlu0 %3515, %v3450
    %v3517 = vpop.permute.xlu0 %3516
    %3520 = vset.pattern.permute.xlu0 0
    %3521 = vperm.xlu0 %3520, %v3451
    %v3522 = vpop.permute.xlu0 %3521
    %3525 = vset.pattern.permute.xlu0 0
    %3526 = vperm.xlu0 %3525, %v3452
    %v3527 = vpop.permute.xlu0 %3526
    %3530 = vset.pattern.permute.xlu0 0
    %3531 = vperm.xlu0 %3530, %v3453
    %v3532 = vpop.permute.xlu0 %3531
    %3535 = vset.pattern.permute.xlu0 0
    %3536 = vperm.xlu0 %3535, %v3454
    %v3537 = vpop.permute.xlu0 %3536
    %3540 = vset.pattern.permute.xlu0 0
    %3541 = vperm.xlu0 %3540, %v3455
    %v3542 = vpop.permute.xlu0 %3541
    %3545 = vset.pattern.permute.xlu0 0
    %3546 = vperm.xlu0 %3545, %v3456
    %v3547 = vpop.permute.xlu0 %3546
    %3550 = vset.pattern.permute.xlu0 0
    %3551 = vperm.xlu0 %3550, %v3457
    %v3552 = vpop.permute.xlu0 %3551
    %3555 = vset.pattern.permute.xlu0 0
    %3556 = vperm.xlu0 %3555, %v3458
    %v3557 = vpop.permute.xlu0 %3556
    %3560 = vset.pattern.permute.xlu0 0
    %3561 = vperm.xlu0 %3560, %v3459
    %v3562 = vpop.permute.xlu0 %3561
    %3565 = vset.pattern.permute.xlu0 0
    %3566 = vperm.xlu0 %3565, %v3460
    %v3567 = vpop.permute.xlu0 %3566
    %3570 = vset.pattern.permute.xlu0 0
    %3571 = vperm.xlu0 %3570, %v3461
    %v3572 = vpop.permute.xlu0 %3571
    %v3574 = vmul.f32 %v3497, %v3462
    %v3575 = vmul.f32 %v3502, %v3463
    %v3576 = vmul.f32 %v3507, %v3464
    %v3577 = vmul.f32 %v3512, %v3465
    %v3578 = vmul.f32 %v3517, %v3466
    %v3579 = vmul.f32 %v3522, %v3467
    %v3580 = vmul.f32 %v3527, %v3468
    %v3581 = vmul.f32 %v3532, %v3469
    %v3582 = vmul.f32 %v3537, %v3470
    %v3583 = vmul.f32 %v3542, %v3471
    %v3584 = vmul.f32 %v3547, %v3472
    %v3585 = vmul.f32 %v3552, %v3473
    %v3586 = vmul.f32 %v3557, %v3474
    %v3587 = vmul.f32 %v3562, %v3475
    %v3588 = vmul.f32 %v3567, %v3476
    %v3589 = vmul.f32 %v3572, %v3477
    %3590 = vset.pattern.permute.xlu0 1
    %3591 = vperm.xlu0 %3590, %v3446
    %v3592 = vpop.permute.xlu0 %3591
    %3594 = vset.pattern.permute.xlu0 1
    %3595 = vperm.xlu0 %3594, %v3447
    %v3596 = vpop.permute.xlu0 %3595
    %3598 = vset.pattern.permute.xlu0 1
    %3599 = vperm.xlu0 %3598, %v3448
    %v3600 = vpop.permute.xlu0 %3599
    %3602 = vset.pattern.permute.xlu0 1
    %3603 = vperm.xlu0 %3602, %v3449
    %v3604 = vpop.permute.xlu0 %3603
    %3606 = vset.pattern.permute.xlu0 1
    %3607 = vperm.xlu0 %3606, %v3450
    %v3608 = vpop.permute.xlu0 %3607
    %3610 = vset.pattern.permute.xlu0 1
    %3611 = vperm.xlu0 %3610, %v3451
    %v3612 = vpop.permute.xlu0 %3611
    %3614 = vset.pattern.permute.xlu0 1
    %3615 = vperm.xlu0 %3614, %v3452
    %v3616 = vpop.permute.xlu0 %3615
    %3618 = vset.pattern.permute.xlu0 1
    %3619 = vperm.xlu0 %3618, %v3453
    %v3620 = vpop.permute.xlu0 %3619
    %3622 = vset.pattern.permute.xlu0 1
    %3623 = vperm.xlu0 %3622, %v3454
    %v3624 = vpop.permute.xlu0 %3623
    %3626 = vset.pattern.permute.xlu0 1
    %3627 = vperm.xlu0 %3626, %v3455
    %v3628 = vpop.permute.xlu0 %3627
    %3630 = vset.pattern.permute.xlu0 1
    %3631 = vperm.xlu0 %3630, %v3456
    %v3632 = vpop.permute.xlu0 %3631
    %3634 = vset.pattern.permute.xlu0 1
    %3635 = vperm.xlu0 %3634, %v3457
    %v3636 = vpop.permute.xlu0 %3635
    %3638 = vset.pattern.permute.xlu0 1
    %3639 = vperm.xlu0 %3638, %v3458
    %v3640 = vpop.permute.xlu0 %3639
    %3642 = vset.pattern.permute.xlu0 1
    %3643 = vperm.xlu0 %3642, %v3459
    %v3644 = vpop.permute.xlu0 %3643
    %3646 = vset.pattern.permute.xlu0 1
    %3647 = vperm.xlu0 %3646, %v3460
    %v3648 = vpop.permute.xlu0 %3647
    %3650 = vset.pattern.permute.xlu0 1
    %3651 = vperm.xlu0 %3650, %v3461
    %v3652 = vpop.permute.xlu0 %3651
    %v3654 = vmul.f32 %v3592, %v3462
    %v3655 = vmul.f32 %v3596, %v3463
    %v3656 = vmul.f32 %v3600, %v3464
    %v3657 = vmul.f32 %v3604, %v3465
    %v3658 = vmul.f32 %v3608, %v3466
    %v3659 = vmul.f32 %v3612, %v3467
    %v3660 = vmul.f32 %v3616, %v3468
    %v3661 = vmul.f32 %v3620, %v3469
    %v3662 = vmul.f32 %v3624, %v3470
    %v3663 = vmul.f32 %v3628, %v3471
    %v3664 = vmul.f32 %v3632, %v3472
    %v3665 = vmul.f32 %v3636, %v3473
    %v3666 = vmul.f32 %v3640, %v3474
    %v3667 = vmul.f32 %v3644, %v3475
    %v3668 = vmul.f32 %v3648, %v3476
    %v3669 = vmul.f32 %v3652, %v3477
    %3670 = vset.pattern.permute.xlu0 2
    %3671 = vperm.xlu0 %3670, %v3446
    %v3672 = vpop.permute.xlu0 %3671
    %3674 = vset.pattern.permute.xlu0 2
    %3675 = vperm.xlu0 %3674, %v3447
    %v3676 = vpop.permute.xlu0 %3675
    %3678 = vset.pattern.permute.xlu0 2
    %3679 = vperm.xlu0 %3678, %v3448
    %v3680 = vpop.permute.xlu0 %3679
    %3682 = vset.pattern.permute.xlu0 2
    %3683 = vperm.xlu0 %3682, %v3449
    %v3684 = vpop.permute.xlu0 %3683
    %3686 = vset.pattern.permute.xlu0 2
    %3687 = vperm.xlu0 %3686, %v3450
    %v3688 = vpop.permute.xlu0 %3687
    %3690 = vset.pattern.permute.xlu0 2
    %3691 = vperm.xlu0 %3690, %v3451
    %v3692 = vpop.permute.xlu0 %3691
    %3694 = vset.pattern.permute.xlu0 2
    %3695 = vperm.xlu0 %3694, %v3452
    %v3696 = vpop.permute.xlu0 %3695
    %3698 = vset.pattern.permute.xlu0 2
    %3699 = vperm.xlu0 %3698, %v3453
    %v3700 = vpop.permute.xlu0 %3699
    %3702 = vset.pattern.permute.xlu0 2
    %3703 = vperm.xlu0 %3702, %v3454
    %v3704 = vpop.permute.xlu0 %3703
    %3706 = vset.pattern.permute.xlu0 2
    %3707 = vperm.xlu0 %3706, %v3455
    %v3708 = vpop.permute.xlu0 %3707
    %3710 = vset.pattern.permute.xlu0 2
    %3711 = vperm.xlu0 %3710, %v3456
    %v3712 = vpop.permute.xlu0 %3711
    %3714 = vset.pattern.permute.xlu0 2
    %3715 = vperm.xlu0 %3714, %v3457
    %v3716 = vpop.permute.xlu0 %3715
    %3718 = vset.pattern.permute.xlu0 2
    %3719 = vperm.xlu0 %3718, %v3458
    %v3720 = vpop.permute.xlu0 %3719
    %3722 = vset.pattern.permute.xlu0 2
    %3723 = vperm.xlu0 %3722, %v3459
    %v3724 = vpop.permute.xlu0 %3723
    %3726 = vset.pattern.permute.xlu0 2
    %3727 = vperm.xlu0 %3726, %v3460
    %v3728 = vpop.permute.xlu0 %3727
    %3730 = vset.pattern.permute.xlu0 2
    %3731 = vperm.xlu0 %3730, %v3461
    %v3732 = vpop.permute.xlu0 %3731
    %v3734 = vmul.f32 %v3672, %v3462
    %v3735 = vmul.f32 %v3676, %v3463
    %v3736 = vmul.f32 %v3680, %v3464
    %v3737 = vmul.f32 %v3684, %v3465
    %v3738 = vmul.f32 %v3688, %v3466
    %v3739 = vmul.f32 %v3692, %v3467
    %v3740 = vmul.f32 %v3696, %v3468
    %v3741 = vmul.f32 %v3700, %v3469
    %v3742 = vmul.f32 %v3704, %v3470
    %v3743 = vmul.f32 %v3708, %v3471
    %v3744 = vmul.f32 %v3712, %v3472
    %v3745 = vmul.f32 %v3716, %v3473
    %v3746 = vmul.f32 %v3720, %v3474
    %v3747 = vmul.f32 %v3724, %v3475
    %v3748 = vmul.f32 %v3728, %v3476
    %v3749 = vmul.f32 %v3732, %v3477
    %3750 = vset.pattern.permute.xlu0 3
    %3751 = vperm.xlu0 %3750, %v3446
    %v3752 = vpop.permute.xlu0 %3751
    %3754 = vset.pattern.permute.xlu0 3
    %3755 = vperm.xlu0 %3754, %v3447
    %v3756 = vpop.permute.xlu0 %3755
    %3758 = vset.pattern.permute.xlu0 3
    %3759 = vperm.xlu0 %3758, %v3448
    %v3760 = vpop.permute.xlu0 %3759
    %3762 = vset.pattern.permute.xlu0 3
    %3763 = vperm.xlu0 %3762, %v3449
    %v3764 = vpop.permute.xlu0 %3763
    %3766 = vset.pattern.permute.xlu0 3
    %3767 = vperm.xlu0 %3766, %v3450
    %v3768 = vpop.permute.xlu0 %3767
    %3770 = vset.pattern.permute.xlu0 3
    %3771 = vperm.xlu0 %3770, %v3451
    %v3772 = vpop.permute.xlu0 %3771
    %3774 = vset.pattern.permute.xlu0 3
    %3775 = vperm.xlu0 %3774, %v3452
    %v3776 = vpop.permute.xlu0 %3775
    %3778 = vset.pattern.permute.xlu0 3
    %3779 = vperm.xlu0 %3778, %v3453
    %v3780 = vpop.permute.xlu0 %3779
    %3782 = vset.pattern.permute.xlu0 3
    %3783 = vperm.xlu0 %3782, %v3454
    %v3784 = vpop.permute.xlu0 %3783
    %3786 = vset.pattern.permute.xlu0 3
    %3787 = vperm.xlu0 %3786, %v3455
    %v3788 = vpop.permute.xlu0 %3787
    %3790 = vset.pattern.permute.xlu0 3
    %3791 = vperm.xlu0 %3790, %v3456
    %v3792 = vpop.permute.xlu0 %3791
    %3794 = vset.pattern.permute.xlu0 3
    %3795 = vperm.xlu0 %3794, %v3457
    %v3796 = vpop.permute.xlu0 %3795
    %3798 = vset.pattern.permute.xlu0 3
    %3799 = vperm.xlu0 %3798, %v3458
    %v3800 = vpop.permute.xlu0 %3799
    %3802 = vset.pattern.permute.xlu0 3
    %3803 = vperm.xlu0 %3802, %v3459
    %v3804 = vpop.permute.xlu0 %3803
    %3806 = vset.pattern.permute.xlu0 3
    %3807 = vperm.xlu0 %3806, %v3460
    %v3808 = vpop.permute.xlu0 %3807
    %3810 = vset.pattern.permute.xlu0 3
    %3811 = vperm.xlu0 %3810, %v3461
    %v3812 = vpop.permute.xlu0 %3811
    %v3814 = vmul.f32 %v3752, %v3462
    %v3815 = vmul.f32 %v3756, %v3463
    %v3816 = vmul.f32 %v3760, %v3464
    %v3817 = vmul.f32 %v3764, %v3465
    %v3818 = vmul.f32 %v3768, %v3466
    %v3819 = vmul.f32 %v3772, %v3467
    %v3820 = vmul.f32 %v3776, %v3468
    %v3821 = vmul.f32 %v3780, %v3469
    %v3822 = vmul.f32 %v3784, %v3470
    %v3823 = vmul.f32 %v3788, %v3471
    %v3824 = vmul.f32 %v3792, %v3472
    %v3825 = vmul.f32 %v3796, %v3473
    %v3826 = vmul.f32 %v3800, %v3474
    %v3827 = vmul.f32 %v3804, %v3475
    %v3828 = vmul.f32 %v3808, %v3476
    %v3829 = vmul.f32 %v3812, %v3477
    %3846 = vrot.lane.b32.xlu0 %v3654, 64
    %v3847 = vpop.permute.xlu0 %3846
    %3848 = vrot.lane.b32.xlu0 %v3655, 64
    %v3849 = vpop.permute.xlu0 %3848
    %3850 = vrot.lane.b32.xlu0 %v3656, 64
    %v3851 = vpop.permute.xlu0 %3850
    %3852 = vrot.lane.b32.xlu0 %v3657, 64
    %v3853 = vpop.permute.xlu0 %3852
    %3854 = vrot.lane.b32.xlu0 %v3658, 64
    %v3855 = vpop.permute.xlu0 %3854
    %3856 = vrot.lane.b32.xlu0 %v3659, 64
    %v3857 = vpop.permute.xlu0 %3856
    %3858 = vrot.lane.b32.xlu0 %v3660, 64
    %v3859 = vpop.permute.xlu0 %3858
    %3860 = vrot.lane.b32.xlu0 %v3661, 64
    %v3861 = vpop.permute.xlu0 %3860
    %3862 = vrot.lane.b32.xlu0 %v3662, 64
    %v3863 = vpop.permute.xlu0 %3862
    %3864 = vrot.lane.b32.xlu0 %v3663, 64
    %v3865 = vpop.permute.xlu0 %3864
    %3866 = vrot.lane.b32.xlu0 %v3664, 64
    %v3867 = vpop.permute.xlu0 %3866
    %3868 = vrot.lane.b32.xlu0 %v3665, 64
    %v3869 = vpop.permute.xlu0 %3868
    %3870 = vrot.lane.b32.xlu0 %v3666, 64
    %v3871 = vpop.permute.xlu0 %3870
    %3872 = vrot.lane.b32.xlu0 %v3667, 64
    %v3873 = vpop.permute.xlu0 %3872
    %3874 = vrot.lane.b32.xlu0 %v3668, 64
    %v3875 = vpop.permute.xlu0 %3874
    %3876 = vrot.lane.b32.xlu0 %v3669, 64
    %v3877 = vpop.permute.xlu0 %3876
    %3910 = vrot.lane.b32.xlu0 %v3814, 64
    %v3911 = vpop.permute.xlu0 %3910
    %3912 = vrot.lane.b32.xlu0 %v3815, 64
    %v3913 = vpop.permute.xlu0 %3912
    %3914 = vrot.lane.b32.xlu0 %v3816, 64
    %v3915 = vpop.permute.xlu0 %3914
    %3916 = vrot.lane.b32.xlu0 %v3817, 64
    %v3917 = vpop.permute.xlu0 %3916
    %3918 = vrot.lane.b32.xlu0 %v3818, 64
    %v3919 = vpop.permute.xlu0 %3918
    %3920 = vrot.lane.b32.xlu0 %v3819, 64
    %v3921 = vpop.permute.xlu0 %3920
    %3922 = vrot.lane.b32.xlu0 %v3820, 64
    %v3923 = vpop.permute.xlu0 %3922
    %3924 = vrot.lane.b32.xlu0 %v3821, 64
    %v3925 = vpop.permute.xlu0 %3924
    %3926 = vrot.lane.b32.xlu0 %v3822, 64
    %v3927 = vpop.permute.xlu0 %3926
    %3928 = vrot.lane.b32.xlu0 %v3823, 64
    %v3929 = vpop.permute.xlu0 %3928
    %3930 = vrot.lane.b32.xlu0 %v3824, 64
    %v3931 = vpop.permute.xlu0 %3930
    %3932 = vrot.lane.b32.xlu0 %v3825, 64
    %v3933 = vpop.permute.xlu0 %3932
    %3934 = vrot.lane.b32.xlu0 %v3826, 64
    %v3935 = vpop.permute.xlu0 %3934
    %3936 = vrot.lane.b32.xlu0 %v3827, 64
    %v3937 = vpop.permute.xlu0 %3936
    %3938 = vrot.lane.b32.xlu0 %v3828, 64
    %v3939 = vpop.permute.xlu0 %3938
    %3940 = vrot.lane.b32.xlu0 %v3829, 64
    %v3941 = vpop.permute.xlu0 %3940
    %v3958 = vsel %vm103, %v3574, %v3847
    %v3959 = vsel %vm103, %v3575, %v3849
    %v3960 = vsel %vm103, %v3576, %v3851
    %v3961 = vsel %vm103, %v3577, %v3853
    %v3962 = vsel %vm103, %v3578, %v3855
    %v3963 = vsel %vm103, %v3579, %v3857
    %v3964 = vsel %vm103, %v3580, %v3859
    %v3965 = vsel %vm103, %v3581, %v3861
    %v3966 = vsel %vm103, %v3582, %v3863
    %v3967 = vsel %vm103, %v3583, %v3865
    %v3968 = vsel %vm103, %v3584, %v3867
    %v3969 = vsel %vm103, %v3585, %v3869
    %v3970 = vsel %vm103, %v3586, %v3871
    %v3971 = vsel %vm103, %v3587, %v3873
    %v3972 = vsel %vm103, %v3588, %v3875
    %v3973 = vsel %vm103, %v3589, %v3877
    %v3974 = vsel %vm103, %v3734, %v3911
    %v3975 = vsel %vm103, %v3735, %v3913
    %v3976 = vsel %vm103, %v3736, %v3915
    %v3977 = vsel %vm103, %v3737, %v3917
    %v3978 = vsel %vm103, %v3738, %v3919
    %v3979 = vsel %vm103, %v3739, %v3921
    %v3980 = vsel %vm103, %v3740, %v3923
    %v3981 = vsel %vm103, %v3741, %v3925
    %v3982 = vsel %vm103, %v3742, %v3927
    %v3983 = vsel %vm103, %v3743, %v3929
    %v3984 = vsel %vm103, %v3744, %v3931
    %v3985 = vsel %vm103, %v3745, %v3933
    %v3986 = vsel %vm103, %v3746, %v3935
    %v3987 = vsel %vm103, %v3747, %v3937
    %v3988 = vsel %vm103, %v3748, %v3939
    %v3989 = vsel %vm103, %v3749, %v3941
    %v3990 = vpack.c.bf16 %v3959, %v3958
    %v3991 = vpack.c.bf16 %v3975, %v3974
    %v3992 = vpack.c.bf16 %v3961, %v3960
    %v3993 = vpack.c.bf16 %v3977, %v3976
    %v3994 = vpack.c.bf16 %v3963, %v3962
    %v3995 = vpack.c.bf16 %v3979, %v3978
    %v3996 = vpack.c.bf16 %v3965, %v3964
    %v3997 = vpack.c.bf16 %v3981, %v3980
    %v3998 = vpack.c.bf16 %v3967, %v3966
    %v3999 = vpack.c.bf16 %v3983, %v3982
    %v4000 = vpack.c.bf16 %v3969, %v3968
    %v4001 = vpack.c.bf16 %v3985, %v3984
    %v4002 = vpack.c.bf16 %v3971, %v3970
    %v4003 = vpack.c.bf16 %v3987, %v3986
    %v4004 = vpack.c.bf16 %v3973, %v3972
    %v4005 = vpack.c.bf16 %v3989, %v3988
    %v4006 = vunpack.c.l.bf16 %v3990
    %v4007 = vunpack.c.l.bf16 %v3991
    %v4008 = vunpack.c.h.bf16 %v3990
    %v4009 = vunpack.c.h.bf16 %v3991
    %v4010 = vunpack.c.l.bf16 %v3992
    %v4011 = vunpack.c.l.bf16 %v3993
    %v4012 = vunpack.c.h.bf16 %v3992
    %v4013 = vunpack.c.h.bf16 %v3993
    %v4014 = vunpack.c.l.bf16 %v3994
    %v4015 = vunpack.c.l.bf16 %v3995
    %v4016 = vunpack.c.h.bf16 %v3994
    %v4017 = vunpack.c.h.bf16 %v3995
    %v4018 = vunpack.c.l.bf16 %v3996
    %v4019 = vunpack.c.l.bf16 %v3997
    %v4020 = vunpack.c.h.bf16 %v3996
    %v4021 = vunpack.c.h.bf16 %v3997
    %v4022 = vunpack.c.l.bf16 %v3998
    %v4023 = vunpack.c.l.bf16 %v3999
    %v4024 = vunpack.c.h.bf16 %v3998
    %v4025 = vunpack.c.h.bf16 %v3999
    %v4026 = vunpack.c.l.bf16 %v4000
    %v4027 = vunpack.c.l.bf16 %v4001
    %v4028 = vunpack.c.h.bf16 %v4000
    %v4029 = vunpack.c.h.bf16 %v4001
    %v4030 = vunpack.c.l.bf16 %v4002
    %v4031 = vunpack.c.l.bf16 %v4003
    %v4032 = vunpack.c.h.bf16 %v4002
    %v4033 = vunpack.c.h.bf16 %v4003
    %v4034 = vunpack.c.l.bf16 %v4004
    %v4035 = vunpack.c.l.bf16 %v4005
    %v4036 = vunpack.c.h.bf16 %v4004
    %v4037 = vunpack.c.h.bf16 %v4005
    %v4038 = vsub.f32 %v3958, %v4006
    %v4039 = vsub.f32 %v3974, %v4007
    %v4040 = vsub.f32 %v3959, %v4008
    %v4041 = vsub.f32 %v3975, %v4009
    %v4042 = vsub.f32 %v3960, %v4010
    %v4043 = vsub.f32 %v3976, %v4011
    %v4044 = vsub.f32 %v3961, %v4012
    %v4045 = vsub.f32 %v3977, %v4013
    %v4046 = vsub.f32 %v3962, %v4014
    %v4047 = vsub.f32 %v3978, %v4015
    %v4048 = vsub.f32 %v3963, %v4016
    %v4049 = vsub.f32 %v3979, %v4017
    %v4050 = vsub.f32 %v3964, %v4018
    %v4051 = vsub.f32 %v3980, %v4019
    %v4052 = vsub.f32 %v3965, %v4020
    %v4053 = vsub.f32 %v3981, %v4021
    %v4054 = vsub.f32 %v3966, %v4022
    %v4055 = vsub.f32 %v3982, %v4023
    %v4056 = vsub.f32 %v3967, %v4024
    %v4057 = vsub.f32 %v3983, %v4025
    %v4058 = vsub.f32 %v3968, %v4026
    %v4059 = vsub.f32 %v3984, %v4027
    %v4060 = vsub.f32 %v3969, %v4028
    %v4061 = vsub.f32 %v3985, %v4029
    %v4062 = vsub.f32 %v3970, %v4030
    %v4063 = vsub.f32 %v3986, %v4031
    %v4064 = vsub.f32 %v3971, %v4032
    %v4065 = vsub.f32 %v3987, %v4033
    %v4066 = vsub.f32 %v3972, %v4034
    %v4067 = vsub.f32 %v3988, %v4035
    %v4068 = vsub.f32 %v3973, %v4036
    %v4069 = vsub.f32 %v3989, %v4037
    %v4070 = vpack.c.bf16 %v4040, %v4038
    %v4071 = vpack.c.bf16 %v4041, %v4039
    %v4072 = vpack.c.bf16 %v4044, %v4042
    %v4073 = vpack.c.bf16 %v4045, %v4043
    %v4074 = vpack.c.bf16 %v4048, %v4046
    %v4075 = vpack.c.bf16 %v4049, %v4047
    %v4076 = vpack.c.bf16 %v4052, %v4050
    %v4077 = vpack.c.bf16 %v4053, %v4051
    %v4078 = vpack.c.bf16 %v4056, %v4054
    %v4079 = vpack.c.bf16 %v4057, %v4055
    %v4080 = vpack.c.bf16 %v4060, %v4058
    %v4081 = vpack.c.bf16 %v4061, %v4059
    %v4082 = vpack.c.bf16 %v4064, %v4062
    %v4083 = vpack.c.bf16 %v4065, %v4063
    %v4084 = vpack.c.bf16 %v4068, %v4066
    %v4085 = vpack.c.bf16 %v4069, %v4067
    %4086 = vmatprep.subr.bf16.mxu0 %v4085
    %4087 = vmatpush1.bf16.msra.mxu0 %v4084
    %4088 = vmatprep.subr.bf16.mxu0 %v4083
    %4089 = vmatpush1.bf16.msra.mxu0 %v4082
    %4090 = vmatprep.subr.bf16.mxu0 %v4081
    %4091 = vmatpush1.bf16.msra.mxu0 %v4080
    %4092 = vmatprep.subr.bf16.mxu0 %v4079
    %4093 = vmatpush1.bf16.msra.mxu0 %v4078
    %4094 = vmatprep.subr.bf16.mxu0 %v4077
    %4095 = vmatpush1.bf16.msra.mxu0 %v4076
    %4096 = vmatprep.subr.bf16.mxu0 %v4075
    %4097 = vmatpush1.bf16.msra.mxu0 %v4074
    %4098 = vmatprep.subr.bf16.mxu0 %v4073
    %4099 = vmatpush1.bf16.msra.mxu0 %v4072
    %4100 = vmatprep.subr.bf16.mxu0 %v4071
    %4101 = vmatpush1.bf16.msra.mxu0 %v4070
    %4102 = vmatprep.subr.bf16.mxu0 0
    %4103 = vmatpush2.bf16.msra.mxu0 0
    %4104 = vmatprep.subr.bf16.mxu0 0
    %4105 = vmatpush2.bf16.msra.mxu0 0
    %4106 = vmatprep.subr.bf16.mxu0 0
    %4107 = vmatpush2.bf16.msra.mxu0 0
    %4108 = vmatprep.subr.bf16.mxu0 0
    %4109 = vmatpush2.bf16.msra.mxu0 0
    %4110 = vmatprep.subr.bf16.mxu0 0
    %4111 = vmatpush2.bf16.msra.mxu0 0
    %4112 = vmatprep.subr.bf16.mxu0 0
    %4113 = vmatpush2.bf16.msra.mxu0 0
    %4114 = vmatprep.subr.bf16.mxu0 0
    %4115 = vmatpush2.bf16.msra.mxu0 0
    %4116 = vmatprep.subr.bf16.mxu0 0
    %4117 = vmatpush2.bf16.msra.mxu0 0
    %4118 = vmatprep.mubr.bf16.mxu0 0
    %4119 = vmatmul.mubr.bf16.gmra.mxu0 %v86
    %v4120 = vpop.f32.mrf.mxu0
    %v4121 = vadd.f32 0.0, %v4120
    %v4122 = vpop.f32.mrf.mxu0
    %v4123 = vadd.f32 0.0, %v4122
    %v4124 = vpop.f32.mrf.mxu0
    %v4125 = vadd.f32 0.0, %v4124
    %v4126 = vpop.f32.mrf.mxu0
    %v4127 = vadd.f32 0.0, %v4126
    %4128 = vmatprep.mubr.bf16.mxu0 0
    %4129 = vmatmul.mubr.bf16.gmra.mxu0 %v87
    %v4130 = vpop.f32.mrf.mxu0
    %v4131 = vadd.f32 0.0, %v4130
    %v4132 = vpop.f32.mrf.mxu0
    %v4133 = vadd.f32 0.0, %v4132
    %v4134 = vpop.f32.mrf.mxu0
    %v4135 = vadd.f32 0.0, %v4134
    %v4136 = vpop.f32.mrf.mxu0
    %v4137 = vadd.f32 0.0, %v4136
    %4138 = vmatprep.mubr.bf16.mxu0 0
    %4139 = vmatmul.mubr.bf16.gmra.mxu0 %v88
    %v4140 = vpop.f32.mrf.mxu0
    %v4141 = vadd.f32 0.0, %v4140
    %v4142 = vpop.f32.mrf.mxu0
    %v4143 = vadd.f32 0.0, %v4142
    %v4144 = vpop.f32.mrf.mxu0
    %v4145 = vadd.f32 0.0, %v4144
    %v4146 = vpop.f32.mrf.mxu0
    %v4147 = vadd.f32 0.0, %v4146
    %4148 = vmatprep.mubr.bf16.mxu0 0
    %4149 = vmatmul.mubr.bf16.gmra.mxu0 %v89
    %v4150 = vpop.f32.mrf.mxu0
    %v4151 = vadd.f32 0.0, %v4150
    %v4152 = vpop.f32.mrf.mxu0
    %v4153 = vadd.f32 0.0, %v4152
    %v4154 = vpop.f32.mrf.mxu0
    %v4155 = vadd.f32 0.0, %v4154
    %v4156 = vpop.f32.mrf.mxu0
    %v4157 = vadd.f32 0.0, %v4156
    %4158 = vmatprep.mubr.bf16.mxu0 0
    %4159 = vmatmul.mubr.bf16.gmra.mxu0 %v90
    %v4160 = vpop.f32.mrf.mxu0
    %v4161 = vadd.f32 0.0, %v4160
    %v4162 = vpop.f32.mrf.mxu0
    %v4163 = vadd.f32 0.0, %v4162
    %v4164 = vpop.f32.mrf.mxu0
    %v4165 = vadd.f32 0.0, %v4164
    %v4166 = vpop.f32.mrf.mxu0
    %v4167 = vadd.f32 0.0, %v4166
    %4168 = vmatprep.mubr.bf16.mxu0 0
    %4169 = vmatmul.mubr.bf16.gmra.mxu0 %v91
    %v4170 = vpop.f32.mrf.mxu0
    %v4171 = vadd.f32 0.0, %v4170
    %v4172 = vpop.f32.mrf.mxu0
    %v4173 = vadd.f32 0.0, %v4172
    %v4174 = vpop.f32.mrf.mxu0
    %v4175 = vadd.f32 0.0, %v4174
    %v4176 = vpop.f32.mrf.mxu0
    %v4177 = vadd.f32 0.0, %v4176
    %4178 = vmatprep.mubr.bf16.mxu0 0
    %4179 = vmatmul.mubr.bf16.gmra.mxu0 %v92
    %v4180 = vpop.f32.mrf.mxu0
    %v4181 = vadd.f32 0.0, %v4180
    %v4182 = vpop.f32.mrf.mxu0
    %v4183 = vadd.f32 0.0, %v4182
    %v4184 = vpop.f32.mrf.mxu0
    %v4185 = vadd.f32 0.0, %v4184
    %v4186 = vpop.f32.mrf.mxu0
    %v4187 = vadd.f32 0.0, %v4186
    %4188 = vmatprep.mubr.bf16.mxu0 0
    %4189 = vmatmul.mubr.bf16.gmra.mxu0 %v93
    %v4190 = vpop.f32.mrf.mxu0
    %v4191 = vadd.f32 0.0, %v4190
    %v4192 = vpop.f32.mrf.mxu0
    %v4193 = vadd.f32 0.0, %v4192
    %v4194 = vpop.f32.mrf.mxu0
    %v4195 = vadd.f32 0.0, %v4194
    %v4196 = vpop.f32.mrf.mxu0
    %v4197 = vadd.f32 0.0, %v4196
    %4198 = vdwg.mxu0
    %4199 = vmatprep.subr.bf16.mxu0 %v4005
    %4200 = vmatpush1.bf16.msra.mxu0 %v4004
    %4201 = vmatprep.subr.bf16.mxu0 %v4003
    %4202 = vmatpush1.bf16.msra.mxu0 %v4002
    %4203 = vmatprep.subr.bf16.mxu0 %v4001
    %4204 = vmatpush1.bf16.msra.mxu0 %v4000
    %4205 = vmatprep.subr.bf16.mxu0 %v3999
    %4206 = vmatpush1.bf16.msra.mxu0 %v3998
    %4207 = vmatprep.subr.bf16.mxu0 %v3997
    %4208 = vmatpush1.bf16.msra.mxu0 %v3996
    %4209 = vmatprep.subr.bf16.mxu0 %v3995
    %4210 = vmatpush1.bf16.msra.mxu0 %v3994
    %4211 = vmatprep.subr.bf16.mxu0 %v3993
    %4212 = vmatpush1.bf16.msra.mxu0 %v3992
    %4213 = vmatprep.subr.bf16.mxu0 %v3991
    %4214 = vmatpush1.bf16.msra.mxu0 %v3990
    %4215 = vmatprep.subr.bf16.mxu0 0
    %4216 = vmatpush2.bf16.msra.mxu0 0
    %4217 = vmatprep.subr.bf16.mxu0 0
    %4218 = vmatpush2.bf16.msra.mxu0 0
    %4219 = vmatprep.subr.bf16.mxu0 0
    %4220 = vmatpush2.bf16.msra.mxu0 0
    %4221 = vmatprep.subr.bf16.mxu0 0
    %4222 = vmatpush2.bf16.msra.mxu0 0
    %4223 = vmatprep.subr.bf16.mxu0 0
    %4224 = vmatpush2.bf16.msra.mxu0 0
    %4225 = vmatprep.subr.bf16.mxu0 0
    %4226 = vmatpush2.bf16.msra.mxu0 0
    %4227 = vmatprep.subr.bf16.mxu0 0
    %4228 = vmatpush2.bf16.msra.mxu0 0
    %4229 = vmatprep.subr.bf16.mxu0 0
    %4230 = vmatpush2.bf16.msra.mxu0 0
    %4231 = vmatprep.mubr.bf16.mxu0 0
    %4232 = vmatmul.mubr.bf16.gmra.mxu0 %v86
    %v4233 = vpop.f32.mrf.mxu0
    %v4234 = vadd.f32 %v4121, %v4233
    %v4235 = vpop.f32.mrf.mxu0
    %v4236 = vadd.f32 %v4123, %v4235
    %v4237 = vpop.f32.mrf.mxu0
    %v4238 = vadd.f32 %v4125, %v4237
    %v4239 = vpop.f32.mrf.mxu0
    %v4240 = vadd.f32 %v4127, %v4239
    %4241 = vmatprep.mubr.bf16.mxu0 0
    %4242 = vmatmul.mubr.bf16.gmra.mxu0 %v87
    %v4243 = vpop.f32.mrf.mxu0
    %v4244 = vadd.f32 %v4131, %v4243
    %v4245 = vpop.f32.mrf.mxu0
    %v4246 = vadd.f32 %v4133, %v4245
    %v4247 = vpop.f32.mrf.mxu0
    %v4248 = vadd.f32 %v4135, %v4247
    %v4249 = vpop.f32.mrf.mxu0
    %v4250 = vadd.f32 %v4137, %v4249
    %4251 = vmatprep.mubr.bf16.mxu0 0
    %4252 = vmatmul.mubr.bf16.gmra.mxu0 %v88
    %v4253 = vpop.f32.mrf.mxu0
    %v4254 = vadd.f32 %v4141, %v4253
    %v4255 = vpop.f32.mrf.mxu0
    %v4256 = vadd.f32 %v4143, %v4255
    %v4257 = vpop.f32.mrf.mxu0
    %v4258 = vadd.f32 %v4145, %v4257
    %v4259 = vpop.f32.mrf.mxu0
    %v4260 = vadd.f32 %v4147, %v4259
    %4261 = vmatprep.mubr.bf16.mxu0 0
    %4262 = vmatmul.mubr.bf16.gmra.mxu0 %v89
    %v4263 = vpop.f32.mrf.mxu0
    %v4264 = vadd.f32 %v4151, %v4263
    %v4265 = vpop.f32.mrf.mxu0
    %v4266 = vadd.f32 %v4153, %v4265
    %v4267 = vpop.f32.mrf.mxu0
    %v4268 = vadd.f32 %v4155, %v4267
    %v4269 = vpop.f32.mrf.mxu0
    %v4270 = vadd.f32 %v4157, %v4269
    %4271 = vmatprep.mubr.bf16.mxu0 0
    %4272 = vmatmul.mubr.bf16.gmra.mxu0 %v90
    %v4273 = vpop.f32.mrf.mxu0
    %v4274 = vadd.f32 %v4161, %v4273
    %v4275 = vpop.f32.mrf.mxu0
    %v4276 = vadd.f32 %v4163, %v4275
    %v4277 = vpop.f32.mrf.mxu0
    %v4278 = vadd.f32 %v4165, %v4277
    %v4279 = vpop.f32.mrf.mxu0
    %v4280 = vadd.f32 %v4167, %v4279
    %4281 = vmatprep.mubr.bf16.mxu0 0
    %4282 = vmatmul.mubr.bf16.gmra.mxu0 %v91
    %v4283 = vpop.f32.mrf.mxu0
    %v4284 = vadd.f32 %v4171, %v4283
    %v4285 = vpop.f32.mrf.mxu0
    %v4286 = vadd.f32 %v4173, %v4285
    %v4287 = vpop.f32.mrf.mxu0
    %v4288 = vadd.f32 %v4175, %v4287
    %v4289 = vpop.f32.mrf.mxu0
    %v4290 = vadd.f32 %v4177, %v4289
    %4291 = vmatprep.mubr.bf16.mxu0 0
    %4292 = vmatmul.mubr.bf16.gmra.mxu0 %v92
    %v4293 = vpop.f32.mrf.mxu0
    %v4294 = vadd.f32 %v4181, %v4293
    %v4295 = vpop.f32.mrf.mxu0
    %v4296 = vadd.f32 %v4183, %v4295
    %v4297 = vpop.f32.mrf.mxu0
    %v4298 = vadd.f32 %v4185, %v4297
    %v4299 = vpop.f32.mrf.mxu0
    %v4300 = vadd.f32 %v4187, %v4299
    %4301 = vmatprep.mubr.bf16.mxu0 0
    %4302 = vmatmul.mubr.bf16.gmra.mxu0 %v93
    %v4303 = vpop.f32.mrf.mxu0
    %v4304 = vadd.f32 %v4191, %v4303
    %v4305 = vpop.f32.mrf.mxu0
    %v4306 = vadd.f32 %v4193, %v4305
    %v4307 = vpop.f32.mrf.mxu0
    %v4308 = vadd.f32 %v4195, %v4307
    %v4309 = vpop.f32.mrf.mxu0
    %v4310 = vadd.f32 %v4197, %v4309
    %4311 = vdwg.mxu0
    %v4312 = vlaneseq
    %v4313 = vshrl.u32 %v4312, 7
    %v4314 = vsub.s32 0, %v4313
    %v4315 = vrot.slane %v3444, %v4314
    %v4316 = vlaneseq
    %v4317 = vshrl.u32 %v4316, 7
    %v4318 = vsub.s32 0, %v4317
    %v4319 = vrot.slane %v3445, %v4318
    %v4320 = vadd.f32 %v4234, %v4315
    %v4321 = vadd.f32 %v4236, %v4319
    %v4322 = vadd.f32 %v4238, %v4315
    %v4323 = vadd.f32 %v4240, %v4319
    %v4324 = vadd.f32 %v4244, %v4315
    %v4325 = vadd.f32 %v4246, %v4319
    %v4326 = vadd.f32 %v4248, %v4315
    %v4327 = vadd.f32 %v4250, %v4319
    %v4328 = vadd.f32 %v4254, %v4315
    %v4329 = vadd.f32 %v4256, %v4319
    %v4330 = vadd.f32 %v4258, %v4315
    %v4331 = vadd.f32 %v4260, %v4319
    %v4332 = vadd.f32 %v4264, %v4315
    %v4333 = vadd.f32 %v4266, %v4319
    %v4334 = vadd.f32 %v4268, %v4315
    %v4335 = vadd.f32 %v4270, %v4319
    %v4336 = vadd.f32 %v4274, %v4315
    %v4337 = vadd.f32 %v4276, %v4319
    %v4338 = vadd.f32 %v4278, %v4315
    %v4339 = vadd.f32 %v4280, %v4319
    %v4340 = vadd.f32 %v4284, %v4315
    %v4341 = vadd.f32 %v4286, %v4319
    %v4342 = vadd.f32 %v4288, %v4315
    %v4343 = vadd.f32 %v4290, %v4319
    %v4344 = vadd.f32 %v4294, %v4315
    %v4345 = vadd.f32 %v4296, %v4319
    %v4346 = vadd.f32 %v4298, %v4315
    %v4347 = vadd.f32 %v4300, %v4319
    %v4348 = vadd.f32 %v4304, %v4315
    %v4349 = vadd.f32 %v4306, %v4319
    %v4350 = vadd.f32 %v4308, %v4315
    %v4351 = vadd.f32 %v4310, %v4319
    %v4352 = vxor.u32 %v4320, 2147483648
    %v4353 = vxor.u32 %v4321, 2147483648
    %v4354 = vxor.u32 %v4322, 2147483648
    %v4355 = vxor.u32 %v4323, 2147483648
    %v4356 = vxor.u32 %v4324, 2147483648
    %v4357 = vxor.u32 %v4325, 2147483648
    %v4358 = vxor.u32 %v4326, 2147483648
    %v4359 = vxor.u32 %v4327, 2147483648
    %v4360 = vxor.u32 %v4328, 2147483648
    %v4361 = vxor.u32 %v4329, 2147483648
    %v4362 = vxor.u32 %v4330, 2147483648
    %v4363 = vxor.u32 %v4331, 2147483648
    %v4364 = vxor.u32 %v4332, 2147483648
    %v4365 = vxor.u32 %v4333, 2147483648
    %v4366 = vxor.u32 %v4334, 2147483648
    %v4367 = vxor.u32 %v4335, 2147483648
    %v4368 = vxor.u32 %v4336, 2147483648
    %v4369 = vxor.u32 %v4337, 2147483648
    %v4370 = vxor.u32 %v4338, 2147483648
    %v4371 = vxor.u32 %v4339, 2147483648
    %v4372 = vxor.u32 %v4340, 2147483648
    %v4373 = vxor.u32 %v4341, 2147483648
    %v4374 = vxor.u32 %v4342, 2147483648
    %v4375 = vxor.u32 %v4343, 2147483648
    %v4376 = vxor.u32 %v4344, 2147483648
    %v4377 = vxor.u32 %v4345, 2147483648
    %v4378 = vxor.u32 %v4346, 2147483648
    %v4379 = vxor.u32 %v4347, 2147483648
    %v4380 = vxor.u32 %v4348, 2147483648
    %v4381 = vxor.u32 %v4349, 2147483648
    %v4382 = vxor.u32 %v4350, 2147483648
    %v4383 = vxor.u32 %v4351, 2147483648
    %v4384 = vmul.f32 %v4352, 1.442695
    %v4385 = vpow.pop %v4384
    %v4386 = vmul.f32 %v4353, 1.442695
    %v4387 = vpow.pop %v4386
    %v4388 = vmul.f32 %v4354, 1.442695
    %v4389 = vpow.pop %v4388
    %v4390 = vmul.f32 %v4355, 1.442695
    %v4391 = vpow.pop %v4390
    %v4392 = vmul.f32 %v4356, 1.442695
    %v4393 = vpow.pop %v4392
    %v4394 = vmul.f32 %v4357, 1.442695
    %v4395 = vpow.pop %v4394
    %v4396 = vmul.f32 %v4358, 1.442695
    %v4397 = vpow.pop %v4396
    %v4398 = vmul.f32 %v4359, 1.442695
    %v4399 = vpow.pop %v4398
    %v4400 = vmul.f32 %v4360, 1.442695
    %v4401 = vpow.pop %v4400
    %v4402 = vmul.f32 %v4361, 1.442695
    %v4403 = vpow.pop %v4402
    %v4404 = vmul.f32 %v4362, 1.442695
    %v4405 = vpow.pop %v4404
    %v4406 = vmul.f32 %v4363, 1.442695
    %v4407 = vpow.pop %v4406
    %v4408 = vmul.f32 %v4364, 1.442695
    %v4409 = vpow.pop %v4408
    %v4410 = vmul.f32 %v4365, 1.442695
    %v4411 = vpow.pop %v4410
    %v4412 = vmul.f32 %v4366, 1.442695
    %v4413 = vpow.pop %v4412
    %v4414 = vmul.f32 %v4367, 1.442695
    %v4415 = vpow.pop %v4414
    %v4416 = vmul.f32 %v4368, 1.442695
    %v4417 = vpow.pop %v4416
    %v4418 = vmul.f32 %v4369, 1.442695
    %v4419 = vpow.pop %v4418
    %v4420 = vmul.f32 %v4370, 1.442695
    %v4421 = vpow.pop %v4420
    %v4422 = vmul.f32 %v4371, 1.442695
    %v4423 = vpow.pop %v4422
    %v4424 = vmul.f32 %v4372, 1.442695
    %v4425 = vpow.pop %v4424
    %v4426 = vmul.f32 %v4373, 1.442695
    %v4427 = vpow.pop %v4426
    %v4428 = vmul.f32 %v4374, 1.442695
    %v4429 = vpow.pop %v4428
    %v4430 = vmul.f32 %v4375, 1.442695
    %v4431 = vpow.pop %v4430
    %v4432 = vmul.f32 %v4376, 1.442695
    %v4433 = vpow.pop %v4432
    %v4434 = vmul.f32 %v4377, 1.442695
    %v4435 = vpow.pop %v4434
    %v4436 = vmul.f32 %v4378, 1.442695
    %v4437 = vpow.pop %v4436
    %v4438 = vmul.f32 %v4379, 1.442695
    %v4439 = vpow.pop %v4438
    %v4440 = vmul.f32 %v4380, 1.442695
    %v4441 = vpow.pop %v4440
    %v4442 = vmul.f32 %v4381, 1.442695
    %v4443 = vpow.pop %v4442
    %v4444 = vmul.f32 %v4382, 1.442695
    %v4445 = vpow.pop %v4444
    %v4446 = vmul.f32 %v4383, 1.442695
    %v4447 = vpow.pop %v4446
    %v4448 = vadd.f32 %v4385, 1.0
    %v4449 = vadd.f32 %v4387, 1.0
    %v4450 = vadd.f32 %v4389, 1.0
    %v4451 = vadd.f32 %v4391, 1.0
    %v4452 = vadd.f32 %v4393, 1.0
    %v4453 = vadd.f32 %v4395, 1.0
    %v4454 = vadd.f32 %v4397, 1.0
    %v4455 = vadd.f32 %v4399, 1.0
    %v4456 = vadd.f32 %v4401, 1.0
    %v4457 = vadd.f32 %v4403, 1.0
    %v4458 = vadd.f32 %v4405, 1.0
    %v4459 = vadd.f32 %v4407, 1.0
    %v4460 = vadd.f32 %v4409, 1.0
    %v4461 = vadd.f32 %v4411, 1.0
    %v4462 = vadd.f32 %v4413, 1.0
    %v4463 = vadd.f32 %v4415, 1.0
    %v4464 = vadd.f32 %v4417, 1.0
    %v4465 = vadd.f32 %v4419, 1.0
    %v4466 = vadd.f32 %v4421, 1.0
    %v4467 = vadd.f32 %v4423, 1.0
    %v4468 = vadd.f32 %v4425, 1.0
    %v4469 = vadd.f32 %v4427, 1.0
    %v4470 = vadd.f32 %v4429, 1.0
    %v4471 = vadd.f32 %v4431, 1.0
    %v4472 = vadd.f32 %v4433, 1.0
    %v4473 = vadd.f32 %v4435, 1.0
    %v4474 = vadd.f32 %v4437, 1.0
    %v4475 = vadd.f32 %v4439, 1.0
    %v4476 = vadd.f32 %v4441, 1.0
    %v4477 = vadd.f32 %v4443, 1.0
    %v4478 = vadd.f32 %v4445, 1.0
    %v4479 = vadd.f32 %v4447, 1.0
    %v4480 = vrcp.pop %v4448
    %v4481 = vmul.f32 1.0, %v4480
    %v4482 = vrcp.pop %v4449
    %v4483 = vmul.f32 1.0, %v4482
    %v4484 = vrcp.pop %v4450
    %v4485 = vmul.f32 1.0, %v4484
    %v4486 = vrcp.pop %v4451
    %v4487 = vmul.f32 1.0, %v4486
    %v4488 = vrcp.pop %v4452
    %v4489 = vmul.f32 1.0, %v4488
    %v4490 = vrcp.pop %v4453
    %v4491 = vmul.f32 1.0, %v4490
    %v4492 = vrcp.pop %v4454
    %v4493 = vmul.f32 1.0, %v4492
    %v4494 = vrcp.pop %v4455
    %v4495 = vmul.f32 1.0, %v4494
    %v4496 = vrcp.pop %v4456
    %v4497 = vmul.f32 1.0, %v4496
    %v4498 = vrcp.pop %v4457
    %v4499 = vmul.f32 1.0, %v4498
    %v4500 = vrcp.pop %v4458
    %v4501 = vmul.f32 1.0, %v4500
    %v4502 = vrcp.pop %v4459
    %v4503 = vmul.f32 1.0, %v4502
    %v4504 = vrcp.pop %v4460
    %v4505 = vmul.f32 1.0, %v4504
    %v4506 = vrcp.pop %v4461
    %v4507 = vmul.f32 1.0, %v4506
    %v4508 = vrcp.pop %v4462
    %v4509 = vmul.f32 1.0, %v4508
    %v4510 = vrcp.pop %v4463
    %v4511 = vmul.f32 1.0, %v4510
    %v4512 = vrcp.pop %v4464
    %v4513 = vmul.f32 1.0, %v4512
    %v4514 = vrcp.pop %v4465
    %v4515 = vmul.f32 1.0, %v4514
    %v4516 = vrcp.pop %v4466
    %v4517 = vmul.f32 1.0, %v4516
    %v4518 = vrcp.pop %v4467
    %v4519 = vmul.f32 1.0, %v4518
    %v4520 = vrcp.pop %v4468
    %v4521 = vmul.f32 1.0, %v4520
    %v4522 = vrcp.pop %v4469
    %v4523 = vmul.f32 1.0, %v4522
    %v4524 = vrcp.pop %v4470
    %v4525 = vmul.f32 1.0, %v4524
    %v4526 = vrcp.pop %v4471
    %v4527 = vmul.f32 1.0, %v4526
    %v4528 = vrcp.pop %v4472
    %v4529 = vmul.f32 1.0, %v4528
    %v4530 = vrcp.pop %v4473
    %v4531 = vmul.f32 1.0, %v4530
    %v4532 = vrcp.pop %v4474
    %v4533 = vmul.f32 1.0, %v4532
    %v4534 = vrcp.pop %v4475
    %v4535 = vmul.f32 1.0, %v4534
    %v4536 = vrcp.pop %v4476
    %v4537 = vmul.f32 1.0, %v4536
    %v4538 = vrcp.pop %v4477
    %v4539 = vmul.f32 1.0, %v4538
    %v4540 = vrcp.pop %v4478
    %v4541 = vmul.f32 1.0, %v4540
    %v4542 = vrcp.pop %v4479
    %v4543 = vmul.f32 1.0, %v4542
    %v4544 = vmul.f32 %v4481, %v3478
    %v4545 = vmul.f32 %v4485, %v3479
    %v4546 = vmul.f32 %v4489, %v3480
    %v4547 = vmul.f32 %v4493, %v3481
    %v4548 = vmul.f32 %v4497, %v3482
    %v4549 = vmul.f32 %v4501, %v3483
    %v4550 = vmul.f32 %v4505, %v3484
    %v4551 = vmul.f32 %v4509, %v3485
    %v4552 = vmul.f32 %v4513, %v3486
    %v4553 = vmul.f32 %v4517, %v3487
    %v4554 = vmul.f32 %v4521, %v3488
    %v4555 = vmul.f32 %v4525, %v3489
    %v4556 = vmul.f32 %v4529, %v3490
    %v4557 = vmul.f32 %v4533, %v3491
    %v4558 = vmul.f32 %v4537, %v3492
    %v4559 = vmul.f32 %v4541, %v3493
    %v4560 = vsel %vm103, %v4544, 0.0
    %4561 = vadd.xlane.f32.xlu0 %v4560
    %v4562 = vpop.xlane.xlu0 %4561
    %v4563 = vsel %vm103, %v4545, 0.0
    %4564 = vadd.xlane.f32.xlu0 %v4563
    %v4565 = vpop.xlane.xlu0 %4564
    %v4566 = vsel %vm103, %v4546, 0.0
    %4567 = vadd.xlane.f32.xlu0 %v4566
    %v4568 = vpop.xlane.xlu0 %4567
    %v4569 = vsel %vm103, %v4547, 0.0
    %4570 = vadd.xlane.f32.xlu0 %v4569
    %v4571 = vpop.xlane.xlu0 %4570
    %v4572 = vsel %vm103, %v4548, 0.0
    %4573 = vadd.xlane.f32.xlu0 %v4572
    %v4574 = vpop.xlane.xlu0 %4573
    %v4575 = vsel %vm103, %v4549, 0.0
    %4576 = vadd.xlane.f32.xlu0 %v4575
    %v4577 = vpop.xlane.xlu0 %4576
    %v4578 = vsel %vm103, %v4550, 0.0
    %4579 = vadd.xlane.f32.xlu0 %v4578
    %v4580 = vpop.xlane.xlu0 %4579
    %v4581 = vsel %vm103, %v4551, 0.0
    %4582 = vadd.xlane.f32.xlu0 %v4581
    %v4583 = vpop.xlane.xlu0 %4582
    %v4584 = vsel %vm103, %v4552, 0.0
    %4585 = vadd.xlane.f32.xlu0 %v4584
    %v4586 = vpop.xlane.xlu0 %4585
    %v4587 = vsel %vm103, %v4553, 0.0
    %4588 = vadd.xlane.f32.xlu0 %v4587
    %v4589 = vpop.xlane.xlu0 %4588
    %v4590 = vsel %vm103, %v4554, 0.0
    %4591 = vadd.xlane.f32.xlu0 %v4590
    %v4592 = vpop.xlane.xlu0 %4591
    %v4593 = vsel %vm103, %v4555, 0.0
    %4594 = vadd.xlane.f32.xlu0 %v4593
    %v4595 = vpop.xlane.xlu0 %4594
    %v4596 = vsel %vm103, %v4556, 0.0
    %4597 = vadd.xlane.f32.xlu0 %v4596
    %v4598 = vpop.xlane.xlu0 %4597
    %v4599 = vsel %vm103, %v4557, 0.0
    %4600 = vadd.xlane.f32.xlu0 %v4599
    %v4601 = vpop.xlane.xlu0 %4600
    %v4602 = vsel %vm103, %v4558, 0.0
    %4603 = vadd.xlane.f32.xlu0 %v4602
    %v4604 = vpop.xlane.xlu0 %4603
    %v4605 = vsel %vm103, %v4559, 0.0
    %4606 = vadd.xlane.f32.xlu0 %v4605
    %v4607 = vpop.xlane.xlu0 %4606
    %4624 = vrot.lane.b32.xlu0 %v3478, 64
    %v4625 = vpop.permute.xlu0 %4624
    %4626 = vrot.lane.b32.xlu0 %v3479, 64
    %v4627 = vpop.permute.xlu0 %4626
    %4628 = vrot.lane.b32.xlu0 %v3480, 64
    %v4629 = vpop.permute.xlu0 %4628
    %4630 = vrot.lane.b32.xlu0 %v3481, 64
    %v4631 = vpop.permute.xlu0 %4630
    %4632 = vrot.lane.b32.xlu0 %v3482, 64
    %v4633 = vpop.permute.xlu0 %4632
    %4634 = vrot.lane.b32.xlu0 %v3483, 64
    %v4635 = vpop.permute.xlu0 %4634
    %4636 = vrot.lane.b32.xlu0 %v3484, 64
    %v4637 = vpop.permute.xlu0 %4636
    %4638 = vrot.lane.b32.xlu0 %v3485, 64
    %v4639 = vpop.permute.xlu0 %4638
    %4640 = vrot.lane.b32.xlu0 %v3486, 64
    %v4641 = vpop.permute.xlu0 %4640
    %4642 = vrot.lane.b32.xlu0 %v3487, 64
    %v4643 = vpop.permute.xlu0 %4642
    %4644 = vrot.lane.b32.xlu0 %v3488, 64
    %v4645 = vpop.permute.xlu0 %4644
    %4646 = vrot.lane.b32.xlu0 %v3489, 64
    %v4647 = vpop.permute.xlu0 %4646
    %4648 = vrot.lane.b32.xlu0 %v3490, 64
    %v4649 = vpop.permute.xlu0 %4648
    %4650 = vrot.lane.b32.xlu0 %v3491, 64
    %v4651 = vpop.permute.xlu0 %4650
    %4652 = vrot.lane.b32.xlu0 %v3492, 64
    %v4653 = vpop.permute.xlu0 %4652
    %4654 = vrot.lane.b32.xlu0 %v3493, 64
    %v4655 = vpop.permute.xlu0 %4654
    %v4672 = vmul.f32 %v4481, %v4625
    %v4673 = vmul.f32 %v4485, %v4627
    %v4674 = vmul.f32 %v4489, %v4629
    %v4675 = vmul.f32 %v4493, %v4631
    %v4676 = vmul.f32 %v4497, %v4633
    %v4677 = vmul.f32 %v4501, %v4635
    %v4678 = vmul.f32 %v4505, %v4637
    %v4679 = vmul.f32 %v4509, %v4639
    %v4680 = vmul.f32 %v4513, %v4641
    %v4681 = vmul.f32 %v4517, %v4643
    %v4682 = vmul.f32 %v4521, %v4645
    %v4683 = vmul.f32 %v4525, %v4647
    %v4684 = vmul.f32 %v4529, %v4649
    %v4685 = vmul.f32 %v4533, %v4651
    %v4686 = vmul.f32 %v4537, %v4653
    %v4687 = vmul.f32 %v4541, %v4655
    %4704 = vrot.lane.b32.xlu0 %v4672, 64
    %v4705 = vpop.permute.xlu0 %4704
    %4706 = vrot.lane.b32.xlu0 %v4673, 64
    %v4707 = vpop.permute.xlu0 %4706
    %4708 = vrot.lane.b32.xlu0 %v4674, 64
    %v4709 = vpop.permute.xlu0 %4708
    %4710 = vrot.lane.b32.xlu0 %v4675, 64
    %v4711 = vpop.permute.xlu0 %4710
    %4712 = vrot.lane.b32.xlu0 %v4676, 64
    %v4713 = vpop.permute.xlu0 %4712
    %4714 = vrot.lane.b32.xlu0 %v4677, 64
    %v4715 = vpop.permute.xlu0 %4714
    %4716 = vrot.lane.b32.xlu0 %v4678, 64
    %v4717 = vpop.permute.xlu0 %4716
    %4718 = vrot.lane.b32.xlu0 %v4679, 64
    %v4719 = vpop.permute.xlu0 %4718
    %4720 = vrot.lane.b32.xlu0 %v4680, 64
    %v4721 = vpop.permute.xlu0 %4720
    %4722 = vrot.lane.b32.xlu0 %v4681, 64
    %v4723 = vpop.permute.xlu0 %4722
    %4724 = vrot.lane.b32.xlu0 %v4682, 64
    %v4725 = vpop.permute.xlu0 %4724
    %4726 = vrot.lane.b32.xlu0 %v4683, 64
    %v4727 = vpop.permute.xlu0 %4726
    %4728 = vrot.lane.b32.xlu0 %v4684, 64
    %v4729 = vpop.permute.xlu0 %4728
    %4730 = vrot.lane.b32.xlu0 %v4685, 64
    %v4731 = vpop.permute.xlu0 %4730
    %4732 = vrot.lane.b32.xlu0 %v4686, 64
    %v4733 = vpop.permute.xlu0 %4732
    %4734 = vrot.lane.b32.xlu0 %v4687, 64
    %v4735 = vpop.permute.xlu0 %4734
    %v4752 = vsel %vm103, %v4705, 0.0
    %4753 = vadd.xlane.f32.xlu0 %v4752
    %v4754 = vpop.xlane.xlu0 %4753
    %v4755 = vsel %vm103, %v4707, 0.0
    %4756 = vadd.xlane.f32.xlu0 %v4755
    %v4757 = vpop.xlane.xlu0 %4756
    %v4758 = vsel %vm103, %v4709, 0.0
    %4759 = vadd.xlane.f32.xlu0 %v4758
    %v4760 = vpop.xlane.xlu0 %4759
    %v4761 = vsel %vm103, %v4711, 0.0
    %4762 = vadd.xlane.f32.xlu0 %v4761
    %v4763 = vpop.xlane.xlu0 %4762
    %v4764 = vsel %vm103, %v4713, 0.0
    %4765 = vadd.xlane.f32.xlu0 %v4764
    %v4766 = vpop.xlane.xlu0 %4765
    %v4767 = vsel %vm103, %v4715, 0.0
    %4768 = vadd.xlane.f32.xlu0 %v4767
    %v4769 = vpop.xlane.xlu0 %4768
    %v4770 = vsel %vm103, %v4717, 0.0
    %4771 = vadd.xlane.f32.xlu0 %v4770
    %v4772 = vpop.xlane.xlu0 %4771
    %v4773 = vsel %vm103, %v4719, 0.0
    %4774 = vadd.xlane.f32.xlu0 %v4773
    %v4775 = vpop.xlane.xlu0 %4774
    %v4776 = vsel %vm103, %v4721, 0.0
    %4777 = vadd.xlane.f32.xlu0 %v4776
    %v4778 = vpop.xlane.xlu0 %4777
    %v4779 = vsel %vm103, %v4723, 0.0
    %4780 = vadd.xlane.f32.xlu0 %v4779
    %v4781 = vpop.xlane.xlu0 %4780
    %v4782 = vsel %vm103, %v4725, 0.0
    %4783 = vadd.xlane.f32.xlu0 %v4782
    %v4784 = vpop.xlane.xlu0 %4783
    %v4785 = vsel %vm103, %v4727, 0.0
    %4786 = vadd.xlane.f32.xlu0 %v4785
    %v4787 = vpop.xlane.xlu0 %4786
    %v4788 = vsel %vm103, %v4729, 0.0
    %4789 = vadd.xlane.f32.xlu0 %v4788
    %v4790 = vpop.xlane.xlu0 %4789
    %v4791 = vsel %vm103, %v4731, 0.0
    %4792 = vadd.xlane.f32.xlu0 %v4791
    %v4793 = vpop.xlane.xlu0 %4792
    %v4794 = vsel %vm103, %v4733, 0.0
    %4795 = vadd.xlane.f32.xlu0 %v4794
    %v4796 = vpop.xlane.xlu0 %4795
    %v4797 = vsel %vm103, %v4735, 0.0
    %4798 = vadd.xlane.f32.xlu0 %v4797
    %v4799 = vpop.xlane.xlu0 %4798
    %v4800 = vmul.f32 %v4483, %v3478
    %v4801 = vmul.f32 %v4487, %v3479
    %v4802 = vmul.f32 %v4491, %v3480
    %v4803 = vmul.f32 %v4495, %v3481
    %v4804 = vmul.f32 %v4499, %v3482
    %v4805 = vmul.f32 %v4503, %v3483
    %v4806 = vmul.f32 %v4507, %v3484
    %v4807 = vmul.f32 %v4511, %v3485
    %v4808 = vmul.f32 %v4515, %v3486
    %v4809 = vmul.f32 %v4519, %v3487
    %v4810 = vmul.f32 %v4523, %v3488
    %v4811 = vmul.f32 %v4527, %v3489
    %v4812 = vmul.f32 %v4531, %v3490
    %v4813 = vmul.f32 %v4535, %v3491
    %v4814 = vmul.f32 %v4539, %v3492
    %v4815 = vmul.f32 %v4543, %v3493
    %v4816 = vsel %vm103, %v4800, 0.0
    %4817 = vadd.xlane.f32.xlu0 %v4816
    %v4818 = vpop.xlane.xlu0 %4817
    %v4819 = vsel %vm103, %v4801, 0.0
    %4820 = vadd.xlane.f32.xlu0 %v4819
    %v4821 = vpop.xlane.xlu0 %4820
    %v4822 = vsel %vm103, %v4802, 0.0
    %4823 = vadd.xlane.f32.xlu0 %v4822
    %v4824 = vpop.xlane.xlu0 %4823
    %v4825 = vsel %vm103, %v4803, 0.0
    %4826 = vadd.xlane.f32.xlu0 %v4825
    %v4827 = vpop.xlane.xlu0 %4826
    %v4828 = vsel %vm103, %v4804, 0.0
    %4829 = vadd.xlane.f32.xlu0 %v4828
    %v4830 = vpop.xlane.xlu0 %4829
    %v4831 = vsel %vm103, %v4805, 0.0
    %4832 = vadd.xlane.f32.xlu0 %v4831
    %v4833 = vpop.xlane.xlu0 %4832
    %v4834 = vsel %vm103, %v4806, 0.0
    %4835 = vadd.xlane.f32.xlu0 %v4834
    %v4836 = vpop.xlane.xlu0 %4835
    %v4837 = vsel %vm103, %v4807, 0.0
    %4838 = vadd.xlane.f32.xlu0 %v4837
    %v4839 = vpop.xlane.xlu0 %4838
    %v4840 = vsel %vm103, %v4808, 0.0
    %4841 = vadd.xlane.f32.xlu0 %v4840
    %v4842 = vpop.xlane.xlu0 %4841
    %v4843 = vsel %vm103, %v4809, 0.0
    %4844 = vadd.xlane.f32.xlu0 %v4843
    %v4845 = vpop.xlane.xlu0 %4844
    %v4846 = vsel %vm103, %v4810, 0.0
    %4847 = vadd.xlane.f32.xlu0 %v4846
    %v4848 = vpop.xlane.xlu0 %4847
    %v4849 = vsel %vm103, %v4811, 0.0
    %4850 = vadd.xlane.f32.xlu0 %v4849
    %v4851 = vpop.xlane.xlu0 %4850
    %v4852 = vsel %vm103, %v4812, 0.0
    %4853 = vadd.xlane.f32.xlu0 %v4852
    %v4854 = vpop.xlane.xlu0 %4853
    %v4855 = vsel %vm103, %v4813, 0.0
    %4856 = vadd.xlane.f32.xlu0 %v4855
    %v4857 = vpop.xlane.xlu0 %4856
    %v4858 = vsel %vm103, %v4814, 0.0
    %4859 = vadd.xlane.f32.xlu0 %v4858
    %v4860 = vpop.xlane.xlu0 %4859
    %v4861 = vsel %vm103, %v4815, 0.0
    %4862 = vadd.xlane.f32.xlu0 %v4861
    %v4863 = vpop.xlane.xlu0 %4862
    %v4864 = vmul.f32 %v4483, %v4625
    %v4865 = vmul.f32 %v4487, %v4627
    %v4866 = vmul.f32 %v4491, %v4629
    %v4867 = vmul.f32 %v4495, %v4631
    %v4868 = vmul.f32 %v4499, %v4633
    %v4869 = vmul.f32 %v4503, %v4635
    %v4870 = vmul.f32 %v4507, %v4637
    %v4871 = vmul.f32 %v4511, %v4639
    %v4872 = vmul.f32 %v4515, %v4641
    %v4873 = vmul.f32 %v4519, %v4643
    %v4874 = vmul.f32 %v4523, %v4645
    %v4875 = vmul.f32 %v4527, %v4647
    %v4876 = vmul.f32 %v4531, %v4649
    %v4877 = vmul.f32 %v4535, %v4651
    %v4878 = vmul.f32 %v4539, %v4653
    %v4879 = vmul.f32 %v4543, %v4655
    %4896 = vrot.lane.b32.xlu0 %v4864, 64
    %v4897 = vpop.permute.xlu0 %4896
    %4898 = vrot.lane.b32.xlu0 %v4865, 64
    %v4899 = vpop.permute.xlu0 %4898
    %4900 = vrot.lane.b32.xlu0 %v4866, 64
    %v4901 = vpop.permute.xlu0 %4900
    %4902 = vrot.lane.b32.xlu0 %v4867, 64
    %v4903 = vpop.permute.xlu0 %4902
    %4904 = vrot.lane.b32.xlu0 %v4868, 64
    %v4905 = vpop.permute.xlu0 %4904
    %4906 = vrot.lane.b32.xlu0 %v4869, 64
    %v4907 = vpop.permute.xlu0 %4906
    %4908 = vrot.lane.b32.xlu0 %v4870, 64
    %v4909 = vpop.permute.xlu0 %4908
    %4910 = vrot.lane.b32.xlu0 %v4871, 64
    %v4911 = vpop.permute.xlu0 %4910
    %4912 = vrot.lane.b32.xlu0 %v4872, 64
    %v4913 = vpop.permute.xlu0 %4912
    %4914 = vrot.lane.b32.xlu0 %v4873, 64
    %v4915 = vpop.permute.xlu0 %4914
    %4916 = vrot.lane.b32.xlu0 %v4874, 64
    %v4917 = vpop.permute.xlu0 %4916
    %4918 = vrot.lane.b32.xlu0 %v4875, 64
    %v4919 = vpop.permute.xlu0 %4918
    %4920 = vrot.lane.b32.xlu0 %v4876, 64
    %v4921 = vpop.permute.xlu0 %4920
    %4922 = vrot.lane.b32.xlu0 %v4877, 64
    %v4923 = vpop.permute.xlu0 %4922
    %4924 = vrot.lane.b32.xlu0 %v4878, 64
    %v4925 = vpop.permute.xlu0 %4924
    %4926 = vrot.lane.b32.xlu0 %v4879, 64
    %v4927 = vpop.permute.xlu0 %4926
    %v4944 = vsel %vm103, %v4897, 0.0
    %4945 = vadd.xlane.f32.xlu0 %v4944
    %v4946 = vpop.xlane.xlu0 %4945
    %v4947 = vsel %vm103, %v4899, 0.0
    %4948 = vadd.xlane.f32.xlu0 %v4947
    %v4949 = vpop.xlane.xlu0 %4948
    %v4950 = vsel %vm103, %v4901, 0.0
    %4951 = vadd.xlane.f32.xlu0 %v4950
    %v4952 = vpop.xlane.xlu0 %4951
    %v4953 = vsel %vm103, %v4903, 0.0
    %4954 = vadd.xlane.f32.xlu0 %v4953
    %v4955 = vpop.xlane.xlu0 %4954
    %v4956 = vsel %vm103, %v4905, 0.0
    %4957 = vadd.xlane.f32.xlu0 %v4956
    %v4958 = vpop.xlane.xlu0 %4957
    %v4959 = vsel %vm103, %v4907, 0.0
    %4960 = vadd.xlane.f32.xlu0 %v4959
    %v4961 = vpop.xlane.xlu0 %4960
    %v4962 = vsel %vm103, %v4909, 0.0
    %4963 = vadd.xlane.f32.xlu0 %v4962
    %v4964 = vpop.xlane.xlu0 %4963
    %v4965 = vsel %vm103, %v4911, 0.0
    %4966 = vadd.xlane.f32.xlu0 %v4965
    %v4967 = vpop.xlane.xlu0 %4966
    %v4968 = vsel %vm103, %v4913, 0.0
    %4969 = vadd.xlane.f32.xlu0 %v4968
    %v4970 = vpop.xlane.xlu0 %4969
    %v4971 = vsel %vm103, %v4915, 0.0
    %4972 = vadd.xlane.f32.xlu0 %v4971
    %v4973 = vpop.xlane.xlu0 %4972
    %v4974 = vsel %vm103, %v4917, 0.0
    %4975 = vadd.xlane.f32.xlu0 %v4974
    %v4976 = vpop.xlane.xlu0 %4975
    %v4977 = vsel %vm103, %v4919, 0.0
    %4978 = vadd.xlane.f32.xlu0 %v4977
    %v4979 = vpop.xlane.xlu0 %4978
    %v4980 = vsel %vm103, %v4921, 0.0
    %4981 = vadd.xlane.f32.xlu0 %v4980
    %v4982 = vpop.xlane.xlu0 %4981
    %v4983 = vsel %vm103, %v4923, 0.0
    %4984 = vadd.xlane.f32.xlu0 %v4983
    %v4985 = vpop.xlane.xlu0 %4984
    %v4986 = vsel %vm103, %v4925, 0.0
    %4987 = vadd.xlane.f32.xlu0 %v4986
    %v4988 = vpop.xlane.xlu0 %4987
    %v4989 = vsel %vm103, %v4927, 0.0
    %4990 = vadd.xlane.f32.xlu0 %v4989
    %v4991 = vpop.xlane.xlu0 %4990
    %v4992 = vsel %vm1647, %v4562, %v4754
    %v4993 = vsel %vm1647, %v4565, %v4757
    %v4994 = vsel %vm1647, %v4568, %v4760
    %v4995 = vsel %vm1647, %v4571, %v4763
    %v4996 = vsel %vm1647, %v4574, %v4766
    %v4997 = vsel %vm1647, %v4577, %v4769
    %v4998 = vsel %vm1647, %v4580, %v4772
    %v4999 = vsel %vm1647, %v4583, %v4775
    %v5000 = vsel %vm1647, %v4586, %v4778
    %v5001 = vsel %vm1647, %v4589, %v4781
    %v5002 = vsel %vm1647, %v4592, %v4784
    %v5003 = vsel %vm1647, %v4595, %v4787
    %v5004 = vsel %vm1647, %v4598, %v4790
    %v5005 = vsel %vm1647, %v4601, %v4793
    %v5006 = vsel %vm1647, %v4604, %v4796
    %v5007 = vsel %vm1647, %v4607, %v4799
    %v5008 = vsel %vm1664, %v4992, %v4818
    %v5009 = vsel %vm1664, %v4993, %v4821
    %v5010 = vsel %vm1664, %v4994, %v4824
    %v5011 = vsel %vm1664, %v4995, %v4827
    %v5012 = vsel %vm1664, %v4996, %v4830
    %v5013 = vsel %vm1664, %v4997, %v4833
    %v5014 = vsel %vm1664, %v4998, %v4836
    %v5015 = vsel %vm1664, %v4999, %v4839
    %v5016 = vsel %vm1664, %v5000, %v4842
    %v5017 = vsel %vm1664, %v5001, %v4845
    %v5018 = vsel %vm1664, %v5002, %v4848
    %v5019 = vsel %vm1664, %v5003, %v4851
    %v5020 = vsel %vm1664, %v5004, %v4854
    %v5021 = vsel %vm1664, %v5005, %v4857
    %v5022 = vsel %vm1664, %v5006, %v4860
    %v5023 = vsel %vm1664, %v5007, %v4863
    %v5024 = vsel %vm1681, %v5008, %v4946
    %v5025 = vsel %vm1681, %v5009, %v4949
    %v5026 = vsel %vm1681, %v5010, %v4952
    %v5027 = vsel %vm1681, %v5011, %v4955
    %v5028 = vsel %vm1681, %v5012, %v4958
    %v5029 = vsel %vm1681, %v5013, %v4961
    %v5030 = vsel %vm1681, %v5014, %v4964
    %v5031 = vsel %vm1681, %v5015, %v4967
    %v5032 = vsel %vm1681, %v5016, %v4970
    %v5033 = vsel %vm1681, %v5017, %v4973
    %v5034 = vsel %vm1681, %v5018, %v4976
    %v5035 = vsel %vm1681, %v5019, %v4979
    %v5036 = vsel %vm1681, %v5020, %v4982
    %v5037 = vsel %vm1681, %v5021, %v4985
    %v5038 = vsel %vm1681, %v5022, %v4988
    %v5039 = vsel %vm1681, %v5023, %v4991
    %5040 = vxpose.xlu0.b32.start [1/16] %v5024, 128
    %5041 = vxpose.xlu0.b32.cont [2/16] %v5025, 128
    %5042 = vxpose.xlu0.b32.cont [3/16] %v5026, 128
    %5043 = vxpose.xlu0.b32.cont [4/16] %v5027, 128
    %5044 = vxpose.xlu0.b32.cont [5/16] %v5028, 128
    %5045 = vxpose.xlu0.b32.cont [6/16] %v5029, 128
    %5046 = vxpose.xlu0.b32.cont [7/16] %v5030, 128
    %5047 = vxpose.xlu0.b32.cont [8/16] %v5031, 128
    %5048 = vxpose.xlu0.b32.cont [9/16] %v5032, 128
    %5049 = vxpose.xlu0.b32.cont [10/16] %v5033, 128
    %5050 = vxpose.xlu0.b32.cont [11/16] %v5034, 128
    %5051 = vxpose.xlu0.b32.cont [12/16] %v5035, 128
    %5052 = vxpose.xlu0.b32.cont [13/16] %v5036, 128
    %5053 = vxpose.xlu0.b32.cont [14/16] %v5037, 128
    %5054 = vxpose.xlu0.b32.cont [15/16] %v5038, 128
    %5055 = vxpose.xlu0.b32.end [16/16] %v5039, 128
    %v5056 = vpop.trf.xlu0
    %v5057 = vpop.trf.xlu0
    %v5058 = vpop.trf.xlu0
    %v5059 = vpop.trf.xlu0
    %v5060 = vpop.trf.xlu0
    %v5061 = vpop.trf.xlu0
    %v5062 = vpop.trf.xlu0
    %v5063 = vpop.trf.xlu0
    %v5064 = vpop.trf.xlu0
    %v5065 = vpop.trf.xlu0
    %v5066 = vpop.trf.xlu0
    %v5067 = vpop.trf.xlu0
    %v5068 = vpop.trf.xlu0
    %v5069 = vpop.trf.xlu0
    %v5070 = vpop.trf.xlu0
    %v5071 = vpop.trf.xlu0
    %5072 = vst [vmem:[#allocation2 + $0x8] sm:$0xf] %v5056
    %v5073 = vadd.f32 %v3958, %v3959
    %v5074 = vadd.f32 %v5073, %v3960
    %v5075 = vadd.f32 %v5074, %v3961
    %v5076 = vadd.f32 %v5075, %v3962
    %v5077 = vadd.f32 %v5076, %v3963
    %v5078 = vadd.f32 %v5077, %v3964
    %v5079 = vadd.f32 %v5078, %v3965
    %v5080 = vadd.f32 %v5079, %v3966
    %v5081 = vadd.f32 %v5080, %v3967
    %v5082 = vadd.f32 %v5081, %v3968
    %v5083 = vadd.f32 %v5082, %v3969
    %v5084 = vadd.f32 %v5083, %v3970
    %v5085 = vadd.f32 %v5084, %v3971
    %v5086 = vadd.f32 %v5085, %v3972
    %v5087 = vadd.f32 %v5086, %v3973
    %v5088 = vrot.slane %v5087, 4
    %v5089 = vadd.f32 %v5087, %v5088
    %v5090 = vrot.slane %v5089, 2
    %v5091 = vadd.f32 %v5089, %v5090
    %v5092 = vrot.slane %v5091, 1
    %v5093 = vadd.f32 %v5091, %v5092
    %v5094 = vadd.f32 %v3974, %v3975
    %v5095 = vadd.f32 %v5094, %v3976
    %v5096 = vadd.f32 %v5095, %v3977
    %v5097 = vadd.f32 %v5096, %v3978
    %v5098 = vadd.f32 %v5097, %v3979
    %v5099 = vadd.f32 %v5098, %v3980
    %v5100 = vadd.f32 %v5099, %v3981
    %v5101 = vadd.f32 %v5100, %v3982
    %v5102 = vadd.f32 %v5101, %v3983
    %v5103 = vadd.f32 %v5102, %v3984
    %v5104 = vadd.f32 %v5103, %v3985
    %v5105 = vadd.f32 %v5104, %v3986
    %v5106 = vadd.f32 %v5105, %v3987
    %v5107 = vadd.f32 %v5106, %v3988
    %v5108 = vadd.f32 %v5107, %v3989
    %v5109 = vrot.slane %v5108, 4
    %v5110 = vadd.f32 %v5108, %v5109
    %v5111 = vrot.slane %v5110, 2
    %v5112 = vadd.f32 %v5110, %v5111
    %v5113 = vrot.slane %v5112, 1
    %v5114 = vadd.f32 %v5112, %v5113
    %v5115 = vadd.f32 %v3444, %v5093
    %v5116 = vadd.f32 %v3445, %v5114
    %v5117 = vld [vmem:[%s0 + $0x180] sm:$0xff]
    %v5118 = vld [vmem:[%s0 + $0x188] sm:$0xff]
    %v5119 = vld [vmem:[%s0 + $0x190] sm:$0xff]
    %v5120 = vld [vmem:[%s0 + $0x198] sm:$0xff]
    %v5121 = vld [vmem:[%s0 + $0x1a0] sm:$0xff]
    %v5122 = vld [vmem:[%s0 + $0x1a8] sm:$0xff]
    %v5123 = vld [vmem:[%s0 + $0x1b0] sm:$0xff]
    %v5124 = vld [vmem:[%s0 + $0x1b8] sm:$0xff]
    %v5125 = vld [vmem:[%s0 + $0x1c0] sm:$0xff]
    %v5126 = vld [vmem:[%s0 + $0x1c8] sm:$0xff]
    %v5127 = vld [vmem:[%s0 + $0x1d0] sm:$0xff]
    %v5128 = vld [vmem:[%s0 + $0x1d8] sm:$0xff]
    %v5129 = vld [vmem:[%s0 + $0x1e0] sm:$0xff]
    %v5130 = vld [vmem:[%s0 + $0x1e8] sm:$0xff]
    %v5131 = vld [vmem:[%s0 + $0x1f0] sm:$0xff]
    %v5132 = vld [vmem:[%s0 + $0x1f8] sm:$0xff]
    %v5133 = vld [vmem:[%s1 + $0x180] sm:$0xff]
    %v5134 = vld [vmem:[%s1 + $0x188] sm:$0xff]
    %v5135 = vld [vmem:[%s1 + $0x190] sm:$0xff]
    %v5136 = vld [vmem:[%s1 + $0x198] sm:$0xff]
    %v5137 = vld [vmem:[%s1 + $0x1a0] sm:$0xff]
    %v5138 = vld [vmem:[%s1 + $0x1a8] sm:$0xff]
    %v5139 = vld [vmem:[%s1 + $0x1b0] sm:$0xff]
    %v5140 = vld [vmem:[%s1 + $0x1b8] sm:$0xff]
    %v5141 = vld [vmem:[%s1 + $0x1c0] sm:$0xff]
    %v5142 = vld [vmem:[%s1 + $0x1c8] sm:$0xff]
    %v5143 = vld [vmem:[%s1 + $0x1d0] sm:$0xff]
    %v5144 = vld [vmem:[%s1 + $0x1d8] sm:$0xff]
    %v5145 = vld [vmem:[%s1 + $0x1e0] sm:$0xff]
    %v5146 = vld [vmem:[%s1 + $0x1e8] sm:$0xff]
    %v5147 = vld [vmem:[%s1 + $0x1f0] sm:$0xff]
    %v5148 = vld [vmem:[%s1 + $0x1f8] sm:$0xff]
    %v5149 = vld [vmem:[%s2 + $0x180] sm:$0xff]
    %v5150 = vld [vmem:[%s2 + $0x188] sm:$0xff]
    %v5151 = vld [vmem:[%s2 + $0x190] sm:$0xff]
    %v5152 = vld [vmem:[%s2 + $0x198] sm:$0xff]
    %v5153 = vld [vmem:[%s2 + $0x1a0] sm:$0xff]
    %v5154 = vld [vmem:[%s2 + $0x1a8] sm:$0xff]
    %v5155 = vld [vmem:[%s2 + $0x1b0] sm:$0xff]
    %v5156 = vld [vmem:[%s2 + $0x1b8] sm:$0xff]
    %v5157 = vld [vmem:[%s2 + $0x1c0] sm:$0xff]
    %v5158 = vld [vmem:[%s2 + $0x1c8] sm:$0xff]
    %v5159 = vld [vmem:[%s2 + $0x1d0] sm:$0xff]
    %v5160 = vld [vmem:[%s2 + $0x1d8] sm:$0xff]
    %v5161 = vld [vmem:[%s2 + $0x1e0] sm:$0xff]
    %v5162 = vld [vmem:[%s2 + $0x1e8] sm:$0xff]
    %v5163 = vld [vmem:[%s2 + $0x1f0] sm:$0xff]
    %v5164 = vld [vmem:[%s2 + $0x1f8] sm:$0xff]
    %5166 = vset.pattern.permute.xlu0 0
    %5167 = vperm.xlu0 %5166, %v5117
    %v5168 = vpop.permute.xlu0 %5167
    %5171 = vset.pattern.permute.xlu0 0
    %5172 = vperm.xlu0 %5171, %v5118
    %v5173 = vpop.permute.xlu0 %5172
    %5176 = vset.pattern.permute.xlu0 0
    %5177 = vperm.xlu0 %5176, %v5119
    %v5178 = vpop.permute.xlu0 %5177
    %5181 = vset.pattern.permute.xlu0 0
    %5182 = vperm.xlu0 %5181, %v5120
    %v5183 = vpop.permute.xlu0 %5182
    %5186 = vset.pattern.permute.xlu0 0
    %5187 = vperm.xlu0 %5186, %v5121
    %v5188 = vpop.permute.xlu0 %5187
    %5191 = vset.pattern.permute.xlu0 0
    %5192 = vperm.xlu0 %5191, %v5122
    %v5193 = vpop.permute.xlu0 %5192
    %5196 = vset.pattern.permute.xlu0 0
    %5197 = vperm.xlu0 %5196, %v5123
    %v5198 = vpop.permute.xlu0 %5197
    %5201 = vset.pattern.permute.xlu0 0
    %5202 = vperm.xlu0 %5201, %v5124
    %v5203 = vpop.permute.xlu0 %5202
    %5206 = vset.pattern.permute.xlu0 0
    %5207 = vperm.xlu0 %5206, %v5125
    %v5208 = vpop.permute.xlu0 %5207
    %5211 = vset.pattern.permute.xlu0 0
    %5212 = vperm.xlu0 %5211, %v5126
    %v5213 = vpop.permute.xlu0 %5212
    %5216 = vset.pattern.permute.xlu0 0
    %5217 = vperm.xlu0 %5216, %v5127
    %v5218 = vpop.permute.xlu0 %5217
    %5221 = vset.pattern.permute.xlu0 0
    %5222 = vperm.xlu0 %5221, %v5128
    %v5223 = vpop.permute.xlu0 %5222
    %5226 = vset.pattern.permute.xlu0 0
    %5227 = vperm.xlu0 %5226, %v5129
    %v5228 = vpop.permute.xlu0 %5227
    %5231 = vset.pattern.permute.xlu0 0
    %5232 = vperm.xlu0 %5231, %v5130
    %v5233 = vpop.permute.xlu0 %5232
    %5236 = vset.pattern.permute.xlu0 0
    %5237 = vperm.xlu0 %5236, %v5131
    %v5238 = vpop.permute.xlu0 %5237
    %5241 = vset.pattern.permute.xlu0 0
    %5242 = vperm.xlu0 %5241, %v5132
    %v5243 = vpop.permute.xlu0 %5242
    %v5245 = vmul.f32 %v5168, %v5133
    %v5246 = vmul.f32 %v5173, %v5134
    %v5247 = vmul.f32 %v5178, %v5135
    %v5248 = vmul.f32 %v5183, %v5136
    %v5249 = vmul.f32 %v5188, %v5137
    %v5250 = vmul.f32 %v5193, %v5138
    %v5251 = vmul.f32 %v5198, %v5139
    %v5252 = vmul.f32 %v5203, %v5140
    %v5253 = vmul.f32 %v5208, %v5141
    %v5254 = vmul.f32 %v5213, %v5142
    %v5255 = vmul.f32 %v5218, %v5143
    %v5256 = vmul.f32 %v5223, %v5144
    %v5257 = vmul.f32 %v5228, %v5145
    %v5258 = vmul.f32 %v5233, %v5146
    %v5259 = vmul.f32 %v5238, %v5147
    %v5260 = vmul.f32 %v5243, %v5148
    %5261 = vset.pattern.permute.xlu0 1
    %5262 = vperm.xlu0 %5261, %v5117
    %v5263 = vpop.permute.xlu0 %5262
    %5265 = vset.pattern.permute.xlu0 1
    %5266 = vperm.xlu0 %5265, %v5118
    %v5267 = vpop.permute.xlu0 %5266
    %5269 = vset.pattern.permute.xlu0 1
    %5270 = vperm.xlu0 %5269, %v5119
    %v5271 = vpop.permute.xlu0 %5270
    %5273 = vset.pattern.permute.xlu0 1
    %5274 = vperm.xlu0 %5273, %v5120
    %v5275 = vpop.permute.xlu0 %5274
    %5277 = vset.pattern.permute.xlu0 1
    %5278 = vperm.xlu0 %5277, %v5121
    %v5279 = vpop.permute.xlu0 %5278
    %5281 = vset.pattern.permute.xlu0 1
    %5282 = vperm.xlu0 %5281, %v5122
    %v5283 = vpop.permute.xlu0 %5282
    %5285 = vset.pattern.permute.xlu0 1
    %5286 = vperm.xlu0 %5285, %v5123
    %v5287 = vpop.permute.xlu0 %5286
    %5289 = vset.pattern.permute.xlu0 1
    %5290 = vperm.xlu0 %5289, %v5124
    %v5291 = vpop.permute.xlu0 %5290
    %5293 = vset.pattern.permute.xlu0 1
    %5294 = vperm.xlu0 %5293, %v5125
    %v5295 = vpop.permute.xlu0 %5294
    %5297 = vset.pattern.permute.xlu0 1
    %5298 = vperm.xlu0 %5297, %v5126
    %v5299 = vpop.permute.xlu0 %5298
    %5301 = vset.pattern.permute.xlu0 1
    %5302 = vperm.xlu0 %5301, %v5127
    %v5303 = vpop.permute.xlu0 %5302
    %5305 = vset.pattern.permute.xlu0 1
    %5306 = vperm.xlu0 %5305, %v5128
    %v5307 = vpop.permute.xlu0 %5306
    %5309 = vset.pattern.permute.xlu0 1
    %5310 = vperm.xlu0 %5309, %v5129
    %v5311 = vpop.permute.xlu0 %5310
    %5313 = vset.pattern.permute.xlu0 1
    %5314 = vperm.xlu0 %5313, %v5130
    %v5315 = vpop.permute.xlu0 %5314
    %5317 = vset.pattern.permute.xlu0 1
    %5318 = vperm.xlu0 %5317, %v5131
    %v5319 = vpop.permute.xlu0 %5318
    %5321 = vset.pattern.permute.xlu0 1
    %5322 = vperm.xlu0 %5321, %v5132
    %v5323 = vpop.permute.xlu0 %5322
    %v5325 = vmul.f32 %v5263, %v5133
    %v5326 = vmul.f32 %v5267, %v5134
    %v5327 = vmul.f32 %v5271, %v5135
    %v5328 = vmul.f32 %v5275, %v5136
    %v5329 = vmul.f32 %v5279, %v5137
    %v5330 = vmul.f32 %v5283, %v5138
    %v5331 = vmul.f32 %v5287, %v5139
    %v5332 = vmul.f32 %v5291, %v5140
    %v5333 = vmul.f32 %v5295, %v5141
    %v5334 = vmul.f32 %v5299, %v5142
    %v5335 = vmul.f32 %v5303, %v5143
    %v5336 = vmul.f32 %v5307, %v5144
    %v5337 = vmul.f32 %v5311, %v5145
    %v5338 = vmul.f32 %v5315, %v5146
    %v5339 = vmul.f32 %v5319, %v5147
    %v5340 = vmul.f32 %v5323, %v5148
    %5341 = vset.pattern.permute.xlu0 2
    %5342 = vperm.xlu0 %5341, %v5117
    %v5343 = vpop.permute.xlu0 %5342
    %5345 = vset.pattern.permute.xlu0 2
    %5346 = vperm.xlu0 %5345, %v5118
    %v5347 = vpop.permute.xlu0 %5346
    %5349 = vset.pattern.permute.xlu0 2
    %5350 = vperm.xlu0 %5349, %v5119
    %v5351 = vpop.permute.xlu0 %5350
    %5353 = vset.pattern.permute.xlu0 2
    %5354 = vperm.xlu0 %5353, %v5120
    %v5355 = vpop.permute.xlu0 %5354
    %5357 = vset.pattern.permute.xlu0 2
    %5358 = vperm.xlu0 %5357, %v5121
    %v5359 = vpop.permute.xlu0 %5358
    %5361 = vset.pattern.permute.xlu0 2
    %5362 = vperm.xlu0 %5361, %v5122
    %v5363 = vpop.permute.xlu0 %5362
    %5365 = vset.pattern.permute.xlu0 2
    %5366 = vperm.xlu0 %5365, %v5123
    %v5367 = vpop.permute.xlu0 %5366
    %5369 = vset.pattern.permute.xlu0 2
    %5370 = vperm.xlu0 %5369, %v5124
    %v5371 = vpop.permute.xlu0 %5370
    %5373 = vset.pattern.permute.xlu0 2
    %5374 = vperm.xlu0 %5373, %v5125
    %v5375 = vpop.permute.xlu0 %5374
    %5377 = vset.pattern.permute.xlu0 2
    %5378 = vperm.xlu0 %5377, %v5126
    %v5379 = vpop.permute.xlu0 %5378
    %5381 = vset.pattern.permute.xlu0 2
    %5382 = vperm.xlu0 %5381, %v5127
    %v5383 = vpop.permute.xlu0 %5382
    %5385 = vset.pattern.permute.xlu0 2
    %5386 = vperm.xlu0 %5385, %v5128
    %v5387 = vpop.permute.xlu0 %5386
    %5389 = vset.pattern.permute.xlu0 2
    %5390 = vperm.xlu0 %5389, %v5129
    %v5391 = vpop.permute.xlu0 %5390
    %5393 = vset.pattern.permute.xlu0 2
    %5394 = vperm.xlu0 %5393, %v5130
    %v5395 = vpop.permute.xlu0 %5394
    %5397 = vset.pattern.permute.xlu0 2
    %5398 = vperm.xlu0 %5397, %v5131
    %v5399 = vpop.permute.xlu0 %5398
    %5401 = vset.pattern.permute.xlu0 2
    %5402 = vperm.xlu0 %5401, %v5132
    %v5403 = vpop.permute.xlu0 %5402
    %v5405 = vmul.f32 %v5343, %v5133
    %v5406 = vmul.f32 %v5347, %v5134
    %v5407 = vmul.f32 %v5351, %v5135
    %v5408 = vmul.f32 %v5355, %v5136
    %v5409 = vmul.f32 %v5359, %v5137
    %v5410 = vmul.f32 %v5363, %v5138
    %v5411 = vmul.f32 %v5367, %v5139
    %v5412 = vmul.f32 %v5371, %v5140
    %v5413 = vmul.f32 %v5375, %v5141
    %v5414 = vmul.f32 %v5379, %v5142
    %v5415 = vmul.f32 %v5383, %v5143
    %v5416 = vmul.f32 %v5387, %v5144
    %v5417 = vmul.f32 %v5391, %v5145
    %v5418 = vmul.f32 %v5395, %v5146
    %v5419 = vmul.f32 %v5399, %v5147
    %v5420 = vmul.f32 %v5403, %v5148
    %5421 = vset.pattern.permute.xlu0 3
    %5422 = vperm.xlu0 %5421, %v5117
    %v5423 = vpop.permute.xlu0 %5422
    %5425 = vset.pattern.permute.xlu0 3
    %5426 = vperm.xlu0 %5425, %v5118
    %v5427 = vpop.permute.xlu0 %5426
    %5429 = vset.pattern.permute.xlu0 3
    %5430 = vperm.xlu0 %5429, %v5119
    %v5431 = vpop.permute.xlu0 %5430
    %5433 = vset.pattern.permute.xlu0 3
    %5434 = vperm.xlu0 %5433, %v5120
    %v5435 = vpop.permute.xlu0 %5434
    %5437 = vset.pattern.permute.xlu0 3
    %5438 = vperm.xlu0 %5437, %v5121
    %v5439 = vpop.permute.xlu0 %5438
    %5441 = vset.pattern.permute.xlu0 3
    %5442 = vperm.xlu0 %5441, %v5122
    %v5443 = vpop.permute.xlu0 %5442
    %5445 = vset.pattern.permute.xlu0 3
    %5446 = vperm.xlu0 %5445, %v5123
    %v5447 = vpop.permute.xlu0 %5446
    %5449 = vset.pattern.permute.xlu0 3
    %5450 = vperm.xlu0 %5449, %v5124
    %v5451 = vpop.permute.xlu0 %5450
    %5453 = vset.pattern.permute.xlu0 3
    %5454 = vperm.xlu0 %5453, %v5125
    %v5455 = vpop.permute.xlu0 %5454
    %5457 = vset.pattern.permute.xlu0 3
    %5458 = vperm.xlu0 %5457, %v5126
    %v5459 = vpop.permute.xlu0 %5458
    %5461 = vset.pattern.permute.xlu0 3
    %5462 = vperm.xlu0 %5461, %v5127
    %v5463 = vpop.permute.xlu0 %5462
    %5465 = vset.pattern.permute.xlu0 3
    %5466 = vperm.xlu0 %5465, %v5128
    %v5467 = vpop.permute.xlu0 %5466
    %5469 = vset.pattern.permute.xlu0 3
    %5470 = vperm.xlu0 %5469, %v5129
    %v5471 = vpop.permute.xlu0 %5470
    %5473 = vset.pattern.permute.xlu0 3
    %5474 = vperm.xlu0 %5473, %v5130
    %v5475 = vpop.permute.xlu0 %5474
    %5477 = vset.pattern.permute.xlu0 3
    %5478 = vperm.xlu0 %5477, %v5131
    %v5479 = vpop.permute.xlu0 %5478
    %5481 = vset.pattern.permute.xlu0 3
    %5482 = vperm.xlu0 %5481, %v5132
    %v5483 = vpop.permute.xlu0 %5482
    %v5485 = vmul.f32 %v5423, %v5133
    %v5486 = vmul.f32 %v5427, %v5134
    %v5487 = vmul.f32 %v5431, %v5135
    %v5488 = vmul.f32 %v5435, %v5136
    %v5489 = vmul.f32 %v5439, %v5137
    %v5490 = vmul.f32 %v5443, %v5138
    %v5491 = vmul.f32 %v5447, %v5139
    %v5492 = vmul.f32 %v5451, %v5140
    %v5493 = vmul.f32 %v5455, %v5141
    %v5494 = vmul.f32 %v5459, %v5142
    %v5495 = vmul.f32 %v5463, %v5143
    %v5496 = vmul.f32 %v5467, %v5144
    %v5497 = vmul.f32 %v5471, %v5145
    %v5498 = vmul.f32 %v5475, %v5146
    %v5499 = vmul.f32 %v5479, %v5147
    %v5500 = vmul.f32 %v5483, %v5148
    %5517 = vrot.lane.b32.xlu0 %v5325, 64
    %v5518 = vpop.permute.xlu0 %5517
    %5519 = vrot.lane.b32.xlu0 %v5326, 64
    %v5520 = vpop.permute.xlu0 %5519
    %5521 = vrot.lane.b32.xlu0 %v5327, 64
    %v5522 = vpop.permute.xlu0 %5521
    %5523 = vrot.lane.b32.xlu0 %v5328, 64
    %v5524 = vpop.permute.xlu0 %5523
    %5525 = vrot.lane.b32.xlu0 %v5329, 64
    %v5526 = vpop.permute.xlu0 %5525
    %5527 = vrot.lane.b32.xlu0 %v5330, 64
    %v5528 = vpop.permute.xlu0 %5527
    %5529 = vrot.lane.b32.xlu0 %v5331, 64
    %v5530 = vpop.permute.xlu0 %5529
    %5531 = vrot.lane.b32.xlu0 %v5332, 64
    %v5532 = vpop.permute.xlu0 %5531
    %5533 = vrot.lane.b32.xlu0 %v5333, 64
    %v5534 = vpop.permute.xlu0 %5533
    %5535 = vrot.lane.b32.xlu0 %v5334, 64
    %v5536 = vpop.permute.xlu0 %5535
    %5537 = vrot.lane.b32.xlu0 %v5335, 64
    %v5538 = vpop.permute.xlu0 %5537
    %5539 = vrot.lane.b32.xlu0 %v5336, 64
    %v5540 = vpop.permute.xlu0 %5539
    %5541 = vrot.lane.b32.xlu0 %v5337, 64
    %v5542 = vpop.permute.xlu0 %5541
    %5543 = vrot.lane.b32.xlu0 %v5338, 64
    %v5544 = vpop.permute.xlu0 %5543
    %5545 = vrot.lane.b32.xlu0 %v5339, 64
    %v5546 = vpop.permute.xlu0 %5545
    %5547 = vrot.lane.b32.xlu0 %v5340, 64
    %v5548 = vpop.permute.xlu0 %5547
    %5581 = vrot.lane.b32.xlu0 %v5485, 64
    %v5582 = vpop.permute.xlu0 %5581
    %5583 = vrot.lane.b32.xlu0 %v5486, 64
    %v5584 = vpop.permute.xlu0 %5583
    %5585 = vrot.lane.b32.xlu0 %v5487, 64
    %v5586 = vpop.permute.xlu0 %5585
    %5587 = vrot.lane.b32.xlu0 %v5488, 64
    %v5588 = vpop.permute.xlu0 %5587
    %5589 = vrot.lane.b32.xlu0 %v5489, 64
    %v5590 = vpop.permute.xlu0 %5589
    %5591 = vrot.lane.b32.xlu0 %v5490, 64
    %v5592 = vpop.permute.xlu0 %5591
    %5593 = vrot.lane.b32.xlu0 %v5491, 64
    %v5594 = vpop.permute.xlu0 %5593
    %5595 = vrot.lane.b32.xlu0 %v5492, 64
    %v5596 = vpop.permute.xlu0 %5595
    %5597 = vrot.lane.b32.xlu0 %v5493, 64
    %v5598 = vpop.permute.xlu0 %5597
    %5599 = vrot.lane.b32.xlu0 %v5494, 64
    %v5600 = vpop.permute.xlu0 %5599
    %5601 = vrot.lane.b32.xlu0 %v5495, 64
    %v5602 = vpop.permute.xlu0 %5601
    %5603 = vrot.lane.b32.xlu0 %v5496, 64
    %v5604 = vpop.permute.xlu0 %5603
    %5605 = vrot.lane.b32.xlu0 %v5497, 64
    %v5606 = vpop.permute.xlu0 %5605
    %5607 = vrot.lane.b32.xlu0 %v5498, 64
    %v5608 = vpop.permute.xlu0 %5607
    %5609 = vrot.lane.b32.xlu0 %v5499, 64
    %v5610 = vpop.permute.xlu0 %5609
    %5611 = vrot.lane.b32.xlu0 %v5500, 64
    %v5612 = vpop.permute.xlu0 %5611
    %v5629 = vsel %vm103, %v5245, %v5518
    %v5630 = vsel %vm103, %v5246, %v5520
    %v5631 = vsel %vm103, %v5247, %v5522
    %v5632 = vsel %vm103, %v5248, %v5524
    %v5633 = vsel %vm103, %v5249, %v5526
    %v5634 = vsel %vm103, %v5250, %v5528
    %v5635 = vsel %vm103, %v5251, %v5530
    %v5636 = vsel %vm103, %v5252, %v5532
    %v5637 = vsel %vm103, %v5253, %v5534
    %v5638 = vsel %vm103, %v5254, %v5536
    %v5639 = vsel %vm103, %v5255, %v5538
    %v5640 = vsel %vm103, %v5256, %v5540
    %v5641 = vsel %vm103, %v5257, %v5542
    %v5642 = vsel %vm103, %v5258, %v5544
    %v5643 = vsel %vm103, %v5259, %v5546
    %v5644 = vsel %vm103, %v5260, %v5548
    %v5645 = vsel %vm103, %v5405, %v5582
    %v5646 = vsel %vm103, %v5406, %v5584
    %v5647 = vsel %vm103, %v5407, %v5586
    %v5648 = vsel %vm103, %v5408, %v5588
    %v5649 = vsel %vm103, %v5409, %v5590
    %v5650 = vsel %vm103, %v5410, %v5592
    %v5651 = vsel %vm103, %v5411, %v5594
    %v5652 = vsel %vm103, %v5412, %v5596
    %v5653 = vsel %vm103, %v5413, %v5598
    %v5654 = vsel %vm103, %v5414, %v5600
    %v5655 = vsel %vm103, %v5415, %v5602
    %v5656 = vsel %vm103, %v5416, %v5604
    %v5657 = vsel %vm103, %v5417, %v5606
    %v5658 = vsel %vm103, %v5418, %v5608
    %v5659 = vsel %vm103, %v5419, %v5610
    %v5660 = vsel %vm103, %v5420, %v5612
    %v5661 = vpack.c.bf16 %v5630, %v5629
    %v5662 = vpack.c.bf16 %v5646, %v5645
    %v5663 = vpack.c.bf16 %v5632, %v5631
    %v5664 = vpack.c.bf16 %v5648, %v5647
    %v5665 = vpack.c.bf16 %v5634, %v5633
    %v5666 = vpack.c.bf16 %v5650, %v5649
    %v5667 = vpack.c.bf16 %v5636, %v5635
    %v5668 = vpack.c.bf16 %v5652, %v5651
    %v5669 = vpack.c.bf16 %v5638, %v5637
    %v5670 = vpack.c.bf16 %v5654, %v5653
    %v5671 = vpack.c.bf16 %v5640, %v5639
    %v5672 = vpack.c.bf16 %v5656, %v5655
    %v5673 = vpack.c.bf16 %v5642, %v5641
    %v5674 = vpack.c.bf16 %v5658, %v5657
    %v5675 = vpack.c.bf16 %v5644, %v5643
    %v5676 = vpack.c.bf16 %v5660, %v5659
    %v5677 = vunpack.c.l.bf16 %v5661
    %v5678 = vunpack.c.l.bf16 %v5662
    %v5679 = vunpack.c.h.bf16 %v5661
    %v5680 = vunpack.c.h.bf16 %v5662
    %v5681 = vunpack.c.l.bf16 %v5663
    %v5682 = vunpack.c.l.bf16 %v5664
    %v5683 = vunpack.c.h.bf16 %v5663
    %v5684 = vunpack.c.h.bf16 %v5664
    %v5685 = vunpack.c.l.bf16 %v5665
    %v5686 = vunpack.c.l.bf16 %v5666
    %v5687 = vunpack.c.h.bf16 %v5665
    %v5688 = vunpack.c.h.bf16 %v5666
    %v5689 = vunpack.c.l.bf16 %v5667
    %v5690 = vunpack.c.l.bf16 %v5668
    %v5691 = vunpack.c.h.bf16 %v5667
    %v5692 = vunpack.c.h.bf16 %v5668
    %v5693 = vunpack.c.l.bf16 %v5669
    %v5694 = vunpack.c.l.bf16 %v5670
    %v5695 = vunpack.c.h.bf16 %v5669
    %v5696 = vunpack.c.h.bf16 %v5670
    %v5697 = vunpack.c.l.bf16 %v5671
    %v5698 = vunpack.c.l.bf16 %v5672
    %v5699 = vunpack.c.h.bf16 %v5671
    %v5700 = vunpack.c.h.bf16 %v5672
    %v5701 = vunpack.c.l.bf16 %v5673
    %v5702 = vunpack.c.l.bf16 %v5674
    %v5703 = vunpack.c.h.bf16 %v5673
    %v5704 = vunpack.c.h.bf16 %v5674
    %v5705 = vunpack.c.l.bf16 %v5675
    %v5706 = vunpack.c.l.bf16 %v5676
    %v5707 = vunpack.c.h.bf16 %v5675
    %v5708 = vunpack.c.h.bf16 %v5676
    %v5709 = vsub.f32 %v5629, %v5677
    %v5710 = vsub.f32 %v5645, %v5678
    %v5711 = vsub.f32 %v5630, %v5679
    %v5712 = vsub.f32 %v5646, %v5680
    %v5713 = vsub.f32 %v5631, %v5681
    %v5714 = vsub.f32 %v5647, %v5682
    %v5715 = vsub.f32 %v5632, %v5683
    %v5716 = vsub.f32 %v5648, %v5684
    %v5717 = vsub.f32 %v5633, %v5685
    %v5718 = vsub.f32 %v5649, %v5686
    %v5719 = vsub.f32 %v5634, %v5687
    %v5720 = vsub.f32 %v5650, %v5688
    %v5721 = vsub.f32 %v5635, %v5689
    %v5722 = vsub.f32 %v5651, %v5690
    %v5723 = vsub.f32 %v5636, %v5691
    %v5724 = vsub.f32 %v5652, %v5692
    %v5725 = vsub.f32 %v5637, %v5693
    %v5726 = vsub.f32 %v5653, %v5694
    %v5727 = vsub.f32 %v5638, %v5695
    %v5728 = vsub.f32 %v5654, %v5696
    %v5729 = vsub.f32 %v5639, %v5697
    %v5730 = vsub.f32 %v5655, %v5698
    %v5731 = vsub.f32 %v5640, %v5699
    %v5732 = vsub.f32 %v5656, %v5700
    %v5733 = vsub.f32 %v5641, %v5701
    %v5734 = vsub.f32 %v5657, %v5702
    %v5735 = vsub.f32 %v5642, %v5703
    %v5736 = vsub.f32 %v5658, %v5704
    %v5737 = vsub.f32 %v5643, %v5705
    %v5738 = vsub.f32 %v5659, %v5706
    %v5739 = vsub.f32 %v5644, %v5707
    %v5740 = vsub.f32 %v5660, %v5708
    %v5741 = vpack.c.bf16 %v5711, %v5709
    %v5742 = vpack.c.bf16 %v5712, %v5710
    %v5743 = vpack.c.bf16 %v5715, %v5713
    %v5744 = vpack.c.bf16 %v5716, %v5714
    %v5745 = vpack.c.bf16 %v5719, %v5717
    %v5746 = vpack.c.bf16 %v5720, %v5718
    %v5747 = vpack.c.bf16 %v5723, %v5721
    %v5748 = vpack.c.bf16 %v5724, %v5722
    %v5749 = vpack.c.bf16 %v5727, %v5725
    %v5750 = vpack.c.bf16 %v5728, %v5726
    %v5751 = vpack.c.bf16 %v5731, %v5729
    %v5752 = vpack.c.bf16 %v5732, %v5730
    %v5753 = vpack.c.bf16 %v5735, %v5733
    %v5754 = vpack.c.bf16 %v5736, %v5734
    %v5755 = vpack.c.bf16 %v5739, %v5737
    %v5756 = vpack.c.bf16 %v5740, %v5738
    %5757 = vmatprep.subr.bf16.mxu0 %v5756
    %5758 = vmatpush1.bf16.msra.mxu0 %v5755
    %5759 = vmatprep.subr.bf16.mxu0 %v5754
    %5760 = vmatpush1.bf16.msra.mxu0 %v5753
    %5761 = vmatprep.subr.bf16.mxu0 %v5752
    %5762 = vmatpush1.bf16.msra.mxu0 %v5751
    %5763 = vmatprep.subr.bf16.mxu0 %v5750
    %5764 = vmatpush1.bf16.msra.mxu0 %v5749
    %5765 = vmatprep.subr.bf16.mxu0 %v5748
    %5766 = vmatpush1.bf16.msra.mxu0 %v5747
    %5767 = vmatprep.subr.bf16.mxu0 %v5746
    %5768 = vmatpush1.bf16.msra.mxu0 %v5745
    %5769 = vmatprep.subr.bf16.mxu0 %v5744
    %5770 = vmatpush1.bf16.msra.mxu0 %v5743
    %5771 = vmatprep.subr.bf16.mxu0 %v5742
    %5772 = vmatpush1.bf16.msra.mxu0 %v5741
    %5773 = vmatprep.subr.bf16.mxu0 0
    %5774 = vmatpush2.bf16.msra.mxu0 0
    %5775 = vmatprep.subr.bf16.mxu0 0
    %5776 = vmatpush2.bf16.msra.mxu0 0
    %5777 = vmatprep.subr.bf16.mxu0 0
    %5778 = vmatpush2.bf16.msra.mxu0 0
    %5779 = vmatprep.subr.bf16.mxu0 0
    %5780 = vmatpush2.bf16.msra.mxu0 0
    %5781 = vmatprep.subr.bf16.mxu0 0
    %5782 = vmatpush2.bf16.msra.mxu0 0
    %5783 = vmatprep.subr.bf16.mxu0 0
    %5784 = vmatpush2.bf16.msra.mxu0 0
    %5785 = vmatprep.subr.bf16.mxu0 0
    %5786 = vmatpush2.bf16.msra.mxu0 0
    %5787 = vmatprep.subr.bf16.mxu0 0
    %5788 = vmatpush2.bf16.msra.mxu0 0
    %5789 = vmatprep.mubr.bf16.mxu0 0
    %5790 = vmatmul.mubr.bf16.gmra.mxu0 %v86
    %v5791 = vpop.f32.mrf.mxu0
    %v5792 = vadd.f32 0.0, %v5791
    %v5793 = vpop.f32.mrf.mxu0
    %v5794 = vadd.f32 0.0, %v5793
    %v5795 = vpop.f32.mrf.mxu0
    %v5796 = vadd.f32 0.0, %v5795
    %v5797 = vpop.f32.mrf.mxu0
    %v5798 = vadd.f32 0.0, %v5797
    %5799 = vmatprep.mubr.bf16.mxu0 0
    %5800 = vmatmul.mubr.bf16.gmra.mxu0 %v87
    %v5801 = vpop.f32.mrf.mxu0
    %v5802 = vadd.f32 0.0, %v5801
    %v5803 = vpop.f32.mrf.mxu0
    %v5804 = vadd.f32 0.0, %v5803
    %v5805 = vpop.f32.mrf.mxu0
    %v5806 = vadd.f32 0.0, %v5805
    %v5807 = vpop.f32.mrf.mxu0
    %v5808 = vadd.f32 0.0, %v5807
    %5809 = vmatprep.mubr.bf16.mxu0 0
    %5810 = vmatmul.mubr.bf16.gmra.mxu0 %v88
    %v5811 = vpop.f32.mrf.mxu0
    %v5812 = vadd.f32 0.0, %v5811
    %v5813 = vpop.f32.mrf.mxu0
    %v5814 = vadd.f32 0.0, %v5813
    %v5815 = vpop.f32.mrf.mxu0
    %v5816 = vadd.f32 0.0, %v5815
    %v5817 = vpop.f32.mrf.mxu0
    %v5818 = vadd.f32 0.0, %v5817
    %5819 = vmatprep.mubr.bf16.mxu0 0
    %5820 = vmatmul.mubr.bf16.gmra.mxu0 %v89
    %v5821 = vpop.f32.mrf.mxu0
    %v5822 = vadd.f32 0.0, %v5821
    %v5823 = vpop.f32.mrf.mxu0
    %v5824 = vadd.f32 0.0, %v5823
    %v5825 = vpop.f32.mrf.mxu0
    %v5826 = vadd.f32 0.0, %v5825
    %v5827 = vpop.f32.mrf.mxu0
    %v5828 = vadd.f32 0.0, %v5827
    %5829 = vmatprep.mubr.bf16.mxu0 0
    %5830 = vmatmul.mubr.bf16.gmra.mxu0 %v90
    %v5831 = vpop.f32.mrf.mxu0
    %v5832 = vadd.f32 0.0, %v5831
    %v5833 = vpop.f32.mrf.mxu0
    %v5834 = vadd.f32 0.0, %v5833
    %v5835 = vpop.f32.mrf.mxu0
    %v5836 = vadd.f32 0.0, %v5835
    %v5837 = vpop.f32.mrf.mxu0
    %v5838 = vadd.f32 0.0, %v5837
    %5839 = vmatprep.mubr.bf16.mxu0 0
    %5840 = vmatmul.mubr.bf16.gmra.mxu0 %v91
    %v5841 = vpop.f32.mrf.mxu0
    %v5842 = vadd.f32 0.0, %v5841
    %v5843 = vpop.f32.mrf.mxu0
    %v5844 = vadd.f32 0.0, %v5843
    %v5845 = vpop.f32.mrf.mxu0
    %v5846 = vadd.f32 0.0, %v5845
    %v5847 = vpop.f32.mrf.mxu0
    %v5848 = vadd.f32 0.0, %v5847
    %5849 = vmatprep.mubr.bf16.mxu0 0
    %5850 = vmatmul.mubr.bf16.gmra.mxu0 %v92
    %v5851 = vpop.f32.mrf.mxu0
    %v5852 = vadd.f32 0.0, %v5851
    %v5853 = vpop.f32.mrf.mxu0
    %v5854 = vadd.f32 0.0, %v5853
    %v5855 = vpop.f32.mrf.mxu0
    %v5856 = vadd.f32 0.0, %v5855
    %v5857 = vpop.f32.mrf.mxu0
    %v5858 = vadd.f32 0.0, %v5857
    %5859 = vmatprep.mubr.bf16.mxu0 0
    %5860 = vmatmul.mubr.bf16.gmra.mxu0 %v93
    %v5861 = vpop.f32.mrf.mxu0
    %v5862 = vadd.f32 0.0, %v5861
    %v5863 = vpop.f32.mrf.mxu0
    %v5864 = vadd.f32 0.0, %v5863
    %v5865 = vpop.f32.mrf.mxu0
    %v5866 = vadd.f32 0.0, %v5865
    %v5867 = vpop.f32.mrf.mxu0
    %v5868 = vadd.f32 0.0, %v5867
    %5869 = vdwg.mxu0
    %5870 = vmatprep.subr.bf16.mxu0 %v5676
    %5871 = vmatpush1.bf16.msra.mxu0 %v5675
    %5872 = vmatprep.subr.bf16.mxu0 %v5674
    %5873 = vmatpush1.bf16.msra.mxu0 %v5673
    %5874 = vmatprep.subr.bf16.mxu0 %v5672
    %5875 = vmatpush1.bf16.msra.mxu0 %v5671
    %5876 = vmatprep.subr.bf16.mxu0 %v5670
    %5877 = vmatpush1.bf16.msra.mxu0 %v5669
    %5878 = vmatprep.subr.bf16.mxu0 %v5668
    %5879 = vmatpush1.bf16.msra.mxu0 %v5667
    %5880 = vmatprep.subr.bf16.mxu0 %v5666
    %5881 = vmatpush1.bf16.msra.mxu0 %v5665
    %5882 = vmatprep.subr.bf16.mxu0 %v5664
    %5883 = vmatpush1.bf16.msra.mxu0 %v5663
    %5884 = vmatprep.subr.bf16.mxu0 %v5662
    %5885 = vmatpush1.bf16.msra.mxu0 %v5661
    %5886 = vmatprep.subr.bf16.mxu0 0
    %5887 = vmatpush2.bf16.msra.mxu0 0
    %5888 = vmatprep.subr.bf16.mxu0 0
    %5889 = vmatpush2.bf16.msra.mxu0 0
    %5890 = vmatprep.subr.bf16.mxu0 0
    %5891 = vmatpush2.bf16.msra.mxu0 0
    %5892 = vmatprep.subr.bf16.mxu0 0
    %5893 = vmatpush2.bf16.msra.mxu0 0
    %5894 = vmatprep.subr.bf16.mxu0 0
    %5895 = vmatpush2.bf16.msra.mxu0 0
    %5896 = vmatprep.subr.bf16.mxu0 0
    %5897 = vmatpush2.bf16.msra.mxu0 0
    %5898 = vmatprep.subr.bf16.mxu0 0
    %5899 = vmatpush2.bf16.msra.mxu0 0
    %5900 = vmatprep.subr.bf16.mxu0 0
    %5901 = vmatpush2.bf16.msra.mxu0 0
    %5902 = vmatprep.mubr.bf16.mxu0 0
    %5903 = vmatmul.mubr.bf16.gmra.mxu0 %v86
    %v5904 = vpop.f32.mrf.mxu0
    %v5905 = vadd.f32 %v5792, %v5904
    %v5906 = vpop.f32.mrf.mxu0
    %v5907 = vadd.f32 %v5794, %v5906
    %v5908 = vpop.f32.mrf.mxu0
    %v5909 = vadd.f32 %v5796, %v5908
    %v5910 = vpop.f32.mrf.mxu0
    %v5911 = vadd.f32 %v5798, %v5910
    %5912 = vmatprep.mubr.bf16.mxu0 0
    %5913 = vmatmul.mubr.bf16.gmra.mxu0 %v87
    %v5914 = vpop.f32.mrf.mxu0
    %v5915 = vadd.f32 %v5802, %v5914
    %v5916 = vpop.f32.mrf.mxu0
    %v5917 = vadd.f32 %v5804, %v5916
    %v5918 = vpop.f32.mrf.mxu0
    %v5919 = vadd.f32 %v5806, %v5918
    %v5920 = vpop.f32.mrf.mxu0
    %v5921 = vadd.f32 %v5808, %v5920
    %5922 = vmatprep.mubr.bf16.mxu0 0
    %5923 = vmatmul.mubr.bf16.gmra.mxu0 %v88
    %v5924 = vpop.f32.mrf.mxu0
    %v5925 = vadd.f32 %v5812, %v5924
    %v5926 = vpop.f32.mrf.mxu0
    %v5927 = vadd.f32 %v5814, %v5926
    %v5928 = vpop.f32.mrf.mxu0
    %v5929 = vadd.f32 %v5816, %v5928
    %v5930 = vpop.f32.mrf.mxu0
    %v5931 = vadd.f32 %v5818, %v5930
    %5932 = vmatprep.mubr.bf16.mxu0 0
    %5933 = vmatmul.mubr.bf16.gmra.mxu0 %v89
    %v5934 = vpop.f32.mrf.mxu0
    %v5935 = vadd.f32 %v5822, %v5934
    %v5936 = vpop.f32.mrf.mxu0
    %v5937 = vadd.f32 %v5824, %v5936
    %v5938 = vpop.f32.mrf.mxu0
    %v5939 = vadd.f32 %v5826, %v5938
    %v5940 = vpop.f32.mrf.mxu0
    %v5941 = vadd.f32 %v5828, %v5940
    %5942 = vmatprep.mubr.bf16.mxu0 0
    %5943 = vmatmul.mubr.bf16.gmra.mxu0 %v90
    %v5944 = vpop.f32.mrf.mxu0
    %v5945 = vadd.f32 %v5832, %v5944
    %v5946 = vpop.f32.mrf.mxu0
    %v5947 = vadd.f32 %v5834, %v5946
    %v5948 = vpop.f32.mrf.mxu0
    %v5949 = vadd.f32 %v5836, %v5948
    %v5950 = vpop.f32.mrf.mxu0
    %v5951 = vadd.f32 %v5838, %v5950
    %5952 = vmatprep.mubr.bf16.mxu0 0
    %5953 = vmatmul.mubr.bf16.gmra.mxu0 %v91
    %v5954 = vpop.f32.mrf.mxu0
    %v5955 = vadd.f32 %v5842, %v5954
    %v5956 = vpop.f32.mrf.mxu0
    %v5957 = vadd.f32 %v5844, %v5956
    %v5958 = vpop.f32.mrf.mxu0
    %v5959 = vadd.f32 %v5846, %v5958
    %v5960 = vpop.f32.mrf.mxu0
    %v5961 = vadd.f32 %v5848, %v5960
    %5962 = vmatprep.mubr.bf16.mxu0 0
    %5963 = vmatmul.mubr.bf16.gmra.mxu0 %v92
    %v5964 = vpop.f32.mrf.mxu0
    %v5965 = vadd.f32 %v5852, %v5964
    %v5966 = vpop.f32.mrf.mxu0
    %v5967 = vadd.f32 %v5854, %v5966
    %v5968 = vpop.f32.mrf.mxu0
    %v5969 = vadd.f32 %v5856, %v5968
    %v5970 = vpop.f32.mrf.mxu0
    %v5971 = vadd.f32 %v5858, %v5970
    %5972 = vmatprep.mubr.bf16.mxu0 0
    %5973 = vmatmul.mubr.bf16.gmra.mxu0 %v93
    %v5974 = vpop.f32.mrf.mxu0
    %v5975 = vadd.f32 %v5862, %v5974
    %v5976 = vpop.f32.mrf.mxu0
    %v5977 = vadd.f32 %v5864, %v5976
    %v5978 = vpop.f32.mrf.mxu0
    %v5979 = vadd.f32 %v5866, %v5978
    %v5980 = vpop.f32.mrf.mxu0
    %v5981 = vadd.f32 %v5868, %v5980
    %5982 = vdwg.mxu0
    %v5983 = vlaneseq
    %v5984 = vshrl.u32 %v5983, 7
    %v5985 = vsub.s32 0, %v5984
    %v5986 = vrot.slane %v5115, %v5985
    %v5987 = vlaneseq
    %v5988 = vshrl.u32 %v5987, 7
    %v5989 = vsub.s32 0, %v5988
    %v5990 = vrot.slane %v5116, %v5989
    %v5991 = vadd.f32 %v5905, %v5986
    %v5992 = vadd.f32 %v5907, %v5990
    %v5993 = vadd.f32 %v5909, %v5986
    %v5994 = vadd.f32 %v5911, %v5990
    %v5995 = vadd.f32 %v5915, %v5986
    %v5996 = vadd.f32 %v5917, %v5990
    %v5997 = vadd.f32 %v5919, %v5986
    %v5998 = vadd.f32 %v5921, %v5990
    %v5999 = vadd.f32 %v5925, %v5986
    %v6000 = vadd.f32 %v5927, %v5990
    %v6001 = vadd.f32 %v5929, %v5986
    %v6002 = vadd.f32 %v5931, %v5990
    %v6003 = vadd.f32 %v5935, %v5986
    %v6004 = vadd.f32 %v5937, %v5990
    %v6005 = vadd.f32 %v5939, %v5986
    %v6006 = vadd.f32 %v5941, %v5990
    %v6007 = vadd.f32 %v5945, %v5986
    %v6008 = vadd.f32 %v5947, %v5990
    %v6009 = vadd.f32 %v5949, %v5986
    %v6010 = vadd.f32 %v5951, %v5990
    %v6011 = vadd.f32 %v5955, %v5986
    %v6012 = vadd.f32 %v5957, %v5990
    %v6013 = vadd.f32 %v5959, %v5986
    %v6014 = vadd.f32 %v5961, %v5990
    %v6015 = vadd.f32 %v5965, %v5986
    %v6016 = vadd.f32 %v5967, %v5990
    %v6017 = vadd.f32 %v5969, %v5986
    %v6018 = vadd.f32 %v5971, %v5990
    %v6019 = vadd.f32 %v5975, %v5986
    %v6020 = vadd.f32 %v5977, %v5990
    %v6021 = vadd.f32 %v5979, %v5986
    %v6022 = vadd.f32 %v5981, %v5990
    %v6023 = vxor.u32 %v5991, 2147483648
    %v6024 = vxor.u32 %v5992, 2147483648
    %v6025 = vxor.u32 %v5993, 2147483648
    %v6026 = vxor.u32 %v5994, 2147483648
    %v6027 = vxor.u32 %v5995, 2147483648
    %v6028 = vxor.u32 %v5996, 2147483648
    %v6029 = vxor.u32 %v5997, 2147483648
    %v6030 = vxor.u32 %v5998, 2147483648
    %v6031 = vxor.u32 %v5999, 2147483648
    %v6032 = vxor.u32 %v6000, 2147483648
    %v6033 = vxor.u32 %v6001, 2147483648
    %v6034 = vxor.u32 %v6002, 2147483648
    %v6035 = vxor.u32 %v6003, 2147483648
    %v6036 = vxor.u32 %v6004, 2147483648
    %v6037 = vxor.u32 %v6005, 2147483648
    %v6038 = vxor.u32 %v6006, 2147483648
    %v6039 = vxor.u32 %v6007, 2147483648
    %v6040 = vxor.u32 %v6008, 2147483648
    %v6041 = vxor.u32 %v6009, 2147483648
    %v6042 = vxor.u32 %v6010, 2147483648
    %v6043 = vxor.u32 %v6011, 2147483648
    %v6044 = vxor.u32 %v6012, 2147483648
    %v6045 = vxor.u32 %v6013, 2147483648
    %v6046 = vxor.u32 %v6014, 2147483648
    %v6047 = vxor.u32 %v6015, 2147483648
    %v6048 = vxor.u32 %v6016, 2147483648
    %v6049 = vxor.u32 %v6017, 2147483648
    %v6050 = vxor.u32 %v6018, 2147483648
    %v6051 = vxor.u32 %v6019, 2147483648
    %v6052 = vxor.u32 %v6020, 2147483648
    %v6053 = vxor.u32 %v6021, 2147483648
    %v6054 = vxor.u32 %v6022, 2147483648
    %v6055 = vmul.f32 %v6023, 1.442695
    %v6056 = vpow.pop %v6055
    %v6057 = vmul.f32 %v6024, 1.442695
    %v6058 = vpow.pop %v6057
    %v6059 = vmul.f32 %v6025, 1.442695
    %v6060 = vpow.pop %v6059
    %v6061 = vmul.f32 %v6026, 1.442695
    %v6062 = vpow.pop %v6061
    %v6063 = vmul.f32 %v6027, 1.442695
    %v6064 = vpow.pop %v6063
    %v6065 = vmul.f32 %v6028, 1.442695
    %v6066 = vpow.pop %v6065
    %v6067 = vmul.f32 %v6029, 1.442695
    %v6068 = vpow.pop %v6067
    %v6069 = vmul.f32 %v6030, 1.442695
    %v6070 = vpow.pop %v6069
    %v6071 = vmul.f32 %v6031, 1.442695
    %v6072 = vpow.pop %v6071
    %v6073 = vmul.f32 %v6032, 1.442695
    %v6074 = vpow.pop %v6073
    %v6075 = vmul.f32 %v6033, 1.442695
    %v6076 = vpow.pop %v6075
    %v6077 = vmul.f32 %v6034, 1.442695
    %v6078 = vpow.pop %v6077
    %v6079 = vmul.f32 %v6035, 1.442695
    %v6080 = vpow.pop %v6079
    %v6081 = vmul.f32 %v6036, 1.442695
    %v6082 = vpow.pop %v6081
    %v6083 = vmul.f32 %v6037, 1.442695
    %v6084 = vpow.pop %v6083
    %v6085 = vmul.f32 %v6038, 1.442695
    %v6086 = vpow.pop %v6085
    %v6087 = vmul.f32 %v6039, 1.442695
    %v6088 = vpow.pop %v6087
    %v6089 = vmul.f32 %v6040, 1.442695
    %v6090 = vpow.pop %v6089
    %v6091 = vmul.f32 %v6041, 1.442695
    %v6092 = vpow.pop %v6091
    %v6093 = vmul.f32 %v6042, 1.442695
    %v6094 = vpow.pop %v6093
    %v6095 = vmul.f32 %v6043, 1.442695
    %v6096 = vpow.pop %v6095
    %v6097 = vmul.f32 %v6044, 1.442695
    %v6098 = vpow.pop %v6097
    %v6099 = vmul.f32 %v6045, 1.442695
    %v6100 = vpow.pop %v6099
    %v6101 = vmul.f32 %v6046, 1.442695
    %v6102 = vpow.pop %v6101
    %v6103 = vmul.f32 %v6047, 1.442695
    %v6104 = vpow.pop %v6103
    %v6105 = vmul.f32 %v6048, 1.442695
    %v6106 = vpow.pop %v6105
    %v6107 = vmul.f32 %v6049, 1.442695
    %v6108 = vpow.pop %v6107
    %v6109 = vmul.f32 %v6050, 1.442695
    %v6110 = vpow.pop %v6109
    %v6111 = vmul.f32 %v6051, 1.442695
    %v6112 = vpow.pop %v6111
    %v6113 = vmul.f32 %v6052, 1.442695
    %v6114 = vpow.pop %v6113
    %v6115 = vmul.f32 %v6053, 1.442695
    %v6116 = vpow.pop %v6115
    %v6117 = vmul.f32 %v6054, 1.442695
    %v6118 = vpow.pop %v6117
    %v6119 = vadd.f32 %v6056, 1.0
    %v6120 = vadd.f32 %v6058, 1.0
    %v6121 = vadd.f32 %v6060, 1.0
    %v6122 = vadd.f32 %v6062, 1.0
    %v6123 = vadd.f32 %v6064, 1.0
    %v6124 = vadd.f32 %v6066, 1.0
    %v6125 = vadd.f32 %v6068, 1.0
    %v6126 = vadd.f32 %v6070, 1.0
    %v6127 = vadd.f32 %v6072, 1.0
    %v6128 = vadd.f32 %v6074, 1.0
    %v6129 = vadd.f32 %v6076, 1.0
    %v6130 = vadd.f32 %v6078, 1.0
    %v6131 = vadd.f32 %v6080, 1.0
    %v6132 = vadd.f32 %v6082, 1.0
    %v6133 = vadd.f32 %v6084, 1.0
    %v6134 = vadd.f32 %v6086, 1.0
    %v6135 = vadd.f32 %v6088, 1.0
    %v6136 = vadd.f32 %v6090, 1.0
    %v6137 = vadd.f32 %v6092, 1.0
    %v6138 = vadd.f32 %v6094, 1.0
    %v6139 = vadd.f32 %v6096, 1.0
    %v6140 = vadd.f32 %v6098, 1.0
    %v6141 = vadd.f32 %v6100, 1.0
    %v6142 = vadd.f32 %v6102, 1.0
    %v6143 = vadd.f32 %v6104, 1.0
    %v6144 = vadd.f32 %v6106, 1.0
    %v6145 = vadd.f32 %v6108, 1.0
    %v6146 = vadd.f32 %v6110, 1.0
    %v6147 = vadd.f32 %v6112, 1.0
    %v6148 = vadd.f32 %v6114, 1.0
    %v6149 = vadd.f32 %v6116, 1.0
    %v6150 = vadd.f32 %v6118, 1.0
    %v6151 = vrcp.pop %v6119
    %v6152 = vmul.f32 1.0, %v6151
    %v6153 = vrcp.pop %v6120
    %v6154 = vmul.f32 1.0, %v6153
    %v6155 = vrcp.pop %v6121
    %v6156 = vmul.f32 1.0, %v6155
    %v6157 = vrcp.pop %v6122
    %v6158 = vmul.f32 1.0, %v6157
    %v6159 = vrcp.pop %v6123
    %v6160 = vmul.f32 1.0, %v6159
    %v6161 = vrcp.pop %v6124
    %v6162 = vmul.f32 1.0, %v6161
    %v6163 = vrcp.pop %v6125
    %v6164 = vmul.f32 1.0, %v6163
    %v6165 = vrcp.pop %v6126
    %v6166 = vmul.f32 1.0, %v6165
    %v6167 = vrcp.pop %v6127
    %v6168 = vmul.f32 1.0, %v6167
    %v6169 = vrcp.pop %v6128
    %v6170 = vmul.f32 1.0, %v6169
    %v6171 = vrcp.pop %v6129
    %v6172 = vmul.f32 1.0, %v6171
    %v6173 = vrcp.pop %v6130
    %v6174 = vmul.f32 1.0, %v6173
    %v6175 = vrcp.pop %v6131
    %v6176 = vmul.f32 1.0, %v6175
    %v6177 = vrcp.pop %v6132
    %v6178 = vmul.f32 1.0, %v6177
    %v6179 = vrcp.pop %v6133
    %v6180 = vmul.f32 1.0, %v6179
    %v6181 = vrcp.pop %v6134
    %v6182 = vmul.f32 1.0, %v6181
    %v6183 = vrcp.pop %v6135
    %v6184 = vmul.f32 1.0, %v6183
    %v6185 = vrcp.pop %v6136
    %v6186 = vmul.f32 1.0, %v6185
    %v6187 = vrcp.pop %v6137
    %v6188 = vmul.f32 1.0, %v6187
    %v6189 = vrcp.pop %v6138
    %v6190 = vmul.f32 1.0, %v6189
    %v6191 = vrcp.pop %v6139
    %v6192 = vmul.f32 1.0, %v6191
    %v6193 = vrcp.pop %v6140
    %v6194 = vmul.f32 1.0, %v6193
    %v6195 = vrcp.pop %v6141
    %v6196 = vmul.f32 1.0, %v6195
    %v6197 = vrcp.pop %v6142
    %v6198 = vmul.f32 1.0, %v6197
    %v6199 = vrcp.pop %v6143
    %v6200 = vmul.f32 1.0, %v6199
    %v6201 = vrcp.pop %v6144
    %v6202 = vmul.f32 1.0, %v6201
    %v6203 = vrcp.pop %v6145
    %v6204 = vmul.f32 1.0, %v6203
    %v6205 = vrcp.pop %v6146
    %v6206 = vmul.f32 1.0, %v6205
    %v6207 = vrcp.pop %v6147
    %v6208 = vmul.f32 1.0, %v6207
    %v6209 = vrcp.pop %v6148
    %v6210 = vmul.f32 1.0, %v6209
    %v6211 = vrcp.pop %v6149
    %v6212 = vmul.f32 1.0, %v6211
    %v6213 = vrcp.pop %v6150
    %v6214 = vmul.f32 1.0, %v6213
    %v6215 = vmul.f32 %v6152, %v5149
    %v6216 = vmul.f32 %v6156, %v5150
    %v6217 = vmul.f32 %v6160, %v5151
    %v6218 = vmul.f32 %v6164, %v5152
    %v6219 = vmul.f32 %v6168, %v5153
    %v6220 = vmul.f32 %v6172, %v5154
    %v6221 = vmul.f32 %v6176, %v5155
    %v6222 = vmul.f32 %v6180, %v5156
    %v6223 = vmul.f32 %v6184, %v5157
    %v6224 = vmul.f32 %v6188, %v5158
    %v6225 = vmul.f32 %v6192, %v5159
    %v6226 = vmul.f32 %v6196, %v5160
    %v6227 = vmul.f32 %v6200, %v5161
    %v6228 = vmul.f32 %v6204, %v5162
    %v6229 = vmul.f32 %v6208, %v5163
    %v6230 = vmul.f32 %v6212, %v5164
    %v6231 = vsel %vm103, %v6215, 0.0
    %6232 = vadd.xlane.f32.xlu0 %v6231
    %v6233 = vpop.xlane.xlu0 %6232
    %v6234 = vsel %vm103, %v6216, 0.0
    %6235 = vadd.xlane.f32.xlu0 %v6234
    %v6236 = vpop.xlane.xlu0 %6235
    %v6237 = vsel %vm103, %v6217, 0.0
    %6238 = vadd.xlane.f32.xlu0 %v6237
    %v6239 = vpop.xlane.xlu0 %6238
    %v6240 = vsel %vm103, %v6218, 0.0
    %6241 = vadd.xlane.f32.xlu0 %v6240
    %v6242 = vpop.xlane.xlu0 %6241
    %v6243 = vsel %vm103, %v6219, 0.0
    %6244 = vadd.xlane.f32.xlu0 %v6243
    %v6245 = vpop.xlane.xlu0 %6244
    %v6246 = vsel %vm103, %v6220, 0.0
    %6247 = vadd.xlane.f32.xlu0 %v6246
    %v6248 = vpop.xlane.xlu0 %6247
    %v6249 = vsel %vm103, %v6221, 0.0
    %6250 = vadd.xlane.f32.xlu0 %v6249
    %v6251 = vpop.xlane.xlu0 %6250
    %v6252 = vsel %vm103, %v6222, 0.0
    %6253 = vadd.xlane.f32.xlu0 %v6252
    %v6254 = vpop.xlane.xlu0 %6253
    %v6255 = vsel %vm103, %v6223, 0.0
    %6256 = vadd.xlane.f32.xlu0 %v6255
    %v6257 = vpop.xlane.xlu0 %6256
    %v6258 = vsel %vm103, %v6224, 0.0
    %6259 = vadd.xlane.f32.xlu0 %v6258
    %v6260 = vpop.xlane.xlu0 %6259
    %v6261 = vsel %vm103, %v6225, 0.0
    %6262 = vadd.xlane.f32.xlu0 %v6261
    %v6263 = vpop.xlane.xlu0 %6262
    %v6264 = vsel %vm103, %v6226, 0.0
    %6265 = vadd.xlane.f32.xlu0 %v6264
    %v6266 = vpop.xlane.xlu0 %6265
    %v6267 = vsel %vm103, %v6227, 0.0
    %6268 = vadd.xlane.f32.xlu0 %v6267
    %v6269 = vpop.xlane.xlu0 %6268
    %v6270 = vsel %vm103, %v6228, 0.0
    %6271 = vadd.xlane.f32.xlu0 %v6270
    %v6272 = vpop.xlane.xlu0 %6271
    %v6273 = vsel %vm103, %v6229, 0.0
    %6274 = vadd.xlane.f32.xlu0 %v6273
    %v6275 = vpop.xlane.xlu0 %6274
    %v6276 = vsel %vm103, %v6230, 0.0
    %6277 = vadd.xlane.f32.xlu0 %v6276
    %v6278 = vpop.xlane.xlu0 %6277
    %6295 = vrot.lane.b32.xlu0 %v5149, 64
    %v6296 = vpop.permute.xlu0 %6295
    %6297 = vrot.lane.b32.xlu0 %v5150, 64
    %v6298 = vpop.permute.xlu0 %6297
    %6299 = vrot.lane.b32.xlu0 %v5151, 64
    %v6300 = vpop.permute.xlu0 %6299
    %6301 = vrot.lane.b32.xlu0 %v5152, 64
    %v6302 = vpop.permute.xlu0 %6301
    %6303 = vrot.lane.b32.xlu0 %v5153, 64
    %v6304 = vpop.permute.xlu0 %6303
    %6305 = vrot.lane.b32.xlu0 %v5154, 64
    %v6306 = vpop.permute.xlu0 %6305
    %6307 = vrot.lane.b32.xlu0 %v5155, 64
    %v6308 = vpop.permute.xlu0 %6307
    %6309 = vrot.lane.b32.xlu0 %v5156, 64
    %v6310 = vpop.permute.xlu0 %6309
    %6311 = vrot.lane.b32.xlu0 %v5157, 64
    %v6312 = vpop.permute.xlu0 %6311
    %6313 = vrot.lane.b32.xlu0 %v5158, 64
    %v6314 = vpop.permute.xlu0 %6313
    %6315 = vrot.lane.b32.xlu0 %v5159, 64
    %v6316 = vpop.permute.xlu0 %6315
    %6317 = vrot.lane.b32.xlu0 %v5160, 64
    %v6318 = vpop.permute.xlu0 %6317
    %6319 = vrot.lane.b32.xlu0 %v5161, 64
    %v6320 = vpop.permute.xlu0 %6319
    %6321 = vrot.lane.b32.xlu0 %v5162, 64
    %v6322 = vpop.permute.xlu0 %6321
    %6323 = vrot.lane.b32.xlu0 %v5163, 64
    %v6324 = vpop.permute.xlu0 %6323
    %6325 = vrot.lane.b32.xlu0 %v5164, 64
    %v6326 = vpop.permute.xlu0 %6325
    %v6343 = vmul.f32 %v6152, %v6296
    %v6344 = vmul.f32 %v6156, %v6298
    %v6345 = vmul.f32 %v6160, %v6300
    %v6346 = vmul.f32 %v6164, %v6302
    %v6347 = vmul.f32 %v6168, %v6304
    %v6348 = vmul.f32 %v6172, %v6306
    %v6349 = vmul.f32 %v6176, %v6308
    %v6350 = vmul.f32 %v6180, %v6310
    %v6351 = vmul.f32 %v6184, %v6312
    %v6352 = vmul.f32 %v6188, %v6314
    %v6353 = vmul.f32 %v6192, %v6316
    %v6354 = vmul.f32 %v6196, %v6318
    %v6355 = vmul.f32 %v6200, %v6320
    %v6356 = vmul.f32 %v6204, %v6322
    %v6357 = vmul.f32 %v6208, %v6324
    %v6358 = vmul.f32 %v6212, %v6326
    %6375 = vrot.lane.b32.xlu0 %v6343, 64
    %v6376 = vpop.permute.xlu0 %6375
    %6377 = vrot.lane.b32.xlu0 %v6344, 64
    %v6378 = vpop.permute.xlu0 %6377
    %6379 = vrot.lane.b32.xlu0 %v6345, 64
    %v6380 = vpop.permute.xlu0 %6379
    %6381 = vrot.lane.b32.xlu0 %v6346, 64
    %v6382 = vpop.permute.xlu0 %6381
    %6383 = vrot.lane.b32.xlu0 %v6347, 64
    %v6384 = vpop.permute.xlu0 %6383
    %6385 = vrot.lane.b32.xlu0 %v6348, 64
    %v6386 = vpop.permute.xlu0 %6385
    %6387 = vrot.lane.b32.xlu0 %v6349, 64
    %v6388 = vpop.permute.xlu0 %6387
    %6389 = vrot.lane.b32.xlu0 %v6350, 64
    %v6390 = vpop.permute.xlu0 %6389
    %6391 = vrot.lane.b32.xlu0 %v6351, 64
    %v6392 = vpop.permute.xlu0 %6391
    %6393 = vrot.lane.b32.xlu0 %v6352, 64
    %v6394 = vpop.permute.xlu0 %6393
    %6395 = vrot.lane.b32.xlu0 %v6353, 64
    %v6396 = vpop.permute.xlu0 %6395
    %6397 = vrot.lane.b32.xlu0 %v6354, 64
    %v6398 = vpop.permute.xlu0 %6397
    %6399 = vrot.lane.b32.xlu0 %v6355, 64
    %v6400 = vpop.permute.xlu0 %6399
    %6401 = vrot.lane.b32.xlu0 %v6356, 64
    %v6402 = vpop.permute.xlu0 %6401
    %6403 = vrot.lane.b32.xlu0 %v6357, 64
    %v6404 = vpop.permute.xlu0 %6403
    %6405 = vrot.lane.b32.xlu0 %v6358, 64
    %v6406 = vpop.permute.xlu0 %6405
    %v6423 = vsel %vm103, %v6376, 0.0
    %6424 = vadd.xlane.f32.xlu0 %v6423
    %v6425 = vpop.xlane.xlu0 %6424
    %v6426 = vsel %vm103, %v6378, 0.0
    %6427 = vadd.xlane.f32.xlu0 %v6426
    %v6428 = vpop.xlane.xlu0 %6427
    %v6429 = vsel %vm103, %v6380, 0.0
    %6430 = vadd.xlane.f32.xlu0 %v6429
    %v6431 = vpop.xlane.xlu0 %6430
    %v6432 = vsel %vm103, %v6382, 0.0
    %6433 = vadd.xlane.f32.xlu0 %v6432
    %v6434 = vpop.xlane.xlu0 %6433
    %v6435 = vsel %vm103, %v6384, 0.0
    %6436 = vadd.xlane.f32.xlu0 %v6435
    %v6437 = vpop.xlane.xlu0 %6436
    %v6438 = vsel %vm103, %v6386, 0.0
    %6439 = vadd.xlane.f32.xlu0 %v6438
    %v6440 = vpop.xlane.xlu0 %6439
    %v6441 = vsel %vm103, %v6388, 0.0
    %6442 = vadd.xlane.f32.xlu0 %v6441
    %v6443 = vpop.xlane.xlu0 %6442
    %v6444 = vsel %vm103, %v6390, 0.0
    %6445 = vadd.xlane.f32.xlu0 %v6444
    %v6446 = vpop.xlane.xlu0 %6445
    %v6447 = vsel %vm103, %v6392, 0.0
    %6448 = vadd.xlane.f32.xlu0 %v6447
    %v6449 = vpop.xlane.xlu0 %6448
    %v6450 = vsel %vm103, %v6394, 0.0
    %6451 = vadd.xlane.f32.xlu0 %v6450
    %v6452 = vpop.xlane.xlu0 %6451
    %v6453 = vsel %vm103, %v6396, 0.0
    %6454 = vadd.xlane.f32.xlu0 %v6453
    %v6455 = vpop.xlane.xlu0 %6454
    %v6456 = vsel %vm103, %v6398, 0.0
    %6457 = vadd.xlane.f32.xlu0 %v6456
    %v6458 = vpop.xlane.xlu0 %6457
    %v6459 = vsel %vm103, %v6400, 0.0
    %6460 = vadd.xlane.f32.xlu0 %v6459
    %v6461 = vpop.xlane.xlu0 %6460
    %v6462 = vsel %vm103, %v6402, 0.0
    %6463 = vadd.xlane.f32.xlu0 %v6462
    %v6464 = vpop.xlane.xlu0 %6463
    %v6465 = vsel %vm103, %v6404, 0.0
    %6466 = vadd.xlane.f32.xlu0 %v6465
    %v6467 = vpop.xlane.xlu0 %6466
    %v6468 = vsel %vm103, %v6406, 0.0
    %6469 = vadd.xlane.f32.xlu0 %v6468
    %v6470 = vpop.xlane.xlu0 %6469
    %v6471 = vmul.f32 %v6154, %v5149
    %v6472 = vmul.f32 %v6158, %v5150
    %v6473 = vmul.f32 %v6162, %v5151
    %v6474 = vmul.f32 %v6166, %v5152
    %v6475 = vmul.f32 %v6170, %v5153
    %v6476 = vmul.f32 %v6174, %v5154
    %v6477 = vmul.f32 %v6178, %v5155
    %v6478 = vmul.f32 %v6182, %v5156
    %v6479 = vmul.f32 %v6186, %v5157
    %v6480 = vmul.f32 %v6190, %v5158
    %v6481 = vmul.f32 %v6194, %v5159
    %v6482 = vmul.f32 %v6198, %v5160
    %v6483 = vmul.f32 %v6202, %v5161
    %v6484 = vmul.f32 %v6206, %v5162
    %v6485 = vmul.f32 %v6210, %v5163
    %v6486 = vmul.f32 %v6214, %v5164
    %v6487 = vsel %vm103, %v6471, 0.0
    %6488 = vadd.xlane.f32.xlu0 %v6487
    %v6489 = vpop.xlane.xlu0 %6488
    %v6490 = vsel %vm103, %v6472, 0.0
    %6491 = vadd.xlane.f32.xlu0 %v6490
    %v6492 = vpop.xlane.xlu0 %6491
    %v6493 = vsel %vm103, %v6473, 0.0
    %6494 = vadd.xlane.f32.xlu0 %v6493
    %v6495 = vpop.xlane.xlu0 %6494
    %v6496 = vsel %vm103, %v6474, 0.0
    %6497 = vadd.xlane.f32.xlu0 %v6496
    %v6498 = vpop.xlane.xlu0 %6497
    %v6499 = vsel %vm103, %v6475, 0.0
    %6500 = vadd.xlane.f32.xlu0 %v6499
    %v6501 = vpop.xlane.xlu0 %6500
    %v6502 = vsel %vm103, %v6476, 0.0
    %6503 = vadd.xlane.f32.xlu0 %v6502
    %v6504 = vpop.xlane.xlu0 %6503
    %v6505 = vsel %vm103, %v6477, 0.0
    %6506 = vadd.xlane.f32.xlu0 %v6505
    %v6507 = vpop.xlane.xlu0 %6506
    %v6508 = vsel %vm103, %v6478, 0.0
    %6509 = vadd.xlane.f32.xlu0 %v6508
    %v6510 = vpop.xlane.xlu0 %6509
    %v6511 = vsel %vm103, %v6479, 0.0
    %6512 = vadd.xlane.f32.xlu0 %v6511
    %v6513 = vpop.xlane.xlu0 %6512
    %v6514 = vsel %vm103, %v6480, 0.0
    %6515 = vadd.xlane.f32.xlu0 %v6514
    %v6516 = vpop.xlane.xlu0 %6515
    %v6517 = vsel %vm103, %v6481, 0.0
    %6518 = vadd.xlane.f32.xlu0 %v6517
    %v6519 = vpop.xlane.xlu0 %6518
    %v6520 = vsel %vm103, %v6482, 0.0
    %6521 = vadd.xlane.f32.xlu0 %v6520
    %v6522 = vpop.xlane.xlu0 %6521
    %v6523 = vsel %vm103, %v6483, 0.0
    %6524 = vadd.xlane.f32.xlu0 %v6523
    %v6525 = vpop.xlane.xlu0 %6524
    %v6526 = vsel %vm103, %v6484, 0.0
    %6527 = vadd.xlane.f32.xlu0 %v6526
    %v6528 = vpop.xlane.xlu0 %6527
    %v6529 = vsel %vm103, %v6485, 0.0
    %6530 = vadd.xlane.f32.xlu0 %v6529
    %v6531 = vpop.xlane.xlu0 %6530
    %v6532 = vsel %vm103, %v6486, 0.0
    %6533 = vadd.xlane.f32.xlu0 %v6532
    %v6534 = vpop.xlane.xlu0 %6533
    %v6535 = vmul.f32 %v6154, %v6296
    %v6536 = vmul.f32 %v6158, %v6298
    %v6537 = vmul.f32 %v6162, %v6300
    %v6538 = vmul.f32 %v6166, %v6302
    %v6539 = vmul.f32 %v6170, %v6304
    %v6540 = vmul.f32 %v6174, %v6306
    %v6541 = vmul.f32 %v6178, %v6308
    %v6542 = vmul.f32 %v6182, %v6310
    %v6543 = vmul.f32 %v6186, %v6312
    %v6544 = vmul.f32 %v6190, %v6314
    %v6545 = vmul.f32 %v6194, %v6316
    %v6546 = vmul.f32 %v6198, %v6318
    %v6547 = vmul.f32 %v6202, %v6320
    %v6548 = vmul.f32 %v6206, %v6322
    %v6549 = vmul.f32 %v6210, %v6324
    %v6550 = vmul.f32 %v6214, %v6326
    %6567 = vrot.lane.b32.xlu0 %v6535, 64
    %v6568 = vpop.permute.xlu0 %6567
    %6569 = vrot.lane.b32.xlu0 %v6536, 64
    %v6570 = vpop.permute.xlu0 %6569
    %6571 = vrot.lane.b32.xlu0 %v6537, 64
    %v6572 = vpop.permute.xlu0 %6571
    %6573 = vrot.lane.b32.xlu0 %v6538, 64
    %v6574 = vpop.permute.xlu0 %6573
    %6575 = vrot.lane.b32.xlu0 %v6539, 64
    %v6576 = vpop.permute.xlu0 %6575
    %6577 = vrot.lane.b32.xlu0 %v6540, 64
    %v6578 = vpop.permute.xlu0 %6577
    %6579 = vrot.lane.b32.xlu0 %v6541, 64
    %v6580 = vpop.permute.xlu0 %6579
    %6581 = vrot.lane.b32.xlu0 %v6542, 64
    %v6582 = vpop.permute.xlu0 %6581
    %6583 = vrot.lane.b32.xlu0 %v6543, 64
    %v6584 = vpop.permute.xlu0 %6583
    %6585 = vrot.lane.b32.xlu0 %v6544, 64
    %v6586 = vpop.permute.xlu0 %6585
    %6587 = vrot.lane.b32.xlu0 %v6545, 64
    %v6588 = vpop.permute.xlu0 %6587
    %6589 = vrot.lane.b32.xlu0 %v6546, 64
    %v6590 = vpop.permute.xlu0 %6589
    %6591 = vrot.lane.b32.xlu0 %v6547, 64
    %v6592 = vpop.permute.xlu0 %6591
    %6593 = vrot.lane.b32.xlu0 %v6548, 64
    %v6594 = vpop.permute.xlu0 %6593
    %6595 = vrot.lane.b32.xlu0 %v6549, 64
    %v6596 = vpop.permute.xlu0 %6595
    %6597 = vrot.lane.b32.xlu0 %v6550, 64
    %v6598 = vpop.permute.xlu0 %6597
    %v6615 = vsel %vm103, %v6568, 0.0
    %6616 = vadd.xlane.f32.xlu0 %v6615
    %v6617 = vpop.xlane.xlu0 %6616
    %v6618 = vsel %vm103, %v6570, 0.0
    %6619 = vadd.xlane.f32.xlu0 %v6618
    %v6620 = vpop.xlane.xlu0 %6619
    %v6621 = vsel %vm103, %v6572, 0.0
    %6622 = vadd.xlane.f32.xlu0 %v6621
    %v6623 = vpop.xlane.xlu0 %6622
    %v6624 = vsel %vm103, %v6574, 0.0
    %6625 = vadd.xlane.f32.xlu0 %v6624
    %v6626 = vpop.xlane.xlu0 %6625
    %v6627 = vsel %vm103, %v6576, 0.0
    %6628 = vadd.xlane.f32.xlu0 %v6627
    %v6629 = vpop.xlane.xlu0 %6628
    %v6630 = vsel %vm103, %v6578, 0.0
    %6631 = vadd.xlane.f32.xlu0 %v6630
    %v6632 = vpop.xlane.xlu0 %6631
    %v6633 = vsel %vm103, %v6580, 0.0
    %6634 = vadd.xlane.f32.xlu0 %v6633
    %v6635 = vpop.xlane.xlu0 %6634
    %v6636 = vsel %vm103, %v6582, 0.0
    %6637 = vadd.xlane.f32.xlu0 %v6636
    %v6638 = vpop.xlane.xlu0 %6637
    %v6639 = vsel %vm103, %v6584, 0.0
    %6640 = vadd.xlane.f32.xlu0 %v6639
    %v6641 = vpop.xlane.xlu0 %6640
    %v6642 = vsel %vm103, %v6586, 0.0
    %6643 = vadd.xlane.f32.xlu0 %v6642
    %v6644 = vpop.xlane.xlu0 %6643
    %v6645 = vsel %vm103, %v6588, 0.0
    %6646 = vadd.xlane.f32.xlu0 %v6645
    %v6647 = vpop.xlane.xlu0 %6646
    %v6648 = vsel %vm103, %v6590, 0.0
    %6649 = vadd.xlane.f32.xlu0 %v6648
    %v6650 = vpop.xlane.xlu0 %6649
    %v6651 = vsel %vm103, %v6592, 0.0
    %6652 = vadd.xlane.f32.xlu0 %v6651
    %v6653 = vpop.xlane.xlu0 %6652
    %v6654 = vsel %vm103, %v6594, 0.0
    %6655 = vadd.xlane.f32.xlu0 %v6654
    %v6656 = vpop.xlane.xlu0 %6655
    %v6657 = vsel %vm103, %v6596, 0.0
    %6658 = vadd.xlane.f32.xlu0 %v6657
    %v6659 = vpop.xlane.xlu0 %6658
    %v6660 = vsel %vm103, %v6598, 0.0
    %6661 = vadd.xlane.f32.xlu0 %v6660
    %v6662 = vpop.xlane.xlu0 %6661
    %v6663 = vsel %vm1647, %v6233, %v6425
    %v6664 = vsel %vm1647, %v6236, %v6428
    %v6665 = vsel %vm1647, %v6239, %v6431
    %v6666 = vsel %vm1647, %v6242, %v6434
    %v6667 = vsel %vm1647, %v6245, %v6437
    %v6668 = vsel %vm1647, %v6248, %v6440
    %v6669 = vsel %vm1647, %v6251, %v6443
    %v6670 = vsel %vm1647, %v6254, %v6446
    %v6671 = vsel %vm1647, %v6257, %v6449
    %v6672 = vsel %vm1647, %v6260, %v6452
    %v6673 = vsel %vm1647, %v6263, %v6455
    %v6674 = vsel %vm1647, %v6266, %v6458
    %v6675 = vsel %vm1647, %v6269, %v6461
    %v6676 = vsel %vm1647, %v6272, %v6464
    %v6677 = vsel %vm1647, %v6275, %v6467
    %v6678 = vsel %vm1647, %v6278, %v6470
    %v6679 = vsel %vm1664, %v6663, %v6489
    %v6680 = vsel %vm1664, %v6664, %v6492
    %v6681 = vsel %vm1664, %v6665, %v6495
    %v6682 = vsel %vm1664, %v6666, %v6498
    %v6683 = vsel %vm1664, %v6667, %v6501
    %v6684 = vsel %vm1664, %v6668, %v6504
    %v6685 = vsel %vm1664, %v6669, %v6507
    %v6686 = vsel %vm1664, %v6670, %v6510
    %v6687 = vsel %vm1664, %v6671, %v6513
    %v6688 = vsel %vm1664, %v6672, %v6516
    %v6689 = vsel %vm1664, %v6673, %v6519
    %v6690 = vsel %vm1664, %v6674, %v6522
    %v6691 = vsel %vm1664, %v6675, %v6525
    %v6692 = vsel %vm1664, %v6676, %v6528
    %v6693 = vsel %vm1664, %v6677, %v6531
    %v6694 = vsel %vm1664, %v6678, %v6534
    %v6695 = vsel %vm1681, %v6679, %v6617
    %v6696 = vsel %vm1681, %v6680, %v6620
    %v6697 = vsel %vm1681, %v6681, %v6623
    %v6698 = vsel %vm1681, %v6682, %v6626
    %v6699 = vsel %vm1681, %v6683, %v6629
    %v6700 = vsel %vm1681, %v6684, %v6632
    %v6701 = vsel %vm1681, %v6685, %v6635
    %v6702 = vsel %vm1681, %v6686, %v6638
    %v6703 = vsel %vm1681, %v6687, %v6641
    %v6704 = vsel %vm1681, %v6688, %v6644
    %v6705 = vsel %vm1681, %v6689, %v6647
    %v6706 = vsel %vm1681, %v6690, %v6650
    %v6707 = vsel %vm1681, %v6691, %v6653
    %v6708 = vsel %vm1681, %v6692, %v6656
    %v6709 = vsel %vm1681, %v6693, %v6659
    %v6710 = vsel %vm1681, %v6694, %v6662
    %6711 = vxpose.xlu0.b32.start [1/16] %v6695, 128
    %6712 = vxpose.xlu0.b32.cont [2/16] %v6696, 128
    %6713 = vxpose.xlu0.b32.cont [3/16] %v6697, 128
    %6714 = vxpose.xlu0.b32.cont [4/16] %v6698, 128
    %6715 = vxpose.xlu0.b32.cont [5/16] %v6699, 128
    %6716 = vxpose.xlu0.b32.cont [6/16] %v6700, 128
    %6717 = vxpose.xlu0.b32.cont [7/16] %v6701, 128
    %6718 = vxpose.xlu0.b32.cont [8/16] %v6702, 128
    %6719 = vxpose.xlu0.b32.cont [9/16] %v6703, 128
    %6720 = vxpose.xlu0.b32.cont [10/16] %v6704, 128
    %6721 = vxpose.xlu0.b32.cont [11/16] %v6705, 128
    %6722 = vxpose.xlu0.b32.cont [12/16] %v6706, 128
    %6723 = vxpose.xlu0.b32.cont [13/16] %v6707, 128
    %6724 = vxpose.xlu0.b32.cont [14/16] %v6708, 128
    %6725 = vxpose.xlu0.b32.cont [15/16] %v6709, 128
    %6726 = vxpose.xlu0.b32.end [16/16] %v6710, 128
    %v6727 = vpop.trf.xlu0
    %v6728 = vpop.trf.xlu0
    %v6729 = vpop.trf.xlu0
    %v6730 = vpop.trf.xlu0
    %v6731 = vpop.trf.xlu0
    %v6732 = vpop.trf.xlu0
    %v6733 = vpop.trf.xlu0
    %v6734 = vpop.trf.xlu0
    %v6735 = vpop.trf.xlu0
    %v6736 = vpop.trf.xlu0
    %v6737 = vpop.trf.xlu0
    %v6738 = vpop.trf.xlu0
    %v6739 = vpop.trf.xlu0
    %v6740 = vpop.trf.xlu0
    %v6741 = vpop.trf.xlu0
    %v6742 = vpop.trf.xlu0
    %6743 = vst [vmem:[#allocation2 + $0xc] sm:$0xf] %v6727
    %v6744 = vadd.f32 %v5629, %v5630
    %v6745 = vadd.f32 %v6744, %v5631
    %v6746 = vadd.f32 %v6745, %v5632
    %v6747 = vadd.f32 %v6746, %v5633
    %v6748 = vadd.f32 %v6747, %v5634
    %v6749 = vadd.f32 %v6748, %v5635
    %v6750 = vadd.f32 %v6749, %v5636
    %v6751 = vadd.f32 %v6750, %v5637
    %v6752 = vadd.f32 %v6751, %v5638
    %v6753 = vadd.f32 %v6752, %v5639
    %v6754 = vadd.f32 %v6753, %v5640
    %v6755 = vadd.f32 %v6754, %v5641
    %v6756 = vadd.f32 %v6755, %v5642
    %v6757 = vadd.f32 %v6756, %v5643
    %v6758 = vadd.f32 %v6757, %v5644
    %v6759 = vrot.slane %v6758, 4
    %v6760 = vadd.f32 %v6758, %v6759
    %v6761 = vrot.slane %v6760, 2
    %v6762 = vadd.f32 %v6760, %v6761
    %v6763 = vrot.slane %v6762, 1
    %v6764 = vadd.f32 %v6762, %v6763
    %v6765 = vadd.f32 %v5645, %v5646
    %v6766 = vadd.f32 %v6765, %v5647
    %v6767 = vadd.f32 %v6766, %v5648
    %v6768 = vadd.f32 %v6767, %v5649
    %v6769 = vadd.f32 %v6768, %v5650
    %v6770 = vadd.f32 %v6769, %v5651
    %v6771 = vadd.f32 %v6770, %v5652
    %v6772 = vadd.f32 %v6771, %v5653
    %v6773 = vadd.f32 %v6772, %v5654
    %v6774 = vadd.f32 %v6773, %v5655
    %v6775 = vadd.f32 %v6774, %v5656
    %v6776 = vadd.f32 %v6775, %v5657
    %v6777 = vadd.f32 %v6776, %v5658
    %v6778 = vadd.f32 %v6777, %v5659
    %v6779 = vadd.f32 %v6778, %v5660
    %v6780 = vrot.slane %v6779, 4
    %v6781 = vadd.f32 %v6779, %v6780
    %v6782 = vrot.slane %v6781, 2
    %v6783 = vadd.f32 %v6781, %v6782
    %v6784 = vrot.slane %v6783, 1
    %v6785 = vadd.f32 %v6783, %v6784
    %v6786 = vadd.f32 %v5115, %v6764
    %v6787 = vadd.f32 %v5116, %v6785
    %v6788 = vld [vmem:[%s0 + $0x200] sm:$0xff]
    %v6789 = vld [vmem:[%s0 + $0x208] sm:$0xff]
    %v6790 = vld [vmem:[%s0 + $0x210] sm:$0xff]
    %v6791 = vld [vmem:[%s0 + $0x218] sm:$0xff]
    %v6792 = vld [vmem:[%s0 + $0x220] sm:$0xff]
    %v6793 = vld [vmem:[%s0 + $0x228] sm:$0xff]
    %v6794 = vld [vmem:[%s0 + $0x230] sm:$0xff]
    %v6795 = vld [vmem:[%s0 + $0x238] sm:$0xff]
    %v6796 = vld [vmem:[%s0 + $0x240] sm:$0xff]
    %v6797 = vld [vmem:[%s0 + $0x248] sm:$0xff]
    %v6798 = vld [vmem:[%s0 + $0x250] sm:$0xff]
    %v6799 = vld [vmem:[%s0 + $0x258] sm:$0xff]
    %v6800 = vld [vmem:[%s0 + $0x260] sm:$0xff]
    %v6801 = vld [vmem:[%s0 + $0x268] sm:$0xff]
    %v6802 = vld [vmem:[%s0 + $0x270] sm:$0xff]
    %v6803 = vld [vmem:[%s0 + $0x278] sm:$0xff]
    %v6804 = vld [vmem:[%s1 + $0x200] sm:$0xff]
    %v6805 = vld [vmem:[%s1 + $0x208] sm:$0xff]
    %v6806 = vld [vmem:[%s1 + $0x210] sm:$0xff]
    %v6807 = vld [vmem:[%s1 + $0x218] sm:$0xff]
    %v6808 = vld [vmem:[%s1 + $0x220] sm:$0xff]
    %v6809 = vld [vmem:[%s1 + $0x228] sm:$0xff]
    %v6810 = vld [vmem:[%s1 + $0x230] sm:$0xff]
    %v6811 = vld [vmem:[%s1 + $0x238] sm:$0xff]
    %v6812 = vld [vmem:[%s1 + $0x240] sm:$0xff]
    %v6813 = vld [vmem:[%s1 + $0x248] sm:$0xff]
    %v6814 = vld [vmem:[%s1 + $0x250] sm:$0xff]
    %v6815 = vld [vmem:[%s1 + $0x258] sm:$0xff]
    %v6816 = vld [vmem:[%s1 + $0x260] sm:$0xff]
    %v6817 = vld [vmem:[%s1 + $0x268] sm:$0xff]
    %v6818 = vld [vmem:[%s1 + $0x270] sm:$0xff]
    %v6819 = vld [vmem:[%s1 + $0x278] sm:$0xff]
    %v6820 = vld [vmem:[%s2 + $0x200] sm:$0xff]
    %v6821 = vld [vmem:[%s2 + $0x208] sm:$0xff]
    %v6822 = vld [vmem:[%s2 + $0x210] sm:$0xff]
    %v6823 = vld [vmem:[%s2 + $0x218] sm:$0xff]
    %v6824 = vld [vmem:[%s2 + $0x220] sm:$0xff]
    %v6825 = vld [vmem:[%s2 + $0x228] sm:$0xff]
    %v6826 = vld [vmem:[%s2 + $0x230] sm:$0xff]
    %v6827 = vld [vmem:[%s2 + $0x238] sm:$0xff]
    %v6828 = vld [vmem:[%s2 + $0x240] sm:$0xff]
    %v6829 = vld [vmem:[%s2 + $0x248] sm:$0xff]
    %v6830 = vld [vmem:[%s2 + $0x250] sm:$0xff]
    %v6831 = vld [vmem:[%s2 + $0x258] sm:$0xff]
    %v6832 = vld [vmem:[%s2 + $0x260] sm:$0xff]
    %v6833 = vld [vmem:[%s2 + $0x268] sm:$0xff]
    %v6834 = vld [vmem:[%s2 + $0x270] sm:$0xff]
    %v6835 = vld [vmem:[%s2 + $0x278] sm:$0xff]
    %6837 = vset.pattern.permute.xlu0 0
    %6838 = vperm.xlu0 %6837, %v6788
    %v6839 = vpop.permute.xlu0 %6838
    %6842 = vset.pattern.permute.xlu0 0
    %6843 = vperm.xlu0 %6842, %v6789
    %v6844 = vpop.permute.xlu0 %6843
    %6847 = vset.pattern.permute.xlu0 0
    %6848 = vperm.xlu0 %6847, %v6790
    %v6849 = vpop.permute.xlu0 %6848
    %6852 = vset.pattern.permute.xlu0 0
    %6853 = vperm.xlu0 %6852, %v6791
    %v6854 = vpop.permute.xlu0 %6853
    %6857 = vset.pattern.permute.xlu0 0
    %6858 = vperm.xlu0 %6857, %v6792
    %v6859 = vpop.permute.xlu0 %6858
    %6862 = vset.pattern.permute.xlu0 0
    %6863 = vperm.xlu0 %6862, %v6793
    %v6864 = vpop.permute.xlu0 %6863
    %6867 = vset.pattern.permute.xlu0 0
    %6868 = vperm.xlu0 %6867, %v6794
    %v6869 = vpop.permute.xlu0 %6868
    %6872 = vset.pattern.permute.xlu0 0
    %6873 = vperm.xlu0 %6872, %v6795
    %v6874 = vpop.permute.xlu0 %6873
    %6877 = vset.pattern.permute.xlu0 0
    %6878 = vperm.xlu0 %6877, %v6796
    %v6879 = vpop.permute.xlu0 %6878
    %6882 = vset.pattern.permute.xlu0 0
    %6883 = vperm.xlu0 %6882, %v6797
    %v6884 = vpop.permute.xlu0 %6883
    %6887 = vset.pattern.permute.xlu0 0
    %6888 = vperm.xlu0 %6887, %v6798
    %v6889 = vpop.permute.xlu0 %6888
    %6892 = vset.pattern.permute.xlu0 0
    %6893 = vperm.xlu0 %6892, %v6799
    %v6894 = vpop.permute.xlu0 %6893
    %6897 = vset.pattern.permute.xlu0 0
    %6898 = vperm.xlu0 %6897, %v6800
    %v6899 = vpop.permute.xlu0 %6898
    %6902 = vset.pattern.permute.xlu0 0
    %6903 = vperm.xlu0 %6902, %v6801
    %v6904 = vpop.permute.xlu0 %6903
    %6907 = vset.pattern.permute.xlu0 0
    %6908 = vperm.xlu0 %6907, %v6802
    %v6909 = vpop.permute.xlu0 %6908
    %6912 = vset.pattern.permute.xlu0 0
    %6913 = vperm.xlu0 %6912, %v6803
    %v6914 = vpop.permute.xlu0 %6913
    %v6916 = vmul.f32 %v6839, %v6804
    %v6917 = vmul.f32 %v6844, %v6805
    %v6918 = vmul.f32 %v6849, %v6806
    %v6919 = vmul.f32 %v6854, %v6807
    %v6920 = vmul.f32 %v6859, %v6808
    %v6921 = vmul.f32 %v6864, %v6809
    %v6922 = vmul.f32 %v6869, %v6810
    %v6923 = vmul.f32 %v6874, %v6811
    %v6924 = vmul.f32 %v6879, %v6812
    %v6925 = vmul.f32 %v6884, %v6813
    %v6926 = vmul.f32 %v6889, %v6814
    %v6927 = vmul.f32 %v6894, %v6815
    %v6928 = vmul.f32 %v6899, %v6816
    %v6929 = vmul.f32 %v6904, %v6817
    %v6930 = vmul.f32 %v6909, %v6818
    %v6931 = vmul.f32 %v6914, %v6819
    %6932 = vset.pattern.permute.xlu0 1
    %6933 = vperm.xlu0 %6932, %v6788
    %v6934 = vpop.permute.xlu0 %6933
    %6936 = vset.pattern.permute.xlu0 1
    %6937 = vperm.xlu0 %6936, %v6789
    %v6938 = vpop.permute.xlu0 %6937
    %6940 = vset.pattern.permute.xlu0 1
    %6941 = vperm.xlu0 %6940, %v6790
    %v6942 = vpop.permute.xlu0 %6941
    %6944 = vset.pattern.permute.xlu0 1
    %6945 = vperm.xlu0 %6944, %v6791
    %v6946 = vpop.permute.xlu0 %6945
    %6948 = vset.pattern.permute.xlu0 1
    %6949 = vperm.xlu0 %6948, %v6792
    %v6950 = vpop.permute.xlu0 %6949
    %6952 = vset.pattern.permute.xlu0 1
    %6953 = vperm.xlu0 %6952, %v6793
    %v6954 = vpop.permute.xlu0 %6953
    %6956 = vset.pattern.permute.xlu0 1
    %6957 = vperm.xlu0 %6956, %v6794
    %v6958 = vpop.permute.xlu0 %6957
    %6960 = vset.pattern.permute.xlu0 1
    %6961 = vperm.xlu0 %6960, %v6795
    %v6962 = vpop.permute.xlu0 %6961
    %6964 = vset.pattern.permute.xlu0 1
    %6965 = vperm.xlu0 %6964, %v6796
    %v6966 = vpop.permute.xlu0 %6965
    %6968 = vset.pattern.permute.xlu0 1
    %6969 = vperm.xlu0 %6968, %v6797
    %v6970 = vpop.permute.xlu0 %6969
    %6972 = vset.pattern.permute.xlu0 1
    %6973 = vperm.xlu0 %6972, %v6798
    %v6974 = vpop.permute.xlu0 %6973
    %6976 = vset.pattern.permute.xlu0 1
    %6977 = vperm.xlu0 %6976, %v6799
    %v6978 = vpop.permute.xlu0 %6977
    %6980 = vset.pattern.permute.xlu0 1
    %6981 = vperm.xlu0 %6980, %v6800
    %v6982 = vpop.permute.xlu0 %6981
    %6984 = vset.pattern.permute.xlu0 1
    %6985 = vperm.xlu0 %6984, %v6801
    %v6986 = vpop.permute.xlu0 %6985
    %6988 = vset.pattern.permute.xlu0 1
    %6989 = vperm.xlu0 %6988, %v6802
    %v6990 = vpop.permute.xlu0 %6989
    %6992 = vset.pattern.permute.xlu0 1
    %6993 = vperm.xlu0 %6992, %v6803
    %v6994 = vpop.permute.xlu0 %6993
    %v6996 = vmul.f32 %v6934, %v6804
    %v6997 = vmul.f32 %v6938, %v6805
    %v6998 = vmul.f32 %v6942, %v6806
    %v6999 = vmul.f32 %v6946, %v6807
    %v7000 = vmul.f32 %v6950, %v6808
    %v7001 = vmul.f32 %v6954, %v6809
    %v7002 = vmul.f32 %v6958, %v6810
    %v7003 = vmul.f32 %v6962, %v6811
    %v7004 = vmul.f32 %v6966, %v6812
    %v7005 = vmul.f32 %v6970, %v6813
    %v7006 = vmul.f32 %v6974, %v6814
    %v7007 = vmul.f32 %v6978, %v6815
    %v7008 = vmul.f32 %v6982, %v6816
    %v7009 = vmul.f32 %v6986, %v6817
    %v7010 = vmul.f32 %v6990, %v6818
    %v7011 = vmul.f32 %v6994, %v6819
    %7012 = vset.pattern.permute.xlu0 2
    %7013 = vperm.xlu0 %7012, %v6788
    %v7014 = vpop.permute.xlu0 %7013
    %7016 = vset.pattern.permute.xlu0 2
    %7017 = vperm.xlu0 %7016, %v6789
    %v7018 = vpop.permute.xlu0 %7017
    %7020 = vset.pattern.permute.xlu0 2
    %7021 = vperm.xlu0 %7020, %v6790
    %v7022 = vpop.permute.xlu0 %7021
    %7024 = vset.pattern.permute.xlu0 2
    %7025 = vperm.xlu0 %7024, %v6791
    %v7026 = vpop.permute.xlu0 %7025
    %7028 = vset.pattern.permute.xlu0 2
    %7029 = vperm.xlu0 %7028, %v6792
    %v7030 = vpop.permute.xlu0 %7029
    %7032 = vset.pattern.permute.xlu0 2
    %7033 = vperm.xlu0 %7032, %v6793
    %v7034 = vpop.permute.xlu0 %7033
    %7036 = vset.pattern.permute.xlu0 2
    %7037 = vperm.xlu0 %7036, %v6794
    %v7038 = vpop.permute.xlu0 %7037
    %7040 = vset.pattern.permute.xlu0 2
    %7041 = vperm.xlu0 %7040, %v6795
    %v7042 = vpop.permute.xlu0 %7041
    %7044 = vset.pattern.permute.xlu0 2
    %7045 = vperm.xlu0 %7044, %v6796
    %v7046 = vpop.permute.xlu0 %7045
    %7048 = vset.pattern.permute.xlu0 2
    %7049 = vperm.xlu0 %7048, %v6797
    %v7050 = vpop.permute.xlu0 %7049
    %7052 = vset.pattern.permute.xlu0 2
    %7053 = vperm.xlu0 %7052, %v6798
    %v7054 = vpop.permute.xlu0 %7053
    %7056 = vset.pattern.permute.xlu0 2
    %7057 = vperm.xlu0 %7056, %v6799
    %v7058 = vpop.permute.xlu0 %7057
    %7060 = vset.pattern.permute.xlu0 2
    %7061 = vperm.xlu0 %7060, %v6800
    %v7062 = vpop.permute.xlu0 %7061
    %7064 = vset.pattern.permute.xlu0 2
    %7065 = vperm.xlu0 %7064, %v6801
    %v7066 = vpop.permute.xlu0 %7065
    %7068 = vset.pattern.permute.xlu0 2
    %7069 = vperm.xlu0 %7068, %v6802
    %v7070 = vpop.permute.xlu0 %7069
    %7072 = vset.pattern.permute.xlu0 2
    %7073 = vperm.xlu0 %7072, %v6803
    %v7074 = vpop.permute.xlu0 %7073
    %v7076 = vmul.f32 %v7014, %v6804
    %v7077 = vmul.f32 %v7018, %v6805
    %v7078 = vmul.f32 %v7022, %v6806
    %v7079 = vmul.f32 %v7026, %v6807
    %v7080 = vmul.f32 %v7030, %v6808
    %v7081 = vmul.f32 %v7034, %v6809
    %v7082 = vmul.f32 %v7038, %v6810
    %v7083 = vmul.f32 %v7042, %v6811
    %v7084 = vmul.f32 %v7046, %v6812
    %v7085 = vmul.f32 %v7050, %v6813
    %v7086 = vmul.f32 %v7054, %v6814
    %v7087 = vmul.f32 %v7058, %v6815
    %v7088 = vmul.f32 %v7062, %v6816
    %v7089 = vmul.f32 %v7066, %v6817
    %v7090 = vmul.f32 %v7070, %v6818
    %v7091 = vmul.f32 %v7074, %v6819
    %7092 = vset.pattern.permute.xlu0 3
    %7093 = vperm.xlu0 %7092, %v6788
    %v7094 = vpop.permute.xlu0 %7093
    %7096 = vset.pattern.permute.xlu0 3
    %7097 = vperm.xlu0 %7096, %v6789
    %v7098 = vpop.permute.xlu0 %7097
    %7100 = vset.pattern.permute.xlu0 3
    %7101 = vperm.xlu0 %7100, %v6790
    %v7102 = vpop.permute.xlu0 %7101
    %7104 = vset.pattern.permute.xlu0 3
    %7105 = vperm.xlu0 %7104, %v6791
    %v7106 = vpop.permute.xlu0 %7105
    %7108 = vset.pattern.permute.xlu0 3
    %7109 = vperm.xlu0 %7108, %v6792
    %v7110 = vpop.permute.xlu0 %7109
    %7112 = vset.pattern.permute.xlu0 3
    %7113 = vperm.xlu0 %7112, %v6793
    %v7114 = vpop.permute.xlu0 %7113
    %7116 = vset.pattern.permute.xlu0 3
    %7117 = vperm.xlu0 %7116, %v6794
    %v7118 = vpop.permute.xlu0 %7117
    %7120 = vset.pattern.permute.xlu0 3
    %7121 = vperm.xlu0 %7120, %v6795
    %v7122 = vpop.permute.xlu0 %7121
    %7124 = vset.pattern.permute.xlu0 3
    %7125 = vperm.xlu0 %7124, %v6796
    %v7126 = vpop.permute.xlu0 %7125
    %7128 = vset.pattern.permute.xlu0 3
    %7129 = vperm.xlu0 %7128, %v6797
    %v7130 = vpop.permute.xlu0 %7129
    %7132 = vset.pattern.permute.xlu0 3
    %7133 = vperm.xlu0 %7132, %v6798
    %v7134 = vpop.permute.xlu0 %7133
    %7136 = vset.pattern.permute.xlu0 3
    %7137 = vperm.xlu0 %7136, %v6799
    %v7138 = vpop.permute.xlu0 %7137
    %7140 = vset.pattern.permute.xlu0 3
    %7141 = vperm.xlu0 %7140, %v6800
    %v7142 = vpop.permute.xlu0 %7141
    %7144 = vset.pattern.permute.xlu0 3
    %7145 = vperm.xlu0 %7144, %v6801
    %v7146 = vpop.permute.xlu0 %7145
    %7148 = vset.pattern.permute.xlu0 3
    %7149 = vperm.xlu0 %7148, %v6802
    %v7150 = vpop.permute.xlu0 %7149
    %7152 = vset.pattern.permute.xlu0 3
    %7153 = vperm.xlu0 %7152, %v6803
    %v7154 = vpop.permute.xlu0 %7153
    %v7156 = vmul.f32 %v7094, %v6804
    %v7157 = vmul.f32 %v7098, %v6805
    %v7158 = vmul.f32 %v7102, %v6806
    %v7159 = vmul.f32 %v7106, %v6807
    %v7160 = vmul.f32 %v7110, %v6808
    %v7161 = vmul.f32 %v7114, %v6809
    %v7162 = vmul.f32 %v7118, %v6810
    %v7163 = vmul.f32 %v7122, %v6811
    %v7164 = vmul.f32 %v7126, %v6812
    %v7165 = vmul.f32 %v7130, %v6813
    %v7166 = vmul.f32 %v7134, %v6814
    %v7167 = vmul.f32 %v7138, %v6815
    %v7168 = vmul.f32 %v7142, %v6816
    %v7169 = vmul.f32 %v7146, %v6817
    %v7170 = vmul.f32 %v7150, %v6818
    %v7171 = vmul.f32 %v7154, %v6819
    %7188 = vrot.lane.b32.xlu0 %v6996, 64
    %v7189 = vpop.permute.xlu0 %7188
    %7190 = vrot.lane.b32.xlu0 %v6997, 64
    %v7191 = vpop.permute.xlu0 %7190
    %7192 = vrot.lane.b32.xlu0 %v6998, 64
    %v7193 = vpop.permute.xlu0 %7192
    %7194 = vrot.lane.b32.xlu0 %v6999, 64
    %v7195 = vpop.permute.xlu0 %7194
    %7196 = vrot.lane.b32.xlu0 %v7000, 64
    %v7197 = vpop.permute.xlu0 %7196
    %7198 = vrot.lane.b32.xlu0 %v7001, 64
    %v7199 = vpop.permute.xlu0 %7198
    %7200 = vrot.lane.b32.xlu0 %v7002, 64
    %v7201 = vpop.permute.xlu0 %7200
    %7202 = vrot.lane.b32.xlu0 %v7003, 64
    %v7203 = vpop.permute.xlu0 %7202
    %7204 = vrot.lane.b32.xlu0 %v7004, 64
    %v7205 = vpop.permute.xlu0 %7204
    %7206 = vrot.lane.b32.xlu0 %v7005, 64
    %v7207 = vpop.permute.xlu0 %7206
    %7208 = vrot.lane.b32.xlu0 %v7006, 64
    %v7209 = vpop.permute.xlu0 %7208
    %7210 = vrot.lane.b32.xlu0 %v7007, 64
    %v7211 = vpop.permute.xlu0 %7210
    %7212 = vrot.lane.b32.xlu0 %v7008, 64
    %v7213 = vpop.permute.xlu0 %7212
    %7214 = vrot.lane.b32.xlu0 %v7009, 64
    %v7215 = vpop.permute.xlu0 %7214
    %7216 = vrot.lane.b32.xlu0 %v7010, 64
    %v7217 = vpop.permute.xlu0 %7216
    %7218 = vrot.lane.b32.xlu0 %v7011, 64
    %v7219 = vpop.permute.xlu0 %7218
    %7252 = vrot.lane.b32.xlu0 %v7156, 64
    %v7253 = vpop.permute.xlu0 %7252
    %7254 = vrot.lane.b32.xlu0 %v7157, 64
    %v7255 = vpop.permute.xlu0 %7254
    %7256 = vrot.lane.b32.xlu0 %v7158, 64
    %v7257 = vpop.permute.xlu0 %7256
    %7258 = vrot.lane.b32.xlu0 %v7159, 64
    %v7259 = vpop.permute.xlu0 %7258
    %7260 = vrot.lane.b32.xlu0 %v7160, 64
    %v7261 = vpop.permute.xlu0 %7260
    %7262 = vrot.lane.b32.xlu0 %v7161, 64
    %v7263 = vpop.permute.xlu0 %7262
    %7264 = vrot.lane.b32.xlu0 %v7162, 64
    %v7265 = vpop.permute.xlu0 %7264
    %7266 = vrot.lane.b32.xlu0 %v7163, 64
    %v7267 = vpop.permute.xlu0 %7266
    %7268 = vrot.lane.b32.xlu0 %v7164, 64
    %v7269 = vpop.permute.xlu0 %7268
    %7270 = vrot.lane.b32.xlu0 %v7165, 64
    %v7271 = vpop.permute.xlu0 %7270
    %7272 = vrot.lane.b32.xlu0 %v7166, 64
    %v7273 = vpop.permute.xlu0 %7272
    %7274 = vrot.lane.b32.xlu0 %v7167, 64
    %v7275 = vpop.permute.xlu0 %7274
    %7276 = vrot.lane.b32.xlu0 %v7168, 64
    %v7277 = vpop.permute.xlu0 %7276
    %7278 = vrot.lane.b32.xlu0 %v7169, 64
    %v7279 = vpop.permute.xlu0 %7278
    %7280 = vrot.lane.b32.xlu0 %v7170, 64
    %v7281 = vpop.permute.xlu0 %7280
    %7282 = vrot.lane.b32.xlu0 %v7171, 64
    %v7283 = vpop.permute.xlu0 %7282
    %v7300 = vsel %vm103, %v6916, %v7189
    %v7301 = vsel %vm103, %v6917, %v7191
    %v7302 = vsel %vm103, %v6918, %v7193
    %v7303 = vsel %vm103, %v6919, %v7195
    %v7304 = vsel %vm103, %v6920, %v7197
    %v7305 = vsel %vm103, %v6921, %v7199
    %v7306 = vsel %vm103, %v6922, %v7201
    %v7307 = vsel %vm103, %v6923, %v7203
    %v7308 = vsel %vm103, %v6924, %v7205
    %v7309 = vsel %vm103, %v6925, %v7207
    %v7310 = vsel %vm103, %v6926, %v7209
    %v7311 = vsel %vm103, %v6927, %v7211
    %v7312 = vsel %vm103, %v6928, %v7213
    %v7313 = vsel %vm103, %v6929, %v7215
    %v7314 = vsel %vm103, %v6930, %v7217
    %v7315 = vsel %vm103, %v6931, %v7219
    %v7316 = vsel %vm103, %v7076, %v7253
    %v7317 = vsel %vm103, %v7077, %v7255
    %v7318 = vsel %vm103, %v7078, %v7257
    %v7319 = vsel %vm103, %v7079, %v7259
    %v7320 = vsel %vm103, %v7080, %v7261
    %v7321 = vsel %vm103, %v7081, %v7263
    %v7322 = vsel %vm103, %v7082, %v7265
    %v7323 = vsel %vm103, %v7083, %v7267
    %v7324 = vsel %vm103, %v7084, %v7269
    %v7325 = vsel %vm103, %v7085, %v7271
    %v7326 = vsel %vm103, %v7086, %v7273
    %v7327 = vsel %vm103, %v7087, %v7275
    %v7328 = vsel %vm103, %v7088, %v7277
    %v7329 = vsel %vm103, %v7089, %v7279
    %v7330 = vsel %vm103, %v7090, %v7281
    %v7331 = vsel %vm103, %v7091, %v7283
    %v7332 = vpack.c.bf16 %v7301, %v7300
    %v7333 = vpack.c.bf16 %v7317, %v7316
    %v7334 = vpack.c.bf16 %v7303, %v7302
    %v7335 = vpack.c.bf16 %v7319, %v7318
    %v7336 = vpack.c.bf16 %v7305, %v7304
    %v7337 = vpack.c.bf16 %v7321, %v7320
    %v7338 = vpack.c.bf16 %v7307, %v7306
    %v7339 = vpack.c.bf16 %v7323, %v7322
    %v7340 = vpack.c.bf16 %v7309, %v7308
    %v7341 = vpack.c.bf16 %v7325, %v7324
    %v7342 = vpack.c.bf16 %v7311, %v7310
    %v7343 = vpack.c.bf16 %v7327, %v7326
    %v7344 = vpack.c.bf16 %v7313, %v7312
    %v7345 = vpack.c.bf16 %v7329, %v7328
    %v7346 = vpack.c.bf16 %v7315, %v7314
    %v7347 = vpack.c.bf16 %v7331, %v7330
    %v7348 = vunpack.c.l.bf16 %v7332
    %v7349 = vunpack.c.l.bf16 %v7333
    %v7350 = vunpack.c.h.bf16 %v7332
    %v7351 = vunpack.c.h.bf16 %v7333
    %v7352 = vunpack.c.l.bf16 %v7334
    %v7353 = vunpack.c.l.bf16 %v7335
    %v7354 = vunpack.c.h.bf16 %v7334
    %v7355 = vunpack.c.h.bf16 %v7335
    %v7356 = vunpack.c.l.bf16 %v7336
    %v7357 = vunpack.c.l.bf16 %v7337
    %v7358 = vunpack.c.h.bf16 %v7336
    %v7359 = vunpack.c.h.bf16 %v7337
    %v7360 = vunpack.c.l.bf16 %v7338
    %v7361 = vunpack.c.l.bf16 %v7339
    %v7362 = vunpack.c.h.bf16 %v7338
    %v7363 = vunpack.c.h.bf16 %v7339
    %v7364 = vunpack.c.l.bf16 %v7340
    %v7365 = vunpack.c.l.bf16 %v7341
    %v7366 = vunpack.c.h.bf16 %v7340
    %v7367 = vunpack.c.h.bf16 %v7341
    %v7368 = vunpack.c.l.bf16 %v7342
    %v7369 = vunpack.c.l.bf16 %v7343
    %v7370 = vunpack.c.h.bf16 %v7342
    %v7371 = vunpack.c.h.bf16 %v7343
    %v7372 = vunpack.c.l.bf16 %v7344
    %v7373 = vunpack.c.l.bf16 %v7345
    %v7374 = vunpack.c.h.bf16 %v7344
    %v7375 = vunpack.c.h.bf16 %v7345
    %v7376 = vunpack.c.l.bf16 %v7346
    %v7377 = vunpack.c.l.bf16 %v7347
    %v7378 = vunpack.c.h.bf16 %v7346
    %v7379 = vunpack.c.h.bf16 %v7347
    %v7380 = vsub.f32 %v7300, %v7348
    %v7381 = vsub.f32 %v7316, %v7349
    %v7382 = vsub.f32 %v7301, %v7350
    %v7383 = vsub.f32 %v7317, %v7351
    %v7384 = vsub.f32 %v7302, %v7352
    %v7385 = vsub.f32 %v7318, %v7353
    %v7386 = vsub.f32 %v7303, %v7354
    %v7387 = vsub.f32 %v7319, %v7355
    %v7388 = vsub.f32 %v7304, %v7356
    %v7389 = vsub.f32 %v7320, %v7357
    %v7390 = vsub.f32 %v7305, %v7358
    %v7391 = vsub.f32 %v7321, %v7359
    %v7392 = vsub.f32 %v7306, %v7360
    %v7393 = vsub.f32 %v7322, %v7361
    %v7394 = vsub.f32 %v7307, %v7362
    %v7395 = vsub.f32 %v7323, %v7363
    %v7396 = vsub.f32 %v7308, %v7364
    %v7397 = vsub.f32 %v7324, %v7365
    %v7398 = vsub.f32 %v7309, %v7366
    %v7399 = vsub.f32 %v7325, %v7367
    %v7400 = vsub.f32 %v7310, %v7368
    %v7401 = vsub.f32 %v7326, %v7369
    %v7402 = vsub.f32 %v7311, %v7370
    %v7403 = vsub.f32 %v7327, %v7371
    %v7404 = vsub.f32 %v7312, %v7372
    %v7405 = vsub.f32 %v7328, %v7373
    %v7406 = vsub.f32 %v7313, %v7374
    %v7407 = vsub.f32 %v7329, %v7375
    %v7408 = vsub.f32 %v7314, %v7376
    %v7409 = vsub.f32 %v7330, %v7377
    %v7410 = vsub.f32 %v7315, %v7378
    %v7411 = vsub.f32 %v7331, %v7379
    %v7412 = vpack.c.bf16 %v7382, %v7380
    %v7413 = vpack.c.bf16 %v7383, %v7381
    %v7414 = vpack.c.bf16 %v7386, %v7384
    %v7415 = vpack.c.bf16 %v7387, %v7385
    %v7416 = vpack.c.bf16 %v7390, %v7388
    %v7417 = vpack.c.bf16 %v7391, %v7389
    %v7418 = vpack.c.bf16 %v7394, %v7392
    %v7419 = vpack.c.bf16 %v7395, %v7393
    %v7420 = vpack.c.bf16 %v7398, %v7396
    %v7421 = vpack.c.bf16 %v7399, %v7397
    %v7422 = vpack.c.bf16 %v7402, %v7400
    %v7423 = vpack.c.bf16 %v7403, %v7401
    %v7424 = vpack.c.bf16 %v7406, %v7404
    %v7425 = vpack.c.bf16 %v7407, %v7405
    %v7426 = vpack.c.bf16 %v7410, %v7408
    %v7427 = vpack.c.bf16 %v7411, %v7409
    %7428 = vmatprep.subr.bf16.mxu0 %v7427
    %7429 = vmatpush1.bf16.msra.mxu0 %v7426
    %7430 = vmatprep.subr.bf16.mxu0 %v7425
    %7431 = vmatpush1.bf16.msra.mxu0 %v7424
    %7432 = vmatprep.subr.bf16.mxu0 %v7423
    %7433 = vmatpush1.bf16.msra.mxu0 %v7422
    %7434 = vmatprep.subr.bf16.mxu0 %v7421
    %7435 = vmatpush1.bf16.msra.mxu0 %v7420
    %7436 = vmatprep.subr.bf16.mxu0 %v7419
    %7437 = vmatpush1.bf16.msra.mxu0 %v7418
    %7438 = vmatprep.subr.bf16.mxu0 %v7417
    %7439 = vmatpush1.bf16.msra.mxu0 %v7416
    %7440 = vmatprep.subr.bf16.mxu0 %v7415
    %7441 = vmatpush1.bf16.msra.mxu0 %v7414
    %7442 = vmatprep.subr.bf16.mxu0 %v7413
    %7443 = vmatpush1.bf16.msra.mxu0 %v7412
    %7444 = vmatprep.subr.bf16.mxu0 0
    %7445 = vmatpush2.bf16.msra.mxu0 0
    %7446 = vmatprep.subr.bf16.mxu0 0
    %7447 = vmatpush2.bf16.msra.mxu0 0
    %7448 = vmatprep.subr.bf16.mxu0 0
    %7449 = vmatpush2.bf16.msra.mxu0 0
    %7450 = vmatprep.subr.bf16.mxu0 0
    %7451 = vmatpush2.bf16.msra.mxu0 0
    %7452 = vmatprep.subr.bf16.mxu0 0
    %7453 = vmatpush2.bf16.msra.mxu0 0
    %7454 = vmatprep.subr.bf16.mxu0 0
    %7455 = vmatpush2.bf16.msra.mxu0 0
    %7456 = vmatprep.subr.bf16.mxu0 0
    %7457 = vmatpush2.bf16.msra.mxu0 0
    %7458 = vmatprep.subr.bf16.mxu0 0
    %7459 = vmatpush2.bf16.msra.mxu0 0
    %7460 = vmatprep.mubr.bf16.mxu0 0
    %7461 = vmatmul.mubr.bf16.gmra.mxu0 %v86
    %v7462 = vpop.f32.mrf.mxu0
    %v7463 = vadd.f32 0.0, %v7462
    %v7464 = vpop.f32.mrf.mxu0
    %v7465 = vadd.f32 0.0, %v7464
    %v7466 = vpop.f32.mrf.mxu0
    %v7467 = vadd.f32 0.0, %v7466
    %v7468 = vpop.f32.mrf.mxu0
    %v7469 = vadd.f32 0.0, %v7468
    %7470 = vmatprep.mubr.bf16.mxu0 0
    %7471 = vmatmul.mubr.bf16.gmra.mxu0 %v87
    %v7472 = vpop.f32.mrf.mxu0
    %v7473 = vadd.f32 0.0, %v7472
    %v7474 = vpop.f32.mrf.mxu0
    %v7475 = vadd.f32 0.0, %v7474
    %v7476 = vpop.f32.mrf.mxu0
    %v7477 = vadd.f32 0.0, %v7476
    %v7478 = vpop.f32.mrf.mxu0
    %v7479 = vadd.f32 0.0, %v7478
    %7480 = vmatprep.mubr.bf16.mxu0 0
    %7481 = vmatmul.mubr.bf16.gmra.mxu0 %v88
    %v7482 = vpop.f32.mrf.mxu0
    %v7483 = vadd.f32 0.0, %v7482
    %v7484 = vpop.f32.mrf.mxu0
    %v7485 = vadd.f32 0.0, %v7484
    %v7486 = vpop.f32.mrf.mxu0
    %v7487 = vadd.f32 0.0, %v7486
    %v7488 = vpop.f32.mrf.mxu0
    %v7489 = vadd.f32 0.0, %v7488
    %7490 = vmatprep.mubr.bf16.mxu0 0
    %7491 = vmatmul.mubr.bf16.gmra.mxu0 %v89
    %v7492 = vpop.f32.mrf.mxu0
    %v7493 = vadd.f32 0.0, %v7492
    %v7494 = vpop.f32.mrf.mxu0
    %v7495 = vadd.f32 0.0, %v7494
    %v7496 = vpop.f32.mrf.mxu0
    %v7497 = vadd.f32 0.0, %v7496
    %v7498 = vpop.f32.mrf.mxu0
    %v7499 = vadd.f32 0.0, %v7498
    %7500 = vmatprep.mubr.bf16.mxu0 0
    %7501 = vmatmul.mubr.bf16.gmra.mxu0 %v90
    %v7502 = vpop.f32.mrf.mxu0
    %v7503 = vadd.f32 0.0, %v7502
    %v7504 = vpop.f32.mrf.mxu0
    %v7505 = vadd.f32 0.0, %v7504
    %v7506 = vpop.f32.mrf.mxu0
    %v7507 = vadd.f32 0.0, %v7506
    %v7508 = vpop.f32.mrf.mxu0
    %v7509 = vadd.f32 0.0, %v7508
    %7510 = vmatprep.mubr.bf16.mxu0 0
    %7511 = vmatmul.mubr.bf16.gmra.mxu0 %v91
    %v7512 = vpop.f32.mrf.mxu0
    %v7513 = vadd.f32 0.0, %v7512
    %v7514 = vpop.f32.mrf.mxu0
    %v7515 = vadd.f32 0.0, %v7514
    %v7516 = vpop.f32.mrf.mxu0
    %v7517 = vadd.f32 0.0, %v7516
    %v7518 = vpop.f32.mrf.mxu0
    %v7519 = vadd.f32 0.0, %v7518
    %7520 = vmatprep.mubr.bf16.mxu0 0
    %7521 = vmatmul.mubr.bf16.gmra.mxu0 %v92
    %v7522 = vpop.f32.mrf.mxu0
    %v7523 = vadd.f32 0.0, %v7522
    %v7524 = vpop.f32.mrf.mxu0
    %v7525 = vadd.f32 0.0, %v7524
    %v7526 = vpop.f32.mrf.mxu0
    %v7527 = vadd.f32 0.0, %v7526
    %v7528 = vpop.f32.mrf.mxu0
    %v7529 = vadd.f32 0.0, %v7528
    %7530 = vmatprep.mubr.bf16.mxu0 0
    %7531 = vmatmul.mubr.bf16.gmra.mxu0 %v93
    %v7532 = vpop.f32.mrf.mxu0
    %v7533 = vadd.f32 0.0, %v7532
    %v7534 = vpop.f32.mrf.mxu0
    %v7535 = vadd.f32 0.0, %v7534
    %v7536 = vpop.f32.mrf.mxu0
    %v7537 = vadd.f32 0.0, %v7536
    %v7538 = vpop.f32.mrf.mxu0
    %v7539 = vadd.f32 0.0, %v7538
    %7540 = vdwg.mxu0
    %7541 = vmatprep.subr.bf16.mxu0 %v7347
    %7542 = vmatpush1.bf16.msra.mxu0 %v7346
    %7543 = vmatprep.subr.bf16.mxu0 %v7345
    %7544 = vmatpush1.bf16.msra.mxu0 %v7344
    %7545 = vmatprep.subr.bf16.mxu0 %v7343
    %7546 = vmatpush1.bf16.msra.mxu0 %v7342
    %7547 = vmatprep.subr.bf16.mxu0 %v7341
    %7548 = vmatpush1.bf16.msra.mxu0 %v7340
    %7549 = vmatprep.subr.bf16.mxu0 %v7339
    %7550 = vmatpush1.bf16.msra.mxu0 %v7338
    %7551 = vmatprep.subr.bf16.mxu0 %v7337
    %7552 = vmatpush1.bf16.msra.mxu0 %v7336
    %7553 = vmatprep.subr.bf16.mxu0 %v7335
    %7554 = vmatpush1.bf16.msra.mxu0 %v7334
    %7555 = vmatprep.subr.bf16.mxu0 %v7333
    %7556 = vmatpush1.bf16.msra.mxu0 %v7332
    %7557 = vmatprep.subr.bf16.mxu0 0
    %7558 = vmatpush2.bf16.msra.mxu0 0
    %7559 = vmatprep.subr.bf16.mxu0 0
    %7560 = vmatpush2.bf16.msra.mxu0 0
    %7561 = vmatprep.subr.bf16.mxu0 0
    %7562 = vmatpush2.bf16.msra.mxu0 0
    %7563 = vmatprep.subr.bf16.mxu0 0
    %7564 = vmatpush2.bf16.msra.mxu0 0
    %7565 = vmatprep.subr.bf16.mxu0 0
    %7566 = vmatpush2.bf16.msra.mxu0 0
    %7567 = vmatprep.subr.bf16.mxu0 0
    %7568 = vmatpush2.bf16.msra.mxu0 0
    %7569 = vmatprep.subr.bf16.mxu0 0
    %7570 = vmatpush2.bf16.msra.mxu0 0
    %7571 = vmatprep.subr.bf16.mxu0 0
    %7572 = vmatpush2.bf16.msra.mxu0 0
    %7573 = vmatprep.mubr.bf16.mxu0 0
    %7574 = vmatmul.mubr.bf16.gmra.mxu0 %v86
    %v7575 = vpop.f32.mrf.mxu0
    %v7576 = vadd.f32 %v7463, %v7575
    %v7577 = vpop.f32.mrf.mxu0
    %v7578 = vadd.f32 %v7465, %v7577
    %v7579 = vpop.f32.mrf.mxu0
    %v7580 = vadd.f32 %v7467, %v7579
    %v7581 = vpop.f32.mrf.mxu0
    %v7582 = vadd.f32 %v7469, %v7581
    %7583 = vmatprep.mubr.bf16.mxu0 0
    %7584 = vmatmul.mubr.bf16.gmra.mxu0 %v87
    %v7585 = vpop.f32.mrf.mxu0
    %v7586 = vadd.f32 %v7473, %v7585
    %v7587 = vpop.f32.mrf.mxu0
    %v7588 = vadd.f32 %v7475, %v7587
    %v7589 = vpop.f32.mrf.mxu0
    %v7590 = vadd.f32 %v7477, %v7589
    %v7591 = vpop.f32.mrf.mxu0
    %v7592 = vadd.f32 %v7479, %v7591
    %7593 = vmatprep.mubr.bf16.mxu0 0
    %7594 = vmatmul.mubr.bf16.gmra.mxu0 %v88
    %v7595 = vpop.f32.mrf.mxu0
    %v7596 = vadd.f32 %v7483, %v7595
    %v7597 = vpop.f32.mrf.mxu0
    %v7598 = vadd.f32 %v7485, %v7597
    %v7599 = vpop.f32.mrf.mxu0
    %v7600 = vadd.f32 %v7487, %v7599
    %v7601 = vpop.f32.mrf.mxu0
    %v7602 = vadd.f32 %v7489, %v7601
    %7603 = vmatprep.mubr.bf16.mxu0 0
    %7604 = vmatmul.mubr.bf16.gmra.mxu0 %v89
    %v7605 = vpop.f32.mrf.mxu0
    %v7606 = vadd.f32 %v7493, %v7605
    %v7607 = vpop.f32.mrf.mxu0
    %v7608 = vadd.f32 %v7495, %v7607
    %v7609 = vpop.f32.mrf.mxu0
    %v7610 = vadd.f32 %v7497, %v7609
    %v7611 = vpop.f32.mrf.mxu0
    %v7612 = vadd.f32 %v7499, %v7611
    %7613 = vmatprep.mubr.bf16.mxu0 0
    %7614 = vmatmul.mubr.bf16.gmra.mxu0 %v90
    %v7615 = vpop.f32.mrf.mxu0
    %v7616 = vadd.f32 %v7503, %v7615
    %v7617 = vpop.f32.mrf.mxu0
    %v7618 = vadd.f32 %v7505, %v7617
    %v7619 = vpop.f32.mrf.mxu0
    %v7620 = vadd.f32 %v7507, %v7619
    %v7621 = vpop.f32.mrf.mxu0
    %v7622 = vadd.f32 %v7509, %v7621
    %7623 = vmatprep.mubr.bf16.mxu0 0
    %7624 = vmatmul.mubr.bf16.gmra.mxu0 %v91
    %v7625 = vpop.f32.mrf.mxu0
    %v7626 = vadd.f32 %v7513, %v7625
    %v7627 = vpop.f32.mrf.mxu0
    %v7628 = vadd.f32 %v7515, %v7627
    %v7629 = vpop.f32.mrf.mxu0
    %v7630 = vadd.f32 %v7517, %v7629
    %v7631 = vpop.f32.mrf.mxu0
    %v7632 = vadd.f32 %v7519, %v7631
    %7633 = vmatprep.mubr.bf16.mxu0 0
    %7634 = vmatmul.mubr.bf16.gmra.mxu0 %v92
    %v7635 = vpop.f32.mrf.mxu0
    %v7636 = vadd.f32 %v7523, %v7635
    %v7637 = vpop.f32.mrf.mxu0
    %v7638 = vadd.f32 %v7525, %v7637
    %v7639 = vpop.f32.mrf.mxu0
    %v7640 = vadd.f32 %v7527, %v7639
    %v7641 = vpop.f32.mrf.mxu0
    %v7642 = vadd.f32 %v7529, %v7641
    %7643 = vmatprep.mubr.bf16.mxu0 0
    %7644 = vmatmul.mubr.bf16.gmra.mxu0 %v93
    %v7645 = vpop.f32.mrf.mxu0
    %v7646 = vadd.f32 %v7533, %v7645
    %v7647 = vpop.f32.mrf.mxu0
    %v7648 = vadd.f32 %v7535, %v7647
    %v7649 = vpop.f32.mrf.mxu0
    %v7650 = vadd.f32 %v7537, %v7649
    %v7651 = vpop.f32.mrf.mxu0
    %v7652 = vadd.f32 %v7539, %v7651
    %7653 = vdwg.mxu0
    %v7654 = vlaneseq
    %v7655 = vshrl.u32 %v7654, 7
    %v7656 = vsub.s32 0, %v7655
    %v7657 = vrot.slane %v6786, %v7656
    %v7658 = vlaneseq
    %v7659 = vshrl.u32 %v7658, 7
    %v7660 = vsub.s32 0, %v7659
    %v7661 = vrot.slane %v6787, %v7660
    %v7662 = vadd.f32 %v7576, %v7657
    %v7663 = vadd.f32 %v7578, %v7661
    %v7664 = vadd.f32 %v7580, %v7657
    %v7665 = vadd.f32 %v7582, %v7661
    %v7666 = vadd.f32 %v7586, %v7657
    %v7667 = vadd.f32 %v7588, %v7661
    %v7668 = vadd.f32 %v7590, %v7657
    %v7669 = vadd.f32 %v7592, %v7661
    %v7670 = vadd.f32 %v7596, %v7657
    %v7671 = vadd.f32 %v7598, %v7661
    %v7672 = vadd.f32 %v7600, %v7657
    %v7673 = vadd.f32 %v7602, %v7661
    %v7674 = vadd.f32 %v7606, %v7657
    %v7675 = vadd.f32 %v7608, %v7661
    %v7676 = vadd.f32 %v7610, %v7657
    %v7677 = vadd.f32 %v7612, %v7661
    %v7678 = vadd.f32 %v7616, %v7657
    %v7679 = vadd.f32 %v7618, %v7661
    %v7680 = vadd.f32 %v7620, %v7657
    %v7681 = vadd.f32 %v7622, %v7661
    %v7682 = vadd.f32 %v7626, %v7657
    %v7683 = vadd.f32 %v7628, %v7661
    %v7684 = vadd.f32 %v7630, %v7657
    %v7685 = vadd.f32 %v7632, %v7661
    %v7686 = vadd.f32 %v7636, %v7657
    %v7687 = vadd.f32 %v7638, %v7661
    %v7688 = vadd.f32 %v7640, %v7657
    %v7689 = vadd.f32 %v7642, %v7661
    %v7690 = vadd.f32 %v7646, %v7657
    %v7691 = vadd.f32 %v7648, %v7661
    %v7692 = vadd.f32 %v7650, %v7657
    %v7693 = vadd.f32 %v7652, %v7661
    %v7694 = vxor.u32 %v7662, 2147483648
    %v7695 = vxor.u32 %v7663, 2147483648
    %v7696 = vxor.u32 %v7664, 2147483648
    %v7697 = vxor.u32 %v7665, 2147483648
    %v7698 = vxor.u32 %v7666, 2147483648
    %v7699 = vxor.u32 %v7667, 2147483648
    %v7700 = vxor.u32 %v7668, 2147483648
    %v7701 = vxor.u32 %v7669, 2147483648
    %v7702 = vxor.u32 %v7670, 2147483648
    %v7703 = vxor.u32 %v7671, 2147483648
    %v7704 = vxor.u32 %v7672, 2147483648
    %v7705 = vxor.u32 %v7673, 2147483648
    %v7706 = vxor.u32 %v7674, 2147483648
    %v7707 = vxor.u32 %v7675, 2147483648
    %v7708 = vxor.u32 %v7676, 2147483648
    %v7709 = vxor.u32 %v7677, 2147483648
    %v7710 = vxor.u32 %v7678, 2147483648
    %v7711 = vxor.u32 %v7679, 2147483648
    %v7712 = vxor.u32 %v7680, 2147483648
    %v7713 = vxor.u32 %v7681, 2147483648
    %v7714 = vxor.u32 %v7682, 2147483648
    %v7715 = vxor.u32 %v7683, 2147483648
    %v7716 = vxor.u32 %v7684, 2147483648
    %v7717 = vxor.u32 %v7685, 2147483648
    %v7718 = vxor.u32 %v7686, 2147483648
    %v7719 = vxor.u32 %v7687, 2147483648
    %v7720 = vxor.u32 %v7688, 2147483648
    %v7721 = vxor.u32 %v7689, 2147483648
    %v7722 = vxor.u32 %v7690, 2147483648
    %v7723 = vxor.u32 %v7691, 2147483648
    %v7724 = vxor.u32 %v7692, 2147483648
    %v7725 = vxor.u32 %v7693, 2147483648
    %v7726 = vmul.f32 %v7694, 1.442695
    %v7727 = vpow.pop %v7726
    %v7728 = vmul.f32 %v7695, 1.442695
    %v7729 = vpow.pop %v7728
    %v7730 = vmul.f32 %v7696, 1.442695
    %v7731 = vpow.pop %v7730
    %v7732 = vmul.f32 %v7697, 1.442695
    %v7733 = vpow.pop %v7732
    %v7734 = vmul.f32 %v7698, 1.442695
    %v7735 = vpow.pop %v7734
    %v7736 = vmul.f32 %v7699, 1.442695
    %v7737 = vpow.pop %v7736
    %v7738 = vmul.f32 %v7700, 1.442695
    %v7739 = vpow.pop %v7738
    %v7740 = vmul.f32 %v7701, 1.442695
    %v7741 = vpow.pop %v7740
    %v7742 = vmul.f32 %v7702, 1.442695
    %v7743 = vpow.pop %v7742
    %v7744 = vmul.f32 %v7703, 1.442695
    %v7745 = vpow.pop %v7744
    %v7746 = vmul.f32 %v7704, 1.442695
    %v7747 = vpow.pop %v7746
    %v7748 = vmul.f32 %v7705, 1.442695
    %v7749 = vpow.pop %v7748
    %v7750 = vmul.f32 %v7706, 1.442695
    %v7751 = vpow.pop %v7750
    %v7752 = vmul.f32 %v7707, 1.442695
    %v7753 = vpow.pop %v7752
    %v7754 = vmul.f32 %v7708, 1.442695
    %v7755 = vpow.pop %v7754
    %v7756 = vmul.f32 %v7709, 1.442695
    %v7757 = vpow.pop %v7756
    %v7758 = vmul.f32 %v7710, 1.442695
    %v7759 = vpow.pop %v7758
    %v7760 = vmul.f32 %v7711, 1.442695
    %v7761 = vpow.pop %v7760
    %v7762 = vmul.f32 %v7712, 1.442695
    %v7763 = vpow.pop %v7762
    %v7764 = vmul.f32 %v7713, 1.442695
    %v7765 = vpow.pop %v7764
    %v7766 = vmul.f32 %v7714, 1.442695
    %v7767 = vpow.pop %v7766
    %v7768 = vmul.f32 %v7715, 1.442695
    %v7769 = vpow.pop %v7768
    %v7770 = vmul.f32 %v7716, 1.442695
    %v7771 = vpow.pop %v7770
    %v7772 = vmul.f32 %v7717, 1.442695
    %v7773 = vpow.pop %v7772
    %v7774 = vmul.f32 %v7718, 1.442695
    %v7775 = vpow.pop %v7774
    %v7776 = vmul.f32 %v7719, 1.442695
    %v7777 = vpow.pop %v7776
    %v7778 = vmul.f32 %v7720, 1.442695
    %v7779 = vpow.pop %v7778
    %v7780 = vmul.f32 %v7721, 1.442695
    %v7781 = vpow.pop %v7780
    %v7782 = vmul.f32 %v7722, 1.442695
    %v7783 = vpow.pop %v7782
    %v7784 = vmul.f32 %v7723, 1.442695
    %v7785 = vpow.pop %v7784
    %v7786 = vmul.f32 %v7724, 1.442695
    %v7787 = vpow.pop %v7786
    %v7788 = vmul.f32 %v7725, 1.442695
    %v7789 = vpow.pop %v7788
    %v7790 = vadd.f32 %v7727, 1.0
    %v7791 = vadd.f32 %v7729, 1.0
    %v7792 = vadd.f32 %v7731, 1.0
    %v7793 = vadd.f32 %v7733, 1.0
    %v7794 = vadd.f32 %v7735, 1.0
    %v7795 = vadd.f32 %v7737, 1.0
    %v7796 = vadd.f32 %v7739, 1.0
    %v7797 = vadd.f32 %v7741, 1.0
    %v7798 = vadd.f32 %v7743, 1.0
    %v7799 = vadd.f32 %v7745, 1.0
    %v7800 = vadd.f32 %v7747, 1.0
    %v7801 = vadd.f32 %v7749, 1.0
    %v7802 = vadd.f32 %v7751, 1.0
    %v7803 = vadd.f32 %v7753, 1.0
    %v7804 = vadd.f32 %v7755, 1.0
    %v7805 = vadd.f32 %v7757, 1.0
    %v7806 = vadd.f32 %v7759, 1.0
    %v7807 = vadd.f32 %v7761, 1.0
    %v7808 = vadd.f32 %v7763, 1.0
    %v7809 = vadd.f32 %v7765, 1.0
    %v7810 = vadd.f32 %v7767, 1.0
    %v7811 = vadd.f32 %v7769, 1.0
    %v7812 = vadd.f32 %v7771, 1.0
    %v7813 = vadd.f32 %v7773, 1.0
    %v7814 = vadd.f32 %v7775, 1.0
    %v7815 = vadd.f32 %v7777, 1.0
    %v7816 = vadd.f32 %v7779, 1.0
    %v7817 = vadd.f32 %v7781, 1.0
    %v7818 = vadd.f32 %v7783, 1.0
    %v7819 = vadd.f32 %v7785, 1.0
    %v7820 = vadd.f32 %v7787, 1.0
    %v7821 = vadd.f32 %v7789, 1.0
    %v7822 = vrcp.pop %v7790
    %v7823 = vmul.f32 1.0, %v7822
    %v7824 = vrcp.pop %v7791
    %v7825 = vmul.f32 1.0, %v7824
    %v7826 = vrcp.pop %v7792
    %v7827 = vmul.f32 1.0, %v7826
    %v7828 = vrcp.pop %v7793
    %v7829 = vmul.f32 1.0, %v7828
    %v7830 = vrcp.pop %v7794
    %v7831 = vmul.f32 1.0, %v7830
    %v7832 = vrcp.pop %v7795
    %v7833 = vmul.f32 1.0, %v7832
    %v7834 = vrcp.pop %v7796
    %v7835 = vmul.f32 1.0, %v7834
    %v7836 = vrcp.pop %v7797
    %v7837 = vmul.f32 1.0, %v7836
    %v7838 = vrcp.pop %v7798
    %v7839 = vmul.f32 1.0, %v7838
    %v7840 = vrcp.pop %v7799
    %v7841 = vmul.f32 1.0, %v7840
    %v7842 = vrcp.pop %v7800
    %v7843 = vmul.f32 1.0, %v7842
    %v7844 = vrcp.pop %v7801
    %v7845 = vmul.f32 1.0, %v7844
    %v7846 = vrcp.pop %v7802
    %v7847 = vmul.f32 1.0, %v7846
    %v7848 = vrcp.pop %v7803
    %v7849 = vmul.f32 1.0, %v7848
    %v7850 = vrcp.pop %v7804
    %v7851 = vmul.f32 1.0, %v7850
    %v7852 = vrcp.pop %v7805
    %v7853 = vmul.f32 1.0, %v7852
    %v7854 = vrcp.pop %v7806
    %v7855 = vmul.f32 1.0, %v7854
    %v7856 = vrcp.pop %v7807
    %v7857 = vmul.f32 1.0, %v7856
    %v7858 = vrcp.pop %v7808
    %v7859 = vmul.f32 1.0, %v7858
    %v7860 = vrcp.pop %v7809
    %v7861 = vmul.f32 1.0, %v7860
    %v7862 = vrcp.pop %v7810
    %v7863 = vmul.f32 1.0, %v7862
    %v7864 = vrcp.pop %v7811
    %v7865 = vmul.f32 1.0, %v7864
    %v7866 = vrcp.pop %v7812
    %v7867 = vmul.f32 1.0, %v7866
    %v7868 = vrcp.pop %v7813
    %v7869 = vmul.f32 1.0, %v7868
    %v7870 = vrcp.pop %v7814
    %v7871 = vmul.f32 1.0, %v7870
    %v7872 = vrcp.pop %v7815
    %v7873 = vmul.f32 1.0, %v7872
    %v7874 = vrcp.pop %v7816
    %v7875 = vmul.f32 1.0, %v7874
    %v7876 = vrcp.pop %v7817
    %v7877 = vmul.f32 1.0, %v7876
    %v7878 = vrcp.pop %v7818
    %v7879 = vmul.f32 1.0, %v7878
    %v7880 = vrcp.pop %v7819
    %v7881 = vmul.f32 1.0, %v7880
    %v7882 = vrcp.pop %v7820
    %v7883 = vmul.f32 1.0, %v7882
    %v7884 = vrcp.pop %v7821
    %v7885 = vmul.f32 1.0, %v7884
    %v7886 = vmul.f32 %v7823, %v6820
    %v7887 = vmul.f32 %v7827, %v6821
    %v7888 = vmul.f32 %v7831, %v6822
    %v7889 = vmul.f32 %v7835, %v6823
    %v7890 = vmul.f32 %v7839, %v6824
    %v7891 = vmul.f32 %v7843, %v6825
    %v7892 = vmul.f32 %v7847, %v6826
    %v7893 = vmul.f32 %v7851, %v6827
    %v7894 = vmul.f32 %v7855, %v6828
    %v7895 = vmul.f32 %v7859, %v6829
    %v7896 = vmul.f32 %v7863, %v6830
    %v7897 = vmul.f32 %v7867, %v6831
    %v7898 = vmul.f32 %v7871, %v6832
    %v7899 = vmul.f32 %v7875, %v6833
    %v7900 = vmul.f32 %v7879, %v6834
    %v7901 = vmul.f32 %v7883, %v6835
    %v7902 = vsel %vm103, %v7886, 0.0
    %7903 = vadd.xlane.f32.xlu0 %v7902
    %v7904 = vpop.xlane.xlu0 %7903
    %v7905 = vsel %vm103, %v7887, 0.0
    %7906 = vadd.xlane.f32.xlu0 %v7905
    %v7907 = vpop.xlane.xlu0 %7906
    %v7908 = vsel %vm103, %v7888, 0.0
    %7909 = vadd.xlane.f32.xlu0 %v7908
    %v7910 = vpop.xlane.xlu0 %7909
    %v7911 = vsel %vm103, %v7889, 0.0
    %7912 = vadd.xlane.f32.xlu0 %v7911
    %v7913 = vpop.xlane.xlu0 %7912
    %v7914 = vsel %vm103, %v7890, 0.0
    %7915 = vadd.xlane.f32.xlu0 %v7914
    %v7916 = vpop.xlane.xlu0 %7915
    %v7917 = vsel %vm103, %v7891, 0.0
    %7918 = vadd.xlane.f32.xlu0 %v7917
    %v7919 = vpop.xlane.xlu0 %7918
    %v7920 = vsel %vm103, %v7892, 0.0
    %7921 = vadd.xlane.f32.xlu0 %v7920
    %v7922 = vpop.xlane.xlu0 %7921
    %v7923 = vsel %vm103, %v7893, 0.0
    %7924 = vadd.xlane.f32.xlu0 %v7923
    %v7925 = vpop.xlane.xlu0 %7924
    %v7926 = vsel %vm103, %v7894, 0.0
    %7927 = vadd.xlane.f32.xlu0 %v7926
    %v7928 = vpop.xlane.xlu0 %7927
    %v7929 = vsel %vm103, %v7895, 0.0
    %7930 = vadd.xlane.f32.xlu0 %v7929
    %v7931 = vpop.xlane.xlu0 %7930
    %v7932 = vsel %vm103, %v7896, 0.0
    %7933 = vadd.xlane.f32.xlu0 %v7932
    %v7934 = vpop.xlane.xlu0 %7933
    %v7935 = vsel %vm103, %v7897, 0.0
    %7936 = vadd.xlane.f32.xlu0 %v7935
    %v7937 = vpop.xlane.xlu0 %7936
    %v7938 = vsel %vm103, %v7898, 0.0
    %7939 = vadd.xlane.f32.xlu0 %v7938
    %v7940 = vpop.xlane.xlu0 %7939
    %v7941 = vsel %vm103, %v7899, 0.0
    %7942 = vadd.xlane.f32.xlu0 %v7941
    %v7943 = vpop.xlane.xlu0 %7942
    %v7944 = vsel %vm103, %v7900, 0.0
    %7945 = vadd.xlane.f32.xlu0 %v7944
    %v7946 = vpop.xlane.xlu0 %7945
    %v7947 = vsel %vm103, %v7901, 0.0
    %7948 = vadd.xlane.f32.xlu0 %v7947
    %v7949 = vpop.xlane.xlu0 %7948
    %7966 = vrot.lane.b32.xlu0 %v6820, 64
    %v7967 = vpop.permute.xlu0 %7966
    %7968 = vrot.lane.b32.xlu0 %v6821, 64
    %v7969 = vpop.permute.xlu0 %7968
    %7970 = vrot.lane.b32.xlu0 %v6822, 64
    %v7971 = vpop.permute.xlu0 %7970
    %7972 = vrot.lane.b32.xlu0 %v6823, 64
    %v7973 = vpop.permute.xlu0 %7972
    %7974 = vrot.lane.b32.xlu0 %v6824, 64
    %v7975 = vpop.permute.xlu0 %7974
    %7976 = vrot.lane.b32.xlu0 %v6825, 64
    %v7977 = vpop.permute.xlu0 %7976
    %7978 = vrot.lane.b32.xlu0 %v6826, 64
    %v7979 = vpop.permute.xlu0 %7978
    %7980 = vrot.lane.b32.xlu0 %v6827, 64
    %v7981 = vpop.permute.xlu0 %7980
    %7982 = vrot.lane.b32.xlu0 %v6828, 64
    %v7983 = vpop.permute.xlu0 %7982
    %7984 = vrot.lane.b32.xlu0 %v6829, 64
    %v7985 = vpop.permute.xlu0 %7984
    %7986 = vrot.lane.b32.xlu0 %v6830, 64
    %v7987 = vpop.permute.xlu0 %7986
    %7988 = vrot.lane.b32.xlu0 %v6831, 64
    %v7989 = vpop.permute.xlu0 %7988
    %7990 = vrot.lane.b32.xlu0 %v6832, 64
    %v7991 = vpop.permute.xlu0 %7990
    %7992 = vrot.lane.b32.xlu0 %v6833, 64
    %v7993 = vpop.permute.xlu0 %7992
    %7994 = vrot.lane.b32.xlu0 %v6834, 64
    %v7995 = vpop.permute.xlu0 %7994
    %7996 = vrot.lane.b32.xlu0 %v6835, 64
    %v7997 = vpop.permute.xlu0 %7996
    %v8014 = vmul.f32 %v7823, %v7967
    %v8015 = vmul.f32 %v7827, %v7969
    %v8016 = vmul.f32 %v7831, %v7971
    %v8017 = vmul.f32 %v7835, %v7973
    %v8018 = vmul.f32 %v7839, %v7975
    %v8019 = vmul.f32 %v7843, %v7977
    %v8020 = vmul.f32 %v7847, %v7979
    %v8021 = vmul.f32 %v7851, %v7981
    %v8022 = vmul.f32 %v7855, %v7983
    %v8023 = vmul.f32 %v7859, %v7985
    %v8024 = vmul.f32 %v7863, %v7987
    %v8025 = vmul.f32 %v7867, %v7989
    %v8026 = vmul.f32 %v7871, %v7991
    %v8027 = vmul.f32 %v7875, %v7993
    %v8028 = vmul.f32 %v7879, %v7995
    %v8029 = vmul.f32 %v7883, %v7997
    %8046 = vrot.lane.b32.xlu0 %v8014, 64
    %v8047 = vpop.permute.xlu0 %8046
    %8048 = vrot.lane.b32.xlu0 %v8015, 64
    %v8049 = vpop.permute.xlu0 %8048
    %8050 = vrot.lane.b32.xlu0 %v8016, 64
    %v8051 = vpop.permute.xlu0 %8050
    %8052 = vrot.lane.b32.xlu0 %v8017, 64
    %v8053 = vpop.permute.xlu0 %8052
    %8054 = vrot.lane.b32.xlu0 %v8018, 64
    %v8055 = vpop.permute.xlu0 %8054
    %8056 = vrot.lane.b32.xlu0 %v8019, 64
    %v8057 = vpop.permute.xlu0 %8056
    %8058 = vrot.lane.b32.xlu0 %v8020, 64
    %v8059 = vpop.permute.xlu0 %8058
    %8060 = vrot.lane.b32.xlu0 %v8021, 64
    %v8061 = vpop.permute.xlu0 %8060
    %8062 = vrot.lane.b32.xlu0 %v8022, 64
    %v8063 = vpop.permute.xlu0 %8062
    %8064 = vrot.lane.b32.xlu0 %v8023, 64
    %v8065 = vpop.permute.xlu0 %8064
    %8066 = vrot.lane.b32.xlu0 %v8024, 64
    %v8067 = vpop.permute.xlu0 %8066
    %8068 = vrot.lane.b32.xlu0 %v8025, 64
    %v8069 = vpop.permute.xlu0 %8068
    %8070 = vrot.lane.b32.xlu0 %v8026, 64
    %v8071 = vpop.permute.xlu0 %8070
    %8072 = vrot.lane.b32.xlu0 %v8027, 64
    %v8073 = vpop.permute.xlu0 %8072
    %8074 = vrot.lane.b32.xlu0 %v8028, 64
    %v8075 = vpop.permute.xlu0 %8074
    %8076 = vrot.lane.b32.xlu0 %v8029, 64
    %v8077 = vpop.permute.xlu0 %8076
    %v8094 = vsel %vm103, %v8047, 0.0
    %8095 = vadd.xlane.f32.xlu0 %v8094
    %v8096 = vpop.xlane.xlu0 %8095
    %v8097 = vsel %vm103, %v8049, 0.0
    %8098 = vadd.xlane.f32.xlu0 %v8097
    %v8099 = vpop.xlane.xlu0 %8098
    %v8100 = vsel %vm103, %v8051, 0.0
    %8101 = vadd.xlane.f32.xlu0 %v8100
    %v8102 = vpop.xlane.xlu0 %8101
    %v8103 = vsel %vm103, %v8053, 0.0
    %8104 = vadd.xlane.f32.xlu0 %v8103
    %v8105 = vpop.xlane.xlu0 %8104
    %v8106 = vsel %vm103, %v8055, 0.0
    %8107 = vadd.xlane.f32.xlu0 %v8106
    %v8108 = vpop.xlane.xlu0 %8107
    %v8109 = vsel %vm103, %v8057, 0.0
    %8110 = vadd.xlane.f32.xlu0 %v8109
    %v8111 = vpop.xlane.xlu0 %8110
    %v8112 = vsel %vm103, %v8059, 0.0
    %8113 = vadd.xlane.f32.xlu0 %v8112
    %v8114 = vpop.xlane.xlu0 %8113
    %v8115 = vsel %vm103, %v8061, 0.0
    %8116 = vadd.xlane.f32.xlu0 %v8115
    %v8117 = vpop.xlane.xlu0 %8116
    %v8118 = vsel %vm103, %v8063, 0.0
    %8119 = vadd.xlane.f32.xlu0 %v8118
    %v8120 = vpop.xlane.xlu0 %8119
    %v8121 = vsel %vm103, %v8065, 0.0
    %8122 = vadd.xlane.f32.xlu0 %v8121
    %v8123 = vpop.xlane.xlu0 %8122
    %v8124 = vsel %vm103, %v8067, 0.0
    %8125 = vadd.xlane.f32.xlu0 %v8124
    %v8126 = vpop.xlane.xlu0 %8125
    %v8127 = vsel %vm103, %v8069, 0.0
    %8128 = vadd.xlane.f32.xlu0 %v8127
    %v8129 = vpop.xlane.xlu0 %8128
    %v8130 = vsel %vm103, %v8071, 0.0
    %8131 = vadd.xlane.f32.xlu0 %v8130
    %v8132 = vpop.xlane.xlu0 %8131
    %v8133 = vsel %vm103, %v8073, 0.0
    %8134 = vadd.xlane.f32.xlu0 %v8133
    %v8135 = vpop.xlane.xlu0 %8134
    %v8136 = vsel %vm103, %v8075, 0.0
    %8137 = vadd.xlane.f32.xlu0 %v8136
    %v8138 = vpop.xlane.xlu0 %8137
    %v8139 = vsel %vm103, %v8077, 0.0
    %8140 = vadd.xlane.f32.xlu0 %v8139
    %v8141 = vpop.xlane.xlu0 %8140
    %v8142 = vmul.f32 %v7825, %v6820
    %v8143 = vmul.f32 %v7829, %v6821
    %v8144 = vmul.f32 %v7833, %v6822
    %v8145 = vmul.f32 %v7837, %v6823
    %v8146 = vmul.f32 %v7841, %v6824
    %v8147 = vmul.f32 %v7845, %v6825
    %v8148 = vmul.f32 %v7849, %v6826
    %v8149 = vmul.f32 %v7853, %v6827
    %v8150 = vmul.f32 %v7857, %v6828
    %v8151 = vmul.f32 %v7861, %v6829
    %v8152 = vmul.f32 %v7865, %v6830
    %v8153 = vmul.f32 %v7869, %v6831
    %v8154 = vmul.f32 %v7873, %v6832
    %v8155 = vmul.f32 %v7877, %v6833
    %v8156 = vmul.f32 %v7881, %v6834
    %v8157 = vmul.f32 %v7885, %v6835
    %v8158 = vsel %vm103, %v8142, 0.0
    %8159 = vadd.xlane.f32.xlu0 %v8158
    %v8160 = vpop.xlane.xlu0 %8159
    %v8161 = vsel %vm103, %v8143, 0.0
    %8162 = vadd.xlane.f32.xlu0 %v8161
    %v8163 = vpop.xlane.xlu0 %8162
    %v8164 = vsel %vm103, %v8144, 0.0
    %8165 = vadd.xlane.f32.xlu0 %v8164
    %v8166 = vpop.xlane.xlu0 %8165
    %v8167 = vsel %vm103, %v8145, 0.0
    %8168 = vadd.xlane.f32.xlu0 %v8167
    %v8169 = vpop.xlane.xlu0 %8168
    %v8170 = vsel %vm103, %v8146, 0.0
    %8171 = vadd.xlane.f32.xlu0 %v8170
    %v8172 = vpop.xlane.xlu0 %8171
    %v8173 = vsel %vm103, %v8147, 0.0
    %8174 = vadd.xlane.f32.xlu0 %v8173
    %v8175 = vpop.xlane.xlu0 %8174
    %v8176 = vsel %vm103, %v8148, 0.0
    %8177 = vadd.xlane.f32.xlu0 %v8176
    %v8178 = vpop.xlane.xlu0 %8177
    %v8179 = vsel %vm103, %v8149, 0.0
    %8180 = vadd.xlane.f32.xlu0 %v8179
    %v8181 = vpop.xlane.xlu0 %8180
    %v8182 = vsel %vm103, %v8150, 0.0
    %8183 = vadd.xlane.f32.xlu0 %v8182
    %v8184 = vpop.xlane.xlu0 %8183
    %v8185 = vsel %vm103, %v8151, 0.0
    %8186 = vadd.xlane.f32.xlu0 %v8185
    %v8187 = vpop.xlane.xlu0 %8186
    %v8188 = vsel %vm103, %v8152, 0.0
    %8189 = vadd.xlane.f32.xlu0 %v8188
    %v8190 = vpop.xlane.xlu0 %8189
    %v8191 = vsel %vm103, %v8153, 0.0
    %8192 = vadd.xlane.f32.xlu0 %v8191
    %v8193 = vpop.xlane.xlu0 %8192
    %v8194 = vsel %vm103, %v8154, 0.0
    %8195 = vadd.xlane.f32.xlu0 %v8194
    %v8196 = vpop.xlane.xlu0 %8195
    %v8197 = vsel %vm103, %v8155, 0.0
    %8198 = vadd.xlane.f32.xlu0 %v8197
    %v8199 = vpop.xlane.xlu0 %8198
    %v8200 = vsel %vm103, %v8156, 0.0
    %8201 = vadd.xlane.f32.xlu0 %v8200
    %v8202 = vpop.xlane.xlu0 %8201
    %v8203 = vsel %vm103, %v8157, 0.0
    %8204 = vadd.xlane.f32.xlu0 %v8203
    %v8205 = vpop.xlane.xlu0 %8204
    %v8206 = vmul.f32 %v7825, %v7967
    %v8207 = vmul.f32 %v7829, %v7969
    %v8208 = vmul.f32 %v7833, %v7971
    %v8209 = vmul.f32 %v7837, %v7973
    %v8210 = vmul.f32 %v7841, %v7975
    %v8211 = vmul.f32 %v7845, %v7977
    %v8212 = vmul.f32 %v7849, %v7979
    %v8213 = vmul.f32 %v7853, %v7981
    %v8214 = vmul.f32 %v7857, %v7983
    %v8215 = vmul.f32 %v7861, %v7985
    %v8216 = vmul.f32 %v7865, %v7987
    %v8217 = vmul.f32 %v7869, %v7989
    %v8218 = vmul.f32 %v7873, %v7991
    %v8219 = vmul.f32 %v7877, %v7993
    %v8220 = vmul.f32 %v7881, %v7995
    %v8221 = vmul.f32 %v7885, %v7997
    %8238 = vrot.lane.b32.xlu0 %v8206, 64
    %v8239 = vpop.permute.xlu0 %8238
    %8240 = vrot.lane.b32.xlu0 %v8207, 64
    %v8241 = vpop.permute.xlu0 %8240
    %8242 = vrot.lane.b32.xlu0 %v8208, 64
    %v8243 = vpop.permute.xlu0 %8242
    %8244 = vrot.lane.b32.xlu0 %v8209, 64
    %v8245 = vpop.permute.xlu0 %8244
    %8246 = vrot.lane.b32.xlu0 %v8210, 64
    %v8247 = vpop.permute.xlu0 %8246
    %8248 = vrot.lane.b32.xlu0 %v8211, 64
    %v8249 = vpop.permute.xlu0 %8248
    %8250 = vrot.lane.b32.xlu0 %v8212, 64
    %v8251 = vpop.permute.xlu0 %8250
    %8252 = vrot.lane.b32.xlu0 %v8213, 64
    %v8253 = vpop.permute.xlu0 %8252
    %8254 = vrot.lane.b32.xlu0 %v8214, 64
    %v8255 = vpop.permute.xlu0 %8254
    %8256 = vrot.lane.b32.xlu0 %v8215, 64
    %v8257 = vpop.permute.xlu0 %8256
    %8258 = vrot.lane.b32.xlu0 %v8216, 64
    %v8259 = vpop.permute.xlu0 %8258
    %8260 = vrot.lane.b32.xlu0 %v8217, 64
    %v8261 = vpop.permute.xlu0 %8260
    %8262 = vrot.lane.b32.xlu0 %v8218, 64
    %v8263 = vpop.permute.xlu0 %8262
    %8264 = vrot.lane.b32.xlu0 %v8219, 64
    %v8265 = vpop.permute.xlu0 %8264
    %8266 = vrot.lane.b32.xlu0 %v8220, 64
    %v8267 = vpop.permute.xlu0 %8266
    %8268 = vrot.lane.b32.xlu0 %v8221, 64
    %v8269 = vpop.permute.xlu0 %8268
    %v8286 = vsel %vm103, %v8239, 0.0
    %8287 = vadd.xlane.f32.xlu0 %v8286
    %v8288 = vpop.xlane.xlu0 %8287
    %v8289 = vsel %vm103, %v8241, 0.0
    %8290 = vadd.xlane.f32.xlu0 %v8289
    %v8291 = vpop.xlane.xlu0 %8290
    %v8292 = vsel %vm103, %v8243, 0.0
    %8293 = vadd.xlane.f32.xlu0 %v8292
    %v8294 = vpop.xlane.xlu0 %8293
    %v8295 = vsel %vm103, %v8245, 0.0
    %8296 = vadd.xlane.f32.xlu0 %v8295
    %v8297 = vpop.xlane.xlu0 %8296
    %v8298 = vsel %vm103, %v8247, 0.0
    %8299 = vadd.xlane.f32.xlu0 %v8298
    %v8300 = vpop.xlane.xlu0 %8299
    %v8301 = vsel %vm103, %v8249, 0.0
    %8302 = vadd.xlane.f32.xlu0 %v8301
    %v8303 = vpop.xlane.xlu0 %8302
    %v8304 = vsel %vm103, %v8251, 0.0
    %8305 = vadd.xlane.f32.xlu0 %v8304
    %v8306 = vpop.xlane.xlu0 %8305
    %v8307 = vsel %vm103, %v8253, 0.0
    %8308 = vadd.xlane.f32.xlu0 %v8307
    %v8309 = vpop.xlane.xlu0 %8308
    %v8310 = vsel %vm103, %v8255, 0.0
    %8311 = vadd.xlane.f32.xlu0 %v8310
    %v8312 = vpop.xlane.xlu0 %8311
    %v8313 = vsel %vm103, %v8257, 0.0
    %8314 = vadd.xlane.f32.xlu0 %v8313
    %v8315 = vpop.xlane.xlu0 %8314
    %v8316 = vsel %vm103, %v8259, 0.0
    %8317 = vadd.xlane.f32.xlu0 %v8316
    %v8318 = vpop.xlane.xlu0 %8317
    %v8319 = vsel %vm103, %v8261, 0.0
    %8320 = vadd.xlane.f32.xlu0 %v8319
    %v8321 = vpop.xlane.xlu0 %8320
    %v8322 = vsel %vm103, %v8263, 0.0
    %8323 = vadd.xlane.f32.xlu0 %v8322
    %v8324 = vpop.xlane.xlu0 %8323
    %v8325 = vsel %vm103, %v8265, 0.0
    %8326 = vadd.xlane.f32.xlu0 %v8325
    %v8327 = vpop.xlane.xlu0 %8326
    %v8328 = vsel %vm103, %v8267, 0.0
    %8329 = vadd.xlane.f32.xlu0 %v8328
    %v8330 = vpop.xlane.xlu0 %8329
    %v8331 = vsel %vm103, %v8269, 0.0
    %8332 = vadd.xlane.f32.xlu0 %v8331
    %v8333 = vpop.xlane.xlu0 %8332
    %v8334 = vsel %vm1647, %v7904, %v8096
    %v8335 = vsel %vm1647, %v7907, %v8099
    %v8336 = vsel %vm1647, %v7910, %v8102
    %v8337 = vsel %vm1647, %v7913, %v8105
    %v8338 = vsel %vm1647, %v7916, %v8108
    %v8339 = vsel %vm1647, %v7919, %v8111
    %v8340 = vsel %vm1647, %v7922, %v8114
    %v8341 = vsel %vm1647, %v7925, %v8117
    %v8342 = vsel %vm1647, %v7928, %v8120
    %v8343 = vsel %vm1647, %v7931, %v8123
    %v8344 = vsel %vm1647, %v7934, %v8126
    %v8345 = vsel %vm1647, %v7937, %v8129
    %v8346 = vsel %vm1647, %v7940, %v8132
    %v8347 = vsel %vm1647, %v7943, %v8135
    %v8348 = vsel %vm1647, %v7946, %v8138
    %v8349 = vsel %vm1647, %v7949, %v8141
    %v8350 = vsel %vm1664, %v8334, %v8160
    %v8351 = vsel %vm1664, %v8335, %v8163
    %v8352 = vsel %vm1664, %v8336, %v8166
    %v8353 = vsel %vm1664, %v8337, %v8169
    %v8354 = vsel %vm1664, %v8338, %v8172
    %v8355 = vsel %vm1664, %v8339, %v8175
    %v8356 = vsel %vm1664, %v8340, %v8178
    %v8357 = vsel %vm1664, %v8341, %v8181
    %v8358 = vsel %vm1664, %v8342, %v8184
    %v8359 = vsel %vm1664, %v8343, %v8187
    %v8360 = vsel %vm1664, %v8344, %v8190
    %v8361 = vsel %vm1664, %v8345, %v8193
    %v8362 = vsel %vm1664, %v8346, %v8196
    %v8363 = vsel %vm1664, %v8347, %v8199
    %v8364 = vsel %vm1664, %v8348, %v8202
    %v8365 = vsel %vm1664, %v8349, %v8205
    %v8366 = vsel %vm1681, %v8350, %v8288
    %v8367 = vsel %vm1681, %v8351, %v8291
    %v8368 = vsel %vm1681, %v8352, %v8294
    %v8369 = vsel %vm1681, %v8353, %v8297
    %v8370 = vsel %vm1681, %v8354, %v8300
    %v8371 = vsel %vm1681, %v8355, %v8303
    %v8372 = vsel %vm1681, %v8356, %v8306
    %v8373 = vsel %vm1681, %v8357, %v8309
    %v8374 = vsel %vm1681, %v8358, %v8312
    %v8375 = vsel %vm1681, %v8359, %v8315
    %v8376 = vsel %vm1681, %v8360, %v8318
    %v8377 = vsel %vm1681, %v8361, %v8321
    %v8378 = vsel %vm1681, %v8362, %v8324
    %v8379 = vsel %vm1681, %v8363, %v8327
    %v8380 = vsel %vm1681, %v8364, %v8330
    %v8381 = vsel %vm1681, %v8365, %v8333
    %8382 = vxpose.xlu0.b32.start [1/16] %v8366, 128
    %8383 = vxpose.xlu0.b32.cont [2/16] %v8367, 128
    %8384 = vxpose.xlu0.b32.cont [3/16] %v8368, 128
    %8385 = vxpose.xlu0.b32.cont [4/16] %v8369, 128
    %8386 = vxpose.xlu0.b32.cont [5/16] %v8370, 128
    %8387 = vxpose.xlu0.b32.cont [6/16] %v8371, 128
    %8388 = vxpose.xlu0.b32.cont [7/16] %v8372, 128
    %8389 = vxpose.xlu0.b32.cont [8/16] %v8373, 128
    %8390 = vxpose.xlu0.b32.cont [9/16] %v8374, 128
    %8391 = vxpose.xlu0.b32.cont [10/16] %v8375, 128
    %8392 = vxpose.xlu0.b32.cont [11/16] %v8376, 128
    %8393 = vxpose.xlu0.b32.cont [12/16] %v8377, 128
    %8394 = vxpose.xlu0.b32.cont [13/16] %v8378, 128
    %8395 = vxpose.xlu0.b32.cont [14/16] %v8379, 128
    %8396 = vxpose.xlu0.b32.cont [15/16] %v8380, 128
    %8397 = vxpose.xlu0.b32.end [16/16] %v8381, 128
    %v8398 = vpop.trf.xlu0
    %v8399 = vpop.trf.xlu0
    %v8400 = vpop.trf.xlu0
    %v8401 = vpop.trf.xlu0
    %v8402 = vpop.trf.xlu0
    %v8403 = vpop.trf.xlu0
    %v8404 = vpop.trf.xlu0
    %v8405 = vpop.trf.xlu0
    %v8406 = vpop.trf.xlu0
    %v8407 = vpop.trf.xlu0
    %v8408 = vpop.trf.xlu0
    %v8409 = vpop.trf.xlu0
    %v8410 = vpop.trf.xlu0
    %v8411 = vpop.trf.xlu0
    %v8412 = vpop.trf.xlu0
    %v8413 = vpop.trf.xlu0
    %8414 = vst [vmem:[#allocation2 + $0x10] sm:$0xf] %v8398
    %v8415 = vadd.f32 %v7300, %v7301
    %v8416 = vadd.f32 %v8415, %v7302
    %v8417 = vadd.f32 %v8416, %v7303
    %v8418 = vadd.f32 %v8417, %v7304
    %v8419 = vadd.f32 %v8418, %v7305
    %v8420 = vadd.f32 %v8419, %v7306
    %v8421 = vadd.f32 %v8420, %v7307
    %v8422 = vadd.f32 %v8421, %v7308
    %v8423 = vadd.f32 %v8422, %v7309
    %v8424 = vadd.f32 %v8423, %v7310
    %v8425 = vadd.f32 %v8424, %v7311
    %v8426 = vadd.f32 %v8425, %v7312
    %v8427 = vadd.f32 %v8426, %v7313
    %v8428 = vadd.f32 %v8427, %v7314
    %v8429 = vadd.f32 %v8428, %v7315
    %v8430 = vrot.slane %v8429, 4
    %v8431 = vadd.f32 %v8429, %v8430
    %v8432 = vrot.slane %v8431, 2
    %v8433 = vadd.f32 %v8431, %v8432
    %v8434 = vrot.slane %v8433, 1
    %v8435 = vadd.f32 %v8433, %v8434
    %v8436 = vadd.f32 %v7316, %v7317
    %v8437 = vadd.f32 %v8436, %v7318
    %v8438 = vadd.f32 %v8437, %v7319
    %v8439 = vadd.f32 %v8438, %v7320
    %v8440 = vadd.f32 %v8439, %v7321
    %v8441 = vadd.f32 %v8440, %v7322
    %v8442 = vadd.f32 %v8441, %v7323
    %v8443 = vadd.f32 %v8442, %v7324
    %v8444 = vadd.f32 %v8443, %v7325
    %v8445 = vadd.f32 %v8444, %v7326
    %v8446 = vadd.f32 %v8445, %v7327
    %v8447 = vadd.f32 %v8446, %v7328
    %v8448 = vadd.f32 %v8447, %v7329
    %v8449 = vadd.f32 %v8448, %v7330
    %v8450 = vadd.f32 %v8449, %v7331
    %v8451 = vrot.slane %v8450, 4
    %v8452 = vadd.f32 %v8450, %v8451
    %v8453 = vrot.slane %v8452, 2
    %v8454 = vadd.f32 %v8452, %v8453
    %v8455 = vrot.slane %v8454, 1
    %v8456 = vadd.f32 %v8454, %v8455
    %v8457 = vadd.f32 %v6786, %v8435
    %v8458 = vadd.f32 %v6787, %v8456
    %v8459 = vld [vmem:[%s0 + $0x280] sm:$0xff]
    %v8460 = vld [vmem:[%s0 + $0x288] sm:$0xff]
    %v8461 = vld [vmem:[%s0 + $0x290] sm:$0xff]
    %v8462 = vld [vmem:[%s0 + $0x298] sm:$0xff]
    %v8463 = vld [vmem:[%s0 + $0x2a0] sm:$0xff]
    %v8464 = vld [vmem:[%s0 + $0x2a8] sm:$0xff]
    %v8465 = vld [vmem:[%s0 + $0x2b0] sm:$0xff]
    %v8466 = vld [vmem:[%s0 + $0x2b8] sm:$0xff]
    %v8467 = vld [vmem:[%s0 + $0x2c0] sm:$0xff]
    %v8468 = vld [vmem:[%s0 + $0x2c8] sm:$0xff]
    %v8469 = vld [vmem:[%s0 + $0x2d0] sm:$0xff]
    %v8470 = vld [vmem:[%s0 + $0x2d8] sm:$0xff]
    %v8471 = vld [vmem:[%s0 + $0x2e0] sm:$0xff]
    %v8472 = vld [vmem:[%s0 + $0x2e8] sm:$0xff]
    %v8473 = vld [vmem:[%s0 + $0x2f0] sm:$0xff]
    %v8474 = vld [vmem:[%s0 + $0x2f8] sm:$0xff]
    %v8475 = vld [vmem:[%s1 + $0x280] sm:$0xff]
    %v8476 = vld [vmem:[%s1 + $0x288] sm:$0xff]
    %v8477 = vld [vmem:[%s1 + $0x290] sm:$0xff]
    %v8478 = vld [vmem:[%s1 + $0x298] sm:$0xff]
    %v8479 = vld [vmem:[%s1 + $0x2a0] sm:$0xff]
    %v8480 = vld [vmem:[%s1 + $0x2a8] sm:$0xff]
    %v8481 = vld [vmem:[%s1 + $0x2b0] sm:$0xff]
    %v8482 = vld [vmem:[%s1 + $0x2b8] sm:$0xff]
    %v8483 = vld [vmem:[%s1 + $0x2c0] sm:$0xff]
    %v8484 = vld [vmem:[%s1 + $0x2c8] sm:$0xff]
    %v8485 = vld [vmem:[%s1 + $0x2d0] sm:$0xff]
    %v8486 = vld [vmem:[%s1 + $0x2d8] sm:$0xff]
    %v8487 = vld [vmem:[%s1 + $0x2e0] sm:$0xff]
    %v8488 = vld [vmem:[%s1 + $0x2e8] sm:$0xff]
    %v8489 = vld [vmem:[%s1 + $0x2f0] sm:$0xff]
    %v8490 = vld [vmem:[%s1 + $0x2f8] sm:$0xff]
    %v8491 = vld [vmem:[%s2 + $0x280] sm:$0xff]
    %v8492 = vld [vmem:[%s2 + $0x288] sm:$0xff]
    %v8493 = vld [vmem:[%s2 + $0x290] sm:$0xff]
    %v8494 = vld [vmem:[%s2 + $0x298] sm:$0xff]
    %v8495 = vld [vmem:[%s2 + $0x2a0] sm:$0xff]
    %v8496 = vld [vmem:[%s2 + $0x2a8] sm:$0xff]
    %v8497 = vld [vmem:[%s2 + $0x2b0] sm:$0xff]
    %v8498 = vld [vmem:[%s2 + $0x2b8] sm:$0xff]
    %v8499 = vld [vmem:[%s2 + $0x2c0] sm:$0xff]
    %v8500 = vld [vmem:[%s2 + $0x2c8] sm:$0xff]
    %v8501 = vld [vmem:[%s2 + $0x2d0] sm:$0xff]
    %v8502 = vld [vmem:[%s2 + $0x2d8] sm:$0xff]
    %v8503 = vld [vmem:[%s2 + $0x2e0] sm:$0xff]
    %v8504 = vld [vmem:[%s2 + $0x2e8] sm:$0xff]
    %v8505 = vld [vmem:[%s2 + $0x2f0] sm:$0xff]
    %v8506 = vld [vmem:[%s2 + $0x2f8] sm:$0xff]
    %8508 = vset.pattern.permute.xlu0 0
    %8509 = vperm.xlu0 %8508, %v8459
    %v8510 = vpop.permute.xlu0 %8509
    %8513 = vset.pattern.permute.xlu0 0
    %8514 = vperm.xlu0 %8513, %v8460
    %v8515 = vpop.permute.xlu0 %8514
    %8518 = vset.pattern.permute.xlu0 0
    %8519 = vperm.xlu0 %8518, %v8461
    %v8520 = vpop.permute.xlu0 %8519
    %8523 = vset.pattern.permute.xlu0 0
    %8524 = vperm.xlu0 %8523, %v8462
    %v8525 = vpop.permute.xlu0 %8524
    %8528 = vset.pattern.permute.xlu0 0
    %8529 = vperm.xlu0 %8528, %v8463
    %v8530 = vpop.permute.xlu0 %8529
    %8533 = vset.pattern.permute.xlu0 0
    %8534 = vperm.xlu0 %8533, %v8464
    %v8535 = vpop.permute.xlu0 %8534
    %8538 = vset.pattern.permute.xlu0 0
    %8539 = vperm.xlu0 %8538, %v8465
    %v8540 = vpop.permute.xlu0 %8539
    %8543 = vset.pattern.permute.xlu0 0
    %8544 = vperm.xlu0 %8543, %v8466
    %v8545 = vpop.permute.xlu0 %8544
    %8548 = vset.pattern.permute.xlu0 0
    %8549 = vperm.xlu0 %8548, %v8467
    %v8550 = vpop.permute.xlu0 %8549
    %8553 = vset.pattern.permute.xlu0 0
    %8554 = vperm.xlu0 %8553, %v8468
    %v8555 = vpop.permute.xlu0 %8554
    %8558 = vset.pattern.permute.xlu0 0
    %8559 = vperm.xlu0 %8558, %v8469
    %v8560 = vpop.permute.xlu0 %8559
    %8563 = vset.pattern.permute.xlu0 0
    %8564 = vperm.xlu0 %8563, %v8470
    %v8565 = vpop.permute.xlu0 %8564
    %8568 = vset.pattern.permute.xlu0 0
    %8569 = vperm.xlu0 %8568, %v8471
    %v8570 = vpop.permute.xlu0 %8569
    %8573 = vset.pattern.permute.xlu0 0
    %8574 = vperm.xlu0 %8573, %v8472
    %v8575 = vpop.permute.xlu0 %8574
    %8578 = vset.pattern.permute.xlu0 0
    %8579 = vperm.xlu0 %8578, %v8473
    %v8580 = vpop.permute.xlu0 %8579
    %8583 = vset.pattern.permute.xlu0 0
    %8584 = vperm.xlu0 %8583, %v8474
    %v8585 = vpop.permute.xlu0 %8584
    %v8587 = vmul.f32 %v8510, %v8475
    %v8588 = vmul.f32 %v8515, %v8476
    %v8589 = vmul.f32 %v8520, %v8477
    %v8590 = vmul.f32 %v8525, %v8478
    %v8591 = vmul.f32 %v8530, %v8479
    %v8592 = vmul.f32 %v8535, %v8480
    %v8593 = vmul.f32 %v8540, %v8481
    %v8594 = vmul.f32 %v8545, %v8482
    %v8595 = vmul.f32 %v8550, %v8483
    %v8596 = vmul.f32 %v8555, %v8484
    %v8597 = vmul.f32 %v8560, %v8485
    %v8598 = vmul.f32 %v8565, %v8486
    %v8599 = vmul.f32 %v8570, %v8487
    %v8600 = vmul.f32 %v8575, %v8488
    %v8601 = vmul.f32 %v8580, %v8489
    %v8602 = vmul.f32 %v8585, %v8490
    %8603 = vset.pattern.permute.xlu0 1
    %8604 = vperm.xlu0 %8603, %v8459
    %v8605 = vpop.permute.xlu0 %8604
    %8607 = vset.pattern.permute.xlu0 1
    %8608 = vperm.xlu0 %8607, %v8460
    %v8609 = vpop.permute.xlu0 %8608
    %8611 = vset.pattern.permute.xlu0 1
    %8612 = vperm.xlu0 %8611, %v8461
    %v8613 = vpop.permute.xlu0 %8612
    %8615 = vset.pattern.permute.xlu0 1
    %8616 = vperm.xlu0 %8615, %v8462
    %v8617 = vpop.permute.xlu0 %8616
    %8619 = vset.pattern.permute.xlu0 1
    %8620 = vperm.xlu0 %8619, %v8463
    %v8621 = vpop.permute.xlu0 %8620
    %8623 = vset.pattern.permute.xlu0 1
    %8624 = vperm.xlu0 %8623, %v8464
    %v8625 = vpop.permute.xlu0 %8624
    %8627 = vset.pattern.permute.xlu0 1
    %8628 = vperm.xlu0 %8627, %v8465
    %v8629 = vpop.permute.xlu0 %8628
    %8631 = vset.pattern.permute.xlu0 1
    %8632 = vperm.xlu0 %8631, %v8466
    %v8633 = vpop.permute.xlu0 %8632
    %8635 = vset.pattern.permute.xlu0 1
    %8636 = vperm.xlu0 %8635, %v8467
    %v8637 = vpop.permute.xlu0 %8636
    %8639 = vset.pattern.permute.xlu0 1
    %8640 = vperm.xlu0 %8639, %v8468
    %v8641 = vpop.permute.xlu0 %8640
    %8643 = vset.pattern.permute.xlu0 1
    %8644 = vperm.xlu0 %8643, %v8469
    %v8645 = vpop.permute.xlu0 %8644
    %8647 = vset.pattern.permute.xlu0 1
    %8648 = vperm.xlu0 %8647, %v8470
    %v8649 = vpop.permute.xlu0 %8648
    %8651 = vset.pattern.permute.xlu0 1
    %8652 = vperm.xlu0 %8651, %v8471
    %v8653 = vpop.permute.xlu0 %8652
    %8655 = vset.pattern.permute.xlu0 1
    %8656 = vperm.xlu0 %8655, %v8472
    %v8657 = vpop.permute.xlu0 %8656
    %8659 = vset.pattern.permute.xlu0 1
    %8660 = vperm.xlu0 %8659, %v8473
    %v8661 = vpop.permute.xlu0 %8660
    %8663 = vset.pattern.permute.xlu0 1
    %8664 = vperm.xlu0 %8663, %v8474
    %v8665 = vpop.permute.xlu0 %8664
    %v8667 = vmul.f32 %v8605, %v8475
    %v8668 = vmul.f32 %v8609, %v8476
    %v8669 = vmul.f32 %v8613, %v8477
    %v8670 = vmul.f32 %v8617, %v8478
    %v8671 = vmul.f32 %v8621, %v8479
    %v8672 = vmul.f32 %v8625, %v8480
    %v8673 = vmul.f32 %v8629, %v8481
    %v8674 = vmul.f32 %v8633, %v8482
    %v8675 = vmul.f32 %v8637, %v8483
    %v8676 = vmul.f32 %v8641, %v8484
    %v8677 = vmul.f32 %v8645, %v8485
    %v8678 = vmul.f32 %v8649, %v8486
    %v8679 = vmul.f32 %v8653, %v8487
    %v8680 = vmul.f32 %v8657, %v8488
    %v8681 = vmul.f32 %v8661, %v8489
    %v8682 = vmul.f32 %v8665, %v8490
    %8683 = vset.pattern.permute.xlu0 2
    %8684 = vperm.xlu0 %8683, %v8459
    %v8685 = vpop.permute.xlu0 %8684
    %8687 = vset.pattern.permute.xlu0 2
    %8688 = vperm.xlu0 %8687, %v8460
    %v8689 = vpop.permute.xlu0 %8688
    %8691 = vset.pattern.permute.xlu0 2
    %8692 = vperm.xlu0 %8691, %v8461
    %v8693 = vpop.permute.xlu0 %8692
    %8695 = vset.pattern.permute.xlu0 2
    %8696 = vperm.xlu0 %8695, %v8462
    %v8697 = vpop.permute.xlu0 %8696
    %8699 = vset.pattern.permute.xlu0 2
    %8700 = vperm.xlu0 %8699, %v8463
    %v8701 = vpop.permute.xlu0 %8700
    %8703 = vset.pattern.permute.xlu0 2
    %8704 = vperm.xlu0 %8703, %v8464
    %v8705 = vpop.permute.xlu0 %8704
    %8707 = vset.pattern.permute.xlu0 2
    %8708 = vperm.xlu0 %8707, %v8465
    %v8709 = vpop.permute.xlu0 %8708
    %8711 = vset.pattern.permute.xlu0 2
    %8712 = vperm.xlu0 %8711, %v8466
    %v8713 = vpop.permute.xlu0 %8712
    %8715 = vset.pattern.permute.xlu0 2
    %8716 = vperm.xlu0 %8715, %v8467
    %v8717 = vpop.permute.xlu0 %8716
    %8719 = vset.pattern.permute.xlu0 2
    %8720 = vperm.xlu0 %8719, %v8468
    %v8721 = vpop.permute.xlu0 %8720
    %8723 = vset.pattern.permute.xlu0 2
    %8724 = vperm.xlu0 %8723, %v8469
    %v8725 = vpop.permute.xlu0 %8724
    %8727 = vset.pattern.permute.xlu0 2
    %8728 = vperm.xlu0 %8727, %v8470
    %v8729 = vpop.permute.xlu0 %8728
    %8731 = vset.pattern.permute.xlu0 2
    %8732 = vperm.xlu0 %8731, %v8471
    %v8733 = vpop.permute.xlu0 %8732
    %8735 = vset.pattern.permute.xlu0 2
    %8736 = vperm.xlu0 %8735, %v8472
    %v8737 = vpop.permute.xlu0 %8736
    %8739 = vset.pattern.permute.xlu0 2
    %8740 = vperm.xlu0 %8739, %v8473
    %v8741 = vpop.permute.xlu0 %8740
    %8743 = vset.pattern.permute.xlu0 2
    %8744 = vperm.xlu0 %8743, %v8474
    %v8745 = vpop.permute.xlu0 %8744
    %v8747 = vmul.f32 %v8685, %v8475
    %v8748 = vmul.f32 %v8689, %v8476
    %v8749 = vmul.f32 %v8693, %v8477
    %v8750 = vmul.f32 %v8697, %v8478
    %v8751 = vmul.f32 %v8701, %v8479
    %v8752 = vmul.f32 %v8705, %v8480
    %v8753 = vmul.f32 %v8709, %v8481
    %v8754 = vmul.f32 %v8713, %v8482
    %v8755 = vmul.f32 %v8717, %v8483
    %v8756 = vmul.f32 %v8721, %v8484
    %v8757 = vmul.f32 %v8725, %v8485
    %v8758 = vmul.f32 %v8729, %v8486
    %v8759 = vmul.f32 %v8733, %v8487
    %v8760 = vmul.f32 %v8737, %v8488
    %v8761 = vmul.f32 %v8741, %v8489
    %v8762 = vmul.f32 %v8745, %v8490
    %8763 = vset.pattern.permute.xlu0 3
    %8764 = vperm.xlu0 %8763, %v8459
    %v8765 = vpop.permute.xlu0 %8764
    %8767 = vset.pattern.permute.xlu0 3
    %8768 = vperm.xlu0 %8767, %v8460
    %v8769 = vpop.permute.xlu0 %8768
    %8771 = vset.pattern.permute.xlu0 3
    %8772 = vperm.xlu0 %8771, %v8461
    %v8773 = vpop.permute.xlu0 %8772
    %8775 = vset.pattern.permute.xlu0 3
    %8776 = vperm.xlu0 %8775, %v8462
    %v8777 = vpop.permute.xlu0 %8776
    %8779 = vset.pattern.permute.xlu0 3
    %8780 = vperm.xlu0 %8779, %v8463
    %v8781 = vpop.permute.xlu0 %8780
    %8783 = vset.pattern.permute.xlu0 3
    %8784 = vperm.xlu0 %8783, %v8464
    %v8785 = vpop.permute.xlu0 %8784
    %8787 = vset.pattern.permute.xlu0 3
    %8788 = vperm.xlu0 %8787, %v8465
    %v8789 = vpop.permute.xlu0 %8788
    %8791 = vset.pattern.permute.xlu0 3
    %8792 = vperm.xlu0 %8791, %v8466
    %v8793 = vpop.permute.xlu0 %8792
    %8795 = vset.pattern.permute.xlu0 3
    %8796 = vperm.xlu0 %8795, %v8467
    %v8797 = vpop.permute.xlu0 %8796
    %8799 = vset.pattern.permute.xlu0 3
    %8800 = vperm.xlu0 %8799, %v8468
    %v8801 = vpop.permute.xlu0 %8800
    %8803 = vset.pattern.permute.xlu0 3
    %8804 = vperm.xlu0 %8803, %v8469
    %v8805 = vpop.permute.xlu0 %8804
    %8807 = vset.pattern.permute.xlu0 3
    %8808 = vperm.xlu0 %8807, %v8470
    %v8809 = vpop.permute.xlu0 %8808
    %8811 = vset.pattern.permute.xlu0 3
    %8812 = vperm.xlu0 %8811, %v8471
    %v8813 = vpop.permute.xlu0 %8812
    %8815 = vset.pattern.permute.xlu0 3
    %8816 = vperm.xlu0 %8815, %v8472
    %v8817 = vpop.permute.xlu0 %8816
    %8819 = vset.pattern.permute.xlu0 3
    %8820 = vperm.xlu0 %8819, %v8473
    %v8821 = vpop.permute.xlu0 %8820
    %8823 = vset.pattern.permute.xlu0 3
    %8824 = vperm.xlu0 %8823, %v8474
    %v8825 = vpop.permute.xlu0 %8824
    %v8827 = vmul.f32 %v8765, %v8475
    %v8828 = vmul.f32 %v8769, %v8476
    %v8829 = vmul.f32 %v8773, %v8477
    %v8830 = vmul.f32 %v8777, %v8478
    %v8831 = vmul.f32 %v8781, %v8479
    %v8832 = vmul.f32 %v8785, %v8480
    %v8833 = vmul.f32 %v8789, %v8481
    %v8834 = vmul.f32 %v8793, %v8482
    %v8835 = vmul.f32 %v8797, %v8483
    %v8836 = vmul.f32 %v8801, %v8484
    %v8837 = vmul.f32 %v8805, %v8485
    %v8838 = vmul.f32 %v8809, %v8486
    %v8839 = vmul.f32 %v8813, %v8487
    %v8840 = vmul.f32 %v8817, %v8488
    %v8841 = vmul.f32 %v8821, %v8489
    %v8842 = vmul.f32 %v8825, %v8490
    %8859 = vrot.lane.b32.xlu0 %v8667, 64
    %v8860 = vpop.permute.xlu0 %8859
    %8861 = vrot.lane.b32.xlu0 %v8668, 64
    %v8862 = vpop.permute.xlu0 %8861
    %8863 = vrot.lane.b32.xlu0 %v8669, 64
    %v8864 = vpop.permute.xlu0 %8863
    %8865 = vrot.lane.b32.xlu0 %v8670, 64
    %v8866 = vpop.permute.xlu0 %8865
    %8867 = vrot.lane.b32.xlu0 %v8671, 64
    %v8868 = vpop.permute.xlu0 %8867
    %8869 = vrot.lane.b32.xlu0 %v8672, 64
    %v8870 = vpop.permute.xlu0 %8869
    %8871 = vrot.lane.b32.xlu0 %v8673, 64
    %v8872 = vpop.permute.xlu0 %8871
    %8873 = vrot.lane.b32.xlu0 %v8674, 64
    %v8874 = vpop.permute.xlu0 %8873
    %8875 = vrot.lane.b32.xlu0 %v8675, 64
    %v8876 = vpop.permute.xlu0 %8875
    %8877 = vrot.lane.b32.xlu0 %v8676, 64
    %v8878 = vpop.permute.xlu0 %8877
    %8879 = vrot.lane.b32.xlu0 %v8677, 64
    %v8880 = vpop.permute.xlu0 %8879
    %8881 = vrot.lane.b32.xlu0 %v8678, 64
    %v8882 = vpop.permute.xlu0 %8881
    %8883 = vrot.lane.b32.xlu0 %v8679, 64
    %v8884 = vpop.permute.xlu0 %8883
    %8885 = vrot.lane.b32.xlu0 %v8680, 64
    %v8886 = vpop.permute.xlu0 %8885
    %8887 = vrot.lane.b32.xlu0 %v8681, 64
    %v8888 = vpop.permute.xlu0 %8887
    %8889 = vrot.lane.b32.xlu0 %v8682, 64
    %v8890 = vpop.permute.xlu0 %8889
    %8923 = vrot.lane.b32.xlu0 %v8827, 64
    %v8924 = vpop.permute.xlu0 %8923
    %8925 = vrot.lane.b32.xlu0 %v8828, 64
    %v8926 = vpop.permute.xlu0 %8925
    %8927 = vrot.lane.b32.xlu0 %v8829, 64
    %v8928 = vpop.permute.xlu0 %8927
    %8929 = vrot.lane.b32.xlu0 %v8830, 64
    %v8930 = vpop.permute.xlu0 %8929
    %8931 = vrot.lane.b32.xlu0 %v8831, 64
    %v8932 = vpop.permute.xlu0 %8931
    %8933 = vrot.lane.b32.xlu0 %v8832, 64
    %v8934 = vpop.permute.xlu0 %8933
    %8935 = vrot.lane.b32.xlu0 %v8833, 64
    %v8936 = vpop.permute.xlu0 %8935
    %8937 = vrot.lane.b32.xlu0 %v8834, 64
    %v8938 = vpop.permute.xlu0 %8937
    %8939 = vrot.lane.b32.xlu0 %v8835, 64
    %v8940 = vpop.permute.xlu0 %8939
    %8941 = vrot.lane.b32.xlu0 %v8836, 64
    %v8942 = vpop.permute.xlu0 %8941
    %8943 = vrot.lane.b32.xlu0 %v8837, 64
    %v8944 = vpop.permute.xlu0 %8943
    %8945 = vrot.lane.b32.xlu0 %v8838, 64
    %v8946 = vpop.permute.xlu0 %8945
    %8947 = vrot.lane.b32.xlu0 %v8839, 64
    %v8948 = vpop.permute.xlu0 %8947
    %8949 = vrot.lane.b32.xlu0 %v8840, 64
    %v8950 = vpop.permute.xlu0 %8949
    %8951 = vrot.lane.b32.xlu0 %v8841, 64
    %v8952 = vpop.permute.xlu0 %8951
    %8953 = vrot.lane.b32.xlu0 %v8842, 64
    %v8954 = vpop.permute.xlu0 %8953
    %v8971 = vsel %vm103, %v8587, %v8860
    %v8972 = vsel %vm103, %v8588, %v8862
    %v8973 = vsel %vm103, %v8589, %v8864
    %v8974 = vsel %vm103, %v8590, %v8866
    %v8975 = vsel %vm103, %v8591, %v8868
    %v8976 = vsel %vm103, %v8592, %v8870
    %v8977 = vsel %vm103, %v8593, %v8872
    %v8978 = vsel %vm103, %v8594, %v8874
    %v8979 = vsel %vm103, %v8595, %v8876
    %v8980 = vsel %vm103, %v8596, %v8878
    %v8981 = vsel %vm103, %v8597, %v8880
    %v8982 = vsel %vm103, %v8598, %v8882
    %v8983 = vsel %vm103, %v8599, %v8884
    %v8984 = vsel %vm103, %v8600, %v8886
    %v8985 = vsel %vm103, %v8601, %v8888
    %v8986 = vsel %vm103, %v8602, %v8890
    %v8987 = vsel %vm103, %v8747, %v8924
    %v8988 = vsel %vm103, %v8748, %v8926
    %v8989 = vsel %vm103, %v8749, %v8928
    %v8990 = vsel %vm103, %v8750, %v8930
    %v8991 = vsel %vm103, %v8751, %v8932
    %v8992 = vsel %vm103, %v8752, %v8934
    %v8993 = vsel %vm103, %v8753, %v8936
    %v8994 = vsel %vm103, %v8754, %v8938
    %v8995 = vsel %vm103, %v8755, %v8940
    %v8996 = vsel %vm103, %v8756, %v8942
    %v8997 = vsel %vm103, %v8757, %v8944
    %v8998 = vsel %vm103, %v8758, %v8946
    %v8999 = vsel %vm103, %v8759, %v8948
    %v9000 = vsel %vm103, %v8760, %v8950
    %v9001 = vsel %vm103, %v8761, %v8952
    %v9002 = vsel %vm103, %v8762, %v8954
    %v9003 = vpack.c.bf16 %v8972, %v8971
    %v9004 = vpack.c.bf16 %v8988, %v8987
    %v9005 = vpack.c.bf16 %v8974, %v8973
    %v9006 = vpack.c.bf16 %v8990, %v8989
    %v9007 = vpack.c.bf16 %v8976, %v8975
    %v9008 = vpack.c.bf16 %v8992, %v8991
    %v9009 = vpack.c.bf16 %v8978, %v8977
    %v9010 = vpack.c.bf16 %v8994, %v8993
    %v9011 = vpack.c.bf16 %v8980, %v8979
    %v9012 = vpack.c.bf16 %v8996, %v8995
    %v9013 = vpack.c.bf16 %v8982, %v8981
    %v9014 = vpack.c.bf16 %v8998, %v8997
    %v9015 = vpack.c.bf16 %v8984, %v8983
    %v9016 = vpack.c.bf16 %v9000, %v8999
    %v9017 = vpack.c.bf16 %v8986, %v8985
    %v9018 = vpack.c.bf16 %v9002, %v9001
    %v9019 = vunpack.c.l.bf16 %v9003
    %v9020 = vunpack.c.l.bf16 %v9004
    %v9021 = vunpack.c.h.bf16 %v9003
    %v9022 = vunpack.c.h.bf16 %v9004
    %v9023 = vunpack.c.l.bf16 %v9005
    %v9024 = vunpack.c.l.bf16 %v9006
    %v9025 = vunpack.c.h.bf16 %v9005
    %v9026 = vunpack.c.h.bf16 %v9006
    %v9027 = vunpack.c.l.bf16 %v9007
    %v9028 = vunpack.c.l.bf16 %v9008
    %v9029 = vunpack.c.h.bf16 %v9007
    %v9030 = vunpack.c.h.bf16 %v9008
    %v9031 = vunpack.c.l.bf16 %v9009
    %v9032 = vunpack.c.l.bf16 %v9010
    %v9033 = vunpack.c.h.bf16 %v9009
    %v9034 = vunpack.c.h.bf16 %v9010
    %v9035 = vunpack.c.l.bf16 %v9011
    %v9036 = vunpack.c.l.bf16 %v9012
    %v9037 = vunpack.c.h.bf16 %v9011
    %v9038 = vunpack.c.h.bf16 %v9012
    %v9039 = vunpack.c.l.bf16 %v9013
    %v9040 = vunpack.c.l.bf16 %v9014
    %v9041 = vunpack.c.h.bf16 %v9013
    %v9042 = vunpack.c.h.bf16 %v9014
    %v9043 = vunpack.c.l.bf16 %v9015
    %v9044 = vunpack.c.l.bf16 %v9016
    %v9045 = vunpack.c.h.bf16 %v9015
    %v9046 = vunpack.c.h.bf16 %v9016
    %v9047 = vunpack.c.l.bf16 %v9017
    %v9048 = vunpack.c.l.bf16 %v9018
    %v9049 = vunpack.c.h.bf16 %v9017
    %v9050 = vunpack.c.h.bf16 %v9018
    %v9051 = vsub.f32 %v8971, %v9019
    %v9052 = vsub.f32 %v8987, %v9020
    %v9053 = vsub.f32 %v8972, %v9021
    %v9054 = vsub.f32 %v8988, %v9022
    %v9055 = vsub.f32 %v8973, %v9023
    %v9056 = vsub.f32 %v8989, %v9024
    %v9057 = vsub.f32 %v8974, %v9025
    %v9058 = vsub.f32 %v8990, %v9026
    %v9059 = vsub.f32 %v8975, %v9027
    %v9060 = vsub.f32 %v8991, %v9028
    %v9061 = vsub.f32 %v8976, %v9029
    %v9062 = vsub.f32 %v8992, %v9030
    %v9063 = vsub.f32 %v8977, %v9031
    %v9064 = vsub.f32 %v8993, %v9032
    %v9065 = vsub.f32 %v8978, %v9033
    %v9066 = vsub.f32 %v8994, %v9034
    %v9067 = vsub.f32 %v8979, %v9035
    %v9068 = vsub.f32 %v8995, %v9036
    %v9069 = vsub.f32 %v8980, %v9037
    %v9070 = vsub.f32 %v8996, %v9038
    %v9071 = vsub.f32 %v8981, %v9039
    %v9072 = vsub.f32 %v8997, %v9040
    %v9073 = vsub.f32 %v8982, %v9041
    %v9074 = vsub.f32 %v8998, %v9042
    %v9075 = vsub.f32 %v8983, %v9043
    %v9076 = vsub.f32 %v8999, %v9044
    %v9077 = vsub.f32 %v8984, %v9045
    %v9078 = vsub.f32 %v9000, %v9046
    %v9079 = vsub.f32 %v8985, %v9047
    %v9080 = vsub.f32 %v9001, %v9048
    %v9081 = vsub.f32 %v8986, %v9049
    %v9082 = vsub.f32 %v9002, %v9050
    %v9083 = vpack.c.bf16 %v9053, %v9051
    %v9084 = vpack.c.bf16 %v9054, %v9052
    %v9085 = vpack.c.bf16 %v9057, %v9055
    %v9086 = vpack.c.bf16 %v9058, %v9056
    %v9087 = vpack.c.bf16 %v9061, %v9059
    %v9088 = vpack.c.bf16 %v9062, %v9060
    %v9089 = vpack.c.bf16 %v9065, %v9063
    %v9090 = vpack.c.bf16 %v9066, %v9064
    %v9091 = vpack.c.bf16 %v9069, %v9067
    %v9092 = vpack.c.bf16 %v9070, %v9068
    %v9093 = vpack.c.bf16 %v9073, %v9071
    %v9094 = vpack.c.bf16 %v9074, %v9072
    %v9095 = vpack.c.bf16 %v9077, %v9075
    %v9096 = vpack.c.bf16 %v9078, %v9076
    %v9097 = vpack.c.bf16 %v9081, %v9079
    %v9098 = vpack.c.bf16 %v9082, %v9080
    %9099 = vmatprep.subr.bf16.mxu0 %v9098
    %9100 = vmatpush1.bf16.msra.mxu0 %v9097
    %9101 = vmatprep.subr.bf16.mxu0 %v9096
    %9102 = vmatpush1.bf16.msra.mxu0 %v9095
    %9103 = vmatprep.subr.bf16.mxu0 %v9094
    %9104 = vmatpush1.bf16.msra.mxu0 %v9093
    %9105 = vmatprep.subr.bf16.mxu0 %v9092
    %9106 = vmatpush1.bf16.msra.mxu0 %v9091
    %9107 = vmatprep.subr.bf16.mxu0 %v9090
    %9108 = vmatpush1.bf16.msra.mxu0 %v9089
    %9109 = vmatprep.subr.bf16.mxu0 %v9088
    %9110 = vmatpush1.bf16.msra.mxu0 %v9087
    %9111 = vmatprep.subr.bf16.mxu0 %v9086
    %9112 = vmatpush1.bf16.msra.mxu0 %v9085
    %9113 = vmatprep.subr.bf16.mxu0 %v9084
    %9114 = vmatpush1.bf16.msra.mxu0 %v9083
    %9115 = vmatprep.subr.bf16.mxu0 0
    %9116 = vmatpush2.bf16.msra.mxu0 0
    %9117 = vmatprep.subr.bf16.mxu0 0
    %9118 = vmatpush2.bf16.msra.mxu0 0
    %9119 = vmatprep.subr.bf16.mxu0 0
    %9120 = vmatpush2.bf16.msra.mxu0 0
    %9121 = vmatprep.subr.bf16.mxu0 0
    %9122 = vmatpush2.bf16.msra.mxu0 0
    %9123 = vmatprep.subr.bf16.mxu0 0
    %9124 = vmatpush2.bf16.msra.mxu0 0
    %9125 = vmatprep.subr.bf16.mxu0 0
    %9126 = vmatpush2.bf16.msra.mxu0 0
    %9127 = vmatprep.subr.bf16.mxu0 0
    %9128 = vmatpush2.bf16.msra.mxu0 0
    %9129 = vmatprep.subr.bf16.mxu0 0
    %9130 = vmatpush2.bf16.msra.mxu0 0
    %9131 = vmatprep.mubr.bf16.mxu0 0
    %9132 = vmatmul.mubr.bf16.gmra.mxu0 %v86
    %v9133 = vpop.f32.mrf.mxu0
    %v9134 = vadd.f32 0.0, %v9133
    %v9135 = vpop.f32.mrf.mxu0
    %v9136 = vadd.f32 0.0, %v9135
    %v9137 = vpop.f32.mrf.mxu0
    %v9138 = vadd.f32 0.0, %v9137
    %v9139 = vpop.f32.mrf.mxu0
    %v9140 = vadd.f32 0.0, %v9139
    %9141 = vmatprep.mubr.bf16.mxu0 0
    %9142 = vmatmul.mubr.bf16.gmra.mxu0 %v87
    %v9143 = vpop.f32.mrf.mxu0
    %v9144 = vadd.f32 0.0, %v9143
    %v9145 = vpop.f32.mrf.mxu0
    %v9146 = vadd.f32 0.0, %v9145
    %v9147 = vpop.f32.mrf.mxu0
    %v9148 = vadd.f32 0.0, %v9147
    %v9149 = vpop.f32.mrf.mxu0
    %v9150 = vadd.f32 0.0, %v9149
    %9151 = vmatprep.mubr.bf16.mxu0 0
    %9152 = vmatmul.mubr.bf16.gmra.mxu0 %v88
    %v9153 = vpop.f32.mrf.mxu0
    %v9154 = vadd.f32 0.0, %v9153
    %v9155 = vpop.f32.mrf.mxu0
    %v9156 = vadd.f32 0.0, %v9155
    %v9157 = vpop.f32.mrf.mxu0
    %v9158 = vadd.f32 0.0, %v9157
    %v9159 = vpop.f32.mrf.mxu0
    %v9160 = vadd.f32 0.0, %v9159
    %9161 = vmatprep.mubr.bf16.mxu0 0
    %9162 = vmatmul.mubr.bf16.gmra.mxu0 %v89
    %v9163 = vpop.f32.mrf.mxu0
    %v9164 = vadd.f32 0.0, %v9163
    %v9165 = vpop.f32.mrf.mxu0
    %v9166 = vadd.f32 0.0, %v9165
    %v9167 = vpop.f32.mrf.mxu0
    %v9168 = vadd.f32 0.0, %v9167
    %v9169 = vpop.f32.mrf.mxu0
    %v9170 = vadd.f32 0.0, %v9169
    %9171 = vmatprep.mubr.bf16.mxu0 0
    %9172 = vmatmul.mubr.bf16.gmra.mxu0 %v90
    %v9173 = vpop.f32.mrf.mxu0
    %v9174 = vadd.f32 0.0, %v9173
    %v9175 = vpop.f32.mrf.mxu0
    %v9176 = vadd.f32 0.0, %v9175
    %v9177 = vpop.f32.mrf.mxu0
    %v9178 = vadd.f32 0.0, %v9177
    %v9179 = vpop.f32.mrf.mxu0
    %v9180 = vadd.f32 0.0, %v9179
    %9181 = vmatprep.mubr.bf16.mxu0 0
    %9182 = vmatmul.mubr.bf16.gmra.mxu0 %v91
    %v9183 = vpop.f32.mrf.mxu0
    %v9184 = vadd.f32 0.0, %v9183
    %v9185 = vpop.f32.mrf.mxu0
    %v9186 = vadd.f32 0.0, %v9185
    %v9187 = vpop.f32.mrf.mxu0
    %v9188 = vadd.f32 0.0, %v9187
    %v9189 = vpop.f32.mrf.mxu0
    %v9190 = vadd.f32 0.0, %v9189
    %9191 = vmatprep.mubr.bf16.mxu0 0
    %9192 = vmatmul.mubr.bf16.gmra.mxu0 %v92
    %v9193 = vpop.f32.mrf.mxu0
    %v9194 = vadd.f32 0.0, %v9193
    %v9195 = vpop.f32.mrf.mxu0
    %v9196 = vadd.f32 0.0, %v9195
    %v9197 = vpop.f32.mrf.mxu0
    %v9198 = vadd.f32 0.0, %v9197
    %v9199 = vpop.f32.mrf.mxu0
    %v9200 = vadd.f32 0.0, %v9199
    %9201 = vmatprep.mubr.bf16.mxu0 0
    %9202 = vmatmul.mubr.bf16.gmra.mxu0 %v93
    %v9203 = vpop.f32.mrf.mxu0
    %v9204 = vadd.f32 0.0, %v9203
    %v9205 = vpop.f32.mrf.mxu0
    %v9206 = vadd.f32 0.0, %v9205
    %v9207 = vpop.f32.mrf.mxu0
    %v9208 = vadd.f32 0.0, %v9207
    %v9209 = vpop.f32.mrf.mxu0
    %v9210 = vadd.f32 0.0, %v9209
    %9211 = vdwg.mxu0
    %9212 = vmatprep.subr.bf16.mxu0 %v9018
    %9213 = vmatpush1.bf16.msra.mxu0 %v9017
    %9214 = vmatprep.subr.bf16.mxu0 %v9016
    %9215 = vmatpush1.bf16.msra.mxu0 %v9015
    %9216 = vmatprep.subr.bf16.mxu0 %v9014
    %9217 = vmatpush1.bf16.msra.mxu0 %v9013
    %9218 = vmatprep.subr.bf16.mxu0 %v9012
    %9219 = vmatpush1.bf16.msra.mxu0 %v9011
    %9220 = vmatprep.subr.bf16.mxu0 %v9010
    %9221 = vmatpush1.bf16.msra.mxu0 %v9009
    %9222 = vmatprep.subr.bf16.mxu0 %v9008
    %9223 = vmatpush1.bf16.msra.mxu0 %v9007
    %9224 = vmatprep.subr.bf16.mxu0 %v9006
    %9225 = vmatpush1.bf16.msra.mxu0 %v9005
    %9226 = vmatprep.subr.bf16.mxu0 %v9004
    %9227 = vmatpush1.bf16.msra.mxu0 %v9003
    %9228 = vmatprep.subr.bf16.mxu0 0
    %9229 = vmatpush2.bf16.msra.mxu0 0
    %9230 = vmatprep.subr.bf16.mxu0 0
    %9231 = vmatpush2.bf16.msra.mxu0 0
    %9232 = vmatprep.subr.bf16.mxu0 0
    %9233 = vmatpush2.bf16.msra.mxu0 0
    %9234 = vmatprep.subr.bf16.mxu0 0
    %9235 = vmatpush2.bf16.msra.mxu0 0
    %9236 = vmatprep.subr.bf16.mxu0 0
    %9237 = vmatpush2.bf16.msra.mxu0 0
    %9238 = vmatprep.subr.bf16.mxu0 0
    %9239 = vmatpush2.bf16.msra.mxu0 0
    %9240 = vmatprep.subr.bf16.mxu0 0
    %9241 = vmatpush2.bf16.msra.mxu0 0
    %9242 = vmatprep.subr.bf16.mxu0 0
    %9243 = vmatpush2.bf16.msra.mxu0 0
    %9244 = vmatprep.mubr.bf16.mxu0 0
    %9245 = vmatmul.mubr.bf16.gmra.mxu0 %v86
    %v9246 = vpop.f32.mrf.mxu0
    %v9247 = vadd.f32 %v9134, %v9246
    %v9248 = vpop.f32.mrf.mxu0
    %v9249 = vadd.f32 %v9136, %v9248
    %v9250 = vpop.f32.mrf.mxu0
    %v9251 = vadd.f32 %v9138, %v9250
    %v9252 = vpop.f32.mrf.mxu0
    %v9253 = vadd.f32 %v9140, %v9252
    %9254 = vmatprep.mubr.bf16.mxu0 0
    %9255 = vmatmul.mubr.bf16.gmra.mxu0 %v87
    %v9256 = vpop.f32.mrf.mxu0
    %v9257 = vadd.f32 %v9144, %v9256
    %v9258 = vpop.f32.mrf.mxu0
    %v9259 = vadd.f32 %v9146, %v9258
    %v9260 = vpop.f32.mrf.mxu0
    %v9261 = vadd.f32 %v9148, %v9260
    %v9262 = vpop.f32.mrf.mxu0
    %v9263 = vadd.f32 %v9150, %v9262
    %9264 = vmatprep.mubr.bf16.mxu0 0
    %9265 = vmatmul.mubr.bf16.gmra.mxu0 %v88
    %v9266 = vpop.f32.mrf.mxu0
    %v9267 = vadd.f32 %v9154, %v9266
    %v9268 = vpop.f32.mrf.mxu0
    %v9269 = vadd.f32 %v9156, %v9268
    %v9270 = vpop.f32.mrf.mxu0
    %v9271 = vadd.f32 %v9158, %v9270
    %v9272 = vpop.f32.mrf.mxu0
    %v9273 = vadd.f32 %v9160, %v9272
    %9274 = vmatprep.mubr.bf16.mxu0 0
    %9275 = vmatmul.mubr.bf16.gmra.mxu0 %v89
    %v9276 = vpop.f32.mrf.mxu0
    %v9277 = vadd.f32 %v9164, %v9276
    %v9278 = vpop.f32.mrf.mxu0
    %v9279 = vadd.f32 %v9166, %v9278
    %v9280 = vpop.f32.mrf.mxu0
    %v9281 = vadd.f32 %v9168, %v9280
    %v9282 = vpop.f32.mrf.mxu0
    %v9283 = vadd.f32 %v9170, %v9282
    %9284 = vmatprep.mubr.bf16.mxu0 0
    %9285 = vmatmul.mubr.bf16.gmra.mxu0 %v90
    %v9286 = vpop.f32.mrf.mxu0
    %v9287 = vadd.f32 %v9174, %v9286
    %v9288 = vpop.f32.mrf.mxu0
    %v9289 = vadd.f32 %v9176, %v9288
    %v9290 = vpop.f32.mrf.mxu0
    %v9291 = vadd.f32 %v9178, %v9290
    %v9292 = vpop.f32.mrf.mxu0
    %v9293 = vadd.f32 %v9180, %v9292
    %9294 = vmatprep.mubr.bf16.mxu0 0
    %9295 = vmatmul.mubr.bf16.gmra.mxu0 %v91
    %v9296 = vpop.f32.mrf.mxu0
    %v9297 = vadd.f32 %v9184, %v9296
    %v9298 = vpop.f32.mrf.mxu0
    %v9299 = vadd.f32 %v9186, %v9298
    %v9300 = vpop.f32.mrf.mxu0
    %v9301 = vadd.f32 %v9188, %v9300
    %v9302 = vpop.f32.mrf.mxu0
    %v9303 = vadd.f32 %v9190, %v9302
    %9304 = vmatprep.mubr.bf16.mxu0 0
    %9305 = vmatmul.mubr.bf16.gmra.mxu0 %v92
    %v9306 = vpop.f32.mrf.mxu0
    %v9307 = vadd.f32 %v9194, %v9306
    %v9308 = vpop.f32.mrf.mxu0
    %v9309 = vadd.f32 %v9196, %v9308
    %v9310 = vpop.f32.mrf.mxu0
    %v9311 = vadd.f32 %v9198, %v9310
    %v9312 = vpop.f32.mrf.mxu0
    %v9313 = vadd.f32 %v9200, %v9312
    %9314 = vmatprep.mubr.bf16.mxu0 0
    %9315 = vmatmul.mubr.bf16.gmra.mxu0 %v93
    %v9316 = vpop.f32.mrf.mxu0
    %v9317 = vadd.f32 %v9204, %v9316
    %v9318 = vpop.f32.mrf.mxu0
    %v9319 = vadd.f32 %v9206, %v9318
    %v9320 = vpop.f32.mrf.mxu0
    %v9321 = vadd.f32 %v9208, %v9320
    %v9322 = vpop.f32.mrf.mxu0
    %v9323 = vadd.f32 %v9210, %v9322
    %9324 = vdwg.mxu0
    %v9325 = vlaneseq
    %v9326 = vshrl.u32 %v9325, 7
    %v9327 = vsub.s32 0, %v9326
    %v9328 = vrot.slane %v8457, %v9327
    %v9329 = vlaneseq
    %v9330 = vshrl.u32 %v9329, 7
    %v9331 = vsub.s32 0, %v9330
    %v9332 = vrot.slane %v8458, %v9331
    %v9333 = vadd.f32 %v9247, %v9328
    %v9334 = vadd.f32 %v9249, %v9332
    %v9335 = vadd.f32 %v9251, %v9328
    %v9336 = vadd.f32 %v9253, %v9332
    %v9337 = vadd.f32 %v9257, %v9328
    %v9338 = vadd.f32 %v9259, %v9332
    %v9339 = vadd.f32 %v9261, %v9328
    %v9340 = vadd.f32 %v9263, %v9332
    %v9341 = vadd.f32 %v9267, %v9328
    %v9342 = vadd.f32 %v9269, %v9332
    %v9343 = vadd.f32 %v9271, %v9328
    %v9344 = vadd.f32 %v9273, %v9332
    %v9345 = vadd.f32 %v9277, %v9328
    %v9346 = vadd.f32 %v9279, %v9332
    %v9347 = vadd.f32 %v9281, %v9328
    %v9348 = vadd.f32 %v9283, %v9332
    %v9349 = vadd.f32 %v9287, %v9328
    %v9350 = vadd.f32 %v9289, %v9332
    %v9351 = vadd.f32 %v9291, %v9328
    %v9352 = vadd.f32 %v9293, %v9332
    %v9353 = vadd.f32 %v9297, %v9328
    %v9354 = vadd.f32 %v9299, %v9332
    %v9355 = vadd.f32 %v9301, %v9328
    %v9356 = vadd.f32 %v9303, %v9332
    %v9357 = vadd.f32 %v9307, %v9328
    %v9358 = vadd.f32 %v9309, %v9332
    %v9359 = vadd.f32 %v9311, %v9328
    %v9360 = vadd.f32 %v9313, %v9332
    %v9361 = vadd.f32 %v9317, %v9328
    %v9362 = vadd.f32 %v9319, %v9332
    %v9363 = vadd.f32 %v9321, %v9328
    %v9364 = vadd.f32 %v9323, %v9332
    %v9365 = vxor.u32 %v9333, 2147483648
    %v9366 = vxor.u32 %v9334, 2147483648
    %v9367 = vxor.u32 %v9335, 2147483648
    %v9368 = vxor.u32 %v9336, 2147483648
    %v9369 = vxor.u32 %v9337, 2147483648
    %v9370 = vxor.u32 %v9338, 2147483648
    %v9371 = vxor.u32 %v9339, 2147483648
    %v9372 = vxor.u32 %v9340, 2147483648
    %v9373 = vxor.u32 %v9341, 2147483648
    %v9374 = vxor.u32 %v9342, 2147483648
    %v9375 = vxor.u32 %v9343, 2147483648
    %v9376 = vxor.u32 %v9344, 2147483648
    %v9377 = vxor.u32 %v9345, 2147483648
    %v9378 = vxor.u32 %v9346, 2147483648
    %v9379 = vxor.u32 %v9347, 2147483648
    %v9380 = vxor.u32 %v9348, 2147483648
    %v9381 = vxor.u32 %v9349, 2147483648
    %v9382 = vxor.u32 %v9350, 2147483648
    %v9383 = vxor.u32 %v9351, 2147483648
    %v9384 = vxor.u32 %v9352, 2147483648
    %v9385 = vxor.u32 %v9353, 2147483648
    %v9386 = vxor.u32 %v9354, 2147483648
    %v9387 = vxor.u32 %v9355, 2147483648
    %v9388 = vxor.u32 %v9356, 2147483648
    %v9389 = vxor.u32 %v9357, 2147483648
    %v9390 = vxor.u32 %v9358, 2147483648
    %v9391 = vxor.u32 %v9359, 2147483648
    %v9392 = vxor.u32 %v9360, 2147483648
    %v9393 = vxor.u32 %v9361, 2147483648
    %v9394 = vxor.u32 %v9362, 2147483648
    %v9395 = vxor.u32 %v9363, 2147483648
    %v9396 = vxor.u32 %v9364, 2147483648
    %v9397 = vmul.f32 %v9365, 1.442695
    %v9398 = vpow.pop %v9397
    %v9399 = vmul.f32 %v9366, 1.442695
    %v9400 = vpow.pop %v9399
    %v9401 = vmul.f32 %v9367, 1.442695
    %v9402 = vpow.pop %v9401
    %v9403 = vmul.f32 %v9368, 1.442695
    %v9404 = vpow.pop %v9403
    %v9405 = vmul.f32 %v9369, 1.442695
    %v9406 = vpow.pop %v9405
    %v9407 = vmul.f32 %v9370, 1.442695
    %v9408 = vpow.pop %v9407
    %v9409 = vmul.f32 %v9371, 1.442695
    %v9410 = vpow.pop %v9409
    %v9411 = vmul.f32 %v9372, 1.442695
    %v9412 = vpow.pop %v9411
    %v9413 = vmul.f32 %v9373, 1.442695
    %v9414 = vpow.pop %v9413
    %v9415 = vmul.f32 %v9374, 1.442695
    %v9416 = vpow.pop %v9415
    %v9417 = vmul.f32 %v9375, 1.442695
    %v9418 = vpow.pop %v9417
    %v9419 = vmul.f32 %v9376, 1.442695
    %v9420 = vpow.pop %v9419
    %v9421 = vmul.f32 %v9377, 1.442695
    %v9422 = vpow.pop %v9421
    %v9423 = vmul.f32 %v9378, 1.442695
    %v9424 = vpow.pop %v9423
    %v9425 = vmul.f32 %v9379, 1.442695
    %v9426 = vpow.pop %v9425
    %v9427 = vmul.f32 %v9380, 1.442695
    %v9428 = vpow.pop %v9427
    %v9429 = vmul.f32 %v9381, 1.442695
    %v9430 = vpow.pop %v9429
    %v9431 = vmul.f32 %v9382, 1.442695
    %v9432 = vpow.pop %v9431
    %v9433 = vmul.f32 %v9383, 1.442695
    %v9434 = vpow.pop %v9433
    %v9435 = vmul.f32 %v9384, 1.442695
    %v9436 = vpow.pop %v9435
    %v9437 = vmul.f32 %v9385, 1.442695
    %v9438 = vpow.pop %v9437
    %v9439 = vmul.f32 %v9386, 1.442695
    %v9440 = vpow.pop %v9439
    %v9441 = vmul.f32 %v9387, 1.442695
    %v9442 = vpow.pop %v9441
    %v9443 = vmul.f32 %v9388, 1.442695
    %v9444 = vpow.pop %v9443
    %v9445 = vmul.f32 %v9389, 1.442695
    %v9446 = vpow.pop %v9445
    %v9447 = vmul.f32 %v9390, 1.442695
    %v9448 = vpow.pop %v9447
    %v9449 = vmul.f32 %v9391, 1.442695
    %v9450 = vpow.pop %v9449
    %v9451 = vmul.f32 %v9392, 1.442695
    %v9452 = vpow.pop %v9451
    %v9453 = vmul.f32 %v9393, 1.442695
    %v9454 = vpow.pop %v9453
    %v9455 = vmul.f32 %v9394, 1.442695
    %v9456 = vpow.pop %v9455
    %v9457 = vmul.f32 %v9395, 1.442695
    %v9458 = vpow.pop %v9457
    %v9459 = vmul.f32 %v9396, 1.442695
    %v9460 = vpow.pop %v9459
    %v9461 = vadd.f32 %v9398, 1.0
    %v9462 = vadd.f32 %v9400, 1.0
    %v9463 = vadd.f32 %v9402, 1.0
    %v9464 = vadd.f32 %v9404, 1.0
    %v9465 = vadd.f32 %v9406, 1.0
    %v9466 = vadd.f32 %v9408, 1.0
    %v9467 = vadd.f32 %v9410, 1.0
    %v9468 = vadd.f32 %v9412, 1.0
    %v9469 = vadd.f32 %v9414, 1.0
    %v9470 = vadd.f32 %v9416, 1.0
    %v9471 = vadd.f32 %v9418, 1.0
    %v9472 = vadd.f32 %v9420, 1.0
    %v9473 = vadd.f32 %v9422, 1.0
    %v9474 = vadd.f32 %v9424, 1.0
    %v9475 = vadd.f32 %v9426, 1.0
    %v9476 = vadd.f32 %v9428, 1.0
    %v9477 = vadd.f32 %v9430, 1.0
    %v9478 = vadd.f32 %v9432, 1.0
    %v9479 = vadd.f32 %v9434, 1.0
    %v9480 = vadd.f32 %v9436, 1.0
    %v9481 = vadd.f32 %v9438, 1.0
    %v9482 = vadd.f32 %v9440, 1.0
    %v9483 = vadd.f32 %v9442, 1.0
    %v9484 = vadd.f32 %v9444, 1.0
    %v9485 = vadd.f32 %v9446, 1.0
    %v9486 = vadd.f32 %v9448, 1.0
    %v9487 = vadd.f32 %v9450, 1.0
    %v9488 = vadd.f32 %v9452, 1.0
    %v9489 = vadd.f32 %v9454, 1.0
    %v9490 = vadd.f32 %v9456, 1.0
    %v9491 = vadd.f32 %v9458, 1.0
    %v9492 = vadd.f32 %v9460, 1.0
    %v9493 = vrcp.pop %v9461
    %v9494 = vmul.f32 1.0, %v9493
    %v9495 = vrcp.pop %v9462
    %v9496 = vmul.f32 1.0, %v9495
    %v9497 = vrcp.pop %v9463
    %v9498 = vmul.f32 1.0, %v9497
    %v9499 = vrcp.pop %v9464
    %v9500 = vmul.f32 1.0, %v9499
    %v9501 = vrcp.pop %v9465
    %v9502 = vmul.f32 1.0, %v9501
    %v9503 = vrcp.pop %v9466
    %v9504 = vmul.f32 1.0, %v9503
    %v9505 = vrcp.pop %v9467
    %v9506 = vmul.f32 1.0, %v9505
    %v9507 = vrcp.pop %v9468
    %v9508 = vmul.f32 1.0, %v9507
    %v9509 = vrcp.pop %v9469
    %v9510 = vmul.f32 1.0, %v9509
    %v9511 = vrcp.pop %v9470
    %v9512 = vmul.f32 1.0, %v9511
    %v9513 = vrcp.pop %v9471
    %v9514 = vmul.f32 1.0, %v9513
    %v9515 = vrcp.pop %v9472
    %v9516 = vmul.f32 1.0, %v9515
    %v9517 = vrcp.pop %v9473
    %v9518 = vmul.f32 1.0, %v9517
    %v9519 = vrcp.pop %v9474
    %v9520 = vmul.f32 1.0, %v9519
    %v9521 = vrcp.pop %v9475
    %v9522 = vmul.f32 1.0, %v9521
    %v9523 = vrcp.pop %v9476
    %v9524 = vmul.f32 1.0, %v9523
    %v9525 = vrcp.pop %v9477
    %v9526 = vmul.f32 1.0, %v9525
    %v9527 = vrcp.pop %v9478
    %v9528 = vmul.f32 1.0, %v9527
    %v9529 = vrcp.pop %v9479
    %v9530 = vmul.f32 1.0, %v9529
    %v9531 = vrcp.pop %v9480
    %v9532 = vmul.f32 1.0, %v9531
    %v9533 = vrcp.pop %v9481
    %v9534 = vmul.f32 1.0, %v9533
    %v9535 = vrcp.pop %v9482
    %v9536 = vmul.f32 1.0, %v9535
    %v9537 = vrcp.pop %v9483
    %v9538 = vmul.f32 1.0, %v9537
    %v9539 = vrcp.pop %v9484
    %v9540 = vmul.f32 1.0, %v9539
    %v9541 = vrcp.pop %v9485
    %v9542 = vmul.f32 1.0, %v9541
    %v9543 = vrcp.pop %v9486
    %v9544 = vmul.f32 1.0, %v9543
    %v9545 = vrcp.pop %v9487
    %v9546 = vmul.f32 1.0, %v9545
    %v9547 = vrcp.pop %v9488
    %v9548 = vmul.f32 1.0, %v9547
    %v9549 = vrcp.pop %v9489
    %v9550 = vmul.f32 1.0, %v9549
    %v9551 = vrcp.pop %v9490
    %v9552 = vmul.f32 1.0, %v9551
    %v9553 = vrcp.pop %v9491
    %v9554 = vmul.f32 1.0, %v9553
    %v9555 = vrcp.pop %v9492
    %v9556 = vmul.f32 1.0, %v9555
    %v9557 = vmul.f32 %v9494, %v8491
    %v9558 = vmul.f32 %v9498, %v8492
    %v9559 = vmul.f32 %v9502, %v8493
    %v9560 = vmul.f32 %v9506, %v8494
    %v9561 = vmul.f32 %v9510, %v8495
    %v9562 = vmul.f32 %v9514, %v8496
    %v9563 = vmul.f32 %v9518, %v8497
    %v9564 = vmul.f32 %v9522, %v8498
    %v9565 = vmul.f32 %v9526, %v8499
    %v9566 = vmul.f32 %v9530, %v8500
    %v9567 = vmul.f32 %v9534, %v8501
    %v9568 = vmul.f32 %v9538, %v8502
    %v9569 = vmul.f32 %v9542, %v8503
    %v9570 = vmul.f32 %v9546, %v8504
    %v9571 = vmul.f32 %v9550, %v8505
    %v9572 = vmul.f32 %v9554, %v8506
    %v9573 = vsel %vm103, %v9557, 0.0
    %9574 = vadd.xlane.f32.xlu0 %v9573
    %v9575 = vpop.xlane.xlu0 %9574
    %v9576 = vsel %vm103, %v9558, 0.0
    %9577 = vadd.xlane.f32.xlu0 %v9576
    %v9578 = vpop.xlane.xlu0 %9577
    %v9579 = vsel %vm103, %v9559, 0.0
    %9580 = vadd.xlane.f32.xlu0 %v9579
    %v9581 = vpop.xlane.xlu0 %9580
    %v9582 = vsel %vm103, %v9560, 0.0
    %9583 = vadd.xlane.f32.xlu0 %v9582
    %v9584 = vpop.xlane.xlu0 %9583
    %v9585 = vsel %vm103, %v9561, 0.0
    %9586 = vadd.xlane.f32.xlu0 %v9585
    %v9587 = vpop.xlane.xlu0 %9586
    %v9588 = vsel %vm103, %v9562, 0.0
    %9589 = vadd.xlane.f32.xlu0 %v9588
    %v9590 = vpop.xlane.xlu0 %9589
    %v9591 = vsel %vm103, %v9563, 0.0
    %9592 = vadd.xlane.f32.xlu0 %v9591
    %v9593 = vpop.xlane.xlu0 %9592
    %v9594 = vsel %vm103, %v9564, 0.0
    %9595 = vadd.xlane.f32.xlu0 %v9594
    %v9596 = vpop.xlane.xlu0 %9595
    %v9597 = vsel %vm103, %v9565, 0.0
    %9598 = vadd.xlane.f32.xlu0 %v9597
    %v9599 = vpop.xlane.xlu0 %9598
    %v9600 = vsel %vm103, %v9566, 0.0
    %9601 = vadd.xlane.f32.xlu0 %v9600
    %v9602 = vpop.xlane.xlu0 %9601
    %v9603 = vsel %vm103, %v9567, 0.0
    %9604 = vadd.xlane.f32.xlu0 %v9603
    %v9605 = vpop.xlane.xlu0 %9604
    %v9606 = vsel %vm103, %v9568, 0.0
    %9607 = vadd.xlane.f32.xlu0 %v9606
    %v9608 = vpop.xlane.xlu0 %9607
    %v9609 = vsel %vm103, %v9569, 0.0
    %9610 = vadd.xlane.f32.xlu0 %v9609
    %v9611 = vpop.xlane.xlu0 %9610
    %v9612 = vsel %vm103, %v9570, 0.0
    %9613 = vadd.xlane.f32.xlu0 %v9612
    %v9614 = vpop.xlane.xlu0 %9613
    %v9615 = vsel %vm103, %v9571, 0.0
    %9616 = vadd.xlane.f32.xlu0 %v9615
    %v9617 = vpop.xlane.xlu0 %9616
    %v9618 = vsel %vm103, %v9572, 0.0
    %9619 = vadd.xlane.f32.xlu0 %v9618
    %v9620 = vpop.xlane.xlu0 %9619
    %9637 = vrot.lane.b32.xlu0 %v8491, 64
    %v9638 = vpop.permute.xlu0 %9637
    %9639 = vrot.lane.b32.xlu0 %v8492, 64
    %v9640 = vpop.permute.xlu0 %9639
    %9641 = vrot.lane.b32.xlu0 %v8493, 64
    %v9642 = vpop.permute.xlu0 %9641
    %9643 = vrot.lane.b32.xlu0 %v8494, 64
    %v9644 = vpop.permute.xlu0 %9643
    %9645 = vrot.lane.b32.xlu0 %v8495, 64
    %v9646 = vpop.permute.xlu0 %9645
    %9647 = vrot.lane.b32.xlu0 %v8496, 64
    %v9648 = vpop.permute.xlu0 %9647
    %9649 = vrot.lane.b32.xlu0 %v8497, 64
    %v9650 = vpop.permute.xlu0 %9649
    %9651 = vrot.lane.b32.xlu0 %v8498, 64
    %v9652 = vpop.permute.xlu0 %9651
    %9653 = vrot.lane.b32.xlu0 %v8499, 64
    %v9654 = vpop.permute.xlu0 %9653
    %9655 = vrot.lane.b32.xlu0 %v8500, 64
    %v9656 = vpop.permute.xlu0 %9655
    %9657 = vrot.lane.b32.xlu0 %v8501, 64
    %v9658 = vpop.permute.xlu0 %9657
    %9659 = vrot.lane.b32.xlu0 %v8502, 64
    %v9660 = vpop.permute.xlu0 %9659
    %9661 = vrot.lane.b32.xlu0 %v8503, 64
    %v9662 = vpop.permute.xlu0 %9661
    %9663 = vrot.lane.b32.xlu0 %v8504, 64
    %v9664 = vpop.permute.xlu0 %9663
    %9665 = vrot.lane.b32.xlu0 %v8505, 64
    %v9666 = vpop.permute.xlu0 %9665
    %9667 = vrot.lane.b32.xlu0 %v8506, 64
    %v9668 = vpop.permute.xlu0 %9667
    %v9685 = vmul.f32 %v9494, %v9638
    %v9686 = vmul.f32 %v9498, %v9640
    %v9687 = vmul.f32 %v9502, %v9642
    %v9688 = vmul.f32 %v9506, %v9644
    %v9689 = vmul.f32 %v9510, %v9646
    %v9690 = vmul.f32 %v9514, %v9648
    %v9691 = vmul.f32 %v9518, %v9650
    %v9692 = vmul.f32 %v9522, %v9652
    %v9693 = vmul.f32 %v9526, %v9654
    %v9694 = vmul.f32 %v9530, %v9656
    %v9695 = vmul.f32 %v9534, %v9658
    %v9696 = vmul.f32 %v9538, %v9660
    %v9697 = vmul.f32 %v9542, %v9662
    %v9698 = vmul.f32 %v9546, %v9664
    %v9699 = vmul.f32 %v9550, %v9666
    %v9700 = vmul.f32 %v9554, %v9668
    %9717 = vrot.lane.b32.xlu0 %v9685, 64
    %v9718 = vpop.permute.xlu0 %9717
    %9719 = vrot.lane.b32.xlu0 %v9686, 64
    %v9720 = vpop.permute.xlu0 %9719
    %9721 = vrot.lane.b32.xlu0 %v9687, 64
    %v9722 = vpop.permute.xlu0 %9721
    %9723 = vrot.lane.b32.xlu0 %v9688, 64
    %v9724 = vpop.permute.xlu0 %9723
    %9725 = vrot.lane.b32.xlu0 %v9689, 64
    %v9726 = vpop.permute.xlu0 %9725
    %9727 = vrot.lane.b32.xlu0 %v9690, 64
    %v9728 = vpop.permute.xlu0 %9727
    %9729 = vrot.lane.b32.xlu0 %v9691, 64
    %v9730 = vpop.permute.xlu0 %9729
    %9731 = vrot.lane.b32.xlu0 %v9692, 64
    %v9732 = vpop.permute.xlu0 %9731
    %9733 = vrot.lane.b32.xlu0 %v9693, 64
    %v9734 = vpop.permute.xlu0 %9733
    %9735 = vrot.lane.b32.xlu0 %v9694, 64
    %v9736 = vpop.permute.xlu0 %9735
    %9737 = vrot.lane.b32.xlu0 %v9695, 64
    %v9738 = vpop.permute.xlu0 %9737
    %9739 = vrot.lane.b32.xlu0 %v9696, 64
    %v9740 = vpop.permute.xlu0 %9739
    %9741 = vrot.lane.b32.xlu0 %v9697, 64
    %v9742 = vpop.permute.xlu0 %9741
    %9743 = vrot.lane.b32.xlu0 %v9698, 64
    %v9744 = vpop.permute.xlu0 %9743
    %9745 = vrot.lane.b32.xlu0 %v9699, 64
    %v9746 = vpop.permute.xlu0 %9745
    %9747 = vrot.lane.b32.xlu0 %v9700, 64
    %v9748 = vpop.permute.xlu0 %9747
    %v9765 = vsel %vm103, %v9718, 0.0
    %9766 = vadd.xlane.f32.xlu0 %v9765
    %v9767 = vpop.xlane.xlu0 %9766
    %v9768 = vsel %vm103, %v9720, 0.0
    %9769 = vadd.xlane.f32.xlu0 %v9768
    %v9770 = vpop.xlane.xlu0 %9769
    %v9771 = vsel %vm103, %v9722, 0.0
    %9772 = vadd.xlane.f32.xlu0 %v9771
    %v9773 = vpop.xlane.xlu0 %9772
    %v9774 = vsel %vm103, %v9724, 0.0
    %9775 = vadd.xlane.f32.xlu0 %v9774
    %v9776 = vpop.xlane.xlu0 %9775
    %v9777 = vsel %vm103, %v9726, 0.0
    %9778 = vadd.xlane.f32.xlu0 %v9777
    %v9779 = vpop.xlane.xlu0 %9778
    %v9780 = vsel %vm103, %v9728, 0.0
    %9781 = vadd.xlane.f32.xlu0 %v9780
    %v9782 = vpop.xlane.xlu0 %9781
    %v9783 = vsel %vm103, %v9730, 0.0
    %9784 = vadd.xlane.f32.xlu0 %v9783
    %v9785 = vpop.xlane.xlu0 %9784
    %v9786 = vsel %vm103, %v9732, 0.0
    %9787 = vadd.xlane.f32.xlu0 %v9786
    %v9788 = vpop.xlane.xlu0 %9787
    %v9789 = vsel %vm103, %v9734, 0.0
    %9790 = vadd.xlane.f32.xlu0 %v9789
    %v9791 = vpop.xlane.xlu0 %9790
    %v9792 = vsel %vm103, %v9736, 0.0
    %9793 = vadd.xlane.f32.xlu0 %v9792
    %v9794 = vpop.xlane.xlu0 %9793
    %v9795 = vsel %vm103, %v9738, 0.0
    %9796 = vadd.xlane.f32.xlu0 %v9795
    %v9797 = vpop.xlane.xlu0 %9796
    %v9798 = vsel %vm103, %v9740, 0.0
    %9799 = vadd.xlane.f32.xlu0 %v9798
    %v9800 = vpop.xlane.xlu0 %9799
    %v9801 = vsel %vm103, %v9742, 0.0
    %9802 = vadd.xlane.f32.xlu0 %v9801
    %v9803 = vpop.xlane.xlu0 %9802
    %v9804 = vsel %vm103, %v9744, 0.0
    %9805 = vadd.xlane.f32.xlu0 %v9804
    %v9806 = vpop.xlane.xlu0 %9805
    %v9807 = vsel %vm103, %v9746, 0.0
    %9808 = vadd.xlane.f32.xlu0 %v9807
    %v9809 = vpop.xlane.xlu0 %9808
    %v9810 = vsel %vm103, %v9748, 0.0
    %9811 = vadd.xlane.f32.xlu0 %v9810
    %v9812 = vpop.xlane.xlu0 %9811
    %v9813 = vmul.f32 %v9496, %v8491
    %v9814 = vmul.f32 %v9500, %v8492
    %v9815 = vmul.f32 %v9504, %v8493
    %v9816 = vmul.f32 %v9508, %v8494
    %v9817 = vmul.f32 %v9512, %v8495
    %v9818 = vmul.f32 %v9516, %v8496
    %v9819 = vmul.f32 %v9520, %v8497
    %v9820 = vmul.f32 %v9524, %v8498
    %v9821 = vmul.f32 %v9528, %v8499
    %v9822 = vmul.f32 %v9532, %v8500
    %v9823 = vmul.f32 %v9536, %v8501
    %v9824 = vmul.f32 %v9540, %v8502
    %v9825 = vmul.f32 %v9544, %v8503
    %v9826 = vmul.f32 %v9548, %v8504
    %v9827 = vmul.f32 %v9552, %v8505
    %v9828 = vmul.f32 %v9556, %v8506
    %v9829 = vsel %vm103, %v9813, 0.0
    %9830 = vadd.xlane.f32.xlu0 %v9829
    %v9831 = vpop.xlane.xlu0 %9830
    %v9832 = vsel %vm103, %v9814, 0.0
    %9833 = vadd.xlane.f32.xlu0 %v9832
    %v9834 = vpop.xlane.xlu0 %9833
    %v9835 = vsel %vm103, %v9815, 0.0
    %9836 = vadd.xlane.f32.xlu0 %v9835
    %v9837 = vpop.xlane.xlu0 %9836
    %v9838 = vsel %vm103, %v9816, 0.0
    %9839 = vadd.xlane.f32.xlu0 %v9838
    %v9840 = vpop.xlane.xlu0 %9839
    %v9841 = vsel %vm103, %v9817, 0.0
    %9842 = vadd.xlane.f32.xlu0 %v9841
    %v9843 = vpop.xlane.xlu0 %9842
    %v9844 = vsel %vm103, %v9818, 0.0
    %9845 = vadd.xlane.f32.xlu0 %v9844
    %v9846 = vpop.xlane.xlu0 %9845
    %v9847 = vsel %vm103, %v9819, 0.0
    %9848 = vadd.xlane.f32.xlu0 %v9847
    %v9849 = vpop.xlane.xlu0 %9848
    %v9850 = vsel %vm103, %v9820, 0.0
    %9851 = vadd.xlane.f32.xlu0 %v9850
    %v9852 = vpop.xlane.xlu0 %9851
    %v9853 = vsel %vm103, %v9821, 0.0
    %9854 = vadd.xlane.f32.xlu0 %v9853
    %v9855 = vpop.xlane.xlu0 %9854
    %v9856 = vsel %vm103, %v9822, 0.0
    %9857 = vadd.xlane.f32.xlu0 %v9856
    %v9858 = vpop.xlane.xlu0 %9857
    %v9859 = vsel %vm103, %v9823, 0.0
    %9860 = vadd.xlane.f32.xlu0 %v9859
    %v9861 = vpop.xlane.xlu0 %9860
    %v9862 = vsel %vm103, %v9824, 0.0
    %9863 = vadd.xlane.f32.xlu0 %v9862
    %v9864 = vpop.xlane.xlu0 %9863
    %v9865 = vsel %vm103, %v9825, 0.0
    %9866 = vadd.xlane.f32.xlu0 %v9865
    %v9867 = vpop.xlane.xlu0 %9866
    %v9868 = vsel %vm103, %v9826, 0.0
    %9869 = vadd.xlane.f32.xlu0 %v9868
    %v9870 = vpop.xlane.xlu0 %9869
    %v9871 = vsel %vm103, %v9827, 0.0
    %9872 = vadd.xlane.f32.xlu0 %v9871
    %v9873 = vpop.xlane.xlu0 %9872
    %v9874 = vsel %vm103, %v9828, 0.0
    %9875 = vadd.xlane.f32.xlu0 %v9874
    %v9876 = vpop.xlane.xlu0 %9875
    %v9877 = vmul.f32 %v9496, %v9638
    %v9878 = vmul.f32 %v9500, %v9640
    %v9879 = vmul.f32 %v9504, %v9642
    %v9880 = vmul.f32 %v9508, %v9644
    %v9881 = vmul.f32 %v9512, %v9646
    %v9882 = vmul.f32 %v9516, %v9648
    %v9883 = vmul.f32 %v9520, %v9650
    %v9884 = vmul.f32 %v9524, %v9652
    %v9885 = vmul.f32 %v9528, %v9654
    %v9886 = vmul.f32 %v9532, %v9656
    %v9887 = vmul.f32 %v9536, %v9658
    %v9888 = vmul.f32 %v9540, %v9660
    %v9889 = vmul.f32 %v9544, %v9662
    %v9890 = vmul.f32 %v9548, %v9664
    %v9891 = vmul.f32 %v9552, %v9666
    %v9892 = vmul.f32 %v9556, %v9668
    %9909 = vrot.lane.b32.xlu0 %v9877, 64
    %v9910 = vpop.permute.xlu0 %9909
    %9911 = vrot.lane.b32.xlu0 %v9878, 64
    %v9912 = vpop.permute.xlu0 %9911
    %9913 = vrot.lane.b32.xlu0 %v9879, 64
    %v9914 = vpop.permute.xlu0 %9913
    %9915 = vrot.lane.b32.xlu0 %v9880, 64
    %v9916 = vpop.permute.xlu0 %9915
    %9917 = vrot.lane.b32.xlu0 %v9881, 64
    %v9918 = vpop.permute.xlu0 %9917
    %9919 = vrot.lane.b32.xlu0 %v9882, 64
    %v9920 = vpop.permute.xlu0 %9919
    %9921 = vrot.lane.b32.xlu0 %v9883, 64
    %v9922 = vpop.permute.xlu0 %9921
    %9923 = vrot.lane.b32.xlu0 %v9884, 64
    %v9924 = vpop.permute.xlu0 %9923
    %9925 = vrot.lane.b32.xlu0 %v9885, 64
    %v9926 = vpop.permute.xlu0 %9925
    %9927 = vrot.lane.b32.xlu0 %v9886, 64
    %v9928 = vpop.permute.xlu0 %9927
    %9929 = vrot.lane.b32.xlu0 %v9887, 64
    %v9930 = vpop.permute.xlu0 %9929
    %9931 = vrot.lane.b32.xlu0 %v9888, 64
    %v9932 = vpop.permute.xlu0 %9931
    %9933 = vrot.lane.b32.xlu0 %v9889, 64
    %v9934 = vpop.permute.xlu0 %9933
    %9935 = vrot.lane.b32.xlu0 %v9890, 64
    %v9936 = vpop.permute.xlu0 %9935
    %9937 = vrot.lane.b32.xlu0 %v9891, 64
    %v9938 = vpop.permute.xlu0 %9937
    %9939 = vrot.lane.b32.xlu0 %v9892, 64
    %v9940 = vpop.permute.xlu0 %9939
    %v9957 = vsel %vm103, %v9910, 0.0
    %9958 = vadd.xlane.f32.xlu0 %v9957
    %v9959 = vpop.xlane.xlu0 %9958
    %v9960 = vsel %vm103, %v9912, 0.0
    %9961 = vadd.xlane.f32.xlu0 %v9960
    %v9962 = vpop.xlane.xlu0 %9961
    %v9963 = vsel %vm103, %v9914, 0.0
    %9964 = vadd.xlane.f32.xlu0 %v9963
    %v9965 = vpop.xlane.xlu0 %9964
    %v9966 = vsel %vm103, %v9916, 0.0
    %9967 = vadd.xlane.f32.xlu0 %v9966
    %v9968 = vpop.xlane.xlu0 %9967
    %v9969 = vsel %vm103, %v9918, 0.0
    %9970 = vadd.xlane.f32.xlu0 %v9969
    %v9971 = vpop.xlane.xlu0 %9970
    %v9972 = vsel %vm103, %v9920, 0.0
    %9973 = vadd.xlane.f32.xlu0 %v9972
    %v9974 = vpop.xlane.xlu0 %9973
    %v9975 = vsel %vm103, %v9922, 0.0
    %9976 = vadd.xlane.f32.xlu0 %v9975
    %v9977 = vpop.xlane.xlu0 %9976
    %v9978 = vsel %vm103, %v9924, 0.0
    %9979 = vadd.xlane.f32.xlu0 %v9978
    %v9980 = vpop.xlane.xlu0 %9979
    %v9981 = vsel %vm103, %v9926, 0.0
    %9982 = vadd.xlane.f32.xlu0 %v9981
    %v9983 = vpop.xlane.xlu0 %9982
    %v9984 = vsel %vm103, %v9928, 0.0
    %9985 = vadd.xlane.f32.xlu0 %v9984
    %v9986 = vpop.xlane.xlu0 %9985
    %v9987 = vsel %vm103, %v9930, 0.0
    %9988 = vadd.xlane.f32.xlu0 %v9987
    %v9989 = vpop.xlane.xlu0 %9988
    %v9990 = vsel %vm103, %v9932, 0.0
    %9991 = vadd.xlane.f32.xlu0 %v9990
    %v9992 = vpop.xlane.xlu0 %9991
    %v9993 = vsel %vm103, %v9934, 0.0
    %9994 = vadd.xlane.f32.xlu0 %v9993
    %v9995 = vpop.xlane.xlu0 %9994
    %v9996 = vsel %vm103, %v9936, 0.0
    %9997 = vadd.xlane.f32.xlu0 %v9996
    %v9998 = vpop.xlane.xlu0 %9997
    %v9999 = vsel %vm103, %v9938, 0.0
    %10000 = vadd.xlane.f32.xlu0 %v9999
    %v10001 = vpop.xlane.xlu0 %10000
    %v10002 = vsel %vm103, %v9940, 0.0
    %10003 = vadd.xlane.f32.xlu0 %v10002
    %v10004 = vpop.xlane.xlu0 %10003
    %v10005 = vsel %vm1647, %v9575, %v9767
    %v10006 = vsel %vm1647, %v9578, %v9770
    %v10007 = vsel %vm1647, %v9581, %v9773
    %v10008 = vsel %vm1647, %v9584, %v9776
    %v10009 = vsel %vm1647, %v9587, %v9779
    %v10010 = vsel %vm1647, %v9590, %v9782
    %v10011 = vsel %vm1647, %v9593, %v9785
    %v10012 = vsel %vm1647, %v9596, %v9788
    %v10013 = vsel %vm1647, %v9599, %v9791
    %v10014 = vsel %vm1647, %v9602, %v9794
    %v10015 = vsel %vm1647, %v9605, %v9797
    %v10016 = vsel %vm1647, %v9608, %v9800
    %v10017 = vsel %vm1647, %v9611, %v9803
    %v10018 = vsel %vm1647, %v9614, %v9806
    %v10019 = vsel %vm1647, %v9617, %v9809
    %v10020 = vsel %vm1647, %v9620, %v9812
    %v10021 = vsel %vm1664, %v10005, %v9831
    %v10022 = vsel %vm1664, %v10006, %v9834
    %v10023 = vsel %vm1664, %v10007, %v9837
    %v10024 = vsel %vm1664, %v10008, %v9840
    %v10025 = vsel %vm1664, %v10009, %v9843
    %v10026 = vsel %vm1664, %v10010, %v9846
    %v10027 = vsel %vm1664, %v10011, %v9849
    %v10028 = vsel %vm1664, %v10012, %v9852
    %v10029 = vsel %vm1664, %v10013, %v9855
    %v10030 = vsel %vm1664, %v10014, %v9858
    %v10031 = vsel %vm1664, %v10015, %v9861
    %v10032 = vsel %vm1664, %v10016, %v9864
    %v10033 = vsel %vm1664, %v10017, %v9867
    %v10034 = vsel %vm1664, %v10018, %v9870
    %v10035 = vsel %vm1664, %v10019, %v9873
    %v10036 = vsel %vm1664, %v10020, %v9876
    %v10037 = vsel %vm1681, %v10021, %v9959
    %v10038 = vsel %vm1681, %v10022, %v9962
    %v10039 = vsel %vm1681, %v10023, %v9965
    %v10040 = vsel %vm1681, %v10024, %v9968
    %v10041 = vsel %vm1681, %v10025, %v9971
    %v10042 = vsel %vm1681, %v10026, %v9974
    %v10043 = vsel %vm1681, %v10027, %v9977
    %v10044 = vsel %vm1681, %v10028, %v9980
    %v10045 = vsel %vm1681, %v10029, %v9983
    %v10046 = vsel %vm1681, %v10030, %v9986
    %v10047 = vsel %vm1681, %v10031, %v9989
    %v10048 = vsel %vm1681, %v10032, %v9992
    %v10049 = vsel %vm1681, %v10033, %v9995
    %v10050 = vsel %vm1681, %v10034, %v9998
    %v10051 = vsel %vm1681, %v10035, %v10001
    %v10052 = vsel %vm1681, %v10036, %v10004
    %10053 = vxpose.xlu0.b32.start [1/16] %v10037, 128
    %10054 = vxpose.xlu0.b32.cont [2/16] %v10038, 128
    %10055 = vxpose.xlu0.b32.cont [3/16] %v10039, 128
    %10056 = vxpose.xlu0.b32.cont [4/16] %v10040, 128
    %10057 = vxpose.xlu0.b32.cont [5/16] %v10041, 128
    %10058 = vxpose.xlu0.b32.cont [6/16] %v10042, 128
    %10059 = vxpose.xlu0.b32.cont [7/16] %v10043, 128
    %10060 = vxpose.xlu0.b32.cont [8/16] %v10044, 128
    %10061 = vxpose.xlu0.b32.cont [9/16] %v10045, 128
    %10062 = vxpose.xlu0.b32.cont [10/16] %v10046, 128
    %10063 = vxpose.xlu0.b32.cont [11/16] %v10047, 128
    %10064 = vxpose.xlu0.b32.cont [12/16] %v10048, 128
    %10065 = vxpose.xlu0.b32.cont [13/16] %v10049, 128
    %10066 = vxpose.xlu0.b32.cont [14/16] %v10050, 128
    %10067 = vxpose.xlu0.b32.cont [15/16] %v10051, 128
    %10068 = vxpose.xlu0.b32.end [16/16] %v10052, 128
    %v10069 = vpop.trf.xlu0
    %v10070 = vpop.trf.xlu0
    %v10071 = vpop.trf.xlu0
    %v10072 = vpop.trf.xlu0
    %v10073 = vpop.trf.xlu0
    %v10074 = vpop.trf.xlu0
    %v10075 = vpop.trf.xlu0
    %v10076 = vpop.trf.xlu0
    %v10077 = vpop.trf.xlu0
    %v10078 = vpop.trf.xlu0
    %v10079 = vpop.trf.xlu0
    %v10080 = vpop.trf.xlu0
    %v10081 = vpop.trf.xlu0
    %v10082 = vpop.trf.xlu0
    %v10083 = vpop.trf.xlu0
    %v10084 = vpop.trf.xlu0
    %10085 = vst [vmem:[#allocation2 + $0x14] sm:$0xf] %v10069
    %v10086 = vadd.f32 %v8971, %v8972
    %v10087 = vadd.f32 %v10086, %v8973
    %v10088 = vadd.f32 %v10087, %v8974
    %v10089 = vadd.f32 %v10088, %v8975
    %v10090 = vadd.f32 %v10089, %v8976
    %v10091 = vadd.f32 %v10090, %v8977
    %v10092 = vadd.f32 %v10091, %v8978
    %v10093 = vadd.f32 %v10092, %v8979
    %v10094 = vadd.f32 %v10093, %v8980
    %v10095 = vadd.f32 %v10094, %v8981
    %v10096 = vadd.f32 %v10095, %v8982
    %v10097 = vadd.f32 %v10096, %v8983
    %v10098 = vadd.f32 %v10097, %v8984
    %v10099 = vadd.f32 %v10098, %v8985
    %v10100 = vadd.f32 %v10099, %v8986
    %v10101 = vrot.slane %v10100, 4
    %v10102 = vadd.f32 %v10100, %v10101
    %v10103 = vrot.slane %v10102, 2
    %v10104 = vadd.f32 %v10102, %v10103
    %v10105 = vrot.slane %v10104, 1
    %v10106 = vadd.f32 %v10104, %v10105
    %v10107 = vadd.f32 %v8987, %v8988
    %v10108 = vadd.f32 %v10107, %v8989
    %v10109 = vadd.f32 %v10108, %v8990
    %v10110 = vadd.f32 %v10109, %v8991
    %v10111 = vadd.f32 %v10110, %v8992
    %v10112 = vadd.f32 %v10111, %v8993
    %v10113 = vadd.f32 %v10112, %v8994
    %v10114 = vadd.f32 %v10113, %v8995
    %v10115 = vadd.f32 %v10114, %v8996
    %v10116 = vadd.f32 %v10115, %v8997
    %v10117 = vadd.f32 %v10116, %v8998
    %v10118 = vadd.f32 %v10117, %v8999
    %v10119 = vadd.f32 %v10118, %v9000
    %v10120 = vadd.f32 %v10119, %v9001
    %v10121 = vadd.f32 %v10120, %v9002
    %v10122 = vrot.slane %v10121, 4
    %v10123 = vadd.f32 %v10121, %v10122
    %v10124 = vrot.slane %v10123, 2
    %v10125 = vadd.f32 %v10123, %v10124
    %v10126 = vrot.slane %v10125, 1
    %v10127 = vadd.f32 %v10125, %v10126
    %v10128 = vadd.f32 %v8457, %v10106
    %v10129 = vadd.f32 %v8458, %v10127
    %v10130 = vld [vmem:[%s0 + $0x300] sm:$0xff]
    %v10131 = vld [vmem:[%s0 + $0x308] sm:$0xff]
    %v10132 = vld [vmem:[%s0 + $0x310] sm:$0xff]
    %v10133 = vld [vmem:[%s0 + $0x318] sm:$0xff]
    %v10134 = vld [vmem:[%s0 + $0x320] sm:$0xff]
    %v10135 = vld [vmem:[%s0 + $0x328] sm:$0xff]
    %v10136 = vld [vmem:[%s0 + $0x330] sm:$0xff]
    %v10137 = vld [vmem:[%s0 + $0x338] sm:$0xff]
    %v10138 = vld [vmem:[%s0 + $0x340] sm:$0xff]
    %v10139 = vld [vmem:[%s0 + $0x348] sm:$0xff]
    %v10140 = vld [vmem:[%s0 + $0x350] sm:$0xff]
    %v10141 = vld [vmem:[%s0 + $0x358] sm:$0xff]
    %v10142 = vld [vmem:[%s0 + $0x360] sm:$0xff]
    %v10143 = vld [vmem:[%s0 + $0x368] sm:$0xff]
    %v10144 = vld [vmem:[%s0 + $0x370] sm:$0xff]
    %v10145 = vld [vmem:[%s0 + $0x378] sm:$0xff]
    %v10146 = vld [vmem:[%s1 + $0x300] sm:$0xff]
    %v10147 = vld [vmem:[%s1 + $0x308] sm:$0xff]
    %v10148 = vld [vmem:[%s1 + $0x310] sm:$0xff]
    %v10149 = vld [vmem:[%s1 + $0x318] sm:$0xff]
    %v10150 = vld [vmem:[%s1 + $0x320] sm:$0xff]
    %v10151 = vld [vmem:[%s1 + $0x328] sm:$0xff]
    %v10152 = vld [vmem:[%s1 + $0x330] sm:$0xff]
    %v10153 = vld [vmem:[%s1 + $0x338] sm:$0xff]
    %v10154 = vld [vmem:[%s1 + $0x340] sm:$0xff]
    %v10155 = vld [vmem:[%s1 + $0x348] sm:$0xff]
    %v10156 = vld [vmem:[%s1 + $0x350] sm:$0xff]
    %v10157 = vld [vmem:[%s1 + $0x358] sm:$0xff]
    %v10158 = vld [vmem:[%s1 + $0x360] sm:$0xff]
    %v10159 = vld [vmem:[%s1 + $0x368] sm:$0xff]
    %v10160 = vld [vmem:[%s1 + $0x370] sm:$0xff]
    %v10161 = vld [vmem:[%s1 + $0x378] sm:$0xff]
    %v10162 = vld [vmem:[%s2 + $0x300] sm:$0xff]
    %v10163 = vld [vmem:[%s2 + $0x308] sm:$0xff]
    %v10164 = vld [vmem:[%s2 + $0x310] sm:$0xff]
    %v10165 = vld [vmem:[%s2 + $0x318] sm:$0xff]
    %v10166 = vld [vmem:[%s2 + $0x320] sm:$0xff]
    %v10167 = vld [vmem:[%s2 + $0x328] sm:$0xff]
    %v10168 = vld [vmem:[%s2 + $0x330] sm:$0xff]
    %v10169 = vld [vmem:[%s2 + $0x338] sm:$0xff]
    %v10170 = vld [vmem:[%s2 + $0x340] sm:$0xff]
    %v10171 = vld [vmem:[%s2 + $0x348] sm:$0xff]
    %v10172 = vld [vmem:[%s2 + $0x350] sm:$0xff]
    %v10173 = vld [vmem:[%s2 + $0x358] sm:$0xff]
    %v10174 = vld [vmem:[%s2 + $0x360] sm:$0xff]
    %v10175 = vld [vmem:[%s2 + $0x368] sm:$0xff]
    %v10176 = vld [vmem:[%s2 + $0x370] sm:$0xff]
    %v10177 = vld [vmem:[%s2 + $0x378] sm:$0xff]
    %10179 = vset.pattern.permute.xlu0 0
    %10180 = vperm.xlu0 %10179, %v10130
    %v10181 = vpop.permute.xlu0 %10180
    %10184 = vset.pattern.permute.xlu0 0
    %10185 = vperm.xlu0 %10184, %v10131
    %v10186 = vpop.permute.xlu0 %10185
    %10189 = vset.pattern.permute.xlu0 0
    %10190 = vperm.xlu0 %10189, %v10132
    %v10191 = vpop.permute.xlu0 %10190
    %10194 = vset.pattern.permute.xlu0 0
    %10195 = vperm.xlu0 %10194, %v10133
    %v10196 = vpop.permute.xlu0 %10195
    %10199 = vset.pattern.permute.xlu0 0
    %10200 = vperm.xlu0 %10199, %v10134
    %v10201 = vpop.permute.xlu0 %10200
    %10204 = vset.pattern.permute.xlu0 0
    %10205 = vperm.xlu0 %10204, %v10135
    %v10206 = vpop.permute.xlu0 %10205
    %10209 = vset.pattern.permute.xlu0 0
    %10210 = vperm.xlu0 %10209, %v10136
    %v10211 = vpop.permute.xlu0 %10210
    %10214 = vset.pattern.permute.xlu0 0
    %10215 = vperm.xlu0 %10214, %v10137
    %v10216 = vpop.permute.xlu0 %10215
    %10219 = vset.pattern.permute.xlu0 0
    %10220 = vperm.xlu0 %10219, %v10138
    %v10221 = vpop.permute.xlu0 %10220
    %10224 = vset.pattern.permute.xlu0 0
    %10225 = vperm.xlu0 %10224, %v10139
    %v10226 = vpop.permute.xlu0 %10225
    %10229 = vset.pattern.permute.xlu0 0
    %10230 = vperm.xlu0 %10229, %v10140
    %v10231 = vpop.permute.xlu0 %10230
    %10234 = vset.pattern.permute.xlu0 0
    %10235 = vperm.xlu0 %10234, %v10141
    %v10236 = vpop.permute.xlu0 %10235
    %10239 = vset.pattern.permute.xlu0 0
    %10240 = vperm.xlu0 %10239, %v10142
    %v10241 = vpop.permute.xlu0 %10240
    %10244 = vset.pattern.permute.xlu0 0
    %10245 = vperm.xlu0 %10244, %v10143
    %v10246 = vpop.permute.xlu0 %10245
    %10249 = vset.pattern.permute.xlu0 0
    %10250 = vperm.xlu0 %10249, %v10144
    %v10251 = vpop.permute.xlu0 %10250
    %10254 = vset.pattern.permute.xlu0 0
    %10255 = vperm.xlu0 %10254, %v10145
    %v10256 = vpop.permute.xlu0 %10255
    %v10258 = vmul.f32 %v10181, %v10146
    %v10259 = vmul.f32 %v10186, %v10147
    %v10260 = vmul.f32 %v10191, %v10148
    %v10261 = vmul.f32 %v10196, %v10149
    %v10262 = vmul.f32 %v10201, %v10150
    %v10263 = vmul.f32 %v10206, %v10151
    %v10264 = vmul.f32 %v10211, %v10152
    %v10265 = vmul.f32 %v10216, %v10153
    %v10266 = vmul.f32 %v10221, %v10154
    %v10267 = vmul.f32 %v10226, %v10155
    %v10268 = vmul.f32 %v10231, %v10156
    %v10269 = vmul.f32 %v10236, %v10157
    %v10270 = vmul.f32 %v10241, %v10158
    %v10271 = vmul.f32 %v10246, %v10159
    %v10272 = vmul.f32 %v10251, %v10160
    %v10273 = vmul.f32 %v10256, %v10161
    %10274 = vset.pattern.permute.xlu0 1
    %10275 = vperm.xlu0 %10274, %v10130
    %v10276 = vpop.permute.xlu0 %10275
    %10278 = vset.pattern.permute.xlu0 1
    %10279 = vperm.xlu0 %10278, %v10131
    %v10280 = vpop.permute.xlu0 %10279
    %10282 = vset.pattern.permute.xlu0 1
    %10283 = vperm.xlu0 %10282, %v10132
    %v10284 = vpop.permute.xlu0 %10283
    %10286 = vset.pattern.permute.xlu0 1
    %10287 = vperm.xlu0 %10286, %v10133
    %v10288 = vpop.permute.xlu0 %10287
    %10290 = vset.pattern.permute.xlu0 1
    %10291 = vperm.xlu0 %10290, %v10134
    %v10292 = vpop.permute.xlu0 %10291
    %10294 = vset.pattern.permute.xlu0 1
    %10295 = vperm.xlu0 %10294, %v10135
    %v10296 = vpop.permute.xlu0 %10295
    %10298 = vset.pattern.permute.xlu0 1
    %10299 = vperm.xlu0 %10298, %v10136
    %v10300 = vpop.permute.xlu0 %10299
    %10302 = vset.pattern.permute.xlu0 1
    %10303 = vperm.xlu0 %10302, %v10137
    %v10304 = vpop.permute.xlu0 %10303
    %10306 = vset.pattern.permute.xlu0 1
    %10307 = vperm.xlu0 %10306, %v10138
    %v10308 = vpop.permute.xlu0 %10307
    %10310 = vset.pattern.permute.xlu0 1
    %10311 = vperm.xlu0 %10310, %v10139
    %v10312 = vpop.permute.xlu0 %10311
    %10314 = vset.pattern.permute.xlu0 1
    %10315 = vperm.xlu0 %10314, %v10140
    %v10316 = vpop.permute.xlu0 %10315
    %10318 = vset.pattern.permute.xlu0 1
    %10319 = vperm.xlu0 %10318, %v10141
    %v10320 = vpop.permute.xlu0 %10319
    %10322 = vset.pattern.permute.xlu0 1
    %10323 = vperm.xlu0 %10322, %v10142
    %v10324 = vpop.permute.xlu0 %10323
    %10326 = vset.pattern.permute.xlu0 1
    %10327 = vperm.xlu0 %10326, %v10143
    %v10328 = vpop.permute.xlu0 %10327
    %10330 = vset.pattern.permute.xlu0 1
    %10331 = vperm.xlu0 %10330, %v10144
    %v10332 = vpop.permute.xlu0 %10331
    %10334 = vset.pattern.permute.xlu0 1
    %10335 = vperm.xlu0 %10334, %v10145
    %v10336 = vpop.permute.xlu0 %10335
    %v10338 = vmul.f32 %v10276, %v10146
    %v10339 = vmul.f32 %v10280, %v10147
    %v10340 = vmul.f32 %v10284, %v10148
    %v10341 = vmul.f32 %v10288, %v10149
    %v10342 = vmul.f32 %v10292, %v10150
    %v10343 = vmul.f32 %v10296, %v10151
    %v10344 = vmul.f32 %v10300, %v10152
    %v10345 = vmul.f32 %v10304, %v10153
    %v10346 = vmul.f32 %v10308, %v10154
    %v10347 = vmul.f32 %v10312, %v10155
    %v10348 = vmul.f32 %v10316, %v10156
    %v10349 = vmul.f32 %v10320, %v10157
    %v10350 = vmul.f32 %v10324, %v10158
    %v10351 = vmul.f32 %v10328, %v10159
    %v10352 = vmul.f32 %v10332, %v10160
    %v10353 = vmul.f32 %v10336, %v10161
    %10354 = vset.pattern.permute.xlu0 2
    %10355 = vperm.xlu0 %10354, %v10130
    %v10356 = vpop.permute.xlu0 %10355
    %10358 = vset.pattern.permute.xlu0 2
    %10359 = vperm.xlu0 %10358, %v10131
    %v10360 = vpop.permute.xlu0 %10359
    %10362 = vset.pattern.permute.xlu0 2
    %10363 = vperm.xlu0 %10362, %v10132
    %v10364 = vpop.permute.xlu0 %10363
    %10366 = vset.pattern.permute.xlu0 2
    %10367 = vperm.xlu0 %10366, %v10133
    %v10368 = vpop.permute.xlu0 %10367
    %10370 = vset.pattern.permute.xlu0 2
    %10371 = vperm.xlu0 %10370, %v10134
    %v10372 = vpop.permute.xlu0 %10371
    %10374 = vset.pattern.permute.xlu0 2
    %10375 = vperm.xlu0 %10374, %v10135
    %v10376 = vpop.permute.xlu0 %10375
    %10378 = vset.pattern.permute.xlu0 2
    %10379 = vperm.xlu0 %10378, %v10136
    %v10380 = vpop.permute.xlu0 %10379
    %10382 = vset.pattern.permute.xlu0 2
    %10383 = vperm.xlu0 %10382, %v10137
    %v10384 = vpop.permute.xlu0 %10383
    %10386 = vset.pattern.permute.xlu0 2
    %10387 = vperm.xlu0 %10386, %v10138
    %v10388 = vpop.permute.xlu0 %10387
    %10390 = vset.pattern.permute.xlu0 2
    %10391 = vperm.xlu0 %10390, %v10139
    %v10392 = vpop.permute.xlu0 %10391
    %10394 = vset.pattern.permute.xlu0 2
    %10395 = vperm.xlu0 %10394, %v10140
    %v10396 = vpop.permute.xlu0 %10395
    %10398 = vset.pattern.permute.xlu0 2
    %10399 = vperm.xlu0 %10398, %v10141
    %v10400 = vpop.permute.xlu0 %10399
    %10402 = vset.pattern.permute.xlu0 2
    %10403 = vperm.xlu0 %10402, %v10142
    %v10404 = vpop.permute.xlu0 %10403
    %10406 = vset.pattern.permute.xlu0 2
    %10407 = vperm.xlu0 %10406, %v10143
    %v10408 = vpop.permute.xlu0 %10407
    %10410 = vset.pattern.permute.xlu0 2
    %10411 = vperm.xlu0 %10410, %v10144
    %v10412 = vpop.permute.xlu0 %10411
    %10414 = vset.pattern.permute.xlu0 2
    %10415 = vperm.xlu0 %10414, %v10145
    %v10416 = vpop.permute.xlu0 %10415
    %v10418 = vmul.f32 %v10356, %v10146
    %v10419 = vmul.f32 %v10360, %v10147
    %v10420 = vmul.f32 %v10364, %v10148
    %v10421 = vmul.f32 %v10368, %v10149
    %v10422 = vmul.f32 %v10372, %v10150
    %v10423 = vmul.f32 %v10376, %v10151
    %v10424 = vmul.f32 %v10380, %v10152
    %v10425 = vmul.f32 %v10384, %v10153
    %v10426 = vmul.f32 %v10388, %v10154
    %v10427 = vmul.f32 %v10392, %v10155
    %v10428 = vmul.f32 %v10396, %v10156
    %v10429 = vmul.f32 %v10400, %v10157
    %v10430 = vmul.f32 %v10404, %v10158
    %v10431 = vmul.f32 %v10408, %v10159
    %v10432 = vmul.f32 %v10412, %v10160
    %v10433 = vmul.f32 %v10416, %v10161
    %10434 = vset.pattern.permute.xlu0 3
    %10435 = vperm.xlu0 %10434, %v10130
    %v10436 = vpop.permute.xlu0 %10435
    %10438 = vset.pattern.permute.xlu0 3
    %10439 = vperm.xlu0 %10438, %v10131
    %v10440 = vpop.permute.xlu0 %10439
    %10442 = vset.pattern.permute.xlu0 3
    %10443 = vperm.xlu0 %10442, %v10132
    %v10444 = vpop.permute.xlu0 %10443
    %10446 = vset.pattern.permute.xlu0 3
    %10447 = vperm.xlu0 %10446, %v10133
    %v10448 = vpop.permute.xlu0 %10447
    %10450 = vset.pattern.permute.xlu0 3
    %10451 = vperm.xlu0 %10450, %v10134
    %v10452 = vpop.permute.xlu0 %10451
    %10454 = vset.pattern.permute.xlu0 3
    %10455 = vperm.xlu0 %10454, %v10135
    %v10456 = vpop.permute.xlu0 %10455
    %10458 = vset.pattern.permute.xlu0 3
    %10459 = vperm.xlu0 %10458, %v10136
    %v10460 = vpop.permute.xlu0 %10459
    %10462 = vset.pattern.permute.xlu0 3
    %10463 = vperm.xlu0 %10462, %v10137
    %v10464 = vpop.permute.xlu0 %10463
    %10466 = vset.pattern.permute.xlu0 3
    %10467 = vperm.xlu0 %10466, %v10138
    %v10468 = vpop.permute.xlu0 %10467
    %10470 = vset.pattern.permute.xlu0 3
    %10471 = vperm.xlu0 %10470, %v10139
    %v10472 = vpop.permute.xlu0 %10471
    %10474 = vset.pattern.permute.xlu0 3
    %10475 = vperm.xlu0 %10474, %v10140
    %v10476 = vpop.permute.xlu0 %10475
    %10478 = vset.pattern.permute.xlu0 3
    %10479 = vperm.xlu0 %10478, %v10141
    %v10480 = vpop.permute.xlu0 %10479
    %10482 = vset.pattern.permute.xlu0 3
    %10483 = vperm.xlu0 %10482, %v10142
    %v10484 = vpop.permute.xlu0 %10483
    %10486 = vset.pattern.permute.xlu0 3
    %10487 = vperm.xlu0 %10486, %v10143
    %v10488 = vpop.permute.xlu0 %10487
    %10490 = vset.pattern.permute.xlu0 3
    %10491 = vperm.xlu0 %10490, %v10144
    %v10492 = vpop.permute.xlu0 %10491
    %10494 = vset.pattern.permute.xlu0 3
    %10495 = vperm.xlu0 %10494, %v10145
    %v10496 = vpop.permute.xlu0 %10495
    %v10498 = vmul.f32 %v10436, %v10146
    %v10499 = vmul.f32 %v10440, %v10147
    %v10500 = vmul.f32 %v10444, %v10148
    %v10501 = vmul.f32 %v10448, %v10149
    %v10502 = vmul.f32 %v10452, %v10150
    %v10503 = vmul.f32 %v10456, %v10151
    %v10504 = vmul.f32 %v10460, %v10152
    %v10505 = vmul.f32 %v10464, %v10153
    %v10506 = vmul.f32 %v10468, %v10154
    %v10507 = vmul.f32 %v10472, %v10155
    %v10508 = vmul.f32 %v10476, %v10156
    %v10509 = vmul.f32 %v10480, %v10157
    %v10510 = vmul.f32 %v10484, %v10158
    %v10511 = vmul.f32 %v10488, %v10159
    %v10512 = vmul.f32 %v10492, %v10160
    %v10513 = vmul.f32 %v10496, %v10161
    %10530 = vrot.lane.b32.xlu0 %v10338, 64
    %v10531 = vpop.permute.xlu0 %10530
    %10532 = vrot.lane.b32.xlu0 %v10339, 64
    %v10533 = vpop.permute.xlu0 %10532
    %10534 = vrot.lane.b32.xlu0 %v10340, 64
    %v10535 = vpop.permute.xlu0 %10534
    %10536 = vrot.lane.b32.xlu0 %v10341, 64
    %v10537 = vpop.permute.xlu0 %10536
    %10538 = vrot.lane.b32.xlu0 %v10342, 64
    %v10539 = vpop.permute.xlu0 %10538
    %10540 = vrot.lane.b32.xlu0 %v10343, 64
    %v10541 = vpop.permute.xlu0 %10540
    %10542 = vrot.lane.b32.xlu0 %v10344, 64
    %v10543 = vpop.permute.xlu0 %10542
    %10544 = vrot.lane.b32.xlu0 %v10345, 64
    %v10545 = vpop.permute.xlu0 %10544
    %10546 = vrot.lane.b32.xlu0 %v10346, 64
    %v10547 = vpop.permute.xlu0 %10546
    %10548 = vrot.lane.b32.xlu0 %v10347, 64
    %v10549 = vpop.permute.xlu0 %10548
    %10550 = vrot.lane.b32.xlu0 %v10348, 64
    %v10551 = vpop.permute.xlu0 %10550
    %10552 = vrot.lane.b32.xlu0 %v10349, 64
    %v10553 = vpop.permute.xlu0 %10552
    %10554 = vrot.lane.b32.xlu0 %v10350, 64
    %v10555 = vpop.permute.xlu0 %10554
    %10556 = vrot.lane.b32.xlu0 %v10351, 64
    %v10557 = vpop.permute.xlu0 %10556
    %10558 = vrot.lane.b32.xlu0 %v10352, 64
    %v10559 = vpop.permute.xlu0 %10558
    %10560 = vrot.lane.b32.xlu0 %v10353, 64
    %v10561 = vpop.permute.xlu0 %10560
    %10594 = vrot.lane.b32.xlu0 %v10498, 64
    %v10595 = vpop.permute.xlu0 %10594
    %10596 = vrot.lane.b32.xlu0 %v10499, 64
    %v10597 = vpop.permute.xlu0 %10596
    %10598 = vrot.lane.b32.xlu0 %v10500, 64
    %v10599 = vpop.permute.xlu0 %10598
    %10600 = vrot.lane.b32.xlu0 %v10501, 64
    %v10601 = vpop.permute.xlu0 %10600
    %10602 = vrot.lane.b32.xlu0 %v10502, 64
    %v10603 = vpop.permute.xlu0 %10602
    %10604 = vrot.lane.b32.xlu0 %v10503, 64
    %v10605 = vpop.permute.xlu0 %10604
    %10606 = vrot.lane.b32.xlu0 %v10504, 64
    %v10607 = vpop.permute.xlu0 %10606
    %10608 = vrot.lane.b32.xlu0 %v10505, 64
    %v10609 = vpop.permute.xlu0 %10608
    %10610 = vrot.lane.b32.xlu0 %v10506, 64
    %v10611 = vpop.permute.xlu0 %10610
    %10612 = vrot.lane.b32.xlu0 %v10507, 64
    %v10613 = vpop.permute.xlu0 %10612
    %10614 = vrot.lane.b32.xlu0 %v10508, 64
    %v10615 = vpop.permute.xlu0 %10614
    %10616 = vrot.lane.b32.xlu0 %v10509, 64
    %v10617 = vpop.permute.xlu0 %10616
    %10618 = vrot.lane.b32.xlu0 %v10510, 64
    %v10619 = vpop.permute.xlu0 %10618
    %10620 = vrot.lane.b32.xlu0 %v10511, 64
    %v10621 = vpop.permute.xlu0 %10620
    %10622 = vrot.lane.b32.xlu0 %v10512, 64
    %v10623 = vpop.permute.xlu0 %10622
    %10624 = vrot.lane.b32.xlu0 %v10513, 64
    %v10625 = vpop.permute.xlu0 %10624
    %v10642 = vsel %vm103, %v10258, %v10531
    %v10643 = vsel %vm103, %v10259, %v10533
    %v10644 = vsel %vm103, %v10260, %v10535
    %v10645 = vsel %vm103, %v10261, %v10537
    %v10646 = vsel %vm103, %v10262, %v10539
    %v10647 = vsel %vm103, %v10263, %v10541
    %v10648 = vsel %vm103, %v10264, %v10543
    %v10649 = vsel %vm103, %v10265, %v10545
    %v10650 = vsel %vm103, %v10266, %v10547
    %v10651 = vsel %vm103, %v10267, %v10549
    %v10652 = vsel %vm103, %v10268, %v10551
    %v10653 = vsel %vm103, %v10269, %v10553
    %v10654 = vsel %vm103, %v10270, %v10555
    %v10655 = vsel %vm103, %v10271, %v10557
    %v10656 = vsel %vm103, %v10272, %v10559
    %v10657 = vsel %vm103, %v10273, %v10561
    %v10658 = vsel %vm103, %v10418, %v10595
    %v10659 = vsel %vm103, %v10419, %v10597
    %v10660 = vsel %vm103, %v10420, %v10599
    %v10661 = vsel %vm103, %v10421, %v10601
    %v10662 = vsel %vm103, %v10422, %v10603
    %v10663 = vsel %vm103, %v10423, %v10605
    %v10664 = vsel %vm103, %v10424, %v10607
    %v10665 = vsel %vm103, %v10425, %v10609
    %v10666 = vsel %vm103, %v10426, %v10611
    %v10667 = vsel %vm103, %v10427, %v10613
    %v10668 = vsel %vm103, %v10428, %v10615
    %v10669 = vsel %vm103, %v10429, %v10617
    %v10670 = vsel %vm103, %v10430, %v10619
    %v10671 = vsel %vm103, %v10431, %v10621
    %v10672 = vsel %vm103, %v10432, %v10623
    %v10673 = vsel %vm103, %v10433, %v10625
    %v10674 = vpack.c.bf16 %v10643, %v10642
    %v10675 = vpack.c.bf16 %v10659, %v10658
    %v10676 = vpack.c.bf16 %v10645, %v10644
    %v10677 = vpack.c.bf16 %v10661, %v10660
    %v10678 = vpack.c.bf16 %v10647, %v10646
    %v10679 = vpack.c.bf16 %v10663, %v10662
    %v10680 = vpack.c.bf16 %v10649, %v10648
    %v10681 = vpack.c.bf16 %v10665, %v10664
    %v10682 = vpack.c.bf16 %v10651, %v10650
    %v10683 = vpack.c.bf16 %v10667, %v10666
    %v10684 = vpack.c.bf16 %v10653, %v10652
    %v10685 = vpack.c.bf16 %v10669, %v10668
    %v10686 = vpack.c.bf16 %v10655, %v10654
    %v10687 = vpack.c.bf16 %v10671, %v10670
    %v10688 = vpack.c.bf16 %v10657, %v10656
    %v10689 = vpack.c.bf16 %v10673, %v10672
    %v10690 = vunpack.c.l.bf16 %v10674
    %v10691 = vunpack.c.l.bf16 %v10675
    %v10692 = vunpack.c.h.bf16 %v10674
    %v10693 = vunpack.c.h.bf16 %v10675
    %v10694 = vunpack.c.l.bf16 %v10676
    %v10695 = vunpack.c.l.bf16 %v10677
    %v10696 = vunpack.c.h.bf16 %v10676
    %v10697 = vunpack.c.h.bf16 %v10677
    %v10698 = vunpack.c.l.bf16 %v10678
    %v10699 = vunpack.c.l.bf16 %v10679
    %v10700 = vunpack.c.h.bf16 %v10678
    %v10701 = vunpack.c.h.bf16 %v10679
    %v10702 = vunpack.c.l.bf16 %v10680
    %v10703 = vunpack.c.l.bf16 %v10681
    %v10704 = vunpack.c.h.bf16 %v10680
    %v10705 = vunpack.c.h.bf16 %v10681
    %v10706 = vunpack.c.l.bf16 %v10682
    %v10707 = vunpack.c.l.bf16 %v10683
    %v10708 = vunpack.c.h.bf16 %v10682
    %v10709 = vunpack.c.h.bf16 %v10683
    %v10710 = vunpack.c.l.bf16 %v10684
    %v10711 = vunpack.c.l.bf16 %v10685
    %v10712 = vunpack.c.h.bf16 %v10684
    %v10713 = vunpack.c.h.bf16 %v10685
    %v10714 = vunpack.c.l.bf16 %v10686
    %v10715 = vunpack.c.l.bf16 %v10687
    %v10716 = vunpack.c.h.bf16 %v10686
    %v10717 = vunpack.c.h.bf16 %v10687
    %v10718 = vunpack.c.l.bf16 %v10688
    %v10719 = vunpack.c.l.bf16 %v10689
    %v10720 = vunpack.c.h.bf16 %v10688
    %v10721 = vunpack.c.h.bf16 %v10689
    %v10722 = vsub.f32 %v10642, %v10690
    %v10723 = vsub.f32 %v10658, %v10691
    %v10724 = vsub.f32 %v10643, %v10692
    %v10725 = vsub.f32 %v10659, %v10693
    %v10726 = vsub.f32 %v10644, %v10694
    %v10727 = vsub.f32 %v10660, %v10695
    %v10728 = vsub.f32 %v10645, %v10696
    %v10729 = vsub.f32 %v10661, %v10697
    %v10730 = vsub.f32 %v10646, %v10698
    %v10731 = vsub.f32 %v10662, %v10699
    %v10732 = vsub.f32 %v10647, %v10700
    %v10733 = vsub.f32 %v10663, %v10701
    %v10734 = vsub.f32 %v10648, %v10702
    %v10735 = vsub.f32 %v10664, %v10703
    %v10736 = vsub.f32 %v10649, %v10704
    %v10737 = vsub.f32 %v10665, %v10705
    %v10738 = vsub.f32 %v10650, %v10706
    %v10739 = vsub.f32 %v10666, %v10707
    %v10740 = vsub.f32 %v10651, %v10708
    %v10741 = vsub.f32 %v10667, %v10709
    %v10742 = vsub.f32 %v10652, %v10710
    %v10743 = vsub.f32 %v10668, %v10711
    %v10744 = vsub.f32 %v10653, %v10712
    %v10745 = vsub.f32 %v10669, %v10713
    %v10746 = vsub.f32 %v10654, %v10714
    %v10747 = vsub.f32 %v10670, %v10715
    %v10748 = vsub.f32 %v10655, %v10716
    %v10749 = vsub.f32 %v10671, %v10717
    %v10750 = vsub.f32 %v10656, %v10718
    %v10751 = vsub.f32 %v10672, %v10719
    %v10752 = vsub.f32 %v10657, %v10720
    %v10753 = vsub.f32 %v10673, %v10721
    %v10754 = vpack.c.bf16 %v10724, %v10722
    %v10755 = vpack.c.bf16 %v10725, %v10723
    %v10756 = vpack.c.bf16 %v10728, %v10726
    %v10757 = vpack.c.bf16 %v10729, %v10727
    %v10758 = vpack.c.bf16 %v10732, %v10730
    %v10759 = vpack.c.bf16 %v10733, %v10731
    %v10760 = vpack.c.bf16 %v10736, %v10734
    %v10761 = vpack.c.bf16 %v10737, %v10735
    %v10762 = vpack.c.bf16 %v10740, %v10738
    %v10763 = vpack.c.bf16 %v10741, %v10739
    %v10764 = vpack.c.bf16 %v10744, %v10742
    %v10765 = vpack.c.bf16 %v10745, %v10743
    %v10766 = vpack.c.bf16 %v10748, %v10746
    %v10767 = vpack.c.bf16 %v10749, %v10747
    %v10768 = vpack.c.bf16 %v10752, %v10750
    %v10769 = vpack.c.bf16 %v10753, %v10751
    %10770 = vmatprep.subr.bf16.mxu0 %v10769
    %10771 = vmatpush1.bf16.msra.mxu0 %v10768
    %10772 = vmatprep.subr.bf16.mxu0 %v10767
    %10773 = vmatpush1.bf16.msra.mxu0 %v10766
    %10774 = vmatprep.subr.bf16.mxu0 %v10765
    %10775 = vmatpush1.bf16.msra.mxu0 %v10764
    %10776 = vmatprep.subr.bf16.mxu0 %v10763
    %10777 = vmatpush1.bf16.msra.mxu0 %v10762
    %10778 = vmatprep.subr.bf16.mxu0 %v10761
    %10779 = vmatpush1.bf16.msra.mxu0 %v10760
    %10780 = vmatprep.subr.bf16.mxu0 %v10759
    %10781 = vmatpush1.bf16.msra.mxu0 %v10758
    %10782 = vmatprep.subr.bf16.mxu0 %v10757
    %10783 = vmatpush1.bf16.msra.mxu0 %v10756
    %10784 = vmatprep.subr.bf16.mxu0 %v10755
    %10785 = vmatpush1.bf16.msra.mxu0 %v10754
    %10786 = vmatprep.subr.bf16.mxu0 0
    %10787 = vmatpush2.bf16.msra.mxu0 0
    %10788 = vmatprep.subr.bf16.mxu0 0
    %10789 = vmatpush2.bf16.msra.mxu0 0
    %10790 = vmatprep.subr.bf16.mxu0 0
    %10791 = vmatpush2.bf16.msra.mxu0 0
    %10792 = vmatprep.subr.bf16.mxu0 0
    %10793 = vmatpush2.bf16.msra.mxu0 0
    %10794 = vmatprep.subr.bf16.mxu0 0
    %10795 = vmatpush2.bf16.msra.mxu0 0
    %10796 = vmatprep.subr.bf16.mxu0 0
    %10797 = vmatpush2.bf16.msra.mxu0 0
    %10798 = vmatprep.subr.bf16.mxu0 0
    %10799 = vmatpush2.bf16.msra.mxu0 0
    %10800 = vmatprep.subr.bf16.mxu0 0
    %10801 = vmatpush2.bf16.msra.mxu0 0
    %10802 = vmatprep.mubr.bf16.mxu0 0
    %10803 = vmatmul.mubr.bf16.gmra.mxu0 %v86
    %v10804 = vpop.f32.mrf.mxu0
    %v10805 = vadd.f32 0.0, %v10804
    %v10806 = vpop.f32.mrf.mxu0
    %v10807 = vadd.f32 0.0, %v10806
    %v10808 = vpop.f32.mrf.mxu0
    %v10809 = vadd.f32 0.0, %v10808
    %v10810 = vpop.f32.mrf.mxu0
    %v10811 = vadd.f32 0.0, %v10810
    %10812 = vmatprep.mubr.bf16.mxu0 0
    %10813 = vmatmul.mubr.bf16.gmra.mxu0 %v87
    %v10814 = vpop.f32.mrf.mxu0
    %v10815 = vadd.f32 0.0, %v10814
    %v10816 = vpop.f32.mrf.mxu0
    %v10817 = vadd.f32 0.0, %v10816
    %v10818 = vpop.f32.mrf.mxu0
    %v10819 = vadd.f32 0.0, %v10818
    %v10820 = vpop.f32.mrf.mxu0
    %v10821 = vadd.f32 0.0, %v10820
    %10822 = vmatprep.mubr.bf16.mxu0 0
    %10823 = vmatmul.mubr.bf16.gmra.mxu0 %v88
    %v10824 = vpop.f32.mrf.mxu0
    %v10825 = vadd.f32 0.0, %v10824
    %v10826 = vpop.f32.mrf.mxu0
    %v10827 = vadd.f32 0.0, %v10826
    %v10828 = vpop.f32.mrf.mxu0
    %v10829 = vadd.f32 0.0, %v10828
    %v10830 = vpop.f32.mrf.mxu0
    %v10831 = vadd.f32 0.0, %v10830
    %10832 = vmatprep.mubr.bf16.mxu0 0
    %10833 = vmatmul.mubr.bf16.gmra.mxu0 %v89
    %v10834 = vpop.f32.mrf.mxu0
    %v10835 = vadd.f32 0.0, %v10834
    %v10836 = vpop.f32.mrf.mxu0
    %v10837 = vadd.f32 0.0, %v10836
    %v10838 = vpop.f32.mrf.mxu0
    %v10839 = vadd.f32 0.0, %v10838
    %v10840 = vpop.f32.mrf.mxu0
    %v10841 = vadd.f32 0.0, %v10840
    %10842 = vmatprep.mubr.bf16.mxu0 0
    %10843 = vmatmul.mubr.bf16.gmra.mxu0 %v90
    %v10844 = vpop.f32.mrf.mxu0
    %v10845 = vadd.f32 0.0, %v10844
    %v10846 = vpop.f32.mrf.mxu0
    %v10847 = vadd.f32 0.0, %v10846
    %v10848 = vpop.f32.mrf.mxu0
    %v10849 = vadd.f32 0.0, %v10848
    %v10850 = vpop.f32.mrf.mxu0
    %v10851 = vadd.f32 0.0, %v10850
    %10852 = vmatprep.mubr.bf16.mxu0 0
    %10853 = vmatmul.mubr.bf16.gmra.mxu0 %v91
    %v10854 = vpop.f32.mrf.mxu0
    %v10855 = vadd.f32 0.0, %v10854
    %v10856 = vpop.f32.mrf.mxu0
    %v10857 = vadd.f32 0.0, %v10856
    %v10858 = vpop.f32.mrf.mxu0
    %v10859 = vadd.f32 0.0, %v10858
    %v10860 = vpop.f32.mrf.mxu0
    %v10861 = vadd.f32 0.0, %v10860
    %10862 = vmatprep.mubr.bf16.mxu0 0
    %10863 = vmatmul.mubr.bf16.gmra.mxu0 %v92
    %v10864 = vpop.f32.mrf.mxu0
    %v10865 = vadd.f32 0.0, %v10864
    %v10866 = vpop.f32.mrf.mxu0
    %v10867 = vadd.f32 0.0, %v10866
    %v10868 = vpop.f32.mrf.mxu0
    %v10869 = vadd.f32 0.0, %v10868
    %v10870 = vpop.f32.mrf.mxu0
    %v10871 = vadd.f32 0.0, %v10870
    %10872 = vmatprep.mubr.bf16.mxu0 0
    %10873 = vmatmul.mubr.bf16.gmra.mxu0 %v93
    %v10874 = vpop.f32.mrf.mxu0
    %v10875 = vadd.f32 0.0, %v10874
    %v10876 = vpop.f32.mrf.mxu0
    %v10877 = vadd.f32 0.0, %v10876
    %v10878 = vpop.f32.mrf.mxu0
    %v10879 = vadd.f32 0.0, %v10878
    %v10880 = vpop.f32.mrf.mxu0
    %v10881 = vadd.f32 0.0, %v10880
    %10882 = vdwg.mxu0
    %10883 = vmatprep.subr.bf16.mxu0 %v10689
    %10884 = vmatpush1.bf16.msra.mxu0 %v10688
    %10885 = vmatprep.subr.bf16.mxu0 %v10687
    %10886 = vmatpush1.bf16.msra.mxu0 %v10686
    %10887 = vmatprep.subr.bf16.mxu0 %v10685
    %10888 = vmatpush1.bf16.msra.mxu0 %v10684
    %10889 = vmatprep.subr.bf16.mxu0 %v10683
    %10890 = vmatpush1.bf16.msra.mxu0 %v10682
    %10891 = vmatprep.subr.bf16.mxu0 %v10681
    %10892 = vmatpush1.bf16.msra.mxu0 %v10680
    %10893 = vmatprep.subr.bf16.mxu0 %v10679
    %10894 = vmatpush1.bf16.msra.mxu0 %v10678
    %10895 = vmatprep.subr.bf16.mxu0 %v10677
    %10896 = vmatpush1.bf16.msra.mxu0 %v10676
    %10897 = vmatprep.subr.bf16.mxu0 %v10675
    %10898 = vmatpush1.bf16.msra.mxu0 %v10674
    %10899 = vmatprep.subr.bf16.mxu0 0
    %10900 = vmatpush2.bf16.msra.mxu0 0
    %10901 = vmatprep.subr.bf16.mxu0 0
    %10902 = vmatpush2.bf16.msra.mxu0 0
    %10903 = vmatprep.subr.bf16.mxu0 0
    %10904 = vmatpush2.bf16.msra.mxu0 0
    %10905 = vmatprep.subr.bf16.mxu0 0
    %10906 = vmatpush2.bf16.msra.mxu0 0
    %10907 = vmatprep.subr.bf16.mxu0 0
    %10908 = vmatpush2.bf16.msra.mxu0 0
    %10909 = vmatprep.subr.bf16.mxu0 0
    %10910 = vmatpush2.bf16.msra.mxu0 0
    %10911 = vmatprep.subr.bf16.mxu0 0
    %10912 = vmatpush2.bf16.msra.mxu0 0
    %10913 = vmatprep.subr.bf16.mxu0 0
    %10914 = vmatpush2.bf16.msra.mxu0 0
    %10915 = vmatprep.mubr.bf16.mxu0 0
    %10916 = vmatmul.mubr.bf16.gmra.mxu0 %v86
    %v10917 = vpop.f32.mrf.mxu0
    %v10918 = vadd.f32 %v10805, %v10917
    %v10919 = vpop.f32.mrf.mxu0
    %v10920 = vadd.f32 %v10807, %v10919
    %v10921 = vpop.f32.mrf.mxu0
    %v10922 = vadd.f32 %v10809, %v10921
    %v10923 = vpop.f32.mrf.mxu0
    %v10924 = vadd.f32 %v10811, %v10923
    %10925 = vmatprep.mubr.bf16.mxu0 0
    %10926 = vmatmul.mubr.bf16.gmra.mxu0 %v87
    %v10927 = vpop.f32.mrf.mxu0
    %v10928 = vadd.f32 %v10815, %v10927
    %v10929 = vpop.f32.mrf.mxu0
    %v10930 = vadd.f32 %v10817, %v10929
    %v10931 = vpop.f32.mrf.mxu0
    %v10932 = vadd.f32 %v10819, %v10931
    %v10933 = vpop.f32.mrf.mxu0
    %v10934 = vadd.f32 %v10821, %v10933
    %10935 = vmatprep.mubr.bf16.mxu0 0
    %10936 = vmatmul.mubr.bf16.gmra.mxu0 %v88
    %v10937 = vpop.f32.mrf.mxu0
    %v10938 = vadd.f32 %v10825, %v10937
    %v10939 = vpop.f32.mrf.mxu0
    %v10940 = vadd.f32 %v10827, %v10939
    %v10941 = vpop.f32.mrf.mxu0
    %v10942 = vadd.f32 %v10829, %v10941
    %v10943 = vpop.f32.mrf.mxu0
    %v10944 = vadd.f32 %v10831, %v10943
    %10945 = vmatprep.mubr.bf16.mxu0 0
    %10946 = vmatmul.mubr.bf16.gmra.mxu0 %v89
    %v10947 = vpop.f32.mrf.mxu0
    %v10948 = vadd.f32 %v10835, %v10947
    %v10949 = vpop.f32.mrf.mxu0
    %v10950 = vadd.f32 %v10837, %v10949
    %v10951 = vpop.f32.mrf.mxu0
    %v10952 = vadd.f32 %v10839, %v10951
    %v10953 = vpop.f32.mrf.mxu0
    %v10954 = vadd.f32 %v10841, %v10953
    %10955 = vmatprep.mubr.bf16.mxu0 0
    %10956 = vmatmul.mubr.bf16.gmra.mxu0 %v90
    %v10957 = vpop.f32.mrf.mxu0
    %v10958 = vadd.f32 %v10845, %v10957
    %v10959 = vpop.f32.mrf.mxu0
    %v10960 = vadd.f32 %v10847, %v10959
    %v10961 = vpop.f32.mrf.mxu0
    %v10962 = vadd.f32 %v10849, %v10961
    %v10963 = vpop.f32.mrf.mxu0
    %v10964 = vadd.f32 %v10851, %v10963
    %10965 = vmatprep.mubr.bf16.mxu0 0
    %10966 = vmatmul.mubr.bf16.gmra.mxu0 %v91
    %v10967 = vpop.f32.mrf.mxu0
    %v10968 = vadd.f32 %v10855, %v10967
    %v10969 = vpop.f32.mrf.mxu0
    %v10970 = vadd.f32 %v10857, %v10969
    %v10971 = vpop.f32.mrf.mxu0
    %v10972 = vadd.f32 %v10859, %v10971
    %v10973 = vpop.f32.mrf.mxu0
    %v10974 = vadd.f32 %v10861, %v10973
    %10975 = vmatprep.mubr.bf16.mxu0 0
    %10976 = vmatmul.mubr.bf16.gmra.mxu0 %v92
    %v10977 = vpop.f32.mrf.mxu0
    %v10978 = vadd.f32 %v10865, %v10977
    %v10979 = vpop.f32.mrf.mxu0
    %v10980 = vadd.f32 %v10867, %v10979
    %v10981 = vpop.f32.mrf.mxu0
    %v10982 = vadd.f32 %v10869, %v10981
    %v10983 = vpop.f32.mrf.mxu0
    %v10984 = vadd.f32 %v10871, %v10983
    %10985 = vmatprep.mubr.bf16.mxu0 0
    %10986 = vmatmul.mubr.bf16.gmra.mxu0 %v93
    %v10987 = vpop.f32.mrf.mxu0
    %v10988 = vadd.f32 %v10875, %v10987
    %v10989 = vpop.f32.mrf.mxu0
    %v10990 = vadd.f32 %v10877, %v10989
    %v10991 = vpop.f32.mrf.mxu0
    %v10992 = vadd.f32 %v10879, %v10991
    %v10993 = vpop.f32.mrf.mxu0
    %v10994 = vadd.f32 %v10881, %v10993
    %10995 = vdwg.mxu0
    %v10996 = vlaneseq
    %v10997 = vshrl.u32 %v10996, 7
    %v10998 = vsub.s32 0, %v10997
    %v10999 = vrot.slane %v10128, %v10998
    %v11000 = vlaneseq
    %v11001 = vshrl.u32 %v11000, 7
    %v11002 = vsub.s32 0, %v11001
    %v11003 = vrot.slane %v10129, %v11002
    %v11004 = vadd.f32 %v10918, %v10999
    %v11005 = vadd.f32 %v10920, %v11003
    %v11006 = vadd.f32 %v10922, %v10999
    %v11007 = vadd.f32 %v10924, %v11003
    %v11008 = vadd.f32 %v10928, %v10999
    %v11009 = vadd.f32 %v10930, %v11003
    %v11010 = vadd.f32 %v10932, %v10999
    %v11011 = vadd.f32 %v10934, %v11003
    %v11012 = vadd.f32 %v10938, %v10999
    %v11013 = vadd.f32 %v10940, %v11003
    %v11014 = vadd.f32 %v10942, %v10999
    %v11015 = vadd.f32 %v10944, %v11003
    %v11016 = vadd.f32 %v10948, %v10999
    %v11017 = vadd.f32 %v10950, %v11003
    %v11018 = vadd.f32 %v10952, %v10999
    %v11019 = vadd.f32 %v10954, %v11003
    %v11020 = vadd.f32 %v10958, %v10999
    %v11021 = vadd.f32 %v10960, %v11003
    %v11022 = vadd.f32 %v10962, %v10999
    %v11023 = vadd.f32 %v10964, %v11003
    %v11024 = vadd.f32 %v10968, %v10999
    %v11025 = vadd.f32 %v10970, %v11003
    %v11026 = vadd.f32 %v10972, %v10999
    %v11027 = vadd.f32 %v10974, %v11003
    %v11028 = vadd.f32 %v10978, %v10999
    %v11029 = vadd.f32 %v10980, %v11003
    %v11030 = vadd.f32 %v10982, %v10999
    %v11031 = vadd.f32 %v10984, %v11003
    %v11032 = vadd.f32 %v10988, %v10999
    %v11033 = vadd.f32 %v10990, %v11003
    %v11034 = vadd.f32 %v10992, %v10999
    %v11035 = vadd.f32 %v10994, %v11003
    %v11036 = vxor.u32 %v11004, 2147483648
    %v11037 = vxor.u32 %v11005, 2147483648
    %v11038 = vxor.u32 %v11006, 2147483648
    %v11039 = vxor.u32 %v11007, 2147483648
    %v11040 = vxor.u32 %v11008, 2147483648
    %v11041 = vxor.u32 %v11009, 2147483648
    %v11042 = vxor.u32 %v11010, 2147483648
    %v11043 = vxor.u32 %v11011, 2147483648
    %v11044 = vxor.u32 %v11012, 2147483648
    %v11045 = vxor.u32 %v11013, 2147483648
    %v11046 = vxor.u32 %v11014, 2147483648
    %v11047 = vxor.u32 %v11015, 2147483648
    %v11048 = vxor.u32 %v11016, 2147483648
    %v11049 = vxor.u32 %v11017, 2147483648
    %v11050 = vxor.u32 %v11018, 2147483648
    %v11051 = vxor.u32 %v11019, 2147483648
    %v11052 = vxor.u32 %v11020, 2147483648
    %v11053 = vxor.u32 %v11021, 2147483648
    %v11054 = vxor.u32 %v11022, 2147483648
    %v11055 = vxor.u32 %v11023, 2147483648
    %v11056 = vxor.u32 %v11024, 2147483648
    %v11057 = vxor.u32 %v11025, 2147483648
    %v11058 = vxor.u32 %v11026, 2147483648
    %v11059 = vxor.u32 %v11027, 2147483648
    %v11060 = vxor.u32 %v11028, 2147483648
    %v11061 = vxor.u32 %v11029, 2147483648
    %v11062 = vxor.u32 %v11030, 2147483648
    %v11063 = vxor.u32 %v11031, 2147483648
    %v11064 = vxor.u32 %v11032, 2147483648
    %v11065 = vxor.u32 %v11033, 2147483648
    %v11066 = vxor.u32 %v11034, 2147483648
    %v11067 = vxor.u32 %v11035, 2147483648
    %v11068 = vmul.f32 %v11036, 1.442695
    %v11069 = vpow.pop %v11068
    %v11070 = vmul.f32 %v11037, 1.442695
    %v11071 = vpow.pop %v11070
    %v11072 = vmul.f32 %v11038, 1.442695
    %v11073 = vpow.pop %v11072
    %v11074 = vmul.f32 %v11039, 1.442695
    %v11075 = vpow.pop %v11074
    %v11076 = vmul.f32 %v11040, 1.442695
    %v11077 = vpow.pop %v11076
    %v11078 = vmul.f32 %v11041, 1.442695
    %v11079 = vpow.pop %v11078
    %v11080 = vmul.f32 %v11042, 1.442695
    %v11081 = vpow.pop %v11080
    %v11082 = vmul.f32 %v11043, 1.442695
    %v11083 = vpow.pop %v11082
    %v11084 = vmul.f32 %v11044, 1.442695
    %v11085 = vpow.pop %v11084
    %v11086 = vmul.f32 %v11045, 1.442695
    %v11087 = vpow.pop %v11086
    %v11088 = vmul.f32 %v11046, 1.442695
    %v11089 = vpow.pop %v11088
    %v11090 = vmul.f32 %v11047, 1.442695
    %v11091 = vpow.pop %v11090
    %v11092 = vmul.f32 %v11048, 1.442695
    %v11093 = vpow.pop %v11092
    %v11094 = vmul.f32 %v11049, 1.442695
    %v11095 = vpow.pop %v11094
    %v11096 = vmul.f32 %v11050, 1.442695
    %v11097 = vpow.pop %v11096
    %v11098 = vmul.f32 %v11051, 1.442695
    %v11099 = vpow.pop %v11098
    %v11100 = vmul.f32 %v11052, 1.442695
    %v11101 = vpow.pop %v11100
    %v11102 = vmul.f32 %v11053, 1.442695
    %v11103 = vpow.pop %v11102
    %v11104 = vmul.f32 %v11054, 1.442695
    %v11105 = vpow.pop %v11104
    %v11106 = vmul.f32 %v11055, 1.442695
    %v11107 = vpow.pop %v11106
    %v11108 = vmul.f32 %v11056, 1.442695
    %v11109 = vpow.pop %v11108
    %v11110 = vmul.f32 %v11057, 1.442695
    %v11111 = vpow.pop %v11110
    %v11112 = vmul.f32 %v11058, 1.442695
    %v11113 = vpow.pop %v11112
    %v11114 = vmul.f32 %v11059, 1.442695
    %v11115 = vpow.pop %v11114
    %v11116 = vmul.f32 %v11060, 1.442695
    %v11117 = vpow.pop %v11116
    %v11118 = vmul.f32 %v11061, 1.442695
    %v11119 = vpow.pop %v11118
    %v11120 = vmul.f32 %v11062, 1.442695
    %v11121 = vpow.pop %v11120
    %v11122 = vmul.f32 %v11063, 1.442695
    %v11123 = vpow.pop %v11122
    %v11124 = vmul.f32 %v11064, 1.442695
    %v11125 = vpow.pop %v11124
    %v11126 = vmul.f32 %v11065, 1.442695
    %v11127 = vpow.pop %v11126
    %v11128 = vmul.f32 %v11066, 1.442695
    %v11129 = vpow.pop %v11128
    %v11130 = vmul.f32 %v11067, 1.442695
    %v11131 = vpow.pop %v11130
    %v11132 = vadd.f32 %v11069, 1.0
    %v11133 = vadd.f32 %v11071, 1.0
    %v11134 = vadd.f32 %v11073, 1.0
    %v11135 = vadd.f32 %v11075, 1.0
    %v11136 = vadd.f32 %v11077, 1.0
    %v11137 = vadd.f32 %v11079, 1.0
    %v11138 = vadd.f32 %v11081, 1.0
    %v11139 = vadd.f32 %v11083, 1.0
    %v11140 = vadd.f32 %v11085, 1.0
    %v11141 = vadd.f32 %v11087, 1.0
    %v11142 = vadd.f32 %v11089, 1.0
    %v11143 = vadd.f32 %v11091, 1.0
    %v11144 = vadd.f32 %v11093, 1.0
    %v11145 = vadd.f32 %v11095, 1.0
    %v11146 = vadd.f32 %v11097, 1.0
    %v11147 = vadd.f32 %v11099, 1.0
    %v11148 = vadd.f32 %v11101, 1.0
    %v11149 = vadd.f32 %v11103, 1.0
    %v11150 = vadd.f32 %v11105, 1.0
    %v11151 = vadd.f32 %v11107, 1.0
    %v11152 = vadd.f32 %v11109, 1.0
    %v11153 = vadd.f32 %v11111, 1.0
    %v11154 = vadd.f32 %v11113, 1.0
    %v11155 = vadd.f32 %v11115, 1.0
    %v11156 = vadd.f32 %v11117, 1.0
    %v11157 = vadd.f32 %v11119, 1.0
    %v11158 = vadd.f32 %v11121, 1.0
    %v11159 = vadd.f32 %v11123, 1.0
    %v11160 = vadd.f32 %v11125, 1.0
    %v11161 = vadd.f32 %v11127, 1.0
    %v11162 = vadd.f32 %v11129, 1.0
    %v11163 = vadd.f32 %v11131, 1.0
    %v11164 = vrcp.pop %v11132
    %v11165 = vmul.f32 1.0, %v11164
    %v11166 = vrcp.pop %v11133
    %v11167 = vmul.f32 1.0, %v11166
    %v11168 = vrcp.pop %v11134
    %v11169 = vmul.f32 1.0, %v11168
    %v11170 = vrcp.pop %v11135
    %v11171 = vmul.f32 1.0, %v11170
    %v11172 = vrcp.pop %v11136
    %v11173 = vmul.f32 1.0, %v11172
    %v11174 = vrcp.pop %v11137
    %v11175 = vmul.f32 1.0, %v11174
    %v11176 = vrcp.pop %v11138
    %v11177 = vmul.f32 1.0, %v11176
    %v11178 = vrcp.pop %v11139
    %v11179 = vmul.f32 1.0, %v11178
    %v11180 = vrcp.pop %v11140
    %v11181 = vmul.f32 1.0, %v11180
    %v11182 = vrcp.pop %v11141
    %v11183 = vmul.f32 1.0, %v11182
    %v11184 = vrcp.pop %v11142
    %v11185 = vmul.f32 1.0, %v11184
    %v11186 = vrcp.pop %v11143
    %v11187 = vmul.f32 1.0, %v11186
    %v11188 = vrcp.pop %v11144
    %v11189 = vmul.f32 1.0, %v11188
    %v11190 = vrcp.pop %v11145
    %v11191 = vmul.f32 1.0, %v11190
    %v11192 = vrcp.pop %v11146
    %v11193 = vmul.f32 1.0, %v11192
    %v11194 = vrcp.pop %v11147
    %v11195 = vmul.f32 1.0, %v11194
    %v11196 = vrcp.pop %v11148
    %v11197 = vmul.f32 1.0, %v11196
    %v11198 = vrcp.pop %v11149
    %v11199 = vmul.f32 1.0, %v11198
    %v11200 = vrcp.pop %v11150
    %v11201 = vmul.f32 1.0, %v11200
    %v11202 = vrcp.pop %v11151
    %v11203 = vmul.f32 1.0, %v11202
    %v11204 = vrcp.pop %v11152
    %v11205 = vmul.f32 1.0, %v11204
    %v11206 = vrcp.pop %v11153
    %v11207 = vmul.f32 1.0, %v11206
    %v11208 = vrcp.pop %v11154
    %v11209 = vmul.f32 1.0, %v11208
    %v11210 = vrcp.pop %v11155
    %v11211 = vmul.f32 1.0, %v11210
    %v11212 = vrcp.pop %v11156
    %v11213 = vmul.f32 1.0, %v11212
    %v11214 = vrcp.pop %v11157
    %v11215 = vmul.f32 1.0, %v11214
    %v11216 = vrcp.pop %v11158
    %v11217 = vmul.f32 1.0, %v11216
    %v11218 = vrcp.pop %v11159
    %v11219 = vmul.f32 1.0, %v11218
    %v11220 = vrcp.pop %v11160
    %v11221 = vmul.f32 1.0, %v11220
    %v11222 = vrcp.pop %v11161
    %v11223 = vmul.f32 1.0, %v11222
    %v11224 = vrcp.pop %v11162
    %v11225 = vmul.f32 1.0, %v11224
    %v11226 = vrcp.pop %v11163
    %v11227 = vmul.f32 1.0, %v11226
    %v11228 = vmul.f32 %v11165, %v10162
    %v11229 = vmul.f32 %v11169, %v10163
    %v11230 = vmul.f32 %v11173, %v10164
    %v11231 = vmul.f32 %v11177, %v10165
    %v11232 = vmul.f32 %v11181, %v10166
    %v11233 = vmul.f32 %v11185, %v10167
    %v11234 = vmul.f32 %v11189, %v10168
    %v11235 = vmul.f32 %v11193, %v10169
    %v11236 = vmul.f32 %v11197, %v10170
    %v11237 = vmul.f32 %v11201, %v10171
    %v11238 = vmul.f32 %v11205, %v10172
    %v11239 = vmul.f32 %v11209, %v10173
    %v11240 = vmul.f32 %v11213, %v10174
    %v11241 = vmul.f32 %v11217, %v10175
    %v11242 = vmul.f32 %v11221, %v10176
    %v11243 = vmul.f32 %v11225, %v10177
    %v11244 = vsel %vm103, %v11228, 0.0
    %11245 = vadd.xlane.f32.xlu0 %v11244
    %v11246 = vpop.xlane.xlu0 %11245
    %v11247 = vsel %vm103, %v11229, 0.0
    %11248 = vadd.xlane.f32.xlu0 %v11247
    %v11249 = vpop.xlane.xlu0 %11248
    %v11250 = vsel %vm103, %v11230, 0.0
    %11251 = vadd.xlane.f32.xlu0 %v11250
    %v11252 = vpop.xlane.xlu0 %11251
    %v11253 = vsel %vm103, %v11231, 0.0
    %11254 = vadd.xlane.f32.xlu0 %v11253
    %v11255 = vpop.xlane.xlu0 %11254
    %v11256 = vsel %vm103, %v11232, 0.0
    %11257 = vadd.xlane.f32.xlu0 %v11256
    %v11258 = vpop.xlane.xlu0 %11257
    %v11259 = vsel %vm103, %v11233, 0.0
    %11260 = vadd.xlane.f32.xlu0 %v11259
    %v11261 = vpop.xlane.xlu0 %11260
    %v11262 = vsel %vm103, %v11234, 0.0
    %11263 = vadd.xlane.f32.xlu0 %v11262
    %v11264 = vpop.xlane.xlu0 %11263
    %v11265 = vsel %vm103, %v11235, 0.0
    %11266 = vadd.xlane.f32.xlu0 %v11265
    %v11267 = vpop.xlane.xlu0 %11266
    %v11268 = vsel %vm103, %v11236, 0.0
    %11269 = vadd.xlane.f32.xlu0 %v11268
    %v11270 = vpop.xlane.xlu0 %11269
    %v11271 = vsel %vm103, %v11237, 0.0
    %11272 = vadd.xlane.f32.xlu0 %v11271
    %v11273 = vpop.xlane.xlu0 %11272
    %v11274 = vsel %vm103, %v11238, 0.0
    %11275 = vadd.xlane.f32.xlu0 %v11274
    %v11276 = vpop.xlane.xlu0 %11275
    %v11277 = vsel %vm103, %v11239, 0.0
    %11278 = vadd.xlane.f32.xlu0 %v11277
    %v11279 = vpop.xlane.xlu0 %11278
    %v11280 = vsel %vm103, %v11240, 0.0
    %11281 = vadd.xlane.f32.xlu0 %v11280
    %v11282 = vpop.xlane.xlu0 %11281
    %v11283 = vsel %vm103, %v11241, 0.0
    %11284 = vadd.xlane.f32.xlu0 %v11283
    %v11285 = vpop.xlane.xlu0 %11284
    %v11286 = vsel %vm103, %v11242, 0.0
    %11287 = vadd.xlane.f32.xlu0 %v11286
    %v11288 = vpop.xlane.xlu0 %11287
    %v11289 = vsel %vm103, %v11243, 0.0
    %11290 = vadd.xlane.f32.xlu0 %v11289
    %v11291 = vpop.xlane.xlu0 %11290
    %11308 = vrot.lane.b32.xlu0 %v10162, 64
    %v11309 = vpop.permute.xlu0 %11308
    %11310 = vrot.lane.b32.xlu0 %v10163, 64
    %v11311 = vpop.permute.xlu0 %11310
    %11312 = vrot.lane.b32.xlu0 %v10164, 64
    %v11313 = vpop.permute.xlu0 %11312
    %11314 = vrot.lane.b32.xlu0 %v10165, 64
    %v11315 = vpop.permute.xlu0 %11314
    %11316 = vrot.lane.b32.xlu0 %v10166, 64
    %v11317 = vpop.permute.xlu0 %11316
    %11318 = vrot.lane.b32.xlu0 %v10167, 64
    %v11319 = vpop.permute.xlu0 %11318
    %11320 = vrot.lane.b32.xlu0 %v10168, 64
    %v11321 = vpop.permute.xlu0 %11320
    %11322 = vrot.lane.b32.xlu0 %v10169, 64
    %v11323 = vpop.permute.xlu0 %11322
    %11324 = vrot.lane.b32.xlu0 %v10170, 64
    %v11325 = vpop.permute.xlu0 %11324
    %11326 = vrot.lane.b32.xlu0 %v10171, 64
    %v11327 = vpop.permute.xlu0 %11326
    %11328 = vrot.lane.b32.xlu0 %v10172, 64
    %v11329 = vpop.permute.xlu0 %11328
    %11330 = vrot.lane.b32.xlu0 %v10173, 64
    %v11331 = vpop.permute.xlu0 %11330
    %11332 = vrot.lane.b32.xlu0 %v10174, 64
    %v11333 = vpop.permute.xlu0 %11332
    %11334 = vrot.lane.b32.xlu0 %v10175, 64
    %v11335 = vpop.permute.xlu0 %11334
    %11336 = vrot.lane.b32.xlu0 %v10176, 64
    %v11337 = vpop.permute.xlu0 %11336
    %11338 = vrot.lane.b32.xlu0 %v10177, 64
    %v11339 = vpop.permute.xlu0 %11338
    %v11356 = vmul.f32 %v11165, %v11309
    %v11357 = vmul.f32 %v11169, %v11311
    %v11358 = vmul.f32 %v11173, %v11313
    %v11359 = vmul.f32 %v11177, %v11315
    %v11360 = vmul.f32 %v11181, %v11317
    %v11361 = vmul.f32 %v11185, %v11319
    %v11362 = vmul.f32 %v11189, %v11321
    %v11363 = vmul.f32 %v11193, %v11323
    %v11364 = vmul.f32 %v11197, %v11325
    %v11365 = vmul.f32 %v11201, %v11327
    %v11366 = vmul.f32 %v11205, %v11329
    %v11367 = vmul.f32 %v11209, %v11331
    %v11368 = vmul.f32 %v11213, %v11333
    %v11369 = vmul.f32 %v11217, %v11335
    %v11370 = vmul.f32 %v11221, %v11337
    %v11371 = vmul.f32 %v11225, %v11339
    %11388 = vrot.lane.b32.xlu0 %v11356, 64
    %v11389 = vpop.permute.xlu0 %11388
    %11390 = vrot.lane.b32.xlu0 %v11357, 64
    %v11391 = vpop.permute.xlu0 %11390
    %11392 = vrot.lane.b32.xlu0 %v11358, 64
    %v11393 = vpop.permute.xlu0 %11392
    %11394 = vrot.lane.b32.xlu0 %v11359, 64
    %v11395 = vpop.permute.xlu0 %11394
    %11396 = vrot.lane.b32.xlu0 %v11360, 64
    %v11397 = vpop.permute.xlu0 %11396
    %11398 = vrot.lane.b32.xlu0 %v11361, 64
    %v11399 = vpop.permute.xlu0 %11398
    %11400 = vrot.lane.b32.xlu0 %v11362, 64
    %v11401 = vpop.permute.xlu0 %11400
    %11402 = vrot.lane.b32.xlu0 %v11363, 64
    %v11403 = vpop.permute.xlu0 %11402
    %11404 = vrot.lane.b32.xlu0 %v11364, 64
    %v11405 = vpop.permute.xlu0 %11404
    %11406 = vrot.lane.b32.xlu0 %v11365, 64
    %v11407 = vpop.permute.xlu0 %11406
    %11408 = vrot.lane.b32.xlu0 %v11366, 64
    %v11409 = vpop.permute.xlu0 %11408
    %11410 = vrot.lane.b32.xlu0 %v11367, 64
    %v11411 = vpop.permute.xlu0 %11410
    %11412 = vrot.lane.b32.xlu0 %v11368, 64
    %v11413 = vpop.permute.xlu0 %11412
    %11414 = vrot.lane.b32.xlu0 %v11369, 64
    %v11415 = vpop.permute.xlu0 %11414
    %11416 = vrot.lane.b32.xlu0 %v11370, 64
    %v11417 = vpop.permute.xlu0 %11416
    %11418 = vrot.lane.b32.xlu0 %v11371, 64
    %v11419 = vpop.permute.xlu0 %11418
    %v11436 = vsel %vm103, %v11389, 0.0
    %11437 = vadd.xlane.f32.xlu0 %v11436
    %v11438 = vpop.xlane.xlu0 %11437
    %v11439 = vsel %vm103, %v11391, 0.0
    %11440 = vadd.xlane.f32.xlu0 %v11439
    %v11441 = vpop.xlane.xlu0 %11440
    %v11442 = vsel %vm103, %v11393, 0.0
    %11443 = vadd.xlane.f32.xlu0 %v11442
    %v11444 = vpop.xlane.xlu0 %11443
    %v11445 = vsel %vm103, %v11395, 0.0
    %11446 = vadd.xlane.f32.xlu0 %v11445
    %v11447 = vpop.xlane.xlu0 %11446
    %v11448 = vsel %vm103, %v11397, 0.0
    %11449 = vadd.xlane.f32.xlu0 %v11448
    %v11450 = vpop.xlane.xlu0 %11449
    %v11451 = vsel %vm103, %v11399, 0.0
    %11452 = vadd.xlane.f32.xlu0 %v11451
    %v11453 = vpop.xlane.xlu0 %11452
    %v11454 = vsel %vm103, %v11401, 0.0
    %11455 = vadd.xlane.f32.xlu0 %v11454
    %v11456 = vpop.xlane.xlu0 %11455
    %v11457 = vsel %vm103, %v11403, 0.0
    %11458 = vadd.xlane.f32.xlu0 %v11457
    %v11459 = vpop.xlane.xlu0 %11458
    %v11460 = vsel %vm103, %v11405, 0.0
    %11461 = vadd.xlane.f32.xlu0 %v11460
    %v11462 = vpop.xlane.xlu0 %11461
    %v11463 = vsel %vm103, %v11407, 0.0
    %11464 = vadd.xlane.f32.xlu0 %v11463
    %v11465 = vpop.xlane.xlu0 %11464
    %v11466 = vsel %vm103, %v11409, 0.0
    %11467 = vadd.xlane.f32.xlu0 %v11466
    %v11468 = vpop.xlane.xlu0 %11467
    %v11469 = vsel %vm103, %v11411, 0.0
    %11470 = vadd.xlane.f32.xlu0 %v11469
    %v11471 = vpop.xlane.xlu0 %11470
    %v11472 = vsel %vm103, %v11413, 0.0
    %11473 = vadd.xlane.f32.xlu0 %v11472
    %v11474 = vpop.xlane.xlu0 %11473
    %v11475 = vsel %vm103, %v11415, 0.0
    %11476 = vadd.xlane.f32.xlu0 %v11475
    %v11477 = vpop.xlane.xlu0 %11476
    %v11478 = vsel %vm103, %v11417, 0.0
    %11479 = vadd.xlane.f32.xlu0 %v11478
    %v11480 = vpop.xlane.xlu0 %11479
    %v11481 = vsel %vm103, %v11419, 0.0
    %11482 = vadd.xlane.f32.xlu0 %v11481
    %v11483 = vpop.xlane.xlu0 %11482
    %v11484 = vmul.f32 %v11167, %v10162
    %v11485 = vmul.f32 %v11171, %v10163
    %v11486 = vmul.f32 %v11175, %v10164
    %v11487 = vmul.f32 %v11179, %v10165
    %v11488 = vmul.f32 %v11183, %v10166
    %v11489 = vmul.f32 %v11187, %v10167
    %v11490 = vmul.f32 %v11191, %v10168
    %v11491 = vmul.f32 %v11195, %v10169
    %v11492 = vmul.f32 %v11199, %v10170
    %v11493 = vmul.f32 %v11203, %v10171
    %v11494 = vmul.f32 %v11207, %v10172
    %v11495 = vmul.f32 %v11211, %v10173
    %v11496 = vmul.f32 %v11215, %v10174
    %v11497 = vmul.f32 %v11219, %v10175
    %v11498 = vmul.f32 %v11223, %v10176
    %v11499 = vmul.f32 %v11227, %v10177
    %v11500 = vsel %vm103, %v11484, 0.0
    %11501 = vadd.xlane.f32.xlu0 %v11500
    %v11502 = vpop.xlane.xlu0 %11501
    %v11503 = vsel %vm103, %v11485, 0.0
    %11504 = vadd.xlane.f32.xlu0 %v11503
    %v11505 = vpop.xlane.xlu0 %11504
    %v11506 = vsel %vm103, %v11486, 0.0
    %11507 = vadd.xlane.f32.xlu0 %v11506
    %v11508 = vpop.xlane.xlu0 %11507
    %v11509 = vsel %vm103, %v11487, 0.0
    %11510 = vadd.xlane.f32.xlu0 %v11509
    %v11511 = vpop.xlane.xlu0 %11510
    %v11512 = vsel %vm103, %v11488, 0.0
    %11513 = vadd.xlane.f32.xlu0 %v11512
    %v11514 = vpop.xlane.xlu0 %11513
    %v11515 = vsel %vm103, %v11489, 0.0
    %11516 = vadd.xlane.f32.xlu0 %v11515
    %v11517 = vpop.xlane.xlu0 %11516
    %v11518 = vsel %vm103, %v11490, 0.0
    %11519 = vadd.xlane.f32.xlu0 %v11518
    %v11520 = vpop.xlane.xlu0 %11519
    %v11521 = vsel %vm103, %v11491, 0.0
    %11522 = vadd.xlane.f32.xlu0 %v11521
    %v11523 = vpop.xlane.xlu0 %11522
    %v11524 = vsel %vm103, %v11492, 0.0
    %11525 = vadd.xlane.f32.xlu0 %v11524
    %v11526 = vpop.xlane.xlu0 %11525
    %v11527 = vsel %vm103, %v11493, 0.0
    %11528 = vadd.xlane.f32.xlu0 %v11527
    %v11529 = vpop.xlane.xlu0 %11528
    %v11530 = vsel %vm103, %v11494, 0.0
    %11531 = vadd.xlane.f32.xlu0 %v11530
    %v11532 = vpop.xlane.xlu0 %11531
    %v11533 = vsel %vm103, %v11495, 0.0
    %11534 = vadd.xlane.f32.xlu0 %v11533
    %v11535 = vpop.xlane.xlu0 %11534
    %v11536 = vsel %vm103, %v11496, 0.0
    %11537 = vadd.xlane.f32.xlu0 %v11536
    %v11538 = vpop.xlane.xlu0 %11537
    %v11539 = vsel %vm103, %v11497, 0.0
    %11540 = vadd.xlane.f32.xlu0 %v11539
    %v11541 = vpop.xlane.xlu0 %11540
    %v11542 = vsel %vm103, %v11498, 0.0
    %11543 = vadd.xlane.f32.xlu0 %v11542
    %v11544 = vpop.xlane.xlu0 %11543
    %v11545 = vsel %vm103, %v11499, 0.0
    %11546 = vadd.xlane.f32.xlu0 %v11545
    %v11547 = vpop.xlane.xlu0 %11546
    %v11548 = vmul.f32 %v11167, %v11309
    %v11549 = vmul.f32 %v11171, %v11311
    %v11550 = vmul.f32 %v11175, %v11313
    %v11551 = vmul.f32 %v11179, %v11315
    %v11552 = vmul.f32 %v11183, %v11317
    %v11553 = vmul.f32 %v11187, %v11319
    %v11554 = vmul.f32 %v11191, %v11321
    %v11555 = vmul.f32 %v11195, %v11323
    %v11556 = vmul.f32 %v11199, %v11325
    %v11557 = vmul.f32 %v11203, %v11327
    %v11558 = vmul.f32 %v11207, %v11329
    %v11559 = vmul.f32 %v11211, %v11331
    %v11560 = vmul.f32 %v11215, %v11333
    %v11561 = vmul.f32 %v11219, %v11335
    %v11562 = vmul.f32 %v11223, %v11337
    %v11563 = vmul.f32 %v11227, %v11339
    %11580 = vrot.lane.b32.xlu0 %v11548, 64
    %v11581 = vpop.permute.xlu0 %11580
    %11582 = vrot.lane.b32.xlu0 %v11549, 64
    %v11583 = vpop.permute.xlu0 %11582
    %11584 = vrot.lane.b32.xlu0 %v11550, 64
    %v11585 = vpop.permute.xlu0 %11584
    %11586 = vrot.lane.b32.xlu0 %v11551, 64
    %v11587 = vpop.permute.xlu0 %11586
    %11588 = vrot.lane.b32.xlu0 %v11552, 64
    %v11589 = vpop.permute.xlu0 %11588
    %11590 = vrot.lane.b32.xlu0 %v11553, 64
    %v11591 = vpop.permute.xlu0 %11590
    %11592 = vrot.lane.b32.xlu0 %v11554, 64
    %v11593 = vpop.permute.xlu0 %11592
    %11594 = vrot.lane.b32.xlu0 %v11555, 64
    %v11595 = vpop.permute.xlu0 %11594
    %11596 = vrot.lane.b32.xlu0 %v11556, 64
    %v11597 = vpop.permute.xlu0 %11596
    %11598 = vrot.lane.b32.xlu0 %v11557, 64
    %v11599 = vpop.permute.xlu0 %11598
    %11600 = vrot.lane.b32.xlu0 %v11558, 64
    %v11601 = vpop.permute.xlu0 %11600
    %11602 = vrot.lane.b32.xlu0 %v11559, 64
    %v11603 = vpop.permute.xlu0 %11602
    %11604 = vrot.lane.b32.xlu0 %v11560, 64
    %v11605 = vpop.permute.xlu0 %11604
    %11606 = vrot.lane.b32.xlu0 %v11561, 64
    %v11607 = vpop.permute.xlu0 %11606
    %11608 = vrot.lane.b32.xlu0 %v11562, 64
    %v11609 = vpop.permute.xlu0 %11608
    %11610 = vrot.lane.b32.xlu0 %v11563, 64
    %v11611 = vpop.permute.xlu0 %11610
    %v11628 = vsel %vm103, %v11581, 0.0
    %11629 = vadd.xlane.f32.xlu0 %v11628
    %v11630 = vpop.xlane.xlu0 %11629
    %v11631 = vsel %vm103, %v11583, 0.0
    %11632 = vadd.xlane.f32.xlu0 %v11631
    %v11633 = vpop.xlane.xlu0 %11632
    %v11634 = vsel %vm103, %v11585, 0.0
    %11635 = vadd.xlane.f32.xlu0 %v11634
    %v11636 = vpop.xlane.xlu0 %11635
    %v11637 = vsel %vm103, %v11587, 0.0
    %11638 = vadd.xlane.f32.xlu0 %v11637
    %v11639 = vpop.xlane.xlu0 %11638
    %v11640 = vsel %vm103, %v11589, 0.0
    %11641 = vadd.xlane.f32.xlu0 %v11640
    %v11642 = vpop.xlane.xlu0 %11641
    %v11643 = vsel %vm103, %v11591, 0.0
    %11644 = vadd.xlane.f32.xlu0 %v11643
    %v11645 = vpop.xlane.xlu0 %11644
    %v11646 = vsel %vm103, %v11593, 0.0
    %11647 = vadd.xlane.f32.xlu0 %v11646
    %v11648 = vpop.xlane.xlu0 %11647
    %v11649 = vsel %vm103, %v11595, 0.0
    %11650 = vadd.xlane.f32.xlu0 %v11649
    %v11651 = vpop.xlane.xlu0 %11650
    %v11652 = vsel %vm103, %v11597, 0.0
    %11653 = vadd.xlane.f32.xlu0 %v11652
    %v11654 = vpop.xlane.xlu0 %11653
    %v11655 = vsel %vm103, %v11599, 0.0
    %11656 = vadd.xlane.f32.xlu0 %v11655
    %v11657 = vpop.xlane.xlu0 %11656
    %v11658 = vsel %vm103, %v11601, 0.0
    %11659 = vadd.xlane.f32.xlu0 %v11658
    %v11660 = vpop.xlane.xlu0 %11659
    %v11661 = vsel %vm103, %v11603, 0.0
    %11662 = vadd.xlane.f32.xlu0 %v11661
    %v11663 = vpop.xlane.xlu0 %11662
    %v11664 = vsel %vm103, %v11605, 0.0
    %11665 = vadd.xlane.f32.xlu0 %v11664
    %v11666 = vpop.xlane.xlu0 %11665
    %v11667 = vsel %vm103, %v11607, 0.0
    %11668 = vadd.xlane.f32.xlu0 %v11667
    %v11669 = vpop.xlane.xlu0 %11668
    %v11670 = vsel %vm103, %v11609, 0.0
    %11671 = vadd.xlane.f32.xlu0 %v11670
    %v11672 = vpop.xlane.xlu0 %11671
    %v11673 = vsel %vm103, %v11611, 0.0
    %11674 = vadd.xlane.f32.xlu0 %v11673
    %v11675 = vpop.xlane.xlu0 %11674
    %v11676 = vsel %vm1647, %v11246, %v11438
    %v11677 = vsel %vm1647, %v11249, %v11441
    %v11678 = vsel %vm1647, %v11252, %v11444
    %v11679 = vsel %vm1647, %v11255, %v11447
    %v11680 = vsel %vm1647, %v11258, %v11450
    %v11681 = vsel %vm1647, %v11261, %v11453
    %v11682 = vsel %vm1647, %v11264, %v11456
    %v11683 = vsel %vm1647, %v11267, %v11459
    %v11684 = vsel %vm1647, %v11270, %v11462
    %v11685 = vsel %vm1647, %v11273, %v11465
    %v11686 = vsel %vm1647, %v11276, %v11468
    %v11687 = vsel %vm1647, %v11279, %v11471
    %v11688 = vsel %vm1647, %v11282, %v11474
    %v11689 = vsel %vm1647, %v11285, %v11477
    %v11690 = vsel %vm1647, %v11288, %v11480
    %v11691 = vsel %vm1647, %v11291, %v11483
    %v11692 = vsel %vm1664, %v11676, %v11502
    %v11693 = vsel %vm1664, %v11677, %v11505
    %v11694 = vsel %vm1664, %v11678, %v11508
    %v11695 = vsel %vm1664, %v11679, %v11511
    %v11696 = vsel %vm1664, %v11680, %v11514
    %v11697 = vsel %vm1664, %v11681, %v11517
    %v11698 = vsel %vm1664, %v11682, %v11520
    %v11699 = vsel %vm1664, %v11683, %v11523
    %v11700 = vsel %vm1664, %v11684, %v11526
    %v11701 = vsel %vm1664, %v11685, %v11529
    %v11702 = vsel %vm1664, %v11686, %v11532
    %v11703 = vsel %vm1664, %v11687, %v11535
    %v11704 = vsel %vm1664, %v11688, %v11538
    %v11705 = vsel %vm1664, %v11689, %v11541
    %v11706 = vsel %vm1664, %v11690, %v11544
    %v11707 = vsel %vm1664, %v11691, %v11547
    %v11708 = vsel %vm1681, %v11692, %v11630
    %v11709 = vsel %vm1681, %v11693, %v11633
    %v11710 = vsel %vm1681, %v11694, %v11636
    %v11711 = vsel %vm1681, %v11695, %v11639
    %v11712 = vsel %vm1681, %v11696, %v11642
    %v11713 = vsel %vm1681, %v11697, %v11645
    %v11714 = vsel %vm1681, %v11698, %v11648
    %v11715 = vsel %vm1681, %v11699, %v11651
    %v11716 = vsel %vm1681, %v11700, %v11654
    %v11717 = vsel %vm1681, %v11701, %v11657
    %v11718 = vsel %vm1681, %v11702, %v11660
    %v11719 = vsel %vm1681, %v11703, %v11663
    %v11720 = vsel %vm1681, %v11704, %v11666
    %v11721 = vsel %vm1681, %v11705, %v11669
    %v11722 = vsel %vm1681, %v11706, %v11672
    %v11723 = vsel %vm1681, %v11707, %v11675
    %11724 = vxpose.xlu0.b32.start [1/16] %v11708, 128
    %11725 = vxpose.xlu0.b32.cont [2/16] %v11709, 128
    %11726 = vxpose.xlu0.b32.cont [3/16] %v11710, 128
    %11727 = vxpose.xlu0.b32.cont [4/16] %v11711, 128
    %11728 = vxpose.xlu0.b32.cont [5/16] %v11712, 128
    %11729 = vxpose.xlu0.b32.cont [6/16] %v11713, 128
    %11730 = vxpose.xlu0.b32.cont [7/16] %v11714, 128
    %11731 = vxpose.xlu0.b32.cont [8/16] %v11715, 128
    %11732 = vxpose.xlu0.b32.cont [9/16] %v11716, 128
    %11733 = vxpose.xlu0.b32.cont [10/16] %v11717, 128
    %11734 = vxpose.xlu0.b32.cont [11/16] %v11718, 128
    %11735 = vxpose.xlu0.b32.cont [12/16] %v11719, 128
    %11736 = vxpose.xlu0.b32.cont [13/16] %v11720, 128
    %11737 = vxpose.xlu0.b32.cont [14/16] %v11721, 128
    %11738 = vxpose.xlu0.b32.cont [15/16] %v11722, 128
    %11739 = vxpose.xlu0.b32.end [16/16] %v11723, 128
    %v11740 = vpop.trf.xlu0
    %v11741 = vpop.trf.xlu0
    %v11742 = vpop.trf.xlu0
    %v11743 = vpop.trf.xlu0
    %v11744 = vpop.trf.xlu0
    %v11745 = vpop.trf.xlu0
    %v11746 = vpop.trf.xlu0
    %v11747 = vpop.trf.xlu0
    %v11748 = vpop.trf.xlu0
    %v11749 = vpop.trf.xlu0
    %v11750 = vpop.trf.xlu0
    %v11751 = vpop.trf.xlu0
    %v11752 = vpop.trf.xlu0
    %v11753 = vpop.trf.xlu0
    %v11754 = vpop.trf.xlu0
    %v11755 = vpop.trf.xlu0
    %v11756 = vadd.s32 %v37, 768
    %vm11757 = vcmp.lt.s32.totalorder %v11756, 783
    %v11758 = vsel %vm11757, %v11740, 0.0
    %11759 = vst [vmem:[#allocation2 + $0x18] sm:$0xf] %v11758
    // Predicated region
    $region18: #{nade_forward.1} parent=1 // pred_check
      _
    $region19: #{nade_forward.1} parent=1 // pred_check_branch
      %11761 = sbr.rel (0) target = $region21
    $region20: #{nade_forward.1} parent=1 // pred_region
      %s11763 = ssub.s32 448, 448
      %11764 = vsyncadd [#allocation3], %s11763
      %s11766 = sshll.u32 [#allocation2], 4
      %s11767 = int_to_ptr.vmem [resolvable:$true] %s11766
      %11769 = dma.vmem_to_hbm [thread:$0]  %s11767, 448, %s4, [#allocation3]
    $region21: #{nade_forward.1} parent=1 // pred_fallthru
      _
    // Predicated region
    $region22: #{nade_forward.1} parent=1 // pred_check
      _
    $region23: #{nade_forward.1} parent=1 // pred_check_branch
      %11771 = sbr.rel (0) target = $region25
    $region24: #{nade_forward.1} parent=1 // pred_region
      %11772 = dma.done [#allocation3], 448
    $region25: #{nade_forward.1} parent=1 // pred_fallthru
      _
    %11773 = vsyncpa [#allocation3], 1

</llo_original>
